<compile_context>
chip_gen: v6e
topology: v6e:2x2x1
jax: 0.10.0
libtpu: 0.0.40
codegen_flags: <defaults>
</compile_context>

<pallas_src>
import functools

import jax
import jax.numpy as jnp
from jax import lax
from jax.experimental import pallas as pl
from jax.experimental.pallas import tpu as pltpu


def _round_up(x, m):
    return (x + m - 1) // m * m


# ----------------------------------------------------------------------------
# Tiled matmul (used for in_proj (with fc_in folded), out_proj, fc_out)
# ----------------------------------------------------------------------------
def _matmul_kernel(a_ref, w_ref, o_ref, acc_ref):
    @pl.when(pl.program_id(2) == 0)
    def _():
        acc_ref[...] = jnp.zeros_like(acc_ref)

    acc_ref[...] += jnp.dot(a_ref[...].astype(jnp.bfloat16),
                            w_ref[...].astype(jnp.bfloat16),
                            preferred_element_type=jnp.float32)

    @pl.when(pl.program_id(2) == pl.num_programs(2) - 1)
    def _():
        o_ref[...] = acc_ref[...].astype(o_ref.dtype)


def matmul(a, w, *, tm=256, tn=128, tk=512):
    M, K = a.shape
    K2, N = w.shape
    assert K == K2
    tm_ = tm if M > tm else M
    tn_ = tn if N > tn else N
    tk_ = tk if K > tk else K
    Mp, Np, Kp = _round_up(M, tm_), _round_up(N, tn_), _round_up(K, tk_)
    a_p = a if (Mp == M and Kp == K) else jnp.pad(a, ((0, Mp - M), (0, Kp - K)))
    w_p = w if (Kp == K and Np == N) else jnp.pad(w, ((0, Kp - K), (0, Np - N)))
    out = pl.pallas_call(
        _matmul_kernel,
        out_shape=jax.ShapeDtypeStruct((Mp, Np), jnp.float32),
        grid=(Mp // tm_, Np // tn_, Kp // tk_),
        in_specs=[pl.BlockSpec((tm_, tk_), lambda i, j, k: (i, k)),
                  pl.BlockSpec((tk_, tn_), lambda i, j, k: (k, j))],
        out_specs=pl.BlockSpec((tm_, tn_), lambda i, j, k: (i, j)),
        scratch_shapes=[pltpu.VMEM((tm_, tn_), jnp.float32)],
        compiler_params=pltpu.CompilerParams(
            dimension_semantics=("parallel", "parallel", "arbitrary")),
    )(a_p, w_p)
    return out if (Mp == M and Np == N) else out[:M, :N]


# ----------------------------------------------------------------------------
# Depthwise causal conv1d (+bias) + SiLU, tiled along L with a carried halo
# ----------------------------------------------------------------------------
def _conv_silu_kernel(x_ref, w_ref, b_ref, o_ref, carry_ref, *, d_conv):
    @pl.when(pl.program_id(1) == 0)
    def _():
        carry_ref[...] = jnp.zeros_like(carry_ref)   # causal left zero-padding

    x = x_ref[...]                                   # (tl, D) f32
    tl = x.shape[0]
    xp = jnp.concatenate([carry_ref[...], x], axis=0)  # (tl + d_conv - 1, D)
    acc = b_ref[...] + jnp.zeros_like(x)
    for k in range(d_conv):
        acc = acc + xp[k:k + tl, :] * w_ref[k:k + 1, :]
    carry_ref[...] = x[tl - (d_conv - 1):, :]        # halo for the next L tile
    # SiLU: exp on the EUP + approx reciprocal keeps the divide off the VALU.
    o_ref[...] = acc * pl.reciprocal(1.0 + jnp.exp(-acc), approx=True)


def causal_conv_silu(x, w, b):
    batch, L, D = x.shape
    d_conv = w.shape[0]
    tl = L
    for cand in (512, 256, 128, 64):
        if L % cand == 0:
            tl = cand
            break
    return pl.pallas_call(
        functools.partial(_conv_silu_kernel, d_conv=d_conv),
        out_shape=jax.ShapeDtypeStruct((batch, L, D), jnp.float32),
        grid=(batch, L // tl),
        in_specs=[pl.BlockSpec((None, tl, D), lambda bi, ci: (bi, ci, 0)),
                  pl.BlockSpec((d_conv, D), lambda bi, ci: (0, 0)),
                  pl.BlockSpec((1, D), lambda bi, ci: (0, 0))],
        out_specs=pl.BlockSpec((None, tl, D), lambda bi, ci: (bi, ci, 0)),
        scratch_shapes=[pltpu.VMEM((d_conv - 1, D), jnp.float32)],
        compiler_params=pltpu.CompilerParams(
            dimension_semantics=("parallel", "arbitrary")),
    )(x, w, b)


# ----------------------------------------------------------------------------
# Chunked SSD (Mamba-2 core), heads fused into the lane axis.
# Grid = (batch, chunks); the chunk axis is sequential and the
# (d_state, nheads*headdim) state is carried in VMEM scratch.
# x*dt, A*dt and the D-skip are fused into the kernel.
# ----------------------------------------------------------------------------
def _ssd_kernel(x_ref, dt_ref, b_in_ref, c_in_ref, A_ref, D_ref, y_ref, state_ref,
                *, nheads, headdim):
    @pl.when(pl.program_id(1) == 0)
    def _():
        state_ref[...] = jnp.zeros_like(state_ref)

    x = x_ref[...]                    # (cs, nheads*headdim)  (first lanes of xBC)
    dt = dt_ref[...]                  # (cs, nheads)
    Bc = b_in_ref[...]                # (cs, d_state)
    Cc = c_in_ref[...]                # (cs, d_state)
    cs = x.shape[0]

    row = lax.broadcasted_iota(jnp.int32, (cs, cs), 0)
    col = lax.broadcasted_iota(jnp.int32, (cs, cs), 1)
    tri_incl = (row >= col).astype(jnp.float32)
    tri_strict = (row > col).astype(jnp.float32)

    # C @ B^T is shared across heads (B/C are broadcast over heads in the ref).
    scores = lax.dot_general(Cc.astype(jnp.bfloat16), Bc.astype(jnp.bfloat16),
                             (((1,), (1,)), ((), ())),
                             preferred_element_type=jnp.float32)        # (cs, cs)

    y_heads = []
    new_states = []
    for h in range(nheads):
        p0 = h * headdim
        x_h = x[:, p0:p0 + headdim]                      # (cs, p)
        dt_h = dt[:, h:h + 1]                            # (cs, 1)
        a_h = A_ref[h] * dt_h                            # (cs, 1)  = A*dt
        xdt_h = x_h * dt_h                               # (cs, p)  = x*dt

        # segsum via triangular-mask matmuls (no in-kernel cumsum/transpose).
        seg = jnp.dot(tri_incl, a_h * tri_strict,
                      preferred_element_type=jnp.float32)                # (cs, cs)
        Lmat = tri_incl * jnp.exp(seg)
        acum = seg[:, 0:1] + a_h[0:1, :]                                 # (cs, 1)

        # intra-chunk (diagonal) contribution
        P = (scores * Lmat).astype(jnp.bfloat16)
        y_h = jnp.dot(P, xdt_h.astype(jnp.bfloat16),
                      preferred_element_type=jnp.float32)                # (cs, p)

        # inter-chunk contribution from the carried state (f32 path)
        state_h = state_ref[:, p0:p0 + headdim]                          # (n, p)
        y_h = y_h + jnp.dot(Cc, state_h,
                            preferred_element_type=jnp.float32) * jnp.exp(acum)
        # fused D skip connection (uses the un-scaled x)
        y_h = y_h + D_ref[h] * x_h
        y_heads.append(y_h)

        # state update for the next chunk
        total = acum[cs - 1:cs, :]                                       # (1, 1)
        decay = jnp.exp(total - acum)                                    # (cs, 1)
        chunk_state = lax.dot_general(
            Bc.astype(jnp.bfloat16), (decay * xdt_h).astype(jnp.bfloat16),
            (((0,), (0,)), ((), ())),
            preferred_element_type=jnp.float32)                          # (n, p)
        new_states.append(jnp.exp(total) * state_h + chunk_state)

    y_ref[...] = jnp.concatenate(y_heads, axis=-1).astype(y_ref.dtype)
    state_ref[...] = jnp.concatenate(new_states, axis=-1)


def ssd_pallas(xBC, dt, Bm, Cm, A, D, cfg, cs):
    # xBC: (b, L, conv_dim) -- the x part occupies the first d_inner lanes.
    # dt: (b, L, nheads); Bm/Cm: (b, L, d_state); A/D: (nheads,) scalars (SMEM).
    b, L, _ = xBC.shape
    d_inner = cfg['d_inner']
    d_state = cfg['d_state']
    nheads = cfg['nheads']
    headdim = cfg['headdim']
    nc = L // cs
    return pl.pallas_call(
        functools.partial(_ssd_kernel, nheads=nheads, headdim=headdim),
        out_shape=jax.ShapeDtypeStruct((b, L, d_inner), jnp.float32),
        grid=(b, nc),
        in_specs=[
            pl.BlockSpec((None, cs, d_inner), lambda bi, ci: (bi, ci, 0)),
            pl.BlockSpec((None, cs, nheads), lambda bi, ci: (bi, ci, 0)),
            pl.BlockSpec((None, cs, d_state), lambda bi, ci: (bi, ci, 0)),
            pl.BlockSpec((None, cs, d_state), lambda bi, ci: (bi, ci, 0)),
            pl.BlockSpec(memory_space=pltpu.MemorySpace.SMEM),   # A  (nheads,)
            pl.BlockSpec(memory_space=pltpu.MemorySpace.SMEM),   # D  (nheads,)
        ],
        out_specs=pl.BlockSpec((None, cs, d_inner), lambda bi, ci: (bi, ci, 0)),
        scratch_shapes=[pltpu.VMEM((d_state, nheads * headdim), jnp.float32)],
        compiler_params=pltpu.CompilerParams(
            dimension_semantics=("parallel", "arbitrary")),
    )(xBC, dt, Bm, Cm, A, D)


# ----------------------------------------------------------------------------
# Gated RMSNorm:  out = (x * silu(z)) * rsqrt(mean((x*silu(z))^2) + eps) * w
# ----------------------------------------------------------------------------
def _gated_rmsnorm_kernel(x_ref, z_ref, w_ref, o_ref, *, eps):
    x = x_ref[...]
    z = z_ref[...]
    x = x * (z * pl.reciprocal(1.0 + jnp.exp(-z), approx=True))   # x * silu(z)
    ms = jnp.mean(x * x, axis=-1, keepdims=True)
    o_ref[...] = (x * lax.rsqrt(ms + eps) * w_ref[...]).astype(o_ref.dtype)


def gated_rmsnorm(x, z, w, eps=1e-5, tm=256):
    M, D = x.shape
    tm_ = tm if M > tm else M
    Mp = _round_up(M, tm_)
    if Mp != M:
        x = jnp.pad(x, ((0, Mp - M), (0, 0)))
        z = jnp.pad(z, ((0, Mp - M), (0, 0)))
    out = pl.pallas_call(
        functools.partial(_gated_rmsnorm_kernel, eps=eps),
        out_shape=jax.ShapeDtypeStruct((Mp, D), jnp.float32),
        grid=(Mp // tm_,),
        in_specs=[pl.BlockSpec((tm_, D), lambda i: (i, 0)),
                  pl.BlockSpec((tm_, D), lambda i: (i, 0)),
                  pl.BlockSpec((1, D), lambda i: (0, 0))],
        out_specs=pl.BlockSpec((tm_, D), lambda i: (i, 0)),
        compiler_params=pltpu.CompilerParams(dimension_semantics=("parallel",)),
    )(x, z, w)
    return out if Mp == M else out[:M]


# ----------------------------------------------------------------------------
# Mamba2 block forward (full-sequence path; fc_in already folded into in_proj)
# ----------------------------------------------------------------------------
def mamba2_forward(u, p, in_proj_w_folded, cfg):
    b, L, cin = u.shape
    d_inner = cfg['d_inner']
    d_state = cfg['d_state']
    nheads = cfg['nheads']
    conv_dim = d_inner + 2 * d_state

    # Internal SSD chunk size: the chunked algorithm is exact for any chunking,
    # so use 128 (full MXU tiles) whenever L allows; padding semantics unchanged.
    cs = 128 if (L % 128 == 0 and cfg['chunk_size'] <= 128) else cfg['chunk_size']
    assert L % cs == 0

    zxbcdt = matmul(u.reshape(b * L, cin), in_proj_w_folded).reshape(b, L, -1)
    z = zxbcdt[..., :d_inner]
    xBC = zxbcdt[..., d_inner:d_inner + conv_dim]
    dt = zxbcdt[..., d_inner + conv_dim:d_inner + conv_dim + nheads]
    dt = jax.nn.softplus(dt + p['dt_bias'])                        # (b, L, h) tiny

    xBC = causal_conv_silu(xBC, p['conv_w'], p['conv_b'])          # (b, L, conv_dim)
    Bm = xBC[..., d_inner:d_inner + d_state]
    Cm = xBC[..., d_inner + d_state:]
    A = -jnp.exp(p['A_log'])                                       # (h,)

    # SSD with fused x*dt, A*dt and D-skip; output stays token-major.
    y = ssd_pallas(xBC, dt, Bm, Cm, A, p['D'], cfg, cs)            # (b, L, d_inner)

    y = gated_rmsnorm(y.reshape(b * L, d_inner),
                      z.reshape(b * L, d_inner), p['norm_w'])
    y = matmul(y, p['out_proj_w']).reshape(b, L, -1)
    # TODO(synk): InferenceCache (conv_state / ssm_state) is not materialized
    # because NdMamba2.forward discards it.
    return y


# ----------------------------------------------------------------------------
# NdMamba2 forward
# ----------------------------------------------------------------------------
def ndmamba2_forward(x, params, cfg):
    b, cin = x.shape[0], x.shape[1]
    size = x.shape[2:]
    x = x.reshape(b, cin, -1)
    l = x.shape[2]
    pad = (64 - l % 64) % 64                       # module semantics: pad to /64
    x = jnp.pad(x, ((0, 0), (0, 0), (0, pad)))
    Lp = x.shape[2]
    u = jnp.transpose(x, (0, 2, 1))                # (b, Lp, cin) -- cin lanes, tiny

    def folded_in_proj(w_in):
        # fc_in has no bias/nonlinearity before in_proj -> fold the two linears
        # and zero-pad the output width to a multiple of 128 (lane-dense tiles).
        w = jnp.dot(params['fc_in_w'], w_in)       # (cin, d_in_proj)
        return jnp.pad(w, ((0, 0), (0, (-w.shape[1]) % 128)))

    x1 = mamba2_forward(u, params['mamba_for'],
                        folded_in_proj(params['mamba_for']['in_proj_w']), cfg)
    x2 = mamba2_forward(jnp.flip(u, axis=1), params['mamba_back'],
                        folded_in_proj(params['mamba_back']['in_proj_w']), cfg)
    x2 = jnp.flip(x2, axis=1)
    xo = x1 + x2                                   # (b, Lp, d_model)

    d_model = params['fc_in_w'].shape[1]
    cout = params['fc_out_w'].shape[1]
    xo = matmul(xo.reshape(b * Lp, d_model), params['fc_out_w']).reshape(b, Lp, cout)
    xo = jnp.transpose(xo, (0, 2, 1))[:, :, :l]
    return xo.reshape((b, cout) + size)


# ----------------------------------------------------------------------------
# Deterministic parameter initialization
# ----------------------------------------------------------------------------
def init_params(key, cin, cout, mamba_dim, cfg):
    d_model = mamba_dim
    d_inner = cfg['d_inner']
    d_state = cfg['d_state']
    nheads = cfg['nheads']
    d_conv = cfg['d_conv']
    conv_dim = d_inner + 2 * d_state
    d_in_proj = 2 * d_inner + 2 * d_state + nheads

    def unif(k, shape, scale):
        return jax.random.uniform(k, shape, jnp.float32, -scale, scale)

    def mamba_params(k):
        ks = jax.random.split(k, 7)
        return {
            'in_proj_w': unif(ks[0], (d_model, d_in_proj), d_model ** -0.5),
            'conv_w': unif(ks[1], (d_conv, conv_dim), d_conv ** -0.5),
            'conv_b': unif(ks[2], (1, conv_dim), 0.1),
            'dt_bias': unif(ks[3], (nheads,), 0.5),
            'A_log': jax.random.uniform(ks[4], (nheads,), jnp.float32, -1.0, 0.5),
            'D': unif(ks[5], (nheads,), 1.0),
            'norm_w': jnp.ones((1, d_inner), jnp.float32),
            'out_proj_w': unif(ks[6], (d_inner, d_model), d_inner ** -0.5),
        }

    keys = jax.random.split(key, 4)
    return {
        'fc_in_w': unif(keys[0], (cin, mamba_dim), cin ** -0.5),
        'fc_out_w': unif(keys[1], (mamba_dim, cout), mamba_dim ** -0.5),
        'mamba_for': mamba_params(keys[2]),
        'mamba_back': mamba_params(keys[3]),
    }


if __name__ == "__main__":
    cin, cout, mamba_dim = 4, 4, 64
    cfg = dict(d_model=mamba_dim, d_state=32, d_conv=4, expand=2,
               headdim=64, chunk_size=64)
    cfg['d_inner'] = cfg['expand'] * cfg['d_model']          # 128
    cfg['nheads'] = cfg['d_inner'] // cfg['headdim']         # 2

    key = jax.random.PRNGKey(0)
    kx, kp = jax.random.split(key)
    x = jax.random.normal(kx, (2, cin, 16, 16), jnp.float32)   # NCHW input
    params = init_params(kp, cin, cout, mamba_dim, cfg)

    fwd = jax.jit(functools.partial(ndmamba2_forward, cfg=cfg))
    y = fwd(x, params)
    jax.block_until_ready(y)

    assert y.shape == (2, cout, 16, 16), y.shape
    assert bool(jnp.all(jnp.isfinite(y)))
    print("KERNEL_OK")
</pallas_src>

<mosaic_0001>
module attributes {stable_mosaic.version = 11 : i64} {
  func.func @_matmul_kernel(%arg0: i32, %arg1: i32, %arg2: i32, %arg3: memref<256x4xf32, #tpu.memory_space<vmem>>, %arg4: memref<4x128xf32, #tpu.memory_space<vmem>>, %arg5: memref<256x128xf32, #tpu.memory_space<vmem>>, %arg6: memref<256x128xf32, #tpu.memory_space<vmem>>) attributes {dimension_semantics = [#tpu.dimension_semantics<parallel>, #tpu.dimension_semantics<parallel>, #tpu.dimension_semantics<arbitrary>], iteration_bounds = array<i64: 2, 3, 1>, scalar_prefetch = 0 : i64, scratch_operands = 1 : i64, tpu.core_type = #tpu.core_type<tc>, window_params = [{transform_indices = @transform_0, window_bounds = array<i64: 256, 4>}, {transform_indices = @transform_1, window_bounds = array<i64: 4, 128>}, {transform_indices = @transform_2, window_bounds = array<i64: 256, 128>}]} {
    %c0_i32 = arith.constant 0 : i32
    %0 = arith.cmpi eq, %arg2, %c0_i32 : i32
    %1 = arith.extui %0 : i1 to i32
    %c0_i32_0 = arith.constant 0 : i32
    %2 = arith.cmpi ne, %1, %c0_i32_0 : i32
    scf.if %2 {
      %cst_10 = arith.constant 0.000000e+00 : f32
      %14 = vector.broadcast %cst_10 : f32 to vector<256x128xf32>
      %c0_11 = arith.constant 0 : index
      %c0_12 = arith.constant 0 : index
      %15 = vector.load %arg6[%c0_11, %c0_12] : memref<256x128xf32, #tpu.memory_space<vmem>>, vector<256x128xf32>
      tpu.vector_store %arg6[%c0_11, %c0_12], %14 {strides = array<i32>} : memref<256x128xf32, #tpu.memory_space<vmem>>, vector<256x128xf32>,
    } else {
    }
    %c0 = arith.constant 0 : index
    %c0_1 = arith.constant 0 : index
    %3 = vector.load %arg6[%c0, %c0_1] : memref<256x128xf32, #tpu.memory_space<vmem>>, vector<256x128xf32>
    %c0_2 = arith.constant 0 : index
    %c0_3 = arith.constant 0 : index
    %4 = vector.load %arg3[%c0_2, %c0_3] : memref<256x4xf32, #tpu.memory_space<vmem>>, vector<256x4xf32>
    %5 = arith.truncf %4 : vector<256x4xf32> to vector<256x4xbf16>
    %c0_4 = arith.constant 0 : index
    %c0_5 = arith.constant 0 : index
    %6 = vector.load %arg4[%c0_4, %c0_5] : memref<4x128xf32, #tpu.memory_space<vmem>>, vector<4x128xf32>
    %7 = arith.truncf %6 : vector<4x128xf32> to vector<4x128xbf16>
    %cst = arith.constant dense<0.000000e+00> : vector<256x128xf32>
    %8 = tpu.matmul %5, %7, %cst {dimension_numbers = #tpu.dot_dimension_numbers<[1], [0], [0], [1], [0, 0, 1, 1], [], []>} : vector<256x4xbf16>, vector<4x128xbf16>, vector<256x128xf32> -> vector<256x128xf32>
    %9 = arith.addf %3, %8 : vector<256x128xf32>
    %c0_6 = arith.constant 0 : index
    %c0_7 = arith.constant 0 : index
    %10 = vector.load %arg6[%c0_6, %c0_7] : memref<256x128xf32, #tpu.memory_space<vmem>>, vector<256x128xf32>
    tpu.vector_store %arg6[%c0_6, %c0_7], %9 {strides = array<i32>} : memref<256x128xf32, #tpu.memory_space<vmem>>, vector<256x128xf32>,
    %c0_i32_8 = arith.constant 0 : i32
    %11 = arith.cmpi eq, %arg2, %c0_i32_8 : i32
    %12 = arith.extui %11 : i1 to i32
    %c0_i32_9 = arith.constant 0 : i32
    %13 = arith.cmpi ne, %12, %c0_i32_9 : i32
    scf.if %13 {
      %c0_10 = arith.constant 0 : index
      %c0_11 = arith.constant 0 : index
      %14 = vector.load %arg6[%c0_10, %c0_11] : memref<256x128xf32, #tpu.memory_space<vmem>>, vector<256x128xf32>
      %c0_12 = arith.constant 0 : index
      %c0_13 = arith.constant 0 : index
      %15 = vector.load %arg5[%c0_12, %c0_13] : memref<256x128xf32, #tpu.memory_space<vmem>>, vector<256x128xf32>
      tpu.vector_store %arg5[%c0_12, %c0_13], %14 {strides = array<i32>} : memref<256x128xf32, #tpu.memory_space<vmem>>, vector<256x128xf32>,
    } else {
    }
    return
  }
  func.func @transform_0(%arg0: i32, %arg1: i32, %arg2: i32) -> (i32, i32) {
    %c0_i32 = arith.constant 0 : i32
    return %arg0, %arg2 : i32, i32
  }
  func.func @transform_1(%arg0: i32, %arg1: i32, %arg2: i32) -> (i32, i32) {
    %c0_i32 = arith.constant 0 : i32
    return %arg2, %arg1 : i32, i32
  }
  func.func @transform_2(%arg0: i32, %arg1: i32, %arg2: i32) -> (i32, i32) {
    %c0_i32 = arith.constant 0 : i32
    return %arg0, %arg1 : i32, i32
  }
}

module attributes {stable_mosaic.version = 11 : i64} {
  func.func @_conv_silu_kernel(%arg0: i32, %arg1: i32, %arg2: memref<1x256x192xf32, #tpu.memory_space<vmem>>, %arg3: memref<4x192xf32, #tpu.memory_space<vmem>>, %arg4: memref<1x192xf32, #tpu.memory_space<vmem>>, %arg5: memref<1x256x192xf32, #tpu.memory_space<vmem>>, %arg6: memref<3x192xf32, #tpu.memory_space<vmem>>) attributes {dimension_semantics = [#tpu.dimension_semantics<parallel>, #tpu.dimension_semantics<arbitrary>], iteration_bounds = array<i64: 2, 1>, scalar_prefetch = 0 : i64, scratch_operands = 1 : i64, tpu.core_type = #tpu.core_type<tc>, window_params = [{transform_indices = @transform_0, window_bounds = array<i64: 1, 256, 192>}, {pipeline_mode = #tpu.pipeline_mode<synchronous>, transform_indices = @transform_1, window_bounds = array<i64: 4, 192>}, {pipeline_mode = #tpu.pipeline_mode<synchronous>, transform_indices = @transform_2, window_bounds = array<i64: 1, 192>}, {transform_indices = @transform_3, window_bounds = array<i64: 1, 256, 192>}]} {
    %c0_i32 = arith.constant 0 : i32
    %0 = arith.cmpi eq, %arg1, %c0_i32 : i32
    %1 = arith.extui %0 : i1 to i32
    %c0_i32_0 = arith.constant 0 : i32
    %2 = arith.cmpi ne, %1, %c0_i32_0 : i32
    scf.if %2 {
      %cst_19 = arith.constant 0.000000e+00 : f32
      %43 = vector.broadcast %cst_19 : f32 to vector<3x192xf32>
      %c0_20 = arith.constant 0 : index
      %c0_21 = arith.constant 0 : index
      %44 = vector.load %arg6[%c0_20, %c0_21] : memref<3x192xf32, #tpu.memory_space<vmem>>, vector<3x192xf32>
      tpu.vector_store %arg6[%c0_20, %c0_21], %43 {strides = array<i32>} : memref<3x192xf32, #tpu.memory_space<vmem>>, vector<3x192xf32>,
    } else {
    }
    %c0 = arith.constant 0 : index
    %c0_1 = arith.constant 0 : index
    %c0_2 = arith.constant 0 : index
    %3 = vector.load %arg2[%c0, %c0_1, %c0_2] : memref<1x256x192xf32, #tpu.memory_space<vmem>>, vector<1x256x192xf32>
    %4 = vector.shape_cast %3 : vector<1x256x192xf32> to vector<256x192xf32>
    %c0_3 = arith.constant 0 : index
    %c0_4 = arith.constant 0 : index
    %5 = vector.load %arg6[%c0_3, %c0_4] : memref<3x192xf32, #tpu.memory_space<vmem>>, vector<3x192xf32>
    %6 = tpu.concatenate %5, %4 in 0 : vector<3x192xf32>, vector<256x192xf32> -> vector<259x192xf32>
    %c0_5 = arith.constant 0 : index
    %c0_6 = arith.constant 0 : index
    %7 = vector.load %arg4[%c0_5, %c0_6] : memref<1x192xf32, #tpu.memory_space<vmem>>, vector<1x192xf32>
    %cst = arith.constant 0.000000e+00 : f32
    %8 = vector.broadcast %cst : f32 to vector<256x192xf32>
    %9 = vector.broadcast %7 : vector<1x192xf32> to vector<256x192xf32>
    %10 = arith.addf %9, %8 : vector<256x192xf32>
    %11 = vector.extract_strided_slice %6 {offsets = [0, 0], sizes = [256, 192], strides = [1, 1]} : vector<259x192xf32> to vector<256x192xf32>
    %c0_7 = arith.constant 0 : index
    %c0_8 = arith.constant 0 : index
    %12 = vector.load %arg3[%c0_7, %c0_8] : memref<4x192xf32, #tpu.memory_space<vmem>>, vector<1x192xf32>
    %13 = vector.broadcast %12 : vector<1x192xf32> to vector<256x192xf32>
    %14 = arith.mulf %11, %13 : vector<256x192xf32>
    %15 = arith.addf %10, %14 : vector<256x192xf32>
    %16 = vector.extract_strided_slice %6 {offsets = [1, 0], sizes = [256, 192], strides = [1, 1]} : vector<259x192xf32> to vector<256x192xf32>
    %c1 = arith.constant 1 : index
    %c0_9 = arith.constant 0 : index
    %17 = vector.load %arg3[%c1, %c0_9] : memref<4x192xf32, #tpu.memory_space<vmem>>, vector<1x192xf32>
    %18 = vector.broadcast %17 : vector<1x192xf32> to vector<256x192xf32>
    %19 = arith.mulf %16, %18 : vector<256x192xf32>
    %20 = arith.addf %15, %19 : vector<256x192xf32>
    %21 = vector.extract_strided_slice %6 {offsets = [2, 0], sizes = [256, 192], strides = [1, 1]} : vector<259x192xf32> to vector<256x192xf32>
    %c2 = arith.constant 2 : index
    %c0_10 = arith.constant 0 : index
    %22 = vector.load %arg3[%c2, %c0_10] : memref<4x192xf32, #tpu.memory_space<vmem>>, vector<1x192xf32>
    %23 = vector.broadcast %22 : vector<1x192xf32> to vector<256x192xf32>
    %24 = arith.mulf %21, %23 : vector<256x192xf32>
    %25 = arith.addf %20, %24 : vector<256x192xf32>
    %26 = vector.extract_strided_slice %6 {offsets = [3, 0], sizes = [256, 192], strides = [1, 1]} : vector<259x192xf32> to vector<256x192xf32>
    %c3 = arith.constant 3 : index
    %c0_11 = arith.constant 0 : index
    %27 = vector.load %arg3[%c3, %c0_11] : memref<4x192xf32, #tpu.memory_space<vmem>>, vector<1x192xf32>
    %28 = vector.broadcast %27 : vector<1x192xf32> to vector<256x192xf32>
    %29 = arith.mulf %26, %28 : vector<256x192xf32>
    %30 = arith.addf %25, %29 : vector<256x192xf32>
    %31 = vector.extract_strided_slice %4 {offsets = [253, 0], sizes = [3, 192], strides = [1, 1]} : vector<256x192xf32> to vector<3x192xf32>
    %c0_12 = arith.constant 0 : index
    %c0_13 = arith.constant 0 : index
    %32 = vector.load %arg6[%c0_12, %c0_13] : memref<3x192xf32, #tpu.memory_space<vmem>>, vector<3x192xf32>
    tpu.vector_store %arg6[%c0_12, %c0_13], %31 {strides = array<i32>} : memref<3x192xf32, #tpu.memory_space<vmem>>, vector<3x192xf32>,
    %cst_14 = arith.constant 0.000000e+00 : f32
    %33 = vector.broadcast %cst_14 : f32 to vector<256x192xf32>
    %34 = arith.subf %33, %30 : vector<256x192xf32>
    %35 = math.exp %34 : vector<256x192xf32>
    %cst_15 = arith.constant 1.000000e+00 : f32
    %36 = vector.broadcast %cst_15 : f32 to vector<256x192xf32>
    %37 = arith.addf %36, %35 : vector<256x192xf32>
    %38 = tpu.reciprocal %37 {approx = true} : vector<256x192xf32> -> vector<256x192xf32>
    %39 = arith.mulf %30, %38 : vector<256x192xf32>
    %c0_16 = arith.constant 0 : index
    %c0_17 = arith.constant 0 : index
    %c0_18 = arith.constant 0 : index
    %40 = vector.load %arg5[%c0_16, %c0_17, %c0_18] : memref<1x256x192xf32, #tpu.memory_space<vmem>>, vector<1x256x192xf32>
    %41 = vector.shape_cast %40 : vector<1x256x192xf32> to vector<256x192xf32>
    %42 = vector.shape_cast %39 : vector<256x192xf32> to vector<1x256x192xf32>
    tpu.vector_store %arg5[%c0_16, %c0_17, %c0_18], %42 {strides = array<i32>} : memref<1x256x192xf32, #tpu.memory_space<vmem>>, vector<1x256x192xf32>,
    return
  }
  func.func @transform_0(%arg0: i32, %arg1: i32) -> (i32, i32, i32) {
    %c0_i32 = arith.constant 0 : i32
    %c0_i32_0 = arith.constant 0 : i32
    return %arg0, %arg1, %c0_i32 : i32, i32, i32
  }
  func.func @transform_1(%arg0: i32, %arg1: i32) -> (i32, i32) {
    %c0_i32 = arith.constant 0 : i32
    %c0_i32_0 = arith.constant 0 : i32
    %c0_i32_1 = arith.constant 0 : i32
    return %c0_i32, %c0_i32_0 : i32, i32
  }
  func.func @transform_2(%arg0: i32, %arg1: i32) -> (i32, i32) {
    %c0_i32 = arith.constant 0 : i32
    %c0_i32_0 = arith.constant 0 : i32
    %c0_i32_1 = arith.constant 0 : i32
    return %c0_i32, %c0_i32_0 : i32, i32
  }
  func.func @transform_3(%arg0: i32, %arg1: i32) -> (i32, i32, i32) {
    %c0_i32 = arith.constant 0 : i32
    %c0_i32_0 = arith.constant 0 : i32
    return %arg0, %arg1, %c0_i32 : i32, i32, i32
  }
}

module attributes {stable_mosaic.version = 11 : i64} {
  func.func @_matmul_kernel(%arg0: i32, %arg1: i32, %arg2: i32, %arg3: memref<256x128xf32, #tpu.memory_space<vmem>>, %arg4: memref<128x64xf32, #tpu.memory_space<vmem>>, %arg5: memref<256x64xf32, #tpu.memory_space<vmem>>, %arg6: memref<256x64xf32, #tpu.memory_space<vmem>>) attributes {dimension_semantics = [#tpu.dimension_semantics<parallel>, #tpu.dimension_semantics<parallel>, #tpu.dimension_semantics<arbitrary>], iteration_bounds = array<i64: 2, 1, 1>, scalar_prefetch = 0 : i64, scratch_operands = 1 : i64, tpu.core_type = #tpu.core_type<tc>, window_params = [{transform_indices = @transform_0, window_bounds = array<i64: 256, 128>}, {transform_indices = @transform_1, window_bounds = array<i64: 128, 64>}, {transform_indices = @transform_2, window_bounds = array<i64: 256, 64>}]} {
    %c0_i32 = arith.constant 0 : i32
    %0 = arith.cmpi eq, %arg2, %c0_i32 : i32
    %1 = arith.extui %0 : i1 to i32
    %c0_i32_0 = arith.constant 0 : i32
    %2 = arith.cmpi ne, %1, %c0_i32_0 : i32
    scf.if %2 {
      %cst_10 = arith.constant 0.000000e+00 : f32
      %14 = vector.broadcast %cst_10 : f32 to vector<256x64xf32>
      %c0_11 = arith.constant 0 : index
      %c0_12 = arith.constant 0 : index
      %15 = vector.load %arg6[%c0_11, %c0_12] : memref<256x64xf32, #tpu.memory_space<vmem>>, vector<256x64xf32>
      tpu.vector_store %arg6[%c0_11, %c0_12], %14 {strides = array<i32>} : memref<256x64xf32, #tpu.memory_space<vmem>>, vector<256x64xf32>,
    } else {
    }
    %c0 = arith.constant 0 : index
    %c0_1 = arith.constant 0 : index
    %3 = vector.load %arg6[%c0, %c0_1] : memref<256x64xf32, #tpu.memory_space<vmem>>, vector<256x64xf32>
    %c0_2 = arith.constant 0 : index
    %c0_3 = arith.constant 0 : index
    %4 = vector.load %arg3[%c0_2, %c0_3] : memref<256x128xf32, #tpu.memory_space<vmem>>, vector<256x128xf32>
    %5 = arith.truncf %4 : vector<256x128xf32> to vector<256x128xbf16>
    %c0_4 = arith.constant 0 : index
    %c0_5 = arith.constant 0 : index
    %6 = vector.load %arg4[%c0_4, %c0_5] : memref<128x64xf32, #tpu.memory_space<vmem>>, vector<128x64xf32>
    %7 = arith.truncf %6 : vector<128x64xf32> to vector<128x64xbf16>
    %cst = arith.constant dense<0.000000e+00> : vector<256x64xf32>
    %8 = tpu.matmul %5, %7, %cst {dimension_numbers = #tpu.dot_dimension_numbers<[1], [0], [0], [1], [0, 0, 1, 1], [], []>} : vector<256x128xbf16>, vector<128x64xbf16>, vector<256x64xf32> -> vector<256x64xf32>
    %9 = arith.addf %3, %8 : vector<256x64xf32>
    %c0_6 = arith.constant 0 : index
    %c0_7 = arith.constant 0 : index
    %10 = vector.load %arg6[%c0_6, %c0_7] : memref<256x64xf32, #tpu.memory_space<vmem>>, vector<256x64xf32>
    tpu.vector_store %arg6[%c0_6, %c0_7], %9 {strides = array<i32>} : memref<256x64xf32, #tpu.memory_space<vmem>>, vector<256x64xf32>,
    %c0_i32_8 = arith.constant 0 : i32
    %11 = arith.cmpi eq, %arg2, %c0_i32_8 : i32
    %12 = arith.extui %11 : i1 to i32
    %c0_i32_9 = arith.constant 0 : i32
    %13 = arith.cmpi ne, %12, %c0_i32_9 : i32
    scf.if %13 {
      %c0_10 = arith.constant 0 : index
      %c0_11 = arith.constant 0 : index
      %14 = vector.load %arg6[%c0_10, %c0_11] : memref<256x64xf32, #tpu.memory_space<vmem>>, vector<256x64xf32>
      %c0_12 = arith.constant 0 : index
      %c0_13 = arith.constant 0 : index
      %15 = vector.load %arg5[%c0_12, %c0_13] : memref<256x64xf32, #tpu.memory_space<vmem>>, vector<256x64xf32>
      tpu.vector_store %arg5[%c0_12, %c0_13], %14 {strides = array<i32>} : memref<256x64xf32, #tpu.memory_space<vmem>>, vector<256x64xf32>,
    } else {
    }
    return
  }
  func.func @transform_0(%arg0: i32, %arg1: i32, %arg2: i32) -> (i32, i32) {
    %c0_i32 = arith.constant 0 : i32
    return %arg0, %arg2 : i32, i32
  }
  func.func @transform_1(%arg0: i32, %arg1: i32, %arg2: i32) -> (i32, i32) {
    %c0_i32 = arith.constant 0 : i32
    return %arg2, %arg1 : i32, i32
  }
  func.func @transform_2(%arg0: i32, %arg1: i32, %arg2: i32) -> (i32, i32) {
    %c0_i32 = arith.constant 0 : i32
    return %arg0, %arg1 : i32, i32
  }
}

module attributes {stable_mosaic.version = 11 : i64} {
  func.func @_gated_rmsnorm_kernel(%arg0: i32, %arg1: memref<256x128xf32, #tpu.memory_space<vmem>>, %arg2: memref<256x128xf32, #tpu.memory_space<vmem>>, %arg3: memref<1x128xf32, #tpu.memory_space<vmem>>, %arg4: memref<256x128xf32, #tpu.memory_space<vmem>>) attributes {dimension_semantics = [#tpu.dimension_semantics<parallel>], iteration_bounds = array<i64: 2>, scalar_prefetch = 0 : i64, scratch_operands = 0 : i64, tpu.core_type = #tpu.core_type<tc>, window_params = [{transform_indices = @transform_0, window_bounds = array<i64: 256, 128>}, {transform_indices = @transform_1, window_bounds = array<i64: 256, 128>}, {pipeline_mode = #tpu.pipeline_mode<synchronous>, transform_indices = @transform_2, window_bounds = array<i64: 1, 128>}, {transform_indices = @transform_3, window_bounds = array<i64: 256, 128>}]} {
    %c0 = arith.constant 0 : index
    %c0_0 = arith.constant 0 : index
    %0 = vector.load %arg1[%c0, %c0_0] : memref<256x128xf32, #tpu.memory_space<vmem>>, vector<256x128xf32>
    %c0_1 = arith.constant 0 : index
    %c0_2 = arith.constant 0 : index
    %1 = vector.load %arg2[%c0_1, %c0_2] : memref<256x128xf32, #tpu.memory_space<vmem>>, vector<256x128xf32>
    %cst = arith.constant 0.000000e+00 : f32
    %2 = vector.broadcast %cst : f32 to vector<256x128xf32>
    %3 = arith.subf %2, %1 : vector<256x128xf32>
    %4 = math.exp %3 : vector<256x128xf32>
    %cst_3 = arith.constant 1.000000e+00 : f32
    %5 = vector.broadcast %cst_3 : f32 to vector<256x128xf32>
    %6 = arith.addf %5, %4 : vector<256x128xf32>
    %7 = tpu.reciprocal %6 {approx = true} : vector<256x128xf32> -> vector<256x128xf32>
    %8 = arith.mulf %1, %7 : vector<256x128xf32>
    %9 = arith.mulf %0, %8 : vector<256x128xf32>
    %10 = arith.mulf %9, %9 : vector<256x128xf32>
    %cst_4 = arith.constant dense<0.000000e+00> : vector<256xf32>
    %11 = vector.multi_reduction <add>, %10, %cst_4 [1] : vector<256x128xf32> to vector<256xf32>
    %12 = vector.shape_cast %11 : vector<256xf32> to vector<256x1xf32>
    %cst_5 = arith.constant 1.280000e+02 : f32
    %13 = vector.broadcast %cst_5 : f32 to vector<256x1xf32>
    %14 = arith.divf %12, %13 : vector<256x1xf32>
    %cst_6 = arith.constant 9.99999974E-6 : f32
    %15 = vector.broadcast %cst_6 : f32 to vector<256x1xf32>
    %16 = arith.addf %14, %15 : vector<256x1xf32>
    %17 = math.rsqrt %16 : vector<256x1xf32>
    %18 = vector.broadcast %17 : vector<256x1xf32> to vector<256x128xf32>
    %19 = arith.mulf %9, %18 : vector<256x128xf32>
    %c0_7 = arith.constant 0 : index
    %c0_8 = arith.constant 0 : index
    %20 = vector.load %arg3[%c0_7, %c0_8] : memref<1x128xf32, #tpu.memory_space<vmem>>, vector<1x128xf32>
    %21 = vector.broadcast %20 : vector<1x128xf32> to vector<256x128xf32>
    %22 = arith.mulf %19, %21 : vector<256x128xf32>
    %c0_9 = arith.constant 0 : index
    %c0_10 = arith.constant 0 : index
    %23 = vector.load %arg4[%c0_9, %c0_10] : memref<256x128xf32, #tpu.memory_space<vmem>>, vector<256x128xf32>
    tpu.vector_store %arg4[%c0_9, %c0_10], %22 {strides = array<i32>} : memref<256x128xf32, #tpu.memory_space<vmem>>, vector<256x128xf32>,
    return
  }
  func.func @transform_0(%arg0: i32) -> (i32, i32) {
    %c0_i32 = arith.constant 0 : i32
    %c0_i32_0 = arith.constant 0 : i32
    return %arg0, %c0_i32 : i32, i32
  }
  func.func @transform_1(%arg0: i32) -> (i32, i32) {
    %c0_i32 = arith.constant 0 : i32
    %c0_i32_0 = arith.constant 0 : i32
    return %arg0, %c0_i32 : i32, i32
  }
  func.func @transform_2(%arg0: i32) -> (i32, i32) {
    %c0_i32 = arith.constant 0 : i32
    %c0_i32_0 = arith.constant 0 : i32
    %c0_i32_1 = arith.constant 0 : i32
    return %c0_i32, %c0_i32_0 : i32, i32
  }
  func.func @transform_3(%arg0: i32) -> (i32, i32) {
    %c0_i32 = arith.constant 0 : i32
    %c0_i32_0 = arith.constant 0 : i32
    return %arg0, %c0_i32 : i32, i32
  }
}

module attributes {stable_mosaic.version = 11 : i64} {
  func.func @_ssd_kernel(%arg0: i32, %arg1: i32, %arg2: memref<1x128x128xf32, #tpu.memory_space<vmem>>, %arg3: memref<1x128x2xf32, #tpu.memory_space<vmem>>, %arg4: memref<1x128x32xf32, #tpu.memory_space<vmem>>, %arg5: memref<1x128x32xf32, #tpu.memory_space<vmem>>, %arg6: memref<2xf32, #tpu.memory_space<smem>>, %arg7: memref<2xf32, #tpu.memory_space<smem>>, %arg8: memref<1x128x128xf32, #tpu.memory_space<vmem>>, %arg9: memref<32x128xf32, #tpu.memory_space<vmem>>) attributes {dimension_semantics = [#tpu.dimension_semantics<parallel>, #tpu.dimension_semantics<arbitrary>], iteration_bounds = array<i64: 2, 2>, scalar_prefetch = 0 : i64, scratch_operands = 1 : i64, tpu.core_type = #tpu.core_type<tc>, window_params = [{transform_indices = @transform_0, window_bounds = array<i64: 1, 128, 128>}, {transform_indices = @transform_1, window_bounds = array<i64: 1, 128, 2>}, {transform_indices = @transform_2, window_bounds = array<i64: 1, 128, 32>}, {transform_indices = @transform_3, window_bounds = array<i64: 1, 128, 32>}, {transform_indices = @transform_4, window_bounds = array<i64: 2>}, {transform_indices = @transform_5, window_bounds = array<i64: 2>}, {transform_indices = @transform_6, window_bounds = array<i64: 1, 128, 128>}]} {
    %c0_i32 = arith.constant 0 : i32
    %0 = arith.cmpi eq, %arg1, %c0_i32 : i32
    %1 = arith.extui %0 : i1 to i32
    %c0_i32_0 = arith.constant 0 : i32
    %2 = arith.cmpi ne, %1, %c0_i32_0 : i32
    scf.if %2 {
      %cst_31 = arith.constant 0.000000e+00 : f32
      %114 = vector.broadcast %cst_31 : f32 to vector<32x128xf32>
      %c0_32 = arith.constant 0 : index
      %c0_33 = arith.constant 0 : index
      %115 = vector.load %arg9[%c0_32, %c0_33] : memref<32x128xf32, #tpu.memory_space<vmem>>, vector<32x128xf32>
      tpu.vector_store %arg9[%c0_32, %c0_33], %114 {strides = array<i32>} : memref<32x128xf32, #tpu.memory_space<vmem>>, vector<32x128xf32>,
    } else {
    }
    %c0 = arith.constant 0 : index
    %c0_1 = arith.constant 0 : index
    %c0_2 = arith.constant 0 : index
    %3 = vector.load %arg2[%c0, %c0_1, %c0_2] : memref<1x128x128xf32, #tpu.memory_space<vmem>>, vector<1x128x128xf32>
    %4 = vector.shape_cast %3 : vector<1x128x128xf32> to vector<128x128xf32>
    %c0_3 = arith.constant 0 : index
    %c0_4 = arith.constant 0 : index
    %c0_5 = arith.constant 0 : index
    %5 = vector.load %arg3[%c0_3, %c0_4, %c0_5] : memref<1x128x2xf32, #tpu.memory_space<vmem>>, vector<1x128x2xf32>
    %6 = vector.shape_cast %5 : vector<1x128x2xf32> to vector<128x2xf32>
    %c0_6 = arith.constant 0 : index
    %c0_7 = arith.constant 0 : index
    %c0_8 = arith.constant 0 : index
    %7 = vector.load %arg4[%c0_6, %c0_7, %c0_8] : memref<1x128x32xf32, #tpu.memory_space<vmem>>, vector<1x128x32xf32>
    %8 = vector.shape_cast %7 : vector<1x128x32xf32> to vector<128x32xf32>
    %c0_9 = arith.constant 0 : index
    %c0_10 = arith.constant 0 : index
    %c0_11 = arith.constant 0 : index
    %9 = vector.load %arg5[%c0_9, %c0_10, %c0_11] : memref<1x128x32xf32, #tpu.memory_space<vmem>>, vector<1x128x32xf32>
    %10 = vector.shape_cast %9 : vector<1x128x32xf32> to vector<128x32xf32>
    %11 = tpu.iota {dimensions = array<i32: 0>} : vector<128x128xi32>
    %12 = tpu.iota {dimensions = array<i32: 1>} : vector<128x128xi32>
    %13 = arith.cmpi sge, %11, %12 : vector<128x128xi32>
    %14 = arith.extui %13 : vector<128x128xi1> to vector<128x128xi32>
    %15 = arith.sitofp %14 : vector<128x128xi32> to vector<128x128xf32>
    %16 = arith.cmpi sgt, %11, %12 : vector<128x128xi32>
    %17 = arith.extui %16 : vector<128x128xi1> to vector<128x128xi32>
    %18 = arith.sitofp %17 : vector<128x128xi32> to vector<128x128xf32>
    %19 = arith.truncf %10 : vector<128x32xf32> to vector<128x32xbf16>
    %20 = arith.truncf %8 : vector<128x32xf32> to vector<128x32xbf16>
    %cst = arith.constant dense<0.000000e+00> : vector<128x128xf32>
    %21 = tpu.matmul %19, %20, %cst {dimension_numbers = #tpu.dot_dimension_numbers<[1], [1], [0], [0], [0, 0, 1, 0], [], []>} : vector<128x32xbf16>, vector<128x32xbf16>, vector<128x128xf32> -> vector<128x128xf32>
    %22 = vector.extract_strided_slice %4 {offsets = [0, 0], sizes = [128, 64], strides = [1, 1]} : vector<128x128xf32> to vector<128x64xf32>
    %23 = vector.extract_strided_slice %6 {offsets = [0, 0], sizes = [128, 1], strides = [1, 1]} : vector<128x2xf32> to vector<128x1xf32>
    %c0_12 = arith.constant 0 : index
    %24 = memref.load %arg6[%c0_12] : memref<2xf32, #tpu.memory_space<smem>>
    %25 = vector.broadcast %24 : f32 to vector<128x1xf32>
    %26 = arith.mulf %25, %23 : vector<128x1xf32>
    %27 = vector.broadcast %23 : vector<128x1xf32> to vector<128x64xf32>
    %28 = arith.mulf %22, %27 : vector<128x64xf32>
    %29 = vector.broadcast %26 : vector<128x1xf32> to vector<128x128xf32>
    %30 = arith.mulf %29, %18 : vector<128x128xf32>
    %cst_13 = arith.constant dense<0.000000e+00> : vector<128x128xf32>
    %31 = tpu.matmul %15, %30, %cst_13 {dimension_numbers = #tpu.dot_dimension_numbers<[1], [0], [0], [1], [0, 0, 1, 1], [], []>} : vector<128x128xf32>, vector<128x128xf32>, vector<128x128xf32> -> vector<128x128xf32>
    %32 = math.exp %31 : vector<128x128xf32>
    %33 = arith.mulf %15, %32 : vector<128x128xf32>
    %34 = vector.extract_strided_slice %31 {offsets = [0, 0], sizes = [128, 1], strides = [1, 1]} : vector<128x128xf32> to vector<128x1xf32>
    %35 = vector.extract_strided_slice %26 {offsets = [0, 0], sizes = [1, 1], strides = [1, 1]} : vector<128x1xf32> to vector<1x1xf32>
    %36 = vector.broadcast %35 : vector<1x1xf32> to vector<128x1xf32>
    %37 = arith.addf %34, %36 : vector<128x1xf32>
    %38 = arith.mulf %21, %33 : vector<128x128xf32>
    %39 = arith.truncf %38 : vector<128x128xf32> to vector<128x128xbf16>
    %40 = arith.truncf %28 : vector<128x64xf32> to vector<128x64xbf16>
    %cst_14 = arith.constant dense<0.000000e+00> : vector<128x64xf32>
    %41 = tpu.matmul %39, %40, %cst_14 {dimension_numbers = #tpu.dot_dimension_numbers<[1], [0], [0], [1], [0, 0, 1, 1], [], []>} : vector<128x128xbf16>, vector<128x64xbf16>, vector<128x64xf32> -> vector<128x64xf32>
    %c0_15 = arith.constant 0 : index
    %c0_16 = arith.constant 0 : index
    %42 = vector.load %arg9[%c0_15, %c0_16] : memref<32x128xf32, #tpu.memory_space<vmem>>, vector<32x64xf32>
    %cst_17 = arith.constant dense<0.000000e+00> : vector<128x64xf32>
    %43 = tpu.matmul %10, %42, %cst_17 {dimension_numbers = #tpu.dot_dimension_numbers<[1], [0], [0], [1], [0, 0, 1, 1], [], []>} : vector<128x32xf32>, vector<32x64xf32>, vector<128x64xf32> -> vector<128x64xf32>
    %44 = math.exp %37 : vector<128x1xf32>
    %45 = vector.broadcast %44 : vector<128x1xf32> to vector<128x64xf32>
    %46 = arith.mulf %43, %45 : vector<128x64xf32>
    %47 = arith.addf %41, %46 : vector<128x64xf32>
    %c0_18 = arith.constant 0 : index
    %48 = memref.load %arg7[%c0_18] : memref<2xf32, #tpu.memory_space<smem>>
    %49 = vector.broadcast %48 : f32 to vector<128x64xf32>
    %50 = arith.mulf %49, %22 : vector<128x64xf32>
    %51 = arith.addf %47, %50 : vector<128x64xf32>
    %52 = vector.extract_strided_slice %37 {offsets = [127, 0], sizes = [1, 1], strides = [1, 1]} : vector<128x1xf32> to vector<1x1xf32>
    %53 = vector.broadcast %52 : vector<1x1xf32> to vector<128x1xf32>
    %54 = arith.subf %53, %37 : vector<128x1xf32>
    %55 = math.exp %54 : vector<128x1xf32>
    %56 = arith.truncf %8 : vector<128x32xf32> to vector<128x32xbf16>
    %57 = vector.broadcast %55 : vector<128x1xf32> to vector<128x64xf32>
    %58 = arith.mulf %57, %28 : vector<128x64xf32>
    %59 = arith.truncf %58 : vector<128x64xf32> to vector<128x64xbf16>
    %cst_19 = arith.constant dense<0.000000e+00> : vector<32x64xf32>
    %60 = tpu.matmul %56, %59, %cst_19 {dimension_numbers = #tpu.dot_dimension_numbers<[0], [0], [1], [1], [0, 1, 1, 1], [], []>} : vector<128x32xbf16>, vector<128x64xbf16>, vector<32x64xf32> -> vector<32x64xf32>
    %61 = math.exp %52 : vector<1x1xf32>
    %62 = vector.broadcast %61 : vector<1x1xf32> to vector<32x64xf32>
    %63 = arith.mulf %62, %42 : vector<32x64xf32>
    %64 = arith.addf %63, %60 : vector<32x64xf32>
    %65 = vector.extract_strided_slice %4 {offsets = [0, 64], sizes = [128, 64], strides = [1, 1]} : vector<128x128xf32> to vector<128x64xf32>
    %66 = vector.extract_strided_slice %6 {offsets = [0, 1], sizes = [128, 1], strides = [1, 1]} : vector<128x2xf32> to vector<128x1xf32>
    %c1 = arith.constant 1 : index
    %67 = memref.load %arg6[%c1] : memref<2xf32, #tpu.memory_space<smem>>
    %68 = vector.broadcast %67 : f32 to vector<128x1xf32>
    %69 = arith.mulf %68, %66 : vector<128x1xf32>
    %70 = vector.broadcast %66 : vector<128x1xf32> to vector<128x64xf32>
    %71 = arith.mulf %65, %70 : vector<128x64xf32>
    %72 = vector.broadcast %69 : vector<128x1xf32> to vector<128x128xf32>
    %73 = arith.mulf %72, %18 : vector<128x128xf32>
    %cst_20 = arith.constant dense<0.000000e+00> : vector<128x128xf32>
    %74 = tpu.matmul %15, %73, %cst_20 {dimension_numbers = #tpu.dot_dimension_numbers<[1], [0], [0], [1], [0, 0, 1, 1], [], []>} : vector<128x128xf32>, vector<128x128xf32>, vector<128x128xf32> -> vector<128x128xf32>
    %75 = math.exp %74 : vector<128x128xf32>
    %76 = arith.mulf %15, %75 : vector<128x128xf32>
    %77 = vector.extract_strided_slice %74 {offsets = [0, 0], sizes = [128, 1], strides = [1, 1]} : vector<128x128xf32> to vector<128x1xf32>
    %78 = vector.extract_strided_slice %69 {offsets = [0, 0], sizes = [1, 1], strides = [1, 1]} : vector<128x1xf32> to vector<1x1xf32>
    %79 = vector.broadcast %78 : vector<1x1xf32> to vector<128x1xf32>
    %80 = arith.addf %77, %79 : vector<128x1xf32>
    %81 = arith.mulf %21, %76 : vector<128x128xf32>
    %82 = arith.truncf %81 : vector<128x128xf32> to vector<128x128xbf16>
    %83 = arith.truncf %71 : vector<128x64xf32> to vector<128x64xbf16>
    %cst_21 = arith.constant dense<0.000000e+00> : vector<128x64xf32>
    %84 = tpu.matmul %82, %83, %cst_21 {dimension_numbers = #tpu.dot_dimension_numbers<[1], [0], [0], [1], [0, 0, 1, 1], [], []>} : vector<128x128xbf16>, vector<128x64xbf16>, vector<128x64xf32> -> vector<128x64xf32>
    %c0_22 = arith.constant 0 : index
    %c64 = arith.constant 64 : index
    %85 = vector.load %arg9[%c0_22, %c64] : memref<32x128xf32, #tpu.memory_space<vmem>>, vector<32x64xf32>
    %cst_23 = arith.constant dense<0.000000e+00> : vector<128x64xf32>
    %86 = tpu.matmul %10, %85, %cst_23 {dimension_numbers = #tpu.dot_dimension_numbers<[1], [0], [0], [1], [0, 0, 1, 1], [], []>} : vector<128x32xf32>, vector<32x64xf32>, vector<128x64xf32> -> vector<128x64xf32>
    %87 = math.exp %80 : vector<128x1xf32>
    %88 = vector.broadcast %87 : vector<128x1xf32> to vector<128x64xf32>
    %89 = arith.mulf %86, %88 : vector<128x64xf32>
    %90 = arith.addf %84, %89 : vector<128x64xf32>
    %c1_24 = arith.constant 1 : index
    %91 = memref.load %arg7[%c1_24] : memref<2xf32, #tpu.memory_space<smem>>
    %92 = vector.broadcast %91 : f32 to vector<128x64xf32>
    %93 = arith.mulf %92, %65 : vector<128x64xf32>
    %94 = arith.addf %90, %93 : vector<128x64xf32>
    %95 = vector.extract_strided_slice %80 {offsets = [127, 0], sizes = [1, 1], strides = [1, 1]} : vector<128x1xf32> to vector<1x1xf32>
    %96 = vector.broadcast %95 : vector<1x1xf32> to vector<128x1xf32>
    %97 = arith.subf %96, %80 : vector<128x1xf32>
    %98 = math.exp %97 : vector<128x1xf32>
    %99 = arith.truncf %8 : vector<128x32xf32> to vector<128x32xbf16>
    %100 = vector.broadcast %98 : vector<128x1xf32> to vector<128x64xf32>
    %101 = arith.mulf %100, %71 : vector<128x64xf32>
    %102 = arith.truncf %101 : vector<128x64xf32> to vector<128x64xbf16>
    %cst_25 = arith.constant dense<0.000000e+00> : vector<32x64xf32>
    %103 = tpu.matmul %99, %102, %cst_25 {dimension_numbers = #tpu.dot_dimension_numbers<[0], [0], [1], [1], [0, 1, 1, 1], [], []>} : vector<128x32xbf16>, vector<128x64xbf16>, vector<32x64xf32> -> vector<32x64xf32>
    %104 = math.exp %95 : vector<1x1xf32>
    %105 = vector.broadcast %104 : vector<1x1xf32> to vector<32x64xf32>
    %106 = arith.mulf %105, %85 : vector<32x64xf32>
    %107 = arith.addf %106, %103 : vector<32x64xf32>
    %108 = tpu.concatenate %51, %94 in 1 : vector<128x64xf32>, vector<128x64xf32> -> vector<128x128xf32>
    %c0_26 = arith.constant 0 : index
    %c0_27 = arith.constant 0 : index
    %c0_28 = arith.constant 0 : index
    %109 = vector.load %arg8[%c0_26, %c0_27, %c0_28] : memref<1x128x128xf32, #tpu.memory_space<vmem>>, vector<1x128x128xf32>
    %110 = vector.shape_cast %109 : vector<1x128x128xf32> to vector<128x128xf32>
    %111 = vector.shape_cast %108 : vector<128x128xf32> to vector<1x128x128xf32>
    tpu.vector_store %arg8[%c0_26, %c0_27, %c0_28], %111 {strides = array<i32>} : memref<1x128x128xf32, #tpu.memory_space<vmem>>, vector<1x128x128xf32>,
    %112 = tpu.concatenate %64, %107 in 1 : vector<32x64xf32>, vector<32x64xf32> -> vector<32x128xf32>
    %c0_29 = arith.constant 0 : index
    %c0_30 = arith.constant 0 : index
    %113 = vector.load %arg9[%c0_29, %c0_30] : memref<32x128xf32, #tpu.memory_space<vmem>>, vector<32x128xf32>
    tpu.vector_store %arg9[%c0_29, %c0_30], %112 {strides = array<i32>} : memref<32x128xf32, #tpu.memory_space<vmem>>, vector<32x128xf32>,
    return
  }
  func.func @transform_0(%arg0: i32, %arg1: i32) -> (i32, i32, i32) {
    %c0_i32 = arith.constant 0 : i32
    %c0_i32_0 = arith.constant 0 : i32
    return %arg0, %arg1, %c0_i32 : i32, i32, i32
  }
  func.func @transform_1(%arg0: i32, %arg1: i32) -> (i32, i32, i32) {
    %c0_i32 = arith.constant 0 : i32
    %c0_i32_0 = arith.constant 0 : i32
    return %arg0, %arg1, %c0_i32 : i32, i32, i32
  }
  func.func @transform_2(%arg0: i32, %arg1: i32) -> (i32, i32, i32) {
    %c0_i32 = arith.constant 0 : i32
    %c0_i32_0 = arith.constant 0 : i32
    return %arg0, %arg1, %c0_i32 : i32, i32, i32
  }
  func.func @transform_3(%arg0: i32, %arg1: i32) -> (i32, i32, i32) {
    %c0_i32 = arith.constant 0 : i32
    %c0_i32_0 = arith.constant 0 : i32
    return %arg0, %arg1, %c0_i32 : i32, i32, i32
  }
  func.func @transform_4(%arg0: i32, %arg1: i32) -> i32 {
    %c0_i32 = arith.constant 0 : i32
    %c0_i32_0 = arith.constant 0 : i32
    return %c0_i32 : i32
  }
  func.func @transform_5(%arg0: i32, %arg1: i32) -> i32 {
    %c0_i32 = arith.constant 0 : i32
    %c0_i32_0 = arith.constant 0 : i32
    return %c0_i32 : i32
  }
  func.func @transform_6(%arg0: i32, %arg1: i32) -> (i32, i32, i32) {
    %c0_i32 = arith.constant 0 : i32
    %c0_i32_0 = arith.constant 0 : i32
    return %arg0, %arg1, %c0_i32 : i32, i32, i32
  }
}

module attributes {stable_mosaic.version = 11 : i64} {
  func.func @_matmul_kernel(%arg0: i32, %arg1: i32, %arg2: i32, %arg3: memref<256x64xf32, #tpu.memory_space<vmem>>, %arg4: memref<64x4xf32, #tpu.memory_space<vmem>>, %arg5: memref<256x4xf32, #tpu.memory_space<vmem>>, %arg6: memref<256x4xf32, #tpu.memory_space<vmem>>) attributes {dimension_semantics = [#tpu.dimension_semantics<parallel>, #tpu.dimension_semantics<parallel>, #tpu.dimension_semantics<arbitrary>], iteration_bounds = array<i64: 2, 1, 1>, scalar_prefetch = 0 : i64, scratch_operands = 1 : i64, tpu.core_type = #tpu.core_type<tc>, window_params = [{transform_indices = @transform_0, window_bounds = array<i64: 256, 64>}, {transform_indices = @transform_1, window_bounds = array<i64: 64, 4>}, {transform_indices = @transform_2, window_bounds = array<i64: 256, 4>}]} {
    %c0_i32 = arith.constant 0 : i32
    %0 = arith.cmpi eq, %arg2, %c0_i32 : i32
    %1 = arith.extui %0 : i1 to i32
    %c0_i32_0 = arith.constant 0 : i32
    %2 = arith.cmpi ne, %1, %c0_i32_0 : i32
    scf.if %2 {
      %cst_10 = arith.constant 0.000000e+00 : f32
      %14 = vector.broadcast %cst_10 : f32 to vector<256x4xf32>
      %c0_11 = arith.constant 0 : index
      %c0_12 = arith.constant 0 : index
      %15 = vector.load %arg6[%c0_11, %c0_12] : memref<256x4xf32, #tpu.memory_space<vmem>>, vector<256x4xf32>
      tpu.vector_store %arg6[%c0_11, %c0_12], %14 {strides = array<i32>} : memref<256x4xf32, #tpu.memory_space<vmem>>, vector<256x4xf32>,
    } else {
    }
    %c0 = arith.constant 0 : index
    %c0_1 = arith.constant 0 : index
    %3 = vector.load %arg6[%c0, %c0_1] : memref<256x4xf32, #tpu.memory_space<vmem>>, vector<256x4xf32>
    %c0_2 = arith.constant 0 : index
    %c0_3 = arith.constant 0 : index
    %4 = vector.load %arg3[%c0_2, %c0_3] : memref<256x64xf32, #tpu.memory_space<vmem>>, vector<256x64xf32>
    %5 = arith.truncf %4 : vector<256x64xf32> to vector<256x64xbf16>
    %c0_4 = arith.constant 0 : index
    %c0_5 = arith.constant 0 : index
    %6 = vector.load %arg4[%c0_4, %c0_5] : memref<64x4xf32, #tpu.memory_space<vmem>>, vector<64x4xf32>
    %7 = arith.truncf %6 : vector<64x4xf32> to vector<64x4xbf16>
    %cst = arith.constant dense<0.000000e+00> : vector<256x4xf32>
    %8 = tpu.matmul %5, %7, %cst {dimension_numbers = #tpu.dot_dimension_numbers<[1], [0], [0], [1], [0, 0, 1, 1], [], []>} : vector<256x64xbf16>, vector<64x4xbf16>, vector<256x4xf32> -> vector<256x4xf32>
    %9 = arith.addf %3, %8 : vector<256x4xf32>
    %c0_6 = arith.constant 0 : index
    %c0_7 = arith.constant 0 : index
    %10 = vector.load %arg6[%c0_6, %c0_7] : memref<256x4xf32, #tpu.memory_space<vmem>>, vector<256x4xf32>
    tpu.vector_store %arg6[%c0_6, %c0_7], %9 {strides = array<i32>} : memref<256x4xf32, #tpu.memory_space<vmem>>, vector<256x4xf32>,
    %c0_i32_8 = arith.constant 0 : i32
    %11 = arith.cmpi eq, %arg2, %c0_i32_8 : i32
    %12 = arith.extui %11 : i1 to i32
    %c0_i32_9 = arith.constant 0 : i32
    %13 = arith.cmpi ne, %12, %c0_i32_9 : i32
    scf.if %13 {
      %c0_10 = arith.constant 0 : index
      %c0_11 = arith.constant 0 : index
      %14 = vector.load %arg6[%c0_10, %c0_11] : memref<256x4xf32, #tpu.memory_space<vmem>>, vector<256x4xf32>
      %c0_12 = arith.constant 0 : index
      %c0_13 = arith.constant 0 : index
      %15 = vector.load %arg5[%c0_12, %c0_13] : memref<256x4xf32, #tpu.memory_space<vmem>>, vector<256x4xf32>
      tpu.vector_store %arg5[%c0_12, %c0_13], %14 {strides = array<i32>} : memref<256x4xf32, #tpu.memory_space<vmem>>, vector<256x4xf32>,
    } else {
    }
    return
  }
  func.func @transform_0(%arg0: i32, %arg1: i32, %arg2: i32) -> (i32, i32) {
    %c0_i32 = arith.constant 0 : i32
    return %arg0, %arg2 : i32, i32
  }
  func.func @transform_1(%arg0: i32, %arg1: i32, %arg2: i32) -> (i32, i32) {
    %c0_i32 = arith.constant 0 : i32
    return %arg2, %arg1 : i32, i32
  }
  func.func @transform_2(%arg0: i32, %arg1: i32, %arg2: i32) -> (i32, i32) {
    %c0_i32 = arith.constant 0 : i32
    return %arg0, %arg1 : i32, i32
  }
}

</mosaic_0001>

<llo_original>
// kernel: ndmamba2_forward.16
$region0: #{ndmamba2_forward.16}
  #allocation0 [shape = 'u32[]', space=smem, size = 0x4, offset = 0x4, fixed_abs, tag = 'smem constant byte address 0x4 - core index']
  #allocation1 [shape = 'u32[144,128]{1,0:T(1,128)}', space=vmem, size = 0x12000, scoped, tag = 'internal scratch']
  #allocation2 [shape = 'f32[256,128]{1,0:T(8,128)}', space=vmem, size = 0x20000, scoped, tag = 'scratch operand']
  %s0 = inlined_call_operand.vmem [shape: f32[512,4], index: 0, kind: input, shape index: {}]
  %s1 = inlined_call_operand.vmem [shape: f32[4,384], index: 1, kind: input, shape index: {}]
  %s2 = inlined_call_operand.vmem [shape: f32[512,384], index: 2, kind: output, shape index: {}]
  %s3 = sld [smem:[#allocation0]]
  $region83: #{ndmamba2_forward.16} parent=0
    _
  %s5 = ssub.s32 1, %s3
  %s6 = scalar_select 0, %s5, %s3
  $region1: #{ndmamba2_forward.16} parent=0
    #allocation3 [shape = 'u8[262144]{0}', space=vmem, size = 0x40000, scoped, tag = 'output window, operand 0']
    loop: start=0, step=1, limit=8
    $region2: #{ndmamba2_forward.16} parent=1 // loop_pre_header
      _
    $region3: #{ndmamba2_forward.16} parent=1 // loop_header
      %s8 = sphi 0, %s12
      %p9 = scmp.ge.s32.totalorder %s8, 8
      %s15 = sphi 0, %s34
      %s16 = sphi 0, %s30
      %s17 = sphi 0, %s26
      %s18 = sphi 0, %s15
      %s19 = sphi 0, %s16
      %s20 = sphi 0, %s17
      %s21 = sphi 0, %s18
      %s22 = sphi 0, %s19
      %s23 = sphi 0, %s20
      %s39 = sphi 0, %s41
      %s42 = sphi 0, %s39
      %s43 = sphi 0, %s42
      %s59 = sphi 0, %s43
      %s67 = sphi 0, %s69
      %s70 = sphi 0, %s67
      %s71 = sphi 0, %s70
      %s87 = sphi 0, %s71
      %s95 = sphi 0, %s97
      %s98 = sphi 0, %s95
      %s99 = sphi 0, %s98
      %s115 = sphi 0, %s99
    $region4: #{ndmamba2_forward.16} parent=1 // loop_header_branch
      %11 = sbr.rel (%p9) target = $region8
    $region5: #{ndmamba2_forward.16} parent=1 // loop_body
      %s13 = ssub.s32 %s8, 1
      %s14 = ssub.s32 %s8, 2
      %s24 = sadd.s32 1, %s17
      %p25 = scmp.ge.s32.totalorder %s24, 1
      %s26 = scalar_select %p25, 0, %s24
      %s27 = sadd.s32 1, %s16
      %s28 = scalar_select %p25, %s27, %s16
      %p29 = scmp.ge.s32.totalorder %s28, 3
      %s30 = scalar_select %p29, 0, %s28
      %s31 = sadd.s32 1, %s15
      %s32 = scalar_select %p29, %s31, %s15
      %p33 = scmp.ge.s32.totalorder %s32, 2
      %s34 = scalar_select %p33, 0, %s32
      %s35 = ssub.s32 %s15, %s34
      %s36 = ssub.s32 %s17, %s26
      %s37 = sor.u32 %s35, %s36
      %p38 = scmp.eq.s32.totalorder %s37, 0
      %s40 = sadd.s32 %s39, 1
      %s41 = scalar_select %p38, %s39, %s40
      %p44 = pneg %p38
      %p45 = scmp.eq.s32.totalorder %s8, 5
      %p46 = por %p44, %p45
      %p47 = scmp.ne.s32.totalorder %s39, %s42
      %p48 = scmp.eq.s32.totalorder %s8, 0
      %p49 = por %p47, %p48
      %p50 = scmp.ne.s32.totalorder %s39, %s42
      %p51 = scmp.eq.s32.totalorder %s13, 5
      %p52 = por %p50, %p51
      %p53 = scmp.ne.s32.totalorder %s42, %s43
      %p54 = scmp.eq.s32.totalorder %s13, 0
      %p55 = por %p53, %p54
      %p56 = scmp.ne.s32.totalorder %s42, %s43
      %p57 = scmp.eq.s32.totalorder %s14, 5
      %p58 = por %p56, %p57
      %p60 = scmp.ne.s32.totalorder %s43, %s59
      %p61 = scmp.eq.s32.totalorder %s14, 0
      %p62 = por %p60, %p61
      %s63 = ssub.s32 %s17, %s26
      %s64 = ssub.s32 %s16, %s30
      %s65 = sor.u32 %s63, %s64
      %p66 = scmp.eq.s32.totalorder %s65, 0
      %s68 = sadd.s32 %s67, 1
      %s69 = scalar_select %p66, %s67, %s68
      %p72 = pneg %p66
      %p73 = scmp.eq.s32.totalorder %s8, 5
      %p74 = por %p72, %p73
      %p75 = scmp.ne.s32.totalorder %s67, %s70
      %p76 = scmp.eq.s32.totalorder %s8, 0
      %p77 = por %p75, %p76
      %p78 = scmp.ne.s32.totalorder %s67, %s70
      %p79 = scmp.eq.s32.totalorder %s13, 5
      %p80 = por %p78, %p79
      %p81 = scmp.ne.s32.totalorder %s70, %s71
      %p82 = scmp.eq.s32.totalorder %s13, 0
      %p83 = por %p81, %p82
      %p84 = scmp.ne.s32.totalorder %s70, %s71
      %p85 = scmp.eq.s32.totalorder %s14, 5
      %p86 = por %p84, %p85
      %p88 = scmp.ne.s32.totalorder %s71, %s87
      %p89 = scmp.eq.s32.totalorder %s14, 0
      %p90 = por %p88, %p89
      %s91 = ssub.s32 %s15, %s34
      %s92 = ssub.s32 %s16, %s30
      %s93 = sor.u32 %s91, %s92
      %p94 = scmp.eq.s32.totalorder %s93, 0
      %s96 = sadd.s32 %s95, 1
      %s97 = scalar_select %p94, %s95, %s96
      %p100 = pneg %p94
      %p101 = scmp.eq.s32.totalorder %s8, 5
      %p102 = por %p100, %p101
      %p103 = scmp.ne.s32.totalorder %s95, %s98
      %p104 = scmp.eq.s32.totalorder %s8, 0
      %p105 = por %p103, %p104
      %p106 = scmp.ne.s32.totalorder %s95, %s98
      %p107 = scmp.eq.s32.totalorder %s13, 5
      %p108 = por %p106, %p107
      %p109 = scmp.ne.s32.totalorder %s98, %s99
      %p110 = scmp.eq.s32.totalorder %s13, 0
      %p111 = por %p109, %p110
      %p112 = scmp.ne.s32.totalorder %s98, %s99
      %p113 = scmp.eq.s32.totalorder %s14, 5
      %p114 = por %p112, %p113
      %p116 = scmp.ne.s32.totalorder %s99, %s115
      %p117 = scmp.eq.s32.totalorder %s14, 0
      %p118 = por %p116, %p117
      %p119 = scmp.le.s32.totalorder 1, %s8
      %p120 = scmp.lt.s32.totalorder %s8, 7
      %p121 = pnand %p119, %p120
      %p122 = pneg %p121
      // Predicated region
      $region9: #{ndmamba2_forward.16} parent=5 // pred_check
        _
      $region10: #{ndmamba2_forward.16} parent=5 // pred_check_branch
        %124 = sbr.rel (%p121) target = $region12
      $region11: #{ndmamba2_forward.16} parent=5 // pred_region
        %s125 = ssub.s32 %s8, 1
      $region12: #{ndmamba2_forward.16} parent=5 // pred_fallthru
        _
      %p126 = scmp.lt.s32.totalorder %s8, 6
      // Predicated region
      $region13: #{ndmamba2_forward.16} parent=5 // pred_check
        %p127 = pneg %p126
      $region14: #{ndmamba2_forward.16} parent=5 // pred_check_branch
        %129 = sbr.rel (%p127) target = $region16
      $region15: #{ndmamba2_forward.16} parent=5 // pred_region
        // Predicated region
        $region17: #{ndmamba2_forward.16} parent=15 // pred_check
          %p130 = pneg %p49
        $region18: #{ndmamba2_forward.16} parent=15 // pred_check_branch
          %132 = sbr.rel (%p130) target = $region20
        $region19: #{ndmamba2_forward.16} parent=15 // pred_region
          %s133 = smul.u32 32, %s15
          %p134 = scmp.lt.s32.totalorder %s133, 63
          %s135 = scalar_select %p134, %s133, 63
          %p136 = scmp.lt.s32.totalorder %s17, 0
          %s137 = scalar_select %p136, %s17, 0
          %s138 = sadd.s32 %s137, %s135
          %s139 = smul.addr %s138, 8
          %s140 = scalar_lea.vmem %s0, %s139
          %s141 = smul.u32 32, %s15
        $region20: #{ndmamba2_forward.16} parent=15 // pred_fallthru
          _
        // Predicated region
        $region21: #{ndmamba2_forward.16} parent=15 // pred_check
          %p142 = pneg %p77
        $region22: #{ndmamba2_forward.16} parent=15 // pred_check_branch
          %144 = sbr.rel (%p142) target = $region24
        $region23: #{ndmamba2_forward.16} parent=15 // pred_region
          %p145 = scmp.lt.s32.totalorder %s17, 0
          %s146 = scalar_select %p145, %s17, 0
          %p147 = scmp.lt.s32.totalorder %s16, 2
          %s148 = scalar_select %p147, %s16, 2
          %s149 = smul.addr %s146, 3
          %s150 = sadd.s32 %s148, %s149
          %s151 = smul.addr %s150, 4
          %s152 = scalar_lea.vmem %s1, %s151
        $region24: #{ndmamba2_forward.16} parent=15 // pred_fallthru
          _
      $region16: #{ndmamba2_forward.16} parent=5 // pred_fallthru
        _
      %p153 = scmp.le.s32.totalorder 1, %s8
      %p154 = scmp.lt.s32.totalorder %s8, 7
      %p155 = pnand %p153, %p154
      %p156 = pneg %p155
      // Predicated region
      $region25: #{ndmamba2_forward.16} parent=5 // pred_check
        _
      $region26: #{ndmamba2_forward.16} parent=5 // pred_check_branch
        %158 = sbr.rel (%p155) target = $region28
      $region27: #{ndmamba2_forward.16} parent=5 // pred_region
        %s159 = ssub.s32 %s8, 1
        %s160 = smul.u32 32, %s18
        %p161 = scmp.lt.s32.totalorder %s160, 63
        %s162 = scalar_select %p161, %s160, 63
        %p163 = scmp.lt.s32.totalorder %s20, 0
        %s164 = scalar_select %p163, %s20, 0
        %s165 = sadd.s32 %s164, %s162
        %s166 = smul.addr %s165, 8
        %s167 = scalar_lea.vmem %s0, %s166
        %p168 = pneg %p55
        %p169 = pneg %p52
        %p170 = scmp.lt.s32.totalorder %s20, 0
        %s171 = scalar_select %p170, %s20, 0
        %p172 = scmp.lt.s32.totalorder %s19, 2
        %s173 = scalar_select %p172, %s19, 2
        %s174 = smul.addr %s171, 3
        %s175 = sadd.s32 %s173, %s174
        %s176 = smul.addr %s175, 4
        %s177 = scalar_lea.vmem %s1, %s176
        %p178 = pneg %p83
        %p179 = pneg %p80
        %p180 = pneg %p111
        %p181 = pneg %p108
        %s182 = sand.u32 %s98, 1
        %s183 = sand.u32 %s98, 1
        %s184 = smul.addr %s183, 256
        %s185 = scalar_lea.vmem [#allocation3], %s184
        %s186 = smul.u32 32, %s18
        %p187 = scmp.lt.s32.totalorder %s186, 63
        %s188 = scalar_select %p187, %s186, 63
        %p189 = scmp.lt.s32.totalorder %s20, 0
        %s190 = scalar_select %p189, %s20, 0
        %s191 = sadd.s32 %s190, %s188
        %s192 = smul.addr %s191, 8
        %s193 = scalar_lea.vmem %s0, %s192
        %s194 = smul.u32 32, %s18
        %p195 = scmp.lt.s32.totalorder %s20, 0
        %s196 = scalar_select %p195, %s20, 0
        %p197 = scmp.lt.s32.totalorder %s19, 2
        %s198 = scalar_select %p197, %s19, 2
        %s199 = smul.addr %s196, 3
        %s200 = sadd.s32 %s198, %s199
        %s201 = smul.addr %s200, 4
        %s202 = scalar_lea.vmem %s1, %s201
        %s203 = smul.u32 32, %s18
        %p205 = scmp.eq.s32.totalorder %s20, 0
        // Predicated region
        $region29: #{ndmamba2_forward.16} parent=27 // pred_check
          %p206 = pneg %p205
        $region30: #{ndmamba2_forward.16} parent=27 // pred_check_branch
          %208 = sbr.rel (%p206) target = $region32
        $region31: #{ndmamba2_forward.16} parent=27 // pred_region
          %209 = vst [vmem:[#allocation2] sm:$0xff] 0.0
          %210 = vst [vmem:[#allocation2 + $0x8] sm:$0xff] 0.0
          %211 = vst [vmem:[#allocation2 + $0x10] sm:$0xff] 0.0
          %212 = vst [vmem:[#allocation2 + $0x18] sm:$0xff] 0.0
          %213 = vst [vmem:[#allocation2 + $0x20] sm:$0xff] 0.0
          %214 = vst [vmem:[#allocation2 + $0x28] sm:$0xff] 0.0
          %215 = vst [vmem:[#allocation2 + $0x30] sm:$0xff] 0.0
          %216 = vst [vmem:[#allocation2 + $0x38] sm:$0xff] 0.0
          %217 = vst [vmem:[#allocation2 + $0x40] sm:$0xff] 0.0
          %218 = vst [vmem:[#allocation2 + $0x48] sm:$0xff] 0.0
          %219 = vst [vmem:[#allocation2 + $0x50] sm:$0xff] 0.0
          %220 = vst [vmem:[#allocation2 + $0x58] sm:$0xff] 0.0
          %221 = vst [vmem:[#allocation2 + $0x60] sm:$0xff] 0.0
          %222 = vst [vmem:[#allocation2 + $0x68] sm:$0xff] 0.0
          %223 = vst [vmem:[#allocation2 + $0x70] sm:$0xff] 0.0
          %224 = vst [vmem:[#allocation2 + $0x78] sm:$0xff] 0.0
          %225 = vst [vmem:[#allocation2 + $0x80] sm:$0xff] 0.0
          %226 = vst [vmem:[#allocation2 + $0x88] sm:$0xff] 0.0
          %227 = vst [vmem:[#allocation2 + $0x90] sm:$0xff] 0.0
          %228 = vst [vmem:[#allocation2 + $0x98] sm:$0xff] 0.0
          %229 = vst [vmem:[#allocation2 + $0xa0] sm:$0xff] 0.0
          %230 = vst [vmem:[#allocation2 + $0xa8] sm:$0xff] 0.0
          %231 = vst [vmem:[#allocation2 + $0xb0] sm:$0xff] 0.0
          %232 = vst [vmem:[#allocation2 + $0xb8] sm:$0xff] 0.0
          %233 = vst [vmem:[#allocation2 + $0xc0] sm:$0xff] 0.0
          %234 = vst [vmem:[#allocation2 + $0xc8] sm:$0xff] 0.0
          %235 = vst [vmem:[#allocation2 + $0xd0] sm:$0xff] 0.0
          %236 = vst [vmem:[#allocation2 + $0xd8] sm:$0xff] 0.0
          %237 = vst [vmem:[#allocation2 + $0xe0] sm:$0xff] 0.0
          %238 = vst [vmem:[#allocation2 + $0xe8] sm:$0xff] 0.0
          %239 = vst [vmem:[#allocation2 + $0xf0] sm:$0xff] 0.0
          %240 = vst [vmem:[#allocation2 + $0xf8] sm:$0xff] 0.0
        $region32: #{ndmamba2_forward.16} parent=27 // pred_fallthru
          _
        %v241 = vld [vmem:[#allocation2] sm:$0xff]
        %v242 = vld [vmem:[#allocation2 + $0x8] sm:$0xff]
        %v243 = vld [vmem:[#allocation2 + $0x10] sm:$0xff]
        %v244 = vld [vmem:[#allocation2 + $0x18] sm:$0xff]
        %v245 = vld [vmem:[#allocation2 + $0x20] sm:$0xff]
        %v246 = vld [vmem:[#allocation2 + $0x28] sm:$0xff]
        %v247 = vld [vmem:[#allocation2 + $0x30] sm:$0xff]
        %v248 = vld [vmem:[#allocation2 + $0x38] sm:$0xff]
        %v249 = vld [vmem:[#allocation2 + $0x40] sm:$0xff]
        %v250 = vld [vmem:[#allocation2 + $0x48] sm:$0xff]
        %v251 = vld [vmem:[#allocation2 + $0x50] sm:$0xff]
        %v252 = vld [vmem:[#allocation2 + $0x58] sm:$0xff]
        %v253 = vld [vmem:[#allocation2 + $0x60] sm:$0xff]
        %v254 = vld [vmem:[#allocation2 + $0x68] sm:$0xff]
        %v255 = vld [vmem:[#allocation2 + $0x70] sm:$0xff]
        %v256 = vld [vmem:[#allocation2 + $0x78] sm:$0xff]
        %v257 = vld [vmem:[#allocation2 + $0x80] sm:$0xff]
        %v258 = vld [vmem:[#allocation2 + $0x88] sm:$0xff]
        %v259 = vld [vmem:[#allocation2 + $0x90] sm:$0xff]
        %v260 = vld [vmem:[#allocation2 + $0x98] sm:$0xff]
        %v261 = vld [vmem:[#allocation2 + $0xa0] sm:$0xff]
        %v262 = vld [vmem:[#allocation2 + $0xa8] sm:$0xff]
        %v263 = vld [vmem:[#allocation2 + $0xb0] sm:$0xff]
        %v264 = vld [vmem:[#allocation2 + $0xb8] sm:$0xff]
        %v265 = vld [vmem:[#allocation2 + $0xc0] sm:$0xff]
        %v266 = vld [vmem:[#allocation2 + $0xc8] sm:$0xff]
        %v267 = vld [vmem:[#allocation2 + $0xd0] sm:$0xff]
        %v268 = vld [vmem:[#allocation2 + $0xd8] sm:$0xff]
        %v269 = vld [vmem:[#allocation2 + $0xe0] sm:$0xff]
        %v270 = vld [vmem:[#allocation2 + $0xe8] sm:$0xff]
        %v271 = vld [vmem:[#allocation2 + $0xf0] sm:$0xff]
        %v272 = vld [vmem:[#allocation2 + $0xf8] sm:$0xff]
        %v273 = vld [vmem:[%s193] sm:$0xff]
        %v274 = vld [vmem:[%s193 + $0x8] sm:$0xff]
        %v275 = vld [vmem:[%s193 + $0x10] sm:$0xff]
        %v276 = vld [vmem:[%s193 + $0x18] sm:$0xff]
        %v277 = vld [vmem:[%s193 + $0x20] sm:$0xff]
        %v278 = vld [vmem:[%s193 + $0x28] sm:$0xff]
        %v279 = vld [vmem:[%s193 + $0x30] sm:$0xff]
        %v280 = vld [vmem:[%s193 + $0x38] sm:$0xff]
        %v281 = vld [vmem:[%s193 + $0x40] sm:$0xff]
        %v282 = vld [vmem:[%s193 + $0x48] sm:$0xff]
        %v283 = vld [vmem:[%s193 + $0x50] sm:$0xff]
        %v284 = vld [vmem:[%s193 + $0x58] sm:$0xff]
        %v285 = vld [vmem:[%s193 + $0x60] sm:$0xff]
        %v286 = vld [vmem:[%s193 + $0x68] sm:$0xff]
        %v287 = vld [vmem:[%s193 + $0x70] sm:$0xff]
        %v288 = vld [vmem:[%s193 + $0x78] sm:$0xff]
        %v289 = vld [vmem:[%s193 + $0x80] sm:$0xff]
        %v290 = vld [vmem:[%s193 + $0x88] sm:$0xff]
        %v291 = vld [vmem:[%s193 + $0x90] sm:$0xff]
        %v292 = vld [vmem:[%s193 + $0x98] sm:$0xff]
        %v293 = vld [vmem:[%s193 + $0xa0] sm:$0xff]
        %v294 = vld [vmem:[%s193 + $0xa8] sm:$0xff]
        %v295 = vld [vmem:[%s193 + $0xb0] sm:$0xff]
        %v296 = vld [vmem:[%s193 + $0xb8] sm:$0xff]
        %v297 = vld [vmem:[%s193 + $0xc0] sm:$0xff]
        %v298 = vld [vmem:[%s193 + $0xc8] sm:$0xff]
        %v299 = vld [vmem:[%s193 + $0xd0] sm:$0xff]
        %v300 = vld [vmem:[%s193 + $0xd8] sm:$0xff]
        %v301 = vld [vmem:[%s193 + $0xe0] sm:$0xff]
        %v302 = vld [vmem:[%s193 + $0xe8] sm:$0xff]
        %v303 = vld [vmem:[%s193 + $0xf0] sm:$0xff]
        %v304 = vld [vmem:[%s193 + $0xf8] sm:$0xff]
        %v305 = vpack.c.bf16 %v274, %v273
        %v306 = vpack.c.bf16 %v276, %v275
        %v307 = vpack.c.bf16 %v278, %v277
        %v308 = vpack.c.bf16 %v280, %v279
        %v309 = vpack.c.bf16 %v282, %v281
        %v310 = vpack.c.bf16 %v284, %v283
        %v311 = vpack.c.bf16 %v286, %v285
        %v312 = vpack.c.bf16 %v288, %v287
        %v313 = vpack.c.bf16 %v290, %v289
        %v314 = vpack.c.bf16 %v292, %v291
        %v315 = vpack.c.bf16 %v294, %v293
        %v316 = vpack.c.bf16 %v296, %v295
        %v317 = vpack.c.bf16 %v298, %v297
        %v318 = vpack.c.bf16 %v300, %v299
        %v319 = vpack.c.bf16 %v302, %v301
        %v320 = vpack.c.bf16 %v304, %v303
        %v321 = vld [vmem:[%s202] sm:$0xf]
        %v322 = vpack.c.bf16 %v321, %v321
        %vm323 = vcmask 31744
        %v325 = vsel %vm323, %v305, 0
        %v328 = vsel %vm323, %v306, 0
        %v331 = vsel %vm323, %v307, 0
        %v334 = vsel %vm323, %v308, 0
        %v337 = vsel %vm323, %v309, 0
        %v340 = vsel %vm323, %v310, 0
        %v343 = vsel %vm323, %v311, 0
        %v346 = vsel %vm323, %v312, 0
        %v349 = vsel %vm323, %v313, 0
        %v352 = vsel %vm323, %v314, 0
        %v355 = vsel %vm323, %v315, 0
        %v358 = vsel %vm323, %v316, 0
        %v361 = vsel %vm323, %v317, 0
        %v364 = vsel %vm323, %v318, 0
        %v367 = vsel %vm323, %v319, 0
        %v370 = vsel %vm323, %v320, 0
        %vm372 = vcmask 1041408
        %v374 = vsel %vm372, %v322, 0
        %376 = vmatprep.subr.bf16.mxu0 0
        %377 = vmatpush1.bf16.msra.mxu0 0
        %378 = vmatprep.subr.bf16.mxu0 0
        %379 = vmatpush1.bf16.msra.mxu0 0
        %380 = vmatprep.subr.bf16.mxu0 0
        %381 = vmatpush1.bf16.msra.mxu0 0
        %382 = vmatprep.subr.bf16.mxu0 0
        %383 = vmatpush1.bf16.msra.mxu0 0
        %384 = vmatprep.subr.bf16.mxu0 0
        %385 = vmatpush1.bf16.msra.mxu0 0
        %386 = vmatprep.subr.bf16.mxu0 0
        %387 = vmatpush1.bf16.msra.mxu0 0
        %388 = vmatprep.subr.bf16.mxu0 0
        %389 = vmatpush1.bf16.msra.mxu0 0
        %390 = vmatprep.subr.bf16.mxu0 0
        %391 = vmatpush1.bf16.msra.mxu0 %v374
        %392 = vmatprep.subr.bf16.mxu0 0
        %393 = vmatpush2.bf16.msra.mxu0 0
        %394 = vmatprep.subr.bf16.mxu0 0
        %395 = vmatpush2.bf16.msra.mxu0 0
        %396 = vmatprep.subr.bf16.mxu0 0
        %397 = vmatpush2.bf16.msra.mxu0 0
        %398 = vmatprep.subr.bf16.mxu0 0
        %399 = vmatpush2.bf16.msra.mxu0 0
        %400 = vmatprep.subr.bf16.mxu0 0
        %401 = vmatpush2.bf16.msra.mxu0 0
        %402 = vmatprep.subr.bf16.mxu0 0
        %403 = vmatpush2.bf16.msra.mxu0 0
        %404 = vmatprep.subr.bf16.mxu0 0
        %405 = vmatpush2.bf16.msra.mxu0 0
        %406 = vmatprep.subr.bf16.mxu0 0
        %407 = vmatpush2.bf16.msra.mxu0 0
        %408 = vmatprep.mubr.bf16.mxu0 0
        %409 = vmatmul.mubr.bf16.gmra.mxu0 %v325
        %v410 = vpop.f32.mrf.mxu0
        %v411 = vadd.f32 0.0, %v410
        %v412 = vpop.f32.mrf.mxu0
        %v413 = vpop.f32.mrf.mxu0
        %v414 = vadd.f32 0.0, %v413
        %v415 = vpop.f32.mrf.mxu0
        %416 = vmatprep.mubr.bf16.mxu0 0
        %417 = vmatmul.mubr.bf16.gmra.mxu0 %v328
        %v418 = vpop.f32.mrf.mxu0
        %v419 = vadd.f32 0.0, %v418
        %v420 = vpop.f32.mrf.mxu0
        %v421 = vpop.f32.mrf.mxu0
        %v422 = vadd.f32 0.0, %v421
        %v423 = vpop.f32.mrf.mxu0
        %424 = vmatprep.mubr.bf16.mxu0 0
        %425 = vmatmul.mubr.bf16.gmra.mxu0 %v331
        %v426 = vpop.f32.mrf.mxu0
        %v427 = vadd.f32 0.0, %v426
        %v428 = vpop.f32.mrf.mxu0
        %v429 = vpop.f32.mrf.mxu0
        %v430 = vadd.f32 0.0, %v429
        %v431 = vpop.f32.mrf.mxu0
        %432 = vmatprep.mubr.bf16.mxu0 0
        %433 = vmatmul.mubr.bf16.gmra.mxu0 %v334
        %v434 = vpop.f32.mrf.mxu0
        %v435 = vadd.f32 0.0, %v434
        %v436 = vpop.f32.mrf.mxu0
        %v437 = vpop.f32.mrf.mxu0
        %v438 = vadd.f32 0.0, %v437
        %v439 = vpop.f32.mrf.mxu0
        %440 = vmatprep.mubr.bf16.mxu0 0
        %441 = vmatmul.mubr.bf16.gmra.mxu0 %v337
        %v442 = vpop.f32.mrf.mxu0
        %v443 = vadd.f32 0.0, %v442
        %v444 = vpop.f32.mrf.mxu0
        %v445 = vpop.f32.mrf.mxu0
        %v446 = vadd.f32 0.0, %v445
        %v447 = vpop.f32.mrf.mxu0
        %448 = vmatprep.mubr.bf16.mxu0 0
        %449 = vmatmul.mubr.bf16.gmra.mxu0 %v340
        %v450 = vpop.f32.mrf.mxu0
        %v451 = vadd.f32 0.0, %v450
        %v452 = vpop.f32.mrf.mxu0
        %v453 = vpop.f32.mrf.mxu0
        %v454 = vadd.f32 0.0, %v453
        %v455 = vpop.f32.mrf.mxu0
        %456 = vmatprep.mubr.bf16.mxu0 0
        %457 = vmatmul.mubr.bf16.gmra.mxu0 %v343
        %v458 = vpop.f32.mrf.mxu0
        %v459 = vadd.f32 0.0, %v458
        %v460 = vpop.f32.mrf.mxu0
        %v461 = vpop.f32.mrf.mxu0
        %v462 = vadd.f32 0.0, %v461
        %v463 = vpop.f32.mrf.mxu0
        %464 = vmatprep.mubr.bf16.mxu0 0
        %465 = vmatmul.mubr.bf16.gmra.mxu0 %v346
        %v466 = vpop.f32.mrf.mxu0
        %v467 = vadd.f32 0.0, %v466
        %v468 = vpop.f32.mrf.mxu0
        %v469 = vpop.f32.mrf.mxu0
        %v470 = vadd.f32 0.0, %v469
        %v471 = vpop.f32.mrf.mxu0
        %472 = vmatprep.mubr.bf16.mxu0 0
        %473 = vmatmul.mubr.bf16.gmra.mxu0 %v349
        %v474 = vpop.f32.mrf.mxu0
        %v475 = vadd.f32 0.0, %v474
        %v476 = vpop.f32.mrf.mxu0
        %v477 = vpop.f32.mrf.mxu0
        %v478 = vadd.f32 0.0, %v477
        %v479 = vpop.f32.mrf.mxu0
        %480 = vmatprep.mubr.bf16.mxu0 0
        %481 = vmatmul.mubr.bf16.gmra.mxu0 %v352
        %v482 = vpop.f32.mrf.mxu0
        %v483 = vadd.f32 0.0, %v482
        %v484 = vpop.f32.mrf.mxu0
        %v485 = vpop.f32.mrf.mxu0
        %v486 = vadd.f32 0.0, %v485
        %v487 = vpop.f32.mrf.mxu0
        %488 = vmatprep.mubr.bf16.mxu0 0
        %489 = vmatmul.mubr.bf16.gmra.mxu0 %v355
        %v490 = vpop.f32.mrf.mxu0
        %v491 = vadd.f32 0.0, %v490
        %v492 = vpop.f32.mrf.mxu0
        %v493 = vpop.f32.mrf.mxu0
        %v494 = vadd.f32 0.0, %v493
        %v495 = vpop.f32.mrf.mxu0
        %496 = vmatprep.mubr.bf16.mxu0 0
        %497 = vmatmul.mubr.bf16.gmra.mxu0 %v358
        %v498 = vpop.f32.mrf.mxu0
        %v499 = vadd.f32 0.0, %v498
        %v500 = vpop.f32.mrf.mxu0
        %v501 = vpop.f32.mrf.mxu0
        %v502 = vadd.f32 0.0, %v501
        %v503 = vpop.f32.mrf.mxu0
        %504 = vmatprep.mubr.bf16.mxu0 0
        %505 = vmatmul.mubr.bf16.gmra.mxu0 %v361
        %v506 = vpop.f32.mrf.mxu0
        %v507 = vadd.f32 0.0, %v506
        %v508 = vpop.f32.mrf.mxu0
        %v509 = vpop.f32.mrf.mxu0
        %v510 = vadd.f32 0.0, %v509
        %v511 = vpop.f32.mrf.mxu0
        %512 = vmatprep.mubr.bf16.mxu0 0
        %513 = vmatmul.mubr.bf16.gmra.mxu0 %v364
        %v514 = vpop.f32.mrf.mxu0
        %v515 = vadd.f32 0.0, %v514
        %v516 = vpop.f32.mrf.mxu0
        %v517 = vpop.f32.mrf.mxu0
        %v518 = vadd.f32 0.0, %v517
        %v519 = vpop.f32.mrf.mxu0
        %520 = vmatprep.mubr.bf16.mxu0 0
        %521 = vmatmul.mubr.bf16.gmra.mxu0 %v367
        %v522 = vpop.f32.mrf.mxu0
        %v523 = vadd.f32 0.0, %v522
        %v524 = vpop.f32.mrf.mxu0
        %v525 = vpop.f32.mrf.mxu0
        %v526 = vadd.f32 0.0, %v525
        %v527 = vpop.f32.mrf.mxu0
        %528 = vmatprep.mubr.bf16.mxu0 0
        %529 = vmatmul.mubr.bf16.gmra.mxu0 %v370
        %v530 = vpop.f32.mrf.mxu0
        %v531 = vadd.f32 0.0, %v530
        %v532 = vpop.f32.mrf.mxu0
        %v533 = vpop.f32.mrf.mxu0
        %v534 = vadd.f32 0.0, %v533
        %v535 = vpop.f32.mrf.mxu0
        %536 = vdwg.mxu0
        %v537 = vadd.f32 %v241, %v411
        %v538 = vadd.f32 %v242, %v414
        %v539 = vadd.f32 %v243, %v419
        %v540 = vadd.f32 %v244, %v422
        %v541 = vadd.f32 %v245, %v427
        %v542 = vadd.f32 %v246, %v430
        %v543 = vadd.f32 %v247, %v435
        %v544 = vadd.f32 %v248, %v438
        %v545 = vadd.f32 %v249, %v443
        %v546 = vadd.f32 %v250, %v446
        %v547 = vadd.f32 %v251, %v451
        %v548 = vadd.f32 %v252, %v454
        %v549 = vadd.f32 %v253, %v459
        %v550 = vadd.f32 %v254, %v462
        %v551 = vadd.f32 %v255, %v467
        %v552 = vadd.f32 %v256, %v470
        %v553 = vadd.f32 %v257, %v475
        %v554 = vadd.f32 %v258, %v478
        %v555 = vadd.f32 %v259, %v483
        %v556 = vadd.f32 %v260, %v486
        %v557 = vadd.f32 %v261, %v491
        %v558 = vadd.f32 %v262, %v494
        %v559 = vadd.f32 %v263, %v499
        %v560 = vadd.f32 %v264, %v502
        %v561 = vadd.f32 %v265, %v507
        %v562 = vadd.f32 %v266, %v510
        %v563 = vadd.f32 %v267, %v515
        %v564 = vadd.f32 %v268, %v518
        %v565 = vadd.f32 %v269, %v523
        %v566 = vadd.f32 %v270, %v526
        %v567 = vadd.f32 %v271, %v531
        %v568 = vadd.f32 %v272, %v534
        %569 = vst [vmem:[#allocation2] sm:$0xff] %v537
        %570 = vst [vmem:[#allocation2 + $0x8] sm:$0xff] %v538
        %571 = vst [vmem:[#allocation2 + $0x10] sm:$0xff] %v539
        %572 = vst [vmem:[#allocation2 + $0x18] sm:$0xff] %v540
        %573 = vst [vmem:[#allocation2 + $0x20] sm:$0xff] %v541
        %574 = vst [vmem:[#allocation2 + $0x28] sm:$0xff] %v542
        %575 = vst [vmem:[#allocation2 + $0x30] sm:$0xff] %v543
        %576 = vst [vmem:[#allocation2 + $0x38] sm:$0xff] %v544
        %577 = vst [vmem:[#allocation2 + $0x40] sm:$0xff] %v545
        %578 = vst [vmem:[#allocation2 + $0x48] sm:$0xff] %v546
        %579 = vst [vmem:[#allocation2 + $0x50] sm:$0xff] %v547
        %580 = vst [vmem:[#allocation2 + $0x58] sm:$0xff] %v548
        %581 = vst [vmem:[#allocation2 + $0x60] sm:$0xff] %v549
        %582 = vst [vmem:[#allocation2 + $0x68] sm:$0xff] %v550
        %583 = vst [vmem:[#allocation2 + $0x70] sm:$0xff] %v551
        %584 = vst [vmem:[#allocation2 + $0x78] sm:$0xff] %v552
        %585 = vst [vmem:[#allocation2 + $0x80] sm:$0xff] %v553
        %586 = vst [vmem:[#allocation2 + $0x88] sm:$0xff] %v554
        %587 = vst [vmem:[#allocation2 + $0x90] sm:$0xff] %v555
        %588 = vst [vmem:[#allocation2 + $0x98] sm:$0xff] %v556
        %589 = vst [vmem:[#allocation2 + $0xa0] sm:$0xff] %v557
        %590 = vst [vmem:[#allocation2 + $0xa8] sm:$0xff] %v558
        %591 = vst [vmem:[#allocation2 + $0xb0] sm:$0xff] %v559
        %592 = vst [vmem:[#allocation2 + $0xb8] sm:$0xff] %v560
        %593 = vst [vmem:[#allocation2 + $0xc0] sm:$0xff] %v561
        %594 = vst [vmem:[#allocation2 + $0xc8] sm:$0xff] %v562
        %595 = vst [vmem:[#allocation2 + $0xd0] sm:$0xff] %v563
        %596 = vst [vmem:[#allocation2 + $0xd8] sm:$0xff] %v564
        %597 = vst [vmem:[#allocation2 + $0xe0] sm:$0xff] %v565
        %598 = vst [vmem:[#allocation2 + $0xe8] sm:$0xff] %v566
        %599 = vst [vmem:[#allocation2 + $0xf0] sm:$0xff] %v567
        %600 = vst [vmem:[#allocation2 + $0xf8] sm:$0xff] %v568
        // Predicated region
        $region33: #{ndmamba2_forward.16} parent=27 // pred_check
          %p601 = pneg %p205
        $region34: #{ndmamba2_forward.16} parent=27 // pred_check_branch
          %603 = sbr.rel (%p601) target = $region36
        $region35: #{ndmamba2_forward.16} parent=27 // pred_region
          %v604 = vld [vmem:[#allocation2] sm:$0xff]
          %v605 = vld [vmem:[#allocation2 + $0x8] sm:$0xff]
          %v606 = vld [vmem:[#allocation2 + $0x10] sm:$0xff]
          %v607 = vld [vmem:[#allocation2 + $0x18] sm:$0xff]
          %v608 = vld [vmem:[#allocation2 + $0x20] sm:$0xff]
          %v609 = vld [vmem:[#allocation2 + $0x28] sm:$0xff]
          %v610 = vld [vmem:[#allocation2 + $0x30] sm:$0xff]
          %v611 = vld [vmem:[#allocation2 + $0x38] sm:$0xff]
          %v612 = vld [vmem:[#allocation2 + $0x40] sm:$0xff]
          %v613 = vld [vmem:[#allocation2 + $0x48] sm:$0xff]
          %v614 = vld [vmem:[#allocation2 + $0x50] sm:$0xff]
          %v615 = vld [vmem:[#allocation2 + $0x58] sm:$0xff]
          %v616 = vld [vmem:[#allocation2 + $0x60] sm:$0xff]
          %v617 = vld [vmem:[#allocation2 + $0x68] sm:$0xff]
          %v618 = vld [vmem:[#allocation2 + $0x70] sm:$0xff]
          %v619 = vld [vmem:[#allocation2 + $0x78] sm:$0xff]
          %v620 = vld [vmem:[#allocation2 + $0x80] sm:$0xff]
          %v621 = vld [vmem:[#allocation2 + $0x88] sm:$0xff]
          %v622 = vld [vmem:[#allocation2 + $0x90] sm:$0xff]
          %v623 = vld [vmem:[#allocation2 + $0x98] sm:$0xff]
          %v624 = vld [vmem:[#allocation2 + $0xa0] sm:$0xff]
          %v625 = vld [vmem:[#allocation2 + $0xa8] sm:$0xff]
          %v626 = vld [vmem:[#allocation2 + $0xb0] sm:$0xff]
          %v627 = vld [vmem:[#allocation2 + $0xb8] sm:$0xff]
          %v628 = vld [vmem:[#allocation2 + $0xc0] sm:$0xff]
          %v629 = vld [vmem:[#allocation2 + $0xc8] sm:$0xff]
          %v630 = vld [vmem:[#allocation2 + $0xd0] sm:$0xff]
          %v631 = vld [vmem:[#allocation2 + $0xd8] sm:$0xff]
          %v632 = vld [vmem:[#allocation2 + $0xe0] sm:$0xff]
          %v633 = vld [vmem:[#allocation2 + $0xe8] sm:$0xff]
          %v634 = vld [vmem:[#allocation2 + $0xf0] sm:$0xff]
          %v635 = vld [vmem:[#allocation2 + $0xf8] sm:$0xff]
          %636 = vst [vmem:[%s185] sm:$0xff] %v604
          %637 = vst [vmem:[%s185 + $0x8] sm:$0xff] %v605
          %638 = vst [vmem:[%s185 + $0x10] sm:$0xff] %v606
          %639 = vst [vmem:[%s185 + $0x18] sm:$0xff] %v607
          %640 = vst [vmem:[%s185 + $0x20] sm:$0xff] %v608
          %641 = vst [vmem:[%s185 + $0x28] sm:$0xff] %v609
          %642 = vst [vmem:[%s185 + $0x30] sm:$0xff] %v610
          %643 = vst [vmem:[%s185 + $0x38] sm:$0xff] %v611
          %644 = vst [vmem:[%s185 + $0x40] sm:$0xff] %v612
          %645 = vst [vmem:[%s185 + $0x48] sm:$0xff] %v613
          %646 = vst [vmem:[%s185 + $0x50] sm:$0xff] %v614
          %647 = vst [vmem:[%s185 + $0x58] sm:$0xff] %v615
          %648 = vst [vmem:[%s185 + $0x60] sm:$0xff] %v616
          %649 = vst [vmem:[%s185 + $0x68] sm:$0xff] %v617
          %650 = vst [vmem:[%s185 + $0x70] sm:$0xff] %v618
          %651 = vst [vmem:[%s185 + $0x78] sm:$0xff] %v619
          %652 = vst [vmem:[%s185 + $0x80] sm:$0xff] %v620
          %653 = vst [vmem:[%s185 + $0x88] sm:$0xff] %v621
          %654 = vst [vmem:[%s185 + $0x90] sm:$0xff] %v622
          %655 = vst [vmem:[%s185 + $0x98] sm:$0xff] %v623
          %656 = vst [vmem:[%s185 + $0xa0] sm:$0xff] %v624
          %657 = vst [vmem:[%s185 + $0xa8] sm:$0xff] %v625
          %658 = vst [vmem:[%s185 + $0xb0] sm:$0xff] %v626
          %659 = vst [vmem:[%s185 + $0xb8] sm:$0xff] %v627
          %660 = vst [vmem:[%s185 + $0xc0] sm:$0xff] %v628
          %661 = vst [vmem:[%s185 + $0xc8] sm:$0xff] %v629
          %662 = vst [vmem:[%s185 + $0xd0] sm:$0xff] %v630
          %663 = vst [vmem:[%s185 + $0xd8] sm:$0xff] %v631
          %664 = vst [vmem:[%s185 + $0xe0] sm:$0xff] %v632
          %665 = vst [vmem:[%s185 + $0xe8] sm:$0xff] %v633
          %666 = vst [vmem:[%s185 + $0xf0] sm:$0xff] %v634
          %667 = vst [vmem:[%s185 + $0xf8] sm:$0xff] %v635
        $region36: #{ndmamba2_forward.16} parent=27 // pred_fallthru
          _
        %s668 = sand.u32 %s98, 1
        %s669 = sand.u32 %s98, 1
        %s670 = smul.addr %s669, 256
        %s671 = scalar_lea.vmem [#allocation3], %s670
        // Predicated region
        $region37: #{ndmamba2_forward.16} parent=27 // pred_check
          %p672 = pneg %p108
        $region38: #{ndmamba2_forward.16} parent=27 // pred_check_branch
          %674 = sbr.rel (%p672) target = $region40
        $region39: #{ndmamba2_forward.16} parent=27 // pred_region
          %s675 = smul.u32 32, %s18
          %s676 = smul.addr %s675, 3
          %s677 = sadd.s32 %s19, %s676
          %s678 = smul.addr %s677, 8
          %s679 = scalar_lea.vmem %s2, %s678
          // Predicated region
          $region41: #{ndmamba2_forward.16} parent=39 // pred_check
            _
          $region42: #{ndmamba2_forward.16} parent=39 // pred_check_branch
            %681 = sbr.rel (0) target = $region44
          $region43: #{ndmamba2_forward.16} parent=39 // pred_region
            // Predicated region
            $region45: #{ndmamba2_forward.16} parent=43 // pred_check
              _
            $region46: #{ndmamba2_forward.16} parent=43 // pred_check_branch
              %683 = sbr.rel (0) target = $region48
            $region47: #{ndmamba2_forward.16} parent=43 // pred_region
              // Predicated region
              $region60: #{ndmamba2_forward.16} parent=47 // pred_check
                _
              $region61: #{ndmamba2_forward.16} parent=47 // pred_check_branch
                %761 = sbr.rel (0) target = $region63
              $region62: #{ndmamba2_forward.16} parent=47 // pred_region
                loop: start=0, step=1, limit=1
                $region64: #{ndmamba2_forward.16} parent=62 // loop_pre_header
                  _
                $region65: #{ndmamba2_forward.16} parent=62 // loop_header
                  %s763 = sphi 0, %s767
                  %p764 = scmp.ge.s32.totalorder %s763, 1
                  %s768 = sphi %s671, %s671
                  %s769 = sphi %s679, %s679
                $region66: #{ndmamba2_forward.16} parent=62 // loop_header_branch
                  %766 = sbr.rel (%p764) target = $region70
                $region67: #{ndmamba2_forward.16} parent=62 // loop_body
                  %v770 = vld [vmem:[%s768] sm:$0xff]
                  %771 = vst [vmem:[%s769] sm:$0xff] %v770
                  %v772 = vld [vmem:[%s768 + $0x8] sm:$0xff]
                  %773 = vst [vmem:[%s769 + $0x18] sm:$0xff] %v772
                  %v774 = vld [vmem:[%s768 + $0x10] sm:$0xff]
                  %775 = vst [vmem:[%s769 + $0x30] sm:$0xff] %v774
                  %v776 = vld [vmem:[%s768 + $0x18] sm:$0xff]
                  %777 = vst [vmem:[%s769 + $0x48] sm:$0xff] %v776
                  %v778 = vld [vmem:[%s768 + $0x20] sm:$0xff]
                  %779 = vst [vmem:[%s769 + $0x60] sm:$0xff] %v778
                  %v780 = vld [vmem:[%s768 + $0x28] sm:$0xff]
                  %781 = vst [vmem:[%s769 + $0x78] sm:$0xff] %v780
                  %v782 = vld [vmem:[%s768 + $0x30] sm:$0xff]
                  %783 = vst [vmem:[%s769 + $0x90] sm:$0xff] %v782
                  %v784 = vld [vmem:[%s768 + $0x38] sm:$0xff]
                  %785 = vst [vmem:[%s769 + $0xa8] sm:$0xff] %v784
                  %v786 = vld [vmem:[%s768 + $0x40] sm:$0xff]
                  %787 = vst [vmem:[%s769 + $0xc0] sm:$0xff] %v786
                  %v788 = vld [vmem:[%s768 + $0x48] sm:$0xff]
                  %789 = vst [vmem:[%s769 + $0xd8] sm:$0xff] %v788
                  %v790 = vld [vmem:[%s768 + $0x50] sm:$0xff]
                  %791 = vst [vmem:[%s769 + $0xf0] sm:$0xff] %v790
                  %v792 = vld [vmem:[%s768 + $0x58] sm:$0xff]
                  %793 = vst [vmem:[%s769 + $0x108] sm:$0xff] %v792
                  %v794 = vld [vmem:[%s768 + $0x60] sm:$0xff]
                  %795 = vst [vmem:[%s769 + $0x120] sm:$0xff] %v794
                  %v796 = vld [vmem:[%s768 + $0x68] sm:$0xff]
                  %797 = vst [vmem:[%s769 + $0x138] sm:$0xff] %v796
                  %v798 = vld [vmem:[%s768 + $0x70] sm:$0xff]
                  %799 = vst [vmem:[%s769 + $0x150] sm:$0xff] %v798
                  %v800 = vld [vmem:[%s768 + $0x78] sm:$0xff]
                  %801 = vst [vmem:[%s769 + $0x168] sm:$0xff] %v800
                  %v802 = vld [vmem:[%s768 + $0x80] sm:$0xff]
                  %803 = vst [vmem:[%s769 + $0x180] sm:$0xff] %v802
                  %v804 = vld [vmem:[%s768 + $0x88] sm:$0xff]
                  %805 = vst [vmem:[%s769 + $0x198] sm:$0xff] %v804
                  %v806 = vld [vmem:[%s768 + $0x90] sm:$0xff]
                  %807 = vst [vmem:[%s769 + $0x1b0] sm:$0xff] %v806
                  %v808 = vld [vmem:[%s768 + $0x98] sm:$0xff]
                  %809 = vst [vmem:[%s769 + $0x1c8] sm:$0xff] %v808
                  %v810 = vld [vmem:[%s768 + $0xa0] sm:$0xff]
                  %811 = vst [vmem:[%s769 + $0x1e0] sm:$0xff] %v810
                  %v812 = vld [vmem:[%s768 + $0xa8] sm:$0xff]
                  %813 = vst [vmem:[%s769 + $0x1f8] sm:$0xff] %v812
                  %v814 = vld [vmem:[%s768 + $0xb0] sm:$0xff]
                  %815 = vst [vmem:[%s769 + $0x210] sm:$0xff] %v814
                  %v816 = vld [vmem:[%s768 + $0xb8] sm:$0xff]
                  %817 = vst [vmem:[%s769 + $0x228] sm:$0xff] %v816
                  %v818 = vld [vmem:[%s768 + $0xc0] sm:$0xff]
                  %819 = vst [vmem:[%s769 + $0x240] sm:$0xff] %v818
                  %v820 = vld [vmem:[%s768 + $0xc8] sm:$0xff]
                  %821 = vst [vmem:[%s769 + $0x258] sm:$0xff] %v820
                  %v822 = vld [vmem:[%s768 + $0xd0] sm:$0xff]
                  %823 = vst [vmem:[%s769 + $0x270] sm:$0xff] %v822
                  %v824 = vld [vmem:[%s768 + $0xd8] sm:$0xff]
                  %825 = vst [vmem:[%s769 + $0x288] sm:$0xff] %v824
                  %v826 = vld [vmem:[%s768 + $0xe0] sm:$0xff]
                  %827 = vst [vmem:[%s769 + $0x2a0] sm:$0xff] %v826
                  %v828 = vld [vmem:[%s768 + $0xe8] sm:$0xff]
                  %829 = vst [vmem:[%s769 + $0x2b8] sm:$0xff] %v828
                  %v830 = vld [vmem:[%s768 + $0xf0] sm:$0xff]
                  %831 = vst [vmem:[%s769 + $0x2d0] sm:$0xff] %v830
                  %v832 = vld [vmem:[%s768 + $0xf8] sm:$0xff]
                  %833 = vst [vmem:[%s769 + $0x2e8] sm:$0xff] %v832
                $region68: #{ndmamba2_forward.16} parent=62 // loop_footer
                  %s767 = sadd.s32 1, %s763
                $region69: #{ndmamba2_forward.16} parent=62 // loop_footer_branch
                  %762 = sbr.rel target = $region65
                $region70: #{ndmamba2_forward.16} parent=62 // loop_exit
                  _
              $region63: #{ndmamba2_forward.16} parent=47 // pred_fallthru
                _
              // Predicated region
              $region71: #{ndmamba2_forward.16} parent=47 // pred_check
                _
              $region72: #{ndmamba2_forward.16} parent=47 // pred_check_branch
                %835 = sbr.rel target = $region74
              $region73: #{ndmamba2_forward.16} parent=47 // pred_region
                _
              $region74: #{ndmamba2_forward.16} parent=47 // pred_fallthru
                _
            $region48: #{ndmamba2_forward.16} parent=43 // pred_fallthru
              _
            // Predicated region
            $region49: #{ndmamba2_forward.16} parent=43 // pred_check
              _
            $region50: #{ndmamba2_forward.16} parent=43 // pred_check_branch
              %685 = sbr.rel target = $region52
            $region51: #{ndmamba2_forward.16} parent=43 // pred_region
              %s687 = ssub.s32 256, 1
              loop: start=0, step=1, limit=1
              $region53: #{ndmamba2_forward.16} parent=51 // loop_pre_header
                _
              $region54: #{ndmamba2_forward.16} parent=51 // loop_header
                %s689 = sphi 0, %s693
                %p690 = scmp.ge.s32.totalorder %s689, 1
                %s694 = sphi %s671, %s671
                %s695 = sphi %s679, %s679
              $region55: #{ndmamba2_forward.16} parent=51 // loop_header_branch
                %692 = sbr.rel (%p690) target = $region59
              $region56: #{ndmamba2_forward.16} parent=51 // loop_body
                %v696 = vld [vmem:[%s694] sm:%s687]
                %697 = vst [vmem:[%s695] sm:%s687] %v696
                %v698 = vld [vmem:[%s694 + $0x8] sm:%s687]
                %699 = vst [vmem:[%s695 + $0x18] sm:%s687] %v698
                %v700 = vld [vmem:[%s694 + $0x10] sm:%s687]
                %701 = vst [vmem:[%s695 + $0x30] sm:%s687] %v700
                %v702 = vld [vmem:[%s694 + $0x18] sm:%s687]
                %703 = vst [vmem:[%s695 + $0x48] sm:%s687] %v702
                %v704 = vld [vmem:[%s694 + $0x20] sm:%s687]
                %705 = vst [vmem:[%s695 + $0x60] sm:%s687] %v704
                %v706 = vld [vmem:[%s694 + $0x28] sm:%s687]
                %707 = vst [vmem:[%s695 + $0x78] sm:%s687] %v706
                %v708 = vld [vmem:[%s694 + $0x30] sm:%s687]
                %709 = vst [vmem:[%s695 + $0x90] sm:%s687] %v708
                %v710 = vld [vmem:[%s694 + $0x38] sm:%s687]
                %711 = vst [vmem:[%s695 + $0xa8] sm:%s687] %v710
                %v712 = vld [vmem:[%s694 + $0x40] sm:%s687]
                %713 = vst [vmem:[%s695 + $0xc0] sm:%s687] %v712
                %v714 = vld [vmem:[%s694 + $0x48] sm:%s687]
                %715 = vst [vmem:[%s695 + $0xd8] sm:%s687] %v714
                %v716 = vld [vmem:[%s694 + $0x50] sm:%s687]
                %717 = vst [vmem:[%s695 + $0xf0] sm:%s687] %v716
                %v718 = vld [vmem:[%s694 + $0x58] sm:%s687]
                %719 = vst [vmem:[%s695 + $0x108] sm:%s687] %v718
                %v720 = vld [vmem:[%s694 + $0x60] sm:%s687]
                %721 = vst [vmem:[%s695 + $0x120] sm:%s687] %v720
                %v722 = vld [vmem:[%s694 + $0x68] sm:%s687]
                %723 = vst [vmem:[%s695 + $0x138] sm:%s687] %v722
                %v724 = vld [vmem:[%s694 + $0x70] sm:%s687]
                %725 = vst [vmem:[%s695 + $0x150] sm:%s687] %v724
                %v726 = vld [vmem:[%s694 + $0x78] sm:%s687]
                %727 = vst [vmem:[%s695 + $0x168] sm:%s687] %v726
                %v728 = vld [vmem:[%s694 + $0x80] sm:%s687]
                %729 = vst [vmem:[%s695 + $0x180] sm:%s687] %v728
                %v730 = vld [vmem:[%s694 + $0x88] sm:%s687]
                %731 = vst [vmem:[%s695 + $0x198] sm:%s687] %v730
                %v732 = vld [vmem:[%s694 + $0x90] sm:%s687]
                %733 = vst [vmem:[%s695 + $0x1b0] sm:%s687] %v732
                %v734 = vld [vmem:[%s694 + $0x98] sm:%s687]
                %735 = vst [vmem:[%s695 + $0x1c8] sm:%s687] %v734
                %v736 = vld [vmem:[%s694 + $0xa0] sm:%s687]
                %737 = vst [vmem:[%s695 + $0x1e0] sm:%s687] %v736
                %v738 = vld [vmem:[%s694 + $0xa8] sm:%s687]
                %739 = vst [vmem:[%s695 + $0x1f8] sm:%s687] %v738
                %v740 = vld [vmem:[%s694 + $0xb0] sm:%s687]
                %741 = vst [vmem:[%s695 + $0x210] sm:%s687] %v740
                %v742 = vld [vmem:[%s694 + $0xb8] sm:%s687]
                %743 = vst [vmem:[%s695 + $0x228] sm:%s687] %v742
                %v744 = vld [vmem:[%s694 + $0xc0] sm:%s687]
                %745 = vst [vmem:[%s695 + $0x240] sm:%s687] %v744
                %v746 = vld [vmem:[%s694 + $0xc8] sm:%s687]
                %747 = vst [vmem:[%s695 + $0x258] sm:%s687] %v746
                %v748 = vld [vmem:[%s694 + $0xd0] sm:%s687]
                %749 = vst [vmem:[%s695 + $0x270] sm:%s687] %v748
                %v750 = vld [vmem:[%s694 + $0xd8] sm:%s687]
                %751 = vst [vmem:[%s695 + $0x288] sm:%s687] %v750
                %v752 = vld [vmem:[%s694 + $0xe0] sm:%s687]
                %753 = vst [vmem:[%s695 + $0x2a0] sm:%s687] %v752
                %v754 = vld [vmem:[%s694 + $0xe8] sm:%s687]
                %755 = vst [vmem:[%s695 + $0x2b8] sm:%s687] %v754
                %v756 = vld [vmem:[%s694 + $0xf0] sm:%s687]
                %757 = vst [vmem:[%s695 + $0x2d0] sm:%s687] %v756
                %v758 = vld [vmem:[%s694 + $0xf8] sm:%s687]
                %759 = vst [vmem:[%s695 + $0x2e8] sm:%s687] %v758
              $region57: #{ndmamba2_forward.16} parent=51 // loop_footer
                %s693 = sadd.s32 1, %s689
              $region58: #{ndmamba2_forward.16} parent=51 // loop_footer_branch
                %688 = sbr.rel target = $region54
              $region59: #{ndmamba2_forward.16} parent=51 // loop_exit
                _
            $region52: #{ndmamba2_forward.16} parent=43 // pred_fallthru
              _
          $region44: #{ndmamba2_forward.16} parent=39 // pred_fallthru
            _
          %836 = vnop
        $region40: #{ndmamba2_forward.16} parent=27 // pred_fallthru
          _
      $region28: #{ndmamba2_forward.16} parent=5 // pred_fallthru
        _
      %p837 = scmp.le.s32.totalorder 2, %s8
      // Predicated region
      $region75: #{ndmamba2_forward.16} parent=5 // pred_check
        %p838 = pneg %p837
      $region76: #{ndmamba2_forward.16} parent=5 // pred_check_branch
        %840 = sbr.rel (%p838) target = $region78
      $region77: #{ndmamba2_forward.16} parent=5 // pred_region
        %s841 = ssub.s32 %s8, 2
        // Predicated region
        $region79: #{ndmamba2_forward.16} parent=77 // pred_check
          %p842 = pneg %p114
        $region80: #{ndmamba2_forward.16} parent=77 // pred_check_branch
          %844 = sbr.rel (%p842) target = $region82
        $region81: #{ndmamba2_forward.16} parent=77 // pred_region
          %s845 = sand.u32 %s99, 1
          %s846 = sand.u32 %s99, 1
          %s847 = smul.addr %s846, 256
          %s848 = scalar_lea.vmem [#allocation3], %s847
        $region82: #{ndmamba2_forward.16} parent=77 // pred_fallthru
          _
      $region78: #{ndmamba2_forward.16} parent=5 // pred_fallthru
        _
    $region6: #{ndmamba2_forward.16} parent=1 // loop_footer
      %s12 = sadd.s32 1, %s8
    $region7: #{ndmamba2_forward.16} parent=1 // loop_footer_branch
      %7 = sbr.rel target = $region3
    $region8: #{ndmamba2_forward.16} parent=1 // loop_exit
      _

// kernel: ndmamba2_forward.20
$region0: #{ndmamba2_forward.20}
  #allocation0 [shape = 'u32[]', space=smem, size = 0x4, offset = 0x4, fixed_abs, tag = 'smem constant byte address 0x4 - core index']
  #allocation1 [shape = 'u32[144,128]{1,0:T(1,128)}', space=vmem, size = 0x12000, scoped, tag = 'internal scratch']
  #allocation2 [shape = 'f32[256,64]{1,0:T(8,128)}', space=vmem, size = 0x20000, scoped, tag = 'scratch operand']
  %s0 = inlined_call_operand.vmem [shape: f32[512,128], index: 0, kind: input, shape index: {}]
  %s1 = inlined_call_operand.vmem [shape: f32[128,64], index: 1, kind: input, shape index: {}]
  %s2 = inlined_call_operand.vmem [shape: f32[512,64], index: 2, kind: output, shape index: {}]
  %s3 = sld [smem:[#allocation0]]
  $region49: #{ndmamba2_forward.20} parent=0
    _
  %s5 = ssub.s32 1, %s3
  %s6 = scalar_select 0, %s5, %s3
  loop: start=0, step=1, limit=4
  $region2: #{ndmamba2_forward.20} parent=0 // loop_pre_header
    _
  $region3: #{ndmamba2_forward.20} parent=0 // loop_header
    %s8 = sphi 0, %s12
    %p9 = scmp.ge.s32.totalorder %s8, 4
    %s15 = sphi 0, %s34
    %s16 = sphi 0, %s30
    %s17 = sphi 0, %s26
    %s18 = sphi 0, %s15
    %s19 = sphi 0, %s16
    %s20 = sphi 0, %s17
    %s21 = sphi 0, %s18
    %s22 = sphi 0, %s19
    %s23 = sphi 0, %s20
    %s39 = sphi 0, %s41
    %s42 = sphi 0, %s39
    %s43 = sphi 0, %s42
    %s59 = sphi 0, %s43
    %s67 = sphi 0, %s69
    %s70 = sphi 0, %s67
    %s71 = sphi 0, %s70
    %s87 = sphi 0, %s71
    %s95 = sphi 0, %s97
    %s98 = sphi 0, %s95
    %s99 = sphi 0, %s98
    %s115 = sphi 0, %s99
  $region4: #{ndmamba2_forward.20} parent=0 // loop_header_branch
    %11 = sbr.rel (%p9) target = $region8
  $region5: #{ndmamba2_forward.20} parent=0 // loop_body
    %s13 = ssub.s32 %s8, 1
    %s14 = ssub.s32 %s8, 2
    %s24 = sadd.s32 1, %s17
    %p25 = scmp.ge.s32.totalorder %s24, 1
    %s26 = scalar_select %p25, 0, %s24
    %s27 = sadd.s32 1, %s16
    %s28 = scalar_select %p25, %s27, %s16
    %p29 = scmp.ge.s32.totalorder %s28, 1
    %s30 = scalar_select %p29, 0, %s28
    %s31 = sadd.s32 1, %s15
    %s32 = scalar_select %p29, %s31, %s15
    %p33 = scmp.ge.s32.totalorder %s32, 2
    %s34 = scalar_select %p33, 0, %s32
    %s35 = ssub.s32 %s15, %s34
    %s36 = ssub.s32 %s17, %s26
    %s37 = sor.u32 %s35, %s36
    %p38 = scmp.eq.s32.totalorder %s37, 0
    %s40 = sadd.s32 %s39, 1
    %s41 = scalar_select %p38, %s39, %s40
    %p44 = pneg %p38
    %p45 = scmp.eq.s32.totalorder %s8, 1
    %p46 = por %p44, %p45
    %p47 = scmp.ne.s32.totalorder %s39, %s42
    %p48 = scmp.eq.s32.totalorder %s8, 0
    %p49 = por %p47, %p48
    %p50 = scmp.ne.s32.totalorder %s39, %s42
    %p51 = scmp.eq.s32.totalorder %s13, 1
    %p52 = por %p50, %p51
    %p53 = scmp.ne.s32.totalorder %s42, %s43
    %p54 = scmp.eq.s32.totalorder %s13, 0
    %p55 = por %p53, %p54
    %p56 = scmp.ne.s32.totalorder %s42, %s43
    %p57 = scmp.eq.s32.totalorder %s14, 1
    %p58 = por %p56, %p57
    %p60 = scmp.ne.s32.totalorder %s43, %s59
    %p61 = scmp.eq.s32.totalorder %s14, 0
    %p62 = por %p60, %p61
    %s63 = ssub.s32 %s17, %s26
    %s64 = ssub.s32 %s16, %s30
    %s65 = sor.u32 %s63, %s64
    %p66 = scmp.eq.s32.totalorder %s65, 0
    %s68 = sadd.s32 %s67, 1
    %s69 = scalar_select %p66, %s67, %s68
    %p72 = pneg %p66
    %p73 = scmp.eq.s32.totalorder %s8, 1
    %p74 = por %p72, %p73
    %p75 = scmp.ne.s32.totalorder %s67, %s70
    %p76 = scmp.eq.s32.totalorder %s8, 0
    %p77 = por %p75, %p76
    %p78 = scmp.ne.s32.totalorder %s67, %s70
    %p79 = scmp.eq.s32.totalorder %s13, 1
    %p80 = por %p78, %p79
    %p81 = scmp.ne.s32.totalorder %s70, %s71
    %p82 = scmp.eq.s32.totalorder %s13, 0
    %p83 = por %p81, %p82
    %p84 = scmp.ne.s32.totalorder %s70, %s71
    %p85 = scmp.eq.s32.totalorder %s14, 1
    %p86 = por %p84, %p85
    %p88 = scmp.ne.s32.totalorder %s71, %s87
    %p89 = scmp.eq.s32.totalorder %s14, 0
    %p90 = por %p88, %p89
    %s91 = ssub.s32 %s15, %s34
    %s92 = ssub.s32 %s16, %s30
    %s93 = sor.u32 %s91, %s92
    %p94 = scmp.eq.s32.totalorder %s93, 0
    %s96 = sadd.s32 %s95, 1
    %s97 = scalar_select %p94, %s95, %s96
    %p100 = pneg %p94
    %p101 = scmp.eq.s32.totalorder %s8, 1
    %p102 = por %p100, %p101
    %p103 = scmp.ne.s32.totalorder %s95, %s98
    %p104 = scmp.eq.s32.totalorder %s8, 0
    %p105 = por %p103, %p104
    %p106 = scmp.ne.s32.totalorder %s95, %s98
    %p107 = scmp.eq.s32.totalorder %s13, 1
    %p108 = por %p106, %p107
    %p109 = scmp.ne.s32.totalorder %s98, %s99
    %p110 = scmp.eq.s32.totalorder %s13, 0
    %p111 = por %p109, %p110
    %p112 = scmp.ne.s32.totalorder %s98, %s99
    %p113 = scmp.eq.s32.totalorder %s14, 1
    %p114 = por %p112, %p113
    %p116 = scmp.ne.s32.totalorder %s99, %s115
    %p117 = scmp.eq.s32.totalorder %s14, 0
    %p118 = por %p116, %p117
    %p119 = scmp.le.s32.totalorder 1, %s8
    %p120 = scmp.lt.s32.totalorder %s8, 3
    %p121 = pnand %p119, %p120
    %p122 = pneg %p121
    // Predicated region
    $region9: #{ndmamba2_forward.20} parent=5 // pred_check
      _
    $region10: #{ndmamba2_forward.20} parent=5 // pred_check_branch
      %124 = sbr.rel (%p121) target = $region12
    $region11: #{ndmamba2_forward.20} parent=5 // pred_region
      %s125 = ssub.s32 %s8, 1
      // Predicated region
      $region13: #{ndmamba2_forward.20} parent=11 // pred_check
        %p126 = pneg %p83
      $region14: #{ndmamba2_forward.20} parent=11 // pred_check_branch
        %128 = sbr.rel (%p126) target = $region16
      $region15: #{ndmamba2_forward.20} parent=11 // pred_region
        %s129 = smul.u32 16, %s20
        %p130 = scmp.lt.s32.totalorder %s129, 15
        %s131 = scalar_select %p130, %s129, 15
        %p132 = scmp.lt.s32.totalorder %s19, 0
        %s133 = scalar_select %p132, %s19, 0
        %s134 = sadd.s32 %s133, %s131
        %s135 = smul.addr %s134, 8
        %s136 = scalar_lea.vmem %s1, %s135
        %s137 = smul.u32 16, %s20
      $region16: #{ndmamba2_forward.20} parent=11 // pred_fallthru
        _
    $region12: #{ndmamba2_forward.20} parent=5 // pred_fallthru
      _
    %p138 = scmp.lt.s32.totalorder %s8, 2
    // Predicated region
    $region17: #{ndmamba2_forward.20} parent=5 // pred_check
      %p139 = pneg %p138
    $region18: #{ndmamba2_forward.20} parent=5 // pred_check_branch
      %141 = sbr.rel (%p139) target = $region20
    $region19: #{ndmamba2_forward.20} parent=5 // pred_region
      // Predicated region
      $region21: #{ndmamba2_forward.20} parent=19 // pred_check
        %p142 = pneg %p49
      $region22: #{ndmamba2_forward.20} parent=19 // pred_check_branch
        %144 = sbr.rel (%p142) target = $region24
      $region23: #{ndmamba2_forward.20} parent=19 // pred_region
        %s145 = smul.u32 32, %s15
        %p146 = scmp.lt.s32.totalorder %s145, 63
        %s147 = scalar_select %p146, %s145, 63
        %p148 = scmp.lt.s32.totalorder %s17, 0
        %s149 = scalar_select %p148, %s17, 0
        %s150 = sadd.s32 %s149, %s147
        %s151 = smul.addr %s150, 8
        %s152 = scalar_lea.vmem %s0, %s151
        %s153 = smul.u32 32, %s15
      $region24: #{ndmamba2_forward.20} parent=19 // pred_fallthru
        _
    $region20: #{ndmamba2_forward.20} parent=5 // pred_fallthru
      _
    %p154 = scmp.le.s32.totalorder 1, %s8
    %p155 = scmp.lt.s32.totalorder %s8, 3
    %p156 = pnand %p154, %p155
    %p157 = pneg %p156
    // Predicated region
    $region25: #{ndmamba2_forward.20} parent=5 // pred_check
      _
    $region26: #{ndmamba2_forward.20} parent=5 // pred_check_branch
      %159 = sbr.rel (%p156) target = $region28
    $region27: #{ndmamba2_forward.20} parent=5 // pred_region
      %s160 = ssub.s32 %s8, 1
      %s161 = smul.u32 32, %s18
      %p162 = scmp.lt.s32.totalorder %s161, 63
      %s163 = scalar_select %p162, %s161, 63
      %p164 = scmp.lt.s32.totalorder %s20, 0
      %s165 = scalar_select %p164, %s20, 0
      %s166 = sadd.s32 %s165, %s163
      %s167 = smul.addr %s166, 8
      %s168 = scalar_lea.vmem %s0, %s167
      %p169 = pneg %p55
      %p170 = pneg %p52
      %s171 = smul.u32 16, %s20
      %p172 = scmp.lt.s32.totalorder %s171, 15
      %s173 = scalar_select %p172, %s171, 15
      %p174 = scmp.lt.s32.totalorder %s19, 0
      %s175 = scalar_select %p174, %s19, 0
      %s176 = sadd.s32 %s175, %s173
      %s177 = smul.addr %s176, 8
      %s178 = scalar_lea.vmem %s1, %s177
      %p179 = pneg %p83
      %p180 = pneg %p80
      %p181 = pneg %p111
      %p182 = pneg %p108
      %s183 = smul.u32 32, %s18
      %p184 = scmp.lt.s32.totalorder %s183, 63
      %s185 = scalar_select %p184, %s183, 63
      %p186 = scmp.lt.s32.totalorder %s19, 0
      %s187 = scalar_select %p186, %s19, 0
      %s188 = sadd.s32 %s187, %s185
      %s189 = smul.addr %s188, 8
      %s190 = scalar_lea.vmem %s2, %s189
      %s191 = smul.u32 32, %s18
      %p192 = scmp.lt.s32.totalorder %s191, 63
      %s193 = scalar_select %p192, %s191, 63
      %p194 = scmp.lt.s32.totalorder %s20, 0
      %s195 = scalar_select %p194, %s20, 0
      %s196 = sadd.s32 %s195, %s193
      %s197 = smul.addr %s196, 8
      %s198 = scalar_lea.vmem %s0, %s197
      %s199 = smul.u32 32, %s18
      %s200 = smul.u32 16, %s20
      %p201 = scmp.lt.s32.totalorder %s200, 15
      %s202 = scalar_select %p201, %s200, 15
      %p203 = scmp.lt.s32.totalorder %s19, 0
      %s204 = scalar_select %p203, %s19, 0
      %s205 = sadd.s32 %s204, %s202
      %s206 = smul.addr %s205, 8
      %s207 = scalar_lea.vmem %s1, %s206
      %s208 = smul.u32 16, %s20
      %s209 = smul.u32 32, %s18
      %p210 = scmp.lt.s32.totalorder %s209, 63
      %s211 = scalar_select %p210, %s209, 63
      %p212 = scmp.lt.s32.totalorder %s19, 0
      %s213 = scalar_select %p212, %s19, 0
      %s214 = sadd.s32 %s213, %s211
      %s215 = smul.addr %s214, 8
      %s216 = scalar_lea.vmem %s2, %s215
      %s217 = smul.u32 32, %s18
      %p219 = scmp.eq.s32.totalorder %s20, 0
      // Predicated region
      $region29: #{ndmamba2_forward.20} parent=27 // pred_check
        %p220 = pneg %p219
      $region30: #{ndmamba2_forward.20} parent=27 // pred_check_branch
        %222 = sbr.rel (%p220) target = $region32
      $region31: #{ndmamba2_forward.20} parent=27 // pred_region
        %vm223 = vcmask 523264
        %224 = vst.msk [vmem:[#allocation2] sm:$0xff] %vm223, 0.0
        %225 = vst.msk [vmem:[#allocation2 + $0x8] sm:$0xff] %vm223, 0.0
        %226 = vst.msk [vmem:[#allocation2 + $0x10] sm:$0xff] %vm223, 0.0
        %227 = vst.msk [vmem:[#allocation2 + $0x18] sm:$0xff] %vm223, 0.0
        %228 = vst.msk [vmem:[#allocation2 + $0x20] sm:$0xff] %vm223, 0.0
        %229 = vst.msk [vmem:[#allocation2 + $0x28] sm:$0xff] %vm223, 0.0
        %230 = vst.msk [vmem:[#allocation2 + $0x30] sm:$0xff] %vm223, 0.0
        %231 = vst.msk [vmem:[#allocation2 + $0x38] sm:$0xff] %vm223, 0.0
        %232 = vst.msk [vmem:[#allocation2 + $0x40] sm:$0xff] %vm223, 0.0
        %233 = vst.msk [vmem:[#allocation2 + $0x48] sm:$0xff] %vm223, 0.0
        %234 = vst.msk [vmem:[#allocation2 + $0x50] sm:$0xff] %vm223, 0.0
        %235 = vst.msk [vmem:[#allocation2 + $0x58] sm:$0xff] %vm223, 0.0
        %236 = vst.msk [vmem:[#allocation2 + $0x60] sm:$0xff] %vm223, 0.0
        %237 = vst.msk [vmem:[#allocation2 + $0x68] sm:$0xff] %vm223, 0.0
        %238 = vst.msk [vmem:[#allocation2 + $0x70] sm:$0xff] %vm223, 0.0
        %239 = vst.msk [vmem:[#allocation2 + $0x78] sm:$0xff] %vm223, 0.0
        %240 = vst.msk [vmem:[#allocation2 + $0x80] sm:$0xff] %vm223, 0.0
        %241 = vst.msk [vmem:[#allocation2 + $0x88] sm:$0xff] %vm223, 0.0
        %242 = vst.msk [vmem:[#allocation2 + $0x90] sm:$0xff] %vm223, 0.0
        %243 = vst.msk [vmem:[#allocation2 + $0x98] sm:$0xff] %vm223, 0.0
        %244 = vst.msk [vmem:[#allocation2 + $0xa0] sm:$0xff] %vm223, 0.0
        %245 = vst.msk [vmem:[#allocation2 + $0xa8] sm:$0xff] %vm223, 0.0
        %246 = vst.msk [vmem:[#allocation2 + $0xb0] sm:$0xff] %vm223, 0.0
        %247 = vst.msk [vmem:[#allocation2 + $0xb8] sm:$0xff] %vm223, 0.0
        %248 = vst.msk [vmem:[#allocation2 + $0xc0] sm:$0xff] %vm223, 0.0
        %249 = vst.msk [vmem:[#allocation2 + $0xc8] sm:$0xff] %vm223, 0.0
        %250 = vst.msk [vmem:[#allocation2 + $0xd0] sm:$0xff] %vm223, 0.0
        %251 = vst.msk [vmem:[#allocation2 + $0xd8] sm:$0xff] %vm223, 0.0
        %252 = vst.msk [vmem:[#allocation2 + $0xe0] sm:$0xff] %vm223, 0.0
        %253 = vst.msk [vmem:[#allocation2 + $0xe8] sm:$0xff] %vm223, 0.0
        %254 = vst.msk [vmem:[#allocation2 + $0xf0] sm:$0xff] %vm223, 0.0
        %255 = vst.msk [vmem:[#allocation2 + $0xf8] sm:$0xff] %vm223, 0.0
      $region32: #{ndmamba2_forward.20} parent=27 // pred_fallthru
        _
      %v256 = vld [vmem:[#allocation2] sm:$0xff]
      %v257 = vld [vmem:[#allocation2 + $0x8] sm:$0xff]
      %v258 = vld [vmem:[#allocation2 + $0x10] sm:$0xff]
      %v259 = vld [vmem:[#allocation2 + $0x18] sm:$0xff]
      %v260 = vld [vmem:[#allocation2 + $0x20] sm:$0xff]
      %v261 = vld [vmem:[#allocation2 + $0x28] sm:$0xff]
      %v262 = vld [vmem:[#allocation2 + $0x30] sm:$0xff]
      %v263 = vld [vmem:[#allocation2 + $0x38] sm:$0xff]
      %v264 = vld [vmem:[#allocation2 + $0x40] sm:$0xff]
      %v265 = vld [vmem:[#allocation2 + $0x48] sm:$0xff]
      %v266 = vld [vmem:[#allocation2 + $0x50] sm:$0xff]
      %v267 = vld [vmem:[#allocation2 + $0x58] sm:$0xff]
      %v268 = vld [vmem:[#allocation2 + $0x60] sm:$0xff]
      %v269 = vld [vmem:[#allocation2 + $0x68] sm:$0xff]
      %v270 = vld [vmem:[#allocation2 + $0x70] sm:$0xff]
      %v271 = vld [vmem:[#allocation2 + $0x78] sm:$0xff]
      %v272 = vld [vmem:[#allocation2 + $0x80] sm:$0xff]
      %v273 = vld [vmem:[#allocation2 + $0x88] sm:$0xff]
      %v274 = vld [vmem:[#allocation2 + $0x90] sm:$0xff]
      %v275 = vld [vmem:[#allocation2 + $0x98] sm:$0xff]
      %v276 = vld [vmem:[#allocation2 + $0xa0] sm:$0xff]
      %v277 = vld [vmem:[#allocation2 + $0xa8] sm:$0xff]
      %v278 = vld [vmem:[#allocation2 + $0xb0] sm:$0xff]
      %v279 = vld [vmem:[#allocation2 + $0xb8] sm:$0xff]
      %v280 = vld [vmem:[#allocation2 + $0xc0] sm:$0xff]
      %v281 = vld [vmem:[#allocation2 + $0xc8] sm:$0xff]
      %v282 = vld [vmem:[#allocation2 + $0xd0] sm:$0xff]
      %v283 = vld [vmem:[#allocation2 + $0xd8] sm:$0xff]
      %v284 = vld [vmem:[#allocation2 + $0xe0] sm:$0xff]
      %v285 = vld [vmem:[#allocation2 + $0xe8] sm:$0xff]
      %v286 = vld [vmem:[#allocation2 + $0xf0] sm:$0xff]
      %v287 = vld [vmem:[#allocation2 + $0xf8] sm:$0xff]
      %v288 = vld [vmem:[%s198] sm:$0xff]
      %v289 = vld [vmem:[%s198 + $0x8] sm:$0xff]
      %v290 = vld [vmem:[%s198 + $0x10] sm:$0xff]
      %v291 = vld [vmem:[%s198 + $0x18] sm:$0xff]
      %v292 = vld [vmem:[%s198 + $0x20] sm:$0xff]
      %v293 = vld [vmem:[%s198 + $0x28] sm:$0xff]
      %v294 = vld [vmem:[%s198 + $0x30] sm:$0xff]
      %v295 = vld [vmem:[%s198 + $0x38] sm:$0xff]
      %v296 = vld [vmem:[%s198 + $0x40] sm:$0xff]
      %v297 = vld [vmem:[%s198 + $0x48] sm:$0xff]
      %v298 = vld [vmem:[%s198 + $0x50] sm:$0xff]
      %v299 = vld [vmem:[%s198 + $0x58] sm:$0xff]
      %v300 = vld [vmem:[%s198 + $0x60] sm:$0xff]
      %v301 = vld [vmem:[%s198 + $0x68] sm:$0xff]
      %v302 = vld [vmem:[%s198 + $0x70] sm:$0xff]
      %v303 = vld [vmem:[%s198 + $0x78] sm:$0xff]
      %v304 = vld [vmem:[%s198 + $0x80] sm:$0xff]
      %v305 = vld [vmem:[%s198 + $0x88] sm:$0xff]
      %v306 = vld [vmem:[%s198 + $0x90] sm:$0xff]
      %v307 = vld [vmem:[%s198 + $0x98] sm:$0xff]
      %v308 = vld [vmem:[%s198 + $0xa0] sm:$0xff]
      %v309 = vld [vmem:[%s198 + $0xa8] sm:$0xff]
      %v310 = vld [vmem:[%s198 + $0xb0] sm:$0xff]
      %v311 = vld [vmem:[%s198 + $0xb8] sm:$0xff]
      %v312 = vld [vmem:[%s198 + $0xc0] sm:$0xff]
      %v313 = vld [vmem:[%s198 + $0xc8] sm:$0xff]
      %v314 = vld [vmem:[%s198 + $0xd0] sm:$0xff]
      %v315 = vld [vmem:[%s198 + $0xd8] sm:$0xff]
      %v316 = vld [vmem:[%s198 + $0xe0] sm:$0xff]
      %v317 = vld [vmem:[%s198 + $0xe8] sm:$0xff]
      %v318 = vld [vmem:[%s198 + $0xf0] sm:$0xff]
      %v319 = vld [vmem:[%s198 + $0xf8] sm:$0xff]
      %v320 = vpack.c.bf16 %v289, %v288
      %v321 = vpack.c.bf16 %v291, %v290
      %v322 = vpack.c.bf16 %v293, %v292
      %v323 = vpack.c.bf16 %v295, %v294
      %v324 = vpack.c.bf16 %v297, %v296
      %v325 = vpack.c.bf16 %v299, %v298
      %v326 = vpack.c.bf16 %v301, %v300
      %v327 = vpack.c.bf16 %v303, %v302
      %v328 = vpack.c.bf16 %v305, %v304
      %v329 = vpack.c.bf16 %v307, %v306
      %v330 = vpack.c.bf16 %v309, %v308
      %v331 = vpack.c.bf16 %v311, %v310
      %v332 = vpack.c.bf16 %v313, %v312
      %v333 = vpack.c.bf16 %v315, %v314
      %v334 = vpack.c.bf16 %v317, %v316
      %v335 = vpack.c.bf16 %v319, %v318
      %v336 = vld [vmem:[%s207] sm:$0xff]
      %v337 = vld [vmem:[%s207 + $0x8] sm:$0xff]
      %v338 = vld [vmem:[%s207 + $0x10] sm:$0xff]
      %v339 = vld [vmem:[%s207 + $0x18] sm:$0xff]
      %v340 = vld [vmem:[%s207 + $0x20] sm:$0xff]
      %v341 = vld [vmem:[%s207 + $0x28] sm:$0xff]
      %v342 = vld [vmem:[%s207 + $0x30] sm:$0xff]
      %v343 = vld [vmem:[%s207 + $0x38] sm:$0xff]
      %v344 = vld [vmem:[%s207 + $0x40] sm:$0xff]
      %v345 = vld [vmem:[%s207 + $0x48] sm:$0xff]
      %v346 = vld [vmem:[%s207 + $0x50] sm:$0xff]
      %v347 = vld [vmem:[%s207 + $0x58] sm:$0xff]
      %v348 = vld [vmem:[%s207 + $0x60] sm:$0xff]
      %v349 = vld [vmem:[%s207 + $0x68] sm:$0xff]
      %v350 = vld [vmem:[%s207 + $0x70] sm:$0xff]
      %v351 = vld [vmem:[%s207 + $0x78] sm:$0xff]
      %v352 = vpack.c.bf16 %v337, %v336
      %v353 = vpack.c.bf16 %v339, %v338
      %v354 = vpack.c.bf16 %v341, %v340
      %v355 = vpack.c.bf16 %v343, %v342
      %v356 = vpack.c.bf16 %v345, %v344
      %v357 = vpack.c.bf16 %v347, %v346
      %v358 = vpack.c.bf16 %v349, %v348
      %v359 = vpack.c.bf16 %v351, %v350
      %360 = vmatprep.subr.bf16.mxu0 0
      %361 = vmatpush1.bf16.msra.mxu0 %v359
      %362 = vmatprep.subr.bf16.mxu0 0
      %363 = vmatpush1.bf16.msra.mxu0 %v358
      %364 = vmatprep.subr.bf16.mxu0 0
      %365 = vmatpush1.bf16.msra.mxu0 %v357
      %366 = vmatprep.subr.bf16.mxu0 0
      %367 = vmatpush1.bf16.msra.mxu0 %v356
      %368 = vmatprep.subr.bf16.mxu0 0
      %369 = vmatpush1.bf16.msra.mxu0 %v355
      %370 = vmatprep.subr.bf16.mxu0 0
      %371 = vmatpush1.bf16.msra.mxu0 %v354
      %372 = vmatprep.subr.bf16.mxu0 0
      %373 = vmatpush1.bf16.msra.mxu0 %v353
      %374 = vmatprep.subr.bf16.mxu0 0
      %375 = vmatpush1.bf16.msra.mxu0 %v352
      %376 = vmatprep.subr.bf16.mxu0 0
      %377 = vmatpush2.bf16.msra.mxu0 0
      %378 = vmatprep.subr.bf16.mxu0 0
      %379 = vmatpush2.bf16.msra.mxu0 0
      %380 = vmatprep.subr.bf16.mxu0 0
      %381 = vmatpush2.bf16.msra.mxu0 0
      %382 = vmatprep.subr.bf16.mxu0 0
      %383 = vmatpush2.bf16.msra.mxu0 0
      %384 = vmatprep.subr.bf16.mxu0 0
      %385 = vmatpush2.bf16.msra.mxu0 0
      %386 = vmatprep.subr.bf16.mxu0 0
      %387 = vmatpush2.bf16.msra.mxu0 0
      %388 = vmatprep.subr.bf16.mxu0 0
      %389 = vmatpush2.bf16.msra.mxu0 0
      %390 = vmatprep.subr.bf16.mxu0 0
      %391 = vmatpush2.bf16.msra.mxu0 0
      %392 = vmatprep.mubr.bf16.mxu0 0
      %393 = vmatmul.mubr.bf16.gmra.mxu0 %v320
      %v394 = vpop.f32.mrf.mxu0
      %v395 = vadd.f32 0.0, %v394
      %v396 = vpop.f32.mrf.mxu0
      %v397 = vpop.f32.mrf.mxu0
      %v398 = vadd.f32 0.0, %v397
      %v399 = vpop.f32.mrf.mxu0
      %400 = vmatprep.mubr.bf16.mxu0 0
      %401 = vmatmul.mubr.bf16.gmra.mxu0 %v321
      %v402 = vpop.f32.mrf.mxu0
      %v403 = vadd.f32 0.0, %v402
      %v404 = vpop.f32.mrf.mxu0
      %v405 = vpop.f32.mrf.mxu0
      %v406 = vadd.f32 0.0, %v405
      %v407 = vpop.f32.mrf.mxu0
      %408 = vmatprep.mubr.bf16.mxu0 0
      %409 = vmatmul.mubr.bf16.gmra.mxu0 %v322
      %v410 = vpop.f32.mrf.mxu0
      %v411 = vadd.f32 0.0, %v410
      %v412 = vpop.f32.mrf.mxu0
      %v413 = vpop.f32.mrf.mxu0
      %v414 = vadd.f32 0.0, %v413
      %v415 = vpop.f32.mrf.mxu0
      %416 = vmatprep.mubr.bf16.mxu0 0
      %417 = vmatmul.mubr.bf16.gmra.mxu0 %v323
      %v418 = vpop.f32.mrf.mxu0
      %v419 = vadd.f32 0.0, %v418
      %v420 = vpop.f32.mrf.mxu0
      %v421 = vpop.f32.mrf.mxu0
      %v422 = vadd.f32 0.0, %v421
      %v423 = vpop.f32.mrf.mxu0
      %424 = vmatprep.mubr.bf16.mxu0 0
      %425 = vmatmul.mubr.bf16.gmra.mxu0 %v324
      %v426 = vpop.f32.mrf.mxu0
      %v427 = vadd.f32 0.0, %v426
      %v428 = vpop.f32.mrf.mxu0
      %v429 = vpop.f32.mrf.mxu0
      %v430 = vadd.f32 0.0, %v429
      %v431 = vpop.f32.mrf.mxu0
      %432 = vmatprep.mubr.bf16.mxu0 0
      %433 = vmatmul.mubr.bf16.gmra.mxu0 %v325
      %v434 = vpop.f32.mrf.mxu0
      %v435 = vadd.f32 0.0, %v434
      %v436 = vpop.f32.mrf.mxu0
      %v437 = vpop.f32.mrf.mxu0
      %v438 = vadd.f32 0.0, %v437
      %v439 = vpop.f32.mrf.mxu0
      %440 = vmatprep.mubr.bf16.mxu0 0
      %441 = vmatmul.mubr.bf16.gmra.mxu0 %v326
      %v442 = vpop.f32.mrf.mxu0
      %v443 = vadd.f32 0.0, %v442
      %v444 = vpop.f32.mrf.mxu0
      %v445 = vpop.f32.mrf.mxu0
      %v446 = vadd.f32 0.0, %v445
      %v447 = vpop.f32.mrf.mxu0
      %448 = vmatprep.mubr.bf16.mxu0 0
      %449 = vmatmul.mubr.bf16.gmra.mxu0 %v327
      %v450 = vpop.f32.mrf.mxu0
      %v451 = vadd.f32 0.0, %v450
      %v452 = vpop.f32.mrf.mxu0
      %v453 = vpop.f32.mrf.mxu0
      %v454 = vadd.f32 0.0, %v453
      %v455 = vpop.f32.mrf.mxu0
      %456 = vmatprep.mubr.bf16.mxu0 0
      %457 = vmatmul.mubr.bf16.gmra.mxu0 %v328
      %v458 = vpop.f32.mrf.mxu0
      %v459 = vadd.f32 0.0, %v458
      %v460 = vpop.f32.mrf.mxu0
      %v461 = vpop.f32.mrf.mxu0
      %v462 = vadd.f32 0.0, %v461
      %v463 = vpop.f32.mrf.mxu0
      %464 = vmatprep.mubr.bf16.mxu0 0
      %465 = vmatmul.mubr.bf16.gmra.mxu0 %v329
      %v466 = vpop.f32.mrf.mxu0
      %v467 = vadd.f32 0.0, %v466
      %v468 = vpop.f32.mrf.mxu0
      %v469 = vpop.f32.mrf.mxu0
      %v470 = vadd.f32 0.0, %v469
      %v471 = vpop.f32.mrf.mxu0
      %472 = vmatprep.mubr.bf16.mxu0 0
      %473 = vmatmul.mubr.bf16.gmra.mxu0 %v330
      %v474 = vpop.f32.mrf.mxu0
      %v475 = vadd.f32 0.0, %v474
      %v476 = vpop.f32.mrf.mxu0
      %v477 = vpop.f32.mrf.mxu0
      %v478 = vadd.f32 0.0, %v477
      %v479 = vpop.f32.mrf.mxu0
      %480 = vmatprep.mubr.bf16.mxu0 0
      %481 = vmatmul.mubr.bf16.gmra.mxu0 %v331
      %v482 = vpop.f32.mrf.mxu0
      %v483 = vadd.f32 0.0, %v482
      %v484 = vpop.f32.mrf.mxu0
      %v485 = vpop.f32.mrf.mxu0
      %v486 = vadd.f32 0.0, %v485
      %v487 = vpop.f32.mrf.mxu0
      %488 = vmatprep.mubr.bf16.mxu0 0
      %489 = vmatmul.mubr.bf16.gmra.mxu0 %v332
      %v490 = vpop.f32.mrf.mxu0
      %v491 = vadd.f32 0.0, %v490
      %v492 = vpop.f32.mrf.mxu0
      %v493 = vpop.f32.mrf.mxu0
      %v494 = vadd.f32 0.0, %v493
      %v495 = vpop.f32.mrf.mxu0
      %496 = vmatprep.mubr.bf16.mxu0 0
      %497 = vmatmul.mubr.bf16.gmra.mxu0 %v333
      %v498 = vpop.f32.mrf.mxu0
      %v499 = vadd.f32 0.0, %v498
      %v500 = vpop.f32.mrf.mxu0
      %v501 = vpop.f32.mrf.mxu0
      %v502 = vadd.f32 0.0, %v501
      %v503 = vpop.f32.mrf.mxu0
      %504 = vmatprep.mubr.bf16.mxu0 0
      %505 = vmatmul.mubr.bf16.gmra.mxu0 %v334
      %v506 = vpop.f32.mrf.mxu0
      %v507 = vadd.f32 0.0, %v506
      %v508 = vpop.f32.mrf.mxu0
      %v509 = vpop.f32.mrf.mxu0
      %v510 = vadd.f32 0.0, %v509
      %v511 = vpop.f32.mrf.mxu0
      %512 = vmatprep.mubr.bf16.mxu0 0
      %513 = vmatmul.mubr.bf16.gmra.mxu0 %v335
      %v514 = vpop.f32.mrf.mxu0
      %v515 = vadd.f32 0.0, %v514
      %v516 = vpop.f32.mrf.mxu0
      %v517 = vpop.f32.mrf.mxu0
      %v518 = vadd.f32 0.0, %v517
      %v519 = vpop.f32.mrf.mxu0
      %520 = vdwg.mxu0
      %v521 = vadd.f32 %v256, %v395
      %v522 = vadd.f32 %v257, %v398
      %v523 = vadd.f32 %v258, %v403
      %v524 = vadd.f32 %v259, %v406
      %v525 = vadd.f32 %v260, %v411
      %v526 = vadd.f32 %v261, %v414
      %v527 = vadd.f32 %v262, %v419
      %v528 = vadd.f32 %v263, %v422
      %v529 = vadd.f32 %v264, %v427
      %v530 = vadd.f32 %v265, %v430
      %v531 = vadd.f32 %v266, %v435
      %v532 = vadd.f32 %v267, %v438
      %v533 = vadd.f32 %v268, %v443
      %v534 = vadd.f32 %v269, %v446
      %v535 = vadd.f32 %v270, %v451
      %v536 = vadd.f32 %v271, %v454
      %v537 = vadd.f32 %v272, %v459
      %v538 = vadd.f32 %v273, %v462
      %v539 = vadd.f32 %v274, %v467
      %v540 = vadd.f32 %v275, %v470
      %v541 = vadd.f32 %v276, %v475
      %v542 = vadd.f32 %v277, %v478
      %v543 = vadd.f32 %v278, %v483
      %v544 = vadd.f32 %v279, %v486
      %v545 = vadd.f32 %v280, %v491
      %v546 = vadd.f32 %v281, %v494
      %v547 = vadd.f32 %v282, %v499
      %v548 = vadd.f32 %v283, %v502
      %v549 = vadd.f32 %v284, %v507
      %v550 = vadd.f32 %v285, %v510
      %v551 = vadd.f32 %v286, %v515
      %v552 = vadd.f32 %v287, %v518
      %vm553 = vcmask 523264
      %554 = vst.msk [vmem:[#allocation2] sm:$0xff] %vm553, %v521
      %555 = vst.msk [vmem:[#allocation2 + $0x8] sm:$0xff] %vm553, %v522
      %556 = vst.msk [vmem:[#allocation2 + $0x10] sm:$0xff] %vm553, %v523
      %557 = vst.msk [vmem:[#allocation2 + $0x18] sm:$0xff] %vm553, %v524
      %558 = vst.msk [vmem:[#allocation2 + $0x20] sm:$0xff] %vm553, %v525
      %559 = vst.msk [vmem:[#allocation2 + $0x28] sm:$0xff] %vm553, %v526
      %560 = vst.msk [vmem:[#allocation2 + $0x30] sm:$0xff] %vm553, %v527
      %561 = vst.msk [vmem:[#allocation2 + $0x38] sm:$0xff] %vm553, %v528
      %562 = vst.msk [vmem:[#allocation2 + $0x40] sm:$0xff] %vm553, %v529
      %563 = vst.msk [vmem:[#allocation2 + $0x48] sm:$0xff] %vm553, %v530
      %564 = vst.msk [vmem:[#allocation2 + $0x50] sm:$0xff] %vm553, %v531
      %565 = vst.msk [vmem:[#allocation2 + $0x58] sm:$0xff] %vm553, %v532
      %566 = vst.msk [vmem:[#allocation2 + $0x60] sm:$0xff] %vm553, %v533
      %567 = vst.msk [vmem:[#allocation2 + $0x68] sm:$0xff] %vm553, %v534
      %568 = vst.msk [vmem:[#allocation2 + $0x70] sm:$0xff] %vm553, %v535
      %569 = vst.msk [vmem:[#allocation2 + $0x78] sm:$0xff] %vm553, %v536
      %570 = vst.msk [vmem:[#allocation2 + $0x80] sm:$0xff] %vm553, %v537
      %571 = vst.msk [vmem:[#allocation2 + $0x88] sm:$0xff] %vm553, %v538
      %572 = vst.msk [vmem:[#allocation2 + $0x90] sm:$0xff] %vm553, %v539
      %573 = vst.msk [vmem:[#allocation2 + $0x98] sm:$0xff] %vm553, %v540
      %574 = vst.msk [vmem:[#allocation2 + $0xa0] sm:$0xff] %vm553, %v541
      %575 = vst.msk [vmem:[#allocation2 + $0xa8] sm:$0xff] %vm553, %v542
      %576 = vst.msk [vmem:[#allocation2 + $0xb0] sm:$0xff] %vm553, %v543
      %577 = vst.msk [vmem:[#allocation2 + $0xb8] sm:$0xff] %vm553, %v544
      %578 = vst.msk [vmem:[#allocation2 + $0xc0] sm:$0xff] %vm553, %v545
      %579 = vst.msk [vmem:[#allocation2 + $0xc8] sm:$0xff] %vm553, %v546
      %580 = vst.msk [vmem:[#allocation2 + $0xd0] sm:$0xff] %vm553, %v547
      %581 = vst.msk [vmem:[#allocation2 + $0xd8] sm:$0xff] %vm553, %v548
      %582 = vst.msk [vmem:[#allocation2 + $0xe0] sm:$0xff] %vm553, %v549
      %583 = vst.msk [vmem:[#allocation2 + $0xe8] sm:$0xff] %vm553, %v550
      %584 = vst.msk [vmem:[#allocation2 + $0xf0] sm:$0xff] %vm553, %v551
      %585 = vst.msk [vmem:[#allocation2 + $0xf8] sm:$0xff] %vm553, %v552
      // Predicated region
      $region33: #{ndmamba2_forward.20} parent=27 // pred_check
        %p586 = pneg %p219
      $region34: #{ndmamba2_forward.20} parent=27 // pred_check_branch
        %588 = sbr.rel (%p586) target = $region36
      $region35: #{ndmamba2_forward.20} parent=27 // pred_region
        %v589 = vld [vmem:[#allocation2] sm:$0xff]
        %v590 = vld [vmem:[#allocation2 + $0x8] sm:$0xff]
        %v591 = vld [vmem:[#allocation2 + $0x10] sm:$0xff]
        %v592 = vld [vmem:[#allocation2 + $0x18] sm:$0xff]
        %v593 = vld [vmem:[#allocation2 + $0x20] sm:$0xff]
        %v594 = vld [vmem:[#allocation2 + $0x28] sm:$0xff]
        %v595 = vld [vmem:[#allocation2 + $0x30] sm:$0xff]
        %v596 = vld [vmem:[#allocation2 + $0x38] sm:$0xff]
        %v597 = vld [vmem:[#allocation2 + $0x40] sm:$0xff]
        %v598 = vld [vmem:[#allocation2 + $0x48] sm:$0xff]
        %v599 = vld [vmem:[#allocation2 + $0x50] sm:$0xff]
        %v600 = vld [vmem:[#allocation2 + $0x58] sm:$0xff]
        %v601 = vld [vmem:[#allocation2 + $0x60] sm:$0xff]
        %v602 = vld [vmem:[#allocation2 + $0x68] sm:$0xff]
        %v603 = vld [vmem:[#allocation2 + $0x70] sm:$0xff]
        %v604 = vld [vmem:[#allocation2 + $0x78] sm:$0xff]
        %v605 = vld [vmem:[#allocation2 + $0x80] sm:$0xff]
        %v606 = vld [vmem:[#allocation2 + $0x88] sm:$0xff]
        %v607 = vld [vmem:[#allocation2 + $0x90] sm:$0xff]
        %v608 = vld [vmem:[#allocation2 + $0x98] sm:$0xff]
        %v609 = vld [vmem:[#allocation2 + $0xa0] sm:$0xff]
        %v610 = vld [vmem:[#allocation2 + $0xa8] sm:$0xff]
        %v611 = vld [vmem:[#allocation2 + $0xb0] sm:$0xff]
        %v612 = vld [vmem:[#allocation2 + $0xb8] sm:$0xff]
        %v613 = vld [vmem:[#allocation2 + $0xc0] sm:$0xff]
        %v614 = vld [vmem:[#allocation2 + $0xc8] sm:$0xff]
        %v615 = vld [vmem:[#allocation2 + $0xd0] sm:$0xff]
        %v616 = vld [vmem:[#allocation2 + $0xd8] sm:$0xff]
        %v617 = vld [vmem:[#allocation2 + $0xe0] sm:$0xff]
        %v618 = vld [vmem:[#allocation2 + $0xe8] sm:$0xff]
        %v619 = vld [vmem:[#allocation2 + $0xf0] sm:$0xff]
        %v620 = vld [vmem:[#allocation2 + $0xf8] sm:$0xff]
        %621 = vst.msk [vmem:[%s216] sm:$0xff] %vm553, %v589
        %622 = vst.msk [vmem:[%s216 + $0x8] sm:$0xff] %vm553, %v590
        %623 = vst.msk [vmem:[%s216 + $0x10] sm:$0xff] %vm553, %v591
        %624 = vst.msk [vmem:[%s216 + $0x18] sm:$0xff] %vm553, %v592
        %625 = vst.msk [vmem:[%s216 + $0x20] sm:$0xff] %vm553, %v593
        %626 = vst.msk [vmem:[%s216 + $0x28] sm:$0xff] %vm553, %v594
        %627 = vst.msk [vmem:[%s216 + $0x30] sm:$0xff] %vm553, %v595
        %628 = vst.msk [vmem:[%s216 + $0x38] sm:$0xff] %vm553, %v596
        %629 = vst.msk [vmem:[%s216 + $0x40] sm:$0xff] %vm553, %v597
        %630 = vst.msk [vmem:[%s216 + $0x48] sm:$0xff] %vm553, %v598
        %631 = vst.msk [vmem:[%s216 + $0x50] sm:$0xff] %vm553, %v599
        %632 = vst.msk [vmem:[%s216 + $0x58] sm:$0xff] %vm553, %v600
        %633 = vst.msk [vmem:[%s216 + $0x60] sm:$0xff] %vm553, %v601
        %634 = vst.msk [vmem:[%s216 + $0x68] sm:$0xff] %vm553, %v602
        %635 = vst.msk [vmem:[%s216 + $0x70] sm:$0xff] %vm553, %v603
        %636 = vst.msk [vmem:[%s216 + $0x78] sm:$0xff] %vm553, %v604
        %637 = vst.msk [vmem:[%s216 + $0x80] sm:$0xff] %vm553, %v605
        %638 = vst.msk [vmem:[%s216 + $0x88] sm:$0xff] %vm553, %v606
        %639 = vst.msk [vmem:[%s216 + $0x90] sm:$0xff] %vm553, %v607
        %640 = vst.msk [vmem:[%s216 + $0x98] sm:$0xff] %vm553, %v608
        %641 = vst.msk [vmem:[%s216 + $0xa0] sm:$0xff] %vm553, %v609
        %642 = vst.msk [vmem:[%s216 + $0xa8] sm:$0xff] %vm553, %v610
        %643 = vst.msk [vmem:[%s216 + $0xb0] sm:$0xff] %vm553, %v611
        %644 = vst.msk [vmem:[%s216 + $0xb8] sm:$0xff] %vm553, %v612
        %645 = vst.msk [vmem:[%s216 + $0xc0] sm:$0xff] %vm553, %v613
        %646 = vst.msk [vmem:[%s216 + $0xc8] sm:$0xff] %vm553, %v614
        %647 = vst.msk [vmem:[%s216 + $0xd0] sm:$0xff] %vm553, %v615
        %648 = vst.msk [vmem:[%s216 + $0xd8] sm:$0xff] %vm553, %v616
        %649 = vst.msk [vmem:[%s216 + $0xe0] sm:$0xff] %vm553, %v617
        %650 = vst.msk [vmem:[%s216 + $0xe8] sm:$0xff] %vm553, %v618
        %651 = vst.msk [vmem:[%s216 + $0xf0] sm:$0xff] %vm553, %v619
        %652 = vst.msk [vmem:[%s216 + $0xf8] sm:$0xff] %vm553, %v620
      $region36: #{ndmamba2_forward.20} parent=27 // pred_fallthru
        _
      %s653 = smul.u32 32, %s18
      %p654 = scmp.lt.s32.totalorder %s653, 63
      %s655 = scalar_select %p654, %s653, 63
      %p656 = scmp.lt.s32.totalorder %s19, 0
      %s657 = scalar_select %p656, %s19, 0
      %s658 = sadd.s32 %s657, %s655
      %s659 = smul.addr %s658, 8
      %s660 = scalar_lea.vmem %s2, %s659
      // Predicated region
      $region37: #{ndmamba2_forward.20} parent=27 // pred_check
        %p661 = pneg %p108
      $region38: #{ndmamba2_forward.20} parent=27 // pred_check_branch
        %663 = sbr.rel (%p661) target = $region40
      $region39: #{ndmamba2_forward.20} parent=27 // pred_region
        %s664 = smul.u32 32, %s18
      $region40: #{ndmamba2_forward.20} parent=27 // pred_fallthru
        _
    $region28: #{ndmamba2_forward.20} parent=5 // pred_fallthru
      _
    %p665 = scmp.le.s32.totalorder 2, %s8
    // Predicated region
    $region41: #{ndmamba2_forward.20} parent=5 // pred_check
      %p666 = pneg %p665
    $region42: #{ndmamba2_forward.20} parent=5 // pred_check_branch
      %668 = sbr.rel (%p666) target = $region44
    $region43: #{ndmamba2_forward.20} parent=5 // pred_region
      %s669 = ssub.s32 %s8, 2
      // Predicated region
      $region45: #{ndmamba2_forward.20} parent=43 // pred_check
        %p670 = pneg %p114
      $region46: #{ndmamba2_forward.20} parent=43 // pred_check_branch
        %672 = sbr.rel (%p670) target = $region48
      $region47: #{ndmamba2_forward.20} parent=43 // pred_region
        %s673 = smul.u32 32, %s21
        %p674 = scmp.lt.s32.totalorder %s673, 63
        %s675 = scalar_select %p674, %s673, 63
        %p676 = scmp.lt.s32.totalorder %s22, 0
        %s677 = scalar_select %p676, %s22, 0
        %s678 = sadd.s32 %s677, %s675
        %s679 = smul.addr %s678, 8
        %s680 = scalar_lea.vmem %s2, %s679
      $region48: #{ndmamba2_forward.20} parent=43 // pred_fallthru
        _
    $region44: #{ndmamba2_forward.20} parent=5 // pred_fallthru
      _
  $region6: #{ndmamba2_forward.20} parent=0 // loop_footer
    %s12 = sadd.s32 1, %s8
  $region7: #{ndmamba2_forward.20} parent=0 // loop_footer_branch
    %7 = sbr.rel target = $region3
  $region8: #{ndmamba2_forward.20} parent=0 // loop_exit
    _

// kernel: ndmamba2_forward.19
$region0: #{ndmamba2_forward.19}
  #allocation0 [shape = 'u32[]', space=smem, size = 0x4, offset = 0x4, fixed_abs, tag = 'smem constant byte address 0x4 - core index']
  #allocation1 [shape = 'u32[144,128]{1,0:T(1,128)}', space=vmem, size = 0x12000, scoped, tag = 'internal scratch']
  %s0 = inlined_call_operand.vmem [shape: f32[512,128], index: 0, kind: input, shape index: {}]
  %s1 = inlined_call_operand.vmem [shape: f32[512,128], index: 1, kind: input, shape index: {}]
  %s2 = inlined_call_operand.vmem [shape: f32[1,128], index: 2, kind: input, shape index: {}]
  %s3 = inlined_call_operand.vmem [shape: f32[512,128], index: 3, kind: output, shape index: {}]
  %s4 = sld [smem:[#allocation0]]
  $region45: #{ndmamba2_forward.19} parent=0
    _
  %s6 = ssub.s32 1, %s4
  %s7 = scalar_select 0, %s6, %s4
  loop: start=0, step=1, limit=4
  $region2: #{ndmamba2_forward.19} parent=0 // loop_pre_header
    _
  $region3: #{ndmamba2_forward.19} parent=0 // loop_header
    %s9 = sphi 0, %s13
    %p10 = scmp.ge.s32.totalorder %s9, 4
    %s19 = sphi 0, %s21
    %s22 = sphi 0, %s19
    %s23 = sphi 0, %s22
    %s39 = sphi 0, %s23
    %s45 = sphi 0, %s47
    %s48 = sphi 0, %s45
    %s49 = sphi 0, %s48
    %s65 = sphi 0, %s49
    %s69 = sphi 0, %s69
    %s71 = sphi 0, %s69
    %s72 = sphi 0, %s71
    %s86 = sphi 0, %s72
    %s92 = sphi 0, %s94
    %s95 = sphi 0, %s92
    %s96 = sphi 0, %s95
    %s112 = sphi 0, %s96
  $region4: #{ndmamba2_forward.19} parent=0 // loop_header_branch
    %12 = sbr.rel (%p10) target = $region8
  $region5: #{ndmamba2_forward.19} parent=0 // loop_body
    %s14 = ssub.s32 %s9, 1
    %s15 = ssub.s32 %s9, 2
    %s16 = sadd.s32 %s9, 1
    %s17 = ssub.s32 %s9, %s16
    %p18 = scmp.eq.s32.totalorder %s17, 0
    %s20 = sadd.s32 %s19, 1
    %s21 = scalar_select %p18, %s19, %s20
    %p24 = pneg %p18
    %p25 = scmp.eq.s32.totalorder %s9, 1
    %p26 = por %p24, %p25
    %p27 = scmp.ne.s32.totalorder %s19, %s22
    %p28 = scmp.eq.s32.totalorder %s9, 0
    %p29 = por %p27, %p28
    %p30 = scmp.ne.s32.totalorder %s19, %s22
    %p31 = scmp.eq.s32.totalorder %s14, 1
    %p32 = por %p30, %p31
    %p33 = scmp.ne.s32.totalorder %s22, %s23
    %p34 = scmp.eq.s32.totalorder %s14, 0
    %p35 = por %p33, %p34
    %p36 = scmp.ne.s32.totalorder %s22, %s23
    %p37 = scmp.eq.s32.totalorder %s15, 1
    %p38 = por %p36, %p37
    %p40 = scmp.ne.s32.totalorder %s23, %s39
    %p41 = scmp.eq.s32.totalorder %s15, 0
    %p42 = por %p40, %p41
    %s43 = ssub.s32 %s9, %s16
    %p44 = scmp.eq.s32.totalorder %s43, 0
    %s46 = sadd.s32 %s45, 1
    %s47 = scalar_select %p44, %s45, %s46
    %p50 = pneg %p44
    %p51 = scmp.eq.s32.totalorder %s9, 1
    %p52 = por %p50, %p51
    %p53 = scmp.ne.s32.totalorder %s45, %s48
    %p54 = scmp.eq.s32.totalorder %s9, 0
    %p55 = por %p53, %p54
    %p56 = scmp.ne.s32.totalorder %s45, %s48
    %p57 = scmp.eq.s32.totalorder %s14, 1
    %p58 = por %p56, %p57
    %p59 = scmp.ne.s32.totalorder %s48, %s49
    %p60 = scmp.eq.s32.totalorder %s14, 0
    %p61 = por %p59, %p60
    %p62 = scmp.ne.s32.totalorder %s48, %s49
    %p63 = scmp.eq.s32.totalorder %s15, 1
    %p64 = por %p62, %p63
    %p66 = scmp.ne.s32.totalorder %s49, %s65
    %p67 = scmp.eq.s32.totalorder %s15, 0
    %p68 = por %p66, %p67
    %s70 = sadd.s32 %s69, 1
    %p73 = scmp.eq.s32.totalorder %s9, 1
    %p74 = scmp.ne.s32.totalorder %s69, %s71
    %p75 = scmp.eq.s32.totalorder %s9, 0
    %p76 = por %p74, %p75
    %p77 = scmp.ne.s32.totalorder %s69, %s71
    %p78 = scmp.eq.s32.totalorder %s14, 1
    %p79 = por %p77, %p78
    %p80 = scmp.ne.s32.totalorder %s71, %s72
    %p81 = scmp.eq.s32.totalorder %s14, 0
    %p82 = por %p80, %p81
    %p83 = scmp.ne.s32.totalorder %s71, %s72
    %p84 = scmp.eq.s32.totalorder %s15, 1
    %p85 = por %p83, %p84
    %p87 = scmp.ne.s32.totalorder %s72, %s86
    %p88 = scmp.eq.s32.totalorder %s15, 0
    %p89 = por %p87, %p88
    %s90 = ssub.s32 %s9, %s16
    %p91 = scmp.eq.s32.totalorder %s90, 0
    %s93 = sadd.s32 %s92, 1
    %s94 = scalar_select %p91, %s92, %s93
    %p97 = pneg %p91
    %p98 = scmp.eq.s32.totalorder %s9, 1
    %p99 = por %p97, %p98
    %p100 = scmp.ne.s32.totalorder %s92, %s95
    %p101 = scmp.eq.s32.totalorder %s9, 0
    %p102 = por %p100, %p101
    %p103 = scmp.ne.s32.totalorder %s92, %s95
    %p104 = scmp.eq.s32.totalorder %s14, 1
    %p105 = por %p103, %p104
    %p106 = scmp.ne.s32.totalorder %s95, %s96
    %p107 = scmp.eq.s32.totalorder %s14, 0
    %p108 = por %p106, %p107
    %p109 = scmp.ne.s32.totalorder %s95, %s96
    %p110 = scmp.eq.s32.totalorder %s15, 1
    %p111 = por %p109, %p110
    %p113 = scmp.ne.s32.totalorder %s96, %s112
    %p114 = scmp.eq.s32.totalorder %s15, 0
    %p115 = por %p113, %p114
    %p116 = scmp.le.s32.totalorder 1, %s9
    %p117 = scmp.lt.s32.totalorder %s9, 3
    %p118 = pnand %p116, %p117
    %p119 = pneg %p118
    // Predicated region
    $region9: #{ndmamba2_forward.19} parent=5 // pred_check
      _
    $region10: #{ndmamba2_forward.19} parent=5 // pred_check_branch
      %121 = sbr.rel (%p118) target = $region12
    $region11: #{ndmamba2_forward.19} parent=5 // pred_region
      %s122 = ssub.s32 %s9, 1
      // Predicated region
      $region13: #{ndmamba2_forward.19} parent=11 // pred_check
        %p123 = pneg %p82
      $region14: #{ndmamba2_forward.19} parent=11 // pred_check_branch
        %125 = sbr.rel (%p123) target = $region16
      $region15: #{ndmamba2_forward.19} parent=11 // pred_region
        _
      $region16: #{ndmamba2_forward.19} parent=11 // pred_fallthru
        _
    $region12: #{ndmamba2_forward.19} parent=5 // pred_fallthru
      _
    %p126 = scmp.lt.s32.totalorder %s9, 2
    // Predicated region
    $region17: #{ndmamba2_forward.19} parent=5 // pred_check
      %p127 = pneg %p126
    $region18: #{ndmamba2_forward.19} parent=5 // pred_check_branch
      %129 = sbr.rel (%p127) target = $region20
    $region19: #{ndmamba2_forward.19} parent=5 // pred_region
      // Predicated region
      $region21: #{ndmamba2_forward.19} parent=19 // pred_check
        %p130 = pneg %p29
      $region22: #{ndmamba2_forward.19} parent=19 // pred_check_branch
        %132 = sbr.rel (%p130) target = $region24
      $region23: #{ndmamba2_forward.19} parent=19 // pred_region
        %s133 = smul.u32 32, %s9
        %p134 = scmp.lt.s32.totalorder %s133, 63
        %s135 = scalar_select %p134, %s133, 63
        %s136 = smul.addr %s135, 8
        %s137 = scalar_lea.vmem %s0, %s136
        %s138 = smul.u32 32, %s9
      $region24: #{ndmamba2_forward.19} parent=19 // pred_fallthru
        _
      // Predicated region
      $region25: #{ndmamba2_forward.19} parent=19 // pred_check
        %p139 = pneg %p55
      $region26: #{ndmamba2_forward.19} parent=19 // pred_check_branch
        %141 = sbr.rel (%p139) target = $region28
      $region27: #{ndmamba2_forward.19} parent=19 // pred_region
        %s142 = smul.u32 32, %s9
        %p143 = scmp.lt.s32.totalorder %s142, 63
        %s144 = scalar_select %p143, %s142, 63
        %s145 = smul.addr %s144, 8
        %s146 = scalar_lea.vmem %s1, %s145
        %s147 = smul.u32 32, %s9
      $region28: #{ndmamba2_forward.19} parent=19 // pred_fallthru
        _
    $region20: #{ndmamba2_forward.19} parent=5 // pred_fallthru
      _
    %p148 = scmp.le.s32.totalorder 1, %s9
    %p149 = scmp.lt.s32.totalorder %s9, 3
    %p150 = pnand %p148, %p149
    %p151 = pneg %p150
    // Predicated region
    $region29: #{ndmamba2_forward.19} parent=5 // pred_check
      _
    $region30: #{ndmamba2_forward.19} parent=5 // pred_check_branch
      %153 = sbr.rel (%p150) target = $region32
    $region31: #{ndmamba2_forward.19} parent=5 // pred_region
      %s154 = ssub.s32 %s9, 1
      %s155 = smul.u32 32, %s14
      %p156 = scmp.lt.s32.totalorder %s155, 63
      %s157 = scalar_select %p156, %s155, 63
      %s158 = smul.addr %s157, 8
      %s159 = scalar_lea.vmem %s0, %s158
      %p160 = pneg %p35
      %p161 = pneg %p32
      %s162 = smul.u32 32, %s14
      %p163 = scmp.lt.s32.totalorder %s162, 63
      %s164 = scalar_select %p163, %s162, 63
      %s165 = smul.addr %s164, 8
      %s166 = scalar_lea.vmem %s1, %s165
      %p167 = pneg %p61
      %p168 = pneg %p58
      %p169 = pneg %p82
      %p170 = pneg %p79
      %p171 = pneg %p108
      %p172 = pneg %p105
      %s173 = smul.u32 32, %s14
      %p174 = scmp.lt.s32.totalorder %s173, 63
      %s175 = scalar_select %p174, %s173, 63
      %s176 = smul.addr %s175, 8
      %s177 = scalar_lea.vmem %s3, %s176
      %s178 = smul.u32 32, %s14
      %p179 = scmp.lt.s32.totalorder %s178, 63
      %s180 = scalar_select %p179, %s178, 63
      %s181 = smul.addr %s180, 8
      %s182 = scalar_lea.vmem %s0, %s181
      %s183 = smul.u32 32, %s14
      %s184 = smul.u32 32, %s14
      %p185 = scmp.lt.s32.totalorder %s184, 63
      %s186 = scalar_select %p185, %s184, 63
      %s187 = smul.addr %s186, 8
      %s188 = scalar_lea.vmem %s1, %s187
      %s189 = smul.u32 32, %s14
      %s190 = smul.u32 32, %s14
      %p191 = scmp.lt.s32.totalorder %s190, 63
      %s192 = scalar_select %p191, %s190, 63
      %s193 = smul.addr %s192, 8
      %s194 = scalar_lea.vmem %s3, %s193
      %s195 = smul.u32 32, %s14
      %v196 = vld [vmem:[%s182] sm:$0xff]
      %v197 = vld [vmem:[%s182 + $0x8] sm:$0xff]
      %v198 = vld [vmem:[%s182 + $0x10] sm:$0xff]
      %v199 = vld [vmem:[%s182 + $0x18] sm:$0xff]
      %v200 = vld [vmem:[%s182 + $0x20] sm:$0xff]
      %v201 = vld [vmem:[%s182 + $0x28] sm:$0xff]
      %v202 = vld [vmem:[%s182 + $0x30] sm:$0xff]
      %v203 = vld [vmem:[%s182 + $0x38] sm:$0xff]
      %v204 = vld [vmem:[%s182 + $0x40] sm:$0xff]
      %v205 = vld [vmem:[%s182 + $0x48] sm:$0xff]
      %v206 = vld [vmem:[%s182 + $0x50] sm:$0xff]
      %v207 = vld [vmem:[%s182 + $0x58] sm:$0xff]
      %v208 = vld [vmem:[%s182 + $0x60] sm:$0xff]
      %v209 = vld [vmem:[%s182 + $0x68] sm:$0xff]
      %v210 = vld [vmem:[%s182 + $0x70] sm:$0xff]
      %v211 = vld [vmem:[%s182 + $0x78] sm:$0xff]
      %v212 = vld [vmem:[%s182 + $0x80] sm:$0xff]
      %v213 = vld [vmem:[%s182 + $0x88] sm:$0xff]
      %v214 = vld [vmem:[%s182 + $0x90] sm:$0xff]
      %v215 = vld [vmem:[%s182 + $0x98] sm:$0xff]
      %v216 = vld [vmem:[%s182 + $0xa0] sm:$0xff]
      %v217 = vld [vmem:[%s182 + $0xa8] sm:$0xff]
      %v218 = vld [vmem:[%s182 + $0xb0] sm:$0xff]
      %v219 = vld [vmem:[%s182 + $0xb8] sm:$0xff]
      %v220 = vld [vmem:[%s182 + $0xc0] sm:$0xff]
      %v221 = vld [vmem:[%s182 + $0xc8] sm:$0xff]
      %v222 = vld [vmem:[%s182 + $0xd0] sm:$0xff]
      %v223 = vld [vmem:[%s182 + $0xd8] sm:$0xff]
      %v224 = vld [vmem:[%s182 + $0xe0] sm:$0xff]
      %v225 = vld [vmem:[%s182 + $0xe8] sm:$0xff]
      %v226 = vld [vmem:[%s182 + $0xf0] sm:$0xff]
      %v227 = vld [vmem:[%s182 + $0xf8] sm:$0xff]
      %v228 = vld [vmem:[%s188] sm:$0xff]
      %v229 = vld [vmem:[%s188 + $0x8] sm:$0xff]
      %v230 = vld [vmem:[%s188 + $0x10] sm:$0xff]
      %v231 = vld [vmem:[%s188 + $0x18] sm:$0xff]
      %v232 = vld [vmem:[%s188 + $0x20] sm:$0xff]
      %v233 = vld [vmem:[%s188 + $0x28] sm:$0xff]
      %v234 = vld [vmem:[%s188 + $0x30] sm:$0xff]
      %v235 = vld [vmem:[%s188 + $0x38] sm:$0xff]
      %v236 = vld [vmem:[%s188 + $0x40] sm:$0xff]
      %v237 = vld [vmem:[%s188 + $0x48] sm:$0xff]
      %v238 = vld [vmem:[%s188 + $0x50] sm:$0xff]
      %v239 = vld [vmem:[%s188 + $0x58] sm:$0xff]
      %v240 = vld [vmem:[%s188 + $0x60] sm:$0xff]
      %v241 = vld [vmem:[%s188 + $0x68] sm:$0xff]
      %v242 = vld [vmem:[%s188 + $0x70] sm:$0xff]
      %v243 = vld [vmem:[%s188 + $0x78] sm:$0xff]
      %v244 = vld [vmem:[%s188 + $0x80] sm:$0xff]
      %v245 = vld [vmem:[%s188 + $0x88] sm:$0xff]
      %v246 = vld [vmem:[%s188 + $0x90] sm:$0xff]
      %v247 = vld [vmem:[%s188 + $0x98] sm:$0xff]
      %v248 = vld [vmem:[%s188 + $0xa0] sm:$0xff]
      %v249 = vld [vmem:[%s188 + $0xa8] sm:$0xff]
      %v250 = vld [vmem:[%s188 + $0xb0] sm:$0xff]
      %v251 = vld [vmem:[%s188 + $0xb8] sm:$0xff]
      %v252 = vld [vmem:[%s188 + $0xc0] sm:$0xff]
      %v253 = vld [vmem:[%s188 + $0xc8] sm:$0xff]
      %v254 = vld [vmem:[%s188 + $0xd0] sm:$0xff]
      %v255 = vld [vmem:[%s188 + $0xd8] sm:$0xff]
      %v256 = vld [vmem:[%s188 + $0xe0] sm:$0xff]
      %v257 = vld [vmem:[%s188 + $0xe8] sm:$0xff]
      %v258 = vld [vmem:[%s188 + $0xf0] sm:$0xff]
      %v259 = vld [vmem:[%s188 + $0xf8] sm:$0xff]
      %v260 = vsub.f32 0.0, %v228
      %v261 = vsub.f32 0.0, %v229
      %v262 = vsub.f32 0.0, %v230
      %v263 = vsub.f32 0.0, %v231
      %v264 = vsub.f32 0.0, %v232
      %v265 = vsub.f32 0.0, %v233
      %v266 = vsub.f32 0.0, %v234
      %v267 = vsub.f32 0.0, %v235
      %v268 = vsub.f32 0.0, %v236
      %v269 = vsub.f32 0.0, %v237
      %v270 = vsub.f32 0.0, %v238
      %v271 = vsub.f32 0.0, %v239
      %v272 = vsub.f32 0.0, %v240
      %v273 = vsub.f32 0.0, %v241
      %v274 = vsub.f32 0.0, %v242
      %v275 = vsub.f32 0.0, %v243
      %v276 = vsub.f32 0.0, %v244
      %v277 = vsub.f32 0.0, %v245
      %v278 = vsub.f32 0.0, %v246
      %v279 = vsub.f32 0.0, %v247
      %v280 = vsub.f32 0.0, %v248
      %v281 = vsub.f32 0.0, %v249
      %v282 = vsub.f32 0.0, %v250
      %v283 = vsub.f32 0.0, %v251
      %v284 = vsub.f32 0.0, %v252
      %v285 = vsub.f32 0.0, %v253
      %v286 = vsub.f32 0.0, %v254
      %v287 = vsub.f32 0.0, %v255
      %v288 = vsub.f32 0.0, %v256
      %v289 = vsub.f32 0.0, %v257
      %v290 = vsub.f32 0.0, %v258
      %v291 = vsub.f32 0.0, %v259
      %v292 = vmul.f32 %v260, 1.442695
      %v293 = vpow.pop %v292
      %v294 = vmul.f32 %v261, 1.442695
      %v295 = vpow.pop %v294
      %v296 = vmul.f32 %v262, 1.442695
      %v297 = vpow.pop %v296
      %v298 = vmul.f32 %v263, 1.442695
      %v299 = vpow.pop %v298
      %v300 = vmul.f32 %v264, 1.442695
      %v301 = vpow.pop %v300
      %v302 = vmul.f32 %v265, 1.442695
      %v303 = vpow.pop %v302
      %v304 = vmul.f32 %v266, 1.442695
      %v305 = vpow.pop %v304
      %v306 = vmul.f32 %v267, 1.442695
      %v307 = vpow.pop %v306
      %v308 = vmul.f32 %v268, 1.442695
      %v309 = vpow.pop %v308
      %v310 = vmul.f32 %v269, 1.442695
      %v311 = vpow.pop %v310
      %v312 = vmul.f32 %v270, 1.442695
      %v313 = vpow.pop %v312
      %v314 = vmul.f32 %v271, 1.442695
      %v315 = vpow.pop %v314
      %v316 = vmul.f32 %v272, 1.442695
      %v317 = vpow.pop %v316
      %v318 = vmul.f32 %v273, 1.442695
      %v319 = vpow.pop %v318
      %v320 = vmul.f32 %v274, 1.442695
      %v321 = vpow.pop %v320
      %v322 = vmul.f32 %v275, 1.442695
      %v323 = vpow.pop %v322
      %v324 = vmul.f32 %v276, 1.442695
      %v325 = vpow.pop %v324
      %v326 = vmul.f32 %v277, 1.442695
      %v327 = vpow.pop %v326
      %v328 = vmul.f32 %v278, 1.442695
      %v329 = vpow.pop %v328
      %v330 = vmul.f32 %v279, 1.442695
      %v331 = vpow.pop %v330
      %v332 = vmul.f32 %v280, 1.442695
      %v333 = vpow.pop %v332
      %v334 = vmul.f32 %v281, 1.442695
      %v335 = vpow.pop %v334
      %v336 = vmul.f32 %v282, 1.442695
      %v337 = vpow.pop %v336
      %v338 = vmul.f32 %v283, 1.442695
      %v339 = vpow.pop %v338
      %v340 = vmul.f32 %v284, 1.442695
      %v341 = vpow.pop %v340
      %v342 = vmul.f32 %v285, 1.442695
      %v343 = vpow.pop %v342
      %v344 = vmul.f32 %v286, 1.442695
      %v345 = vpow.pop %v344
      %v346 = vmul.f32 %v287, 1.442695
      %v347 = vpow.pop %v346
      %v348 = vmul.f32 %v288, 1.442695
      %v349 = vpow.pop %v348
      %v350 = vmul.f32 %v289, 1.442695
      %v351 = vpow.pop %v350
      %v352 = vmul.f32 %v290, 1.442695
      %v353 = vpow.pop %v352
      %v354 = vmul.f32 %v291, 1.442695
      %v355 = vpow.pop %v354
      %v356 = vadd.f32 %v293, 1.0
      %v357 = vadd.f32 %v295, 1.0
      %v358 = vadd.f32 %v297, 1.0
      %v359 = vadd.f32 %v299, 1.0
      %v360 = vadd.f32 %v301, 1.0
      %v361 = vadd.f32 %v303, 1.0
      %v362 = vadd.f32 %v305, 1.0
      %v363 = vadd.f32 %v307, 1.0
      %v364 = vadd.f32 %v309, 1.0
      %v365 = vadd.f32 %v311, 1.0
      %v366 = vadd.f32 %v313, 1.0
      %v367 = vadd.f32 %v315, 1.0
      %v368 = vadd.f32 %v317, 1.0
      %v369 = vadd.f32 %v319, 1.0
      %v370 = vadd.f32 %v321, 1.0
      %v371 = vadd.f32 %v323, 1.0
      %v372 = vadd.f32 %v325, 1.0
      %v373 = vadd.f32 %v327, 1.0
      %v374 = vadd.f32 %v329, 1.0
      %v375 = vadd.f32 %v331, 1.0
      %v376 = vadd.f32 %v333, 1.0
      %v377 = vadd.f32 %v335, 1.0
      %v378 = vadd.f32 %v337, 1.0
      %v379 = vadd.f32 %v339, 1.0
      %v380 = vadd.f32 %v341, 1.0
      %v381 = vadd.f32 %v343, 1.0
      %v382 = vadd.f32 %v345, 1.0
      %v383 = vadd.f32 %v347, 1.0
      %v384 = vadd.f32 %v349, 1.0
      %v385 = vadd.f32 %v351, 1.0
      %v386 = vadd.f32 %v353, 1.0
      %v387 = vadd.f32 %v355, 1.0
      %v388 = vrcp.pop %v356
      %v389 = vrcp.pop %v357
      %v390 = vrcp.pop %v358
      %v391 = vrcp.pop %v359
      %v392 = vrcp.pop %v360
      %v393 = vrcp.pop %v361
      %v394 = vrcp.pop %v362
      %v395 = vrcp.pop %v363
      %v396 = vrcp.pop %v364
      %v397 = vrcp.pop %v365
      %v398 = vrcp.pop %v366
      %v399 = vrcp.pop %v367
      %v400 = vrcp.pop %v368
      %v401 = vrcp.pop %v369
      %v402 = vrcp.pop %v370
      %v403 = vrcp.pop %v371
      %v404 = vrcp.pop %v372
      %v405 = vrcp.pop %v373
      %v406 = vrcp.pop %v374
      %v407 = vrcp.pop %v375
      %v408 = vrcp.pop %v376
      %v409 = vrcp.pop %v377
      %v410 = vrcp.pop %v378
      %v411 = vrcp.pop %v379
      %v412 = vrcp.pop %v380
      %v413 = vrcp.pop %v381
      %v414 = vrcp.pop %v382
      %v415 = vrcp.pop %v383
      %v416 = vrcp.pop %v384
      %v417 = vrcp.pop %v385
      %v418 = vrcp.pop %v386
      %v419 = vrcp.pop %v387
      %v420 = vmul.f32 %v228, %v388
      %v421 = vmul.f32 %v229, %v389
      %v422 = vmul.f32 %v230, %v390
      %v423 = vmul.f32 %v231, %v391
      %v424 = vmul.f32 %v232, %v392
      %v425 = vmul.f32 %v233, %v393
      %v426 = vmul.f32 %v234, %v394
      %v427 = vmul.f32 %v235, %v395
      %v428 = vmul.f32 %v236, %v396
      %v429 = vmul.f32 %v237, %v397
      %v430 = vmul.f32 %v238, %v398
      %v431 = vmul.f32 %v239, %v399
      %v432 = vmul.f32 %v240, %v400
      %v433 = vmul.f32 %v241, %v401
      %v434 = vmul.f32 %v242, %v402
      %v435 = vmul.f32 %v243, %v403
      %v436 = vmul.f32 %v244, %v404
      %v437 = vmul.f32 %v245, %v405
      %v438 = vmul.f32 %v246, %v406
      %v439 = vmul.f32 %v247, %v407
      %v440 = vmul.f32 %v248, %v408
      %v441 = vmul.f32 %v249, %v409
      %v442 = vmul.f32 %v250, %v410
      %v443 = vmul.f32 %v251, %v411
      %v444 = vmul.f32 %v252, %v412
      %v445 = vmul.f32 %v253, %v413
      %v446 = vmul.f32 %v254, %v414
      %v447 = vmul.f32 %v255, %v415
      %v448 = vmul.f32 %v256, %v416
      %v449 = vmul.f32 %v257, %v417
      %v450 = vmul.f32 %v258, %v418
      %v451 = vmul.f32 %v259, %v419
      %v452 = vmul.f32 %v196, %v420
      %v453 = vmul.f32 %v197, %v421
      %v454 = vmul.f32 %v198, %v422
      %v455 = vmul.f32 %v199, %v423
      %v456 = vmul.f32 %v200, %v424
      %v457 = vmul.f32 %v201, %v425
      %v458 = vmul.f32 %v202, %v426
      %v459 = vmul.f32 %v203, %v427
      %v460 = vmul.f32 %v204, %v428
      %v461 = vmul.f32 %v205, %v429
      %v462 = vmul.f32 %v206, %v430
      %v463 = vmul.f32 %v207, %v431
      %v464 = vmul.f32 %v208, %v432
      %v465 = vmul.f32 %v209, %v433
      %v466 = vmul.f32 %v210, %v434
      %v467 = vmul.f32 %v211, %v435
      %v468 = vmul.f32 %v212, %v436
      %v469 = vmul.f32 %v213, %v437
      %v470 = vmul.f32 %v214, %v438
      %v471 = vmul.f32 %v215, %v439
      %v472 = vmul.f32 %v216, %v440
      %v473 = vmul.f32 %v217, %v441
      %v474 = vmul.f32 %v218, %v442
      %v475 = vmul.f32 %v219, %v443
      %v476 = vmul.f32 %v220, %v444
      %v477 = vmul.f32 %v221, %v445
      %v478 = vmul.f32 %v222, %v446
      %v479 = vmul.f32 %v223, %v447
      %v480 = vmul.f32 %v224, %v448
      %v481 = vmul.f32 %v225, %v449
      %v482 = vmul.f32 %v226, %v450
      %v483 = vmul.f32 %v227, %v451
      %v484 = vmul.f32 %v452, %v452
      %v485 = vmul.f32 %v453, %v453
      %v486 = vmul.f32 %v454, %v454
      %v487 = vmul.f32 %v455, %v455
      %v488 = vmul.f32 %v456, %v456
      %v489 = vmul.f32 %v457, %v457
      %v490 = vmul.f32 %v458, %v458
      %v491 = vmul.f32 %v459, %v459
      %v492 = vmul.f32 %v460, %v460
      %v493 = vmul.f32 %v461, %v461
      %v494 = vmul.f32 %v462, %v462
      %v495 = vmul.f32 %v463, %v463
      %v496 = vmul.f32 %v464, %v464
      %v497 = vmul.f32 %v465, %v465
      %v498 = vmul.f32 %v466, %v466
      %v499 = vmul.f32 %v467, %v467
      %v500 = vmul.f32 %v468, %v468
      %v501 = vmul.f32 %v469, %v469
      %v502 = vmul.f32 %v470, %v470
      %v503 = vmul.f32 %v471, %v471
      %v504 = vmul.f32 %v472, %v472
      %v505 = vmul.f32 %v473, %v473
      %v506 = vmul.f32 %v474, %v474
      %v507 = vmul.f32 %v475, %v475
      %v508 = vmul.f32 %v476, %v476
      %v509 = vmul.f32 %v477, %v477
      %v510 = vmul.f32 %v478, %v478
      %v511 = vmul.f32 %v479, %v479
      %v512 = vmul.f32 %v480, %v480
      %v513 = vmul.f32 %v481, %v481
      %v514 = vmul.f32 %v482, %v482
      %v515 = vmul.f32 %v483, %v483
      %516 = vadd.xlane.f32.xlu0 %v484
      %v517 = vpop.xlane.xlu0 %516
      %518 = vadd.xlane.f32.xlu0 %v485
      %v519 = vpop.xlane.xlu0 %518
      %520 = vadd.xlane.f32.xlu0 %v486
      %v521 = vpop.xlane.xlu0 %520
      %522 = vadd.xlane.f32.xlu0 %v487
      %v523 = vpop.xlane.xlu0 %522
      %524 = vadd.xlane.f32.xlu0 %v488
      %v525 = vpop.xlane.xlu0 %524
      %526 = vadd.xlane.f32.xlu0 %v489
      %v527 = vpop.xlane.xlu0 %526
      %528 = vadd.xlane.f32.xlu0 %v490
      %v529 = vpop.xlane.xlu0 %528
      %530 = vadd.xlane.f32.xlu0 %v491
      %v531 = vpop.xlane.xlu0 %530
      %532 = vadd.xlane.f32.xlu0 %v492
      %v533 = vpop.xlane.xlu0 %532
      %534 = vadd.xlane.f32.xlu0 %v493
      %v535 = vpop.xlane.xlu0 %534
      %536 = vadd.xlane.f32.xlu0 %v494
      %v537 = vpop.xlane.xlu0 %536
      %538 = vadd.xlane.f32.xlu0 %v495
      %v539 = vpop.xlane.xlu0 %538
      %540 = vadd.xlane.f32.xlu0 %v496
      %v541 = vpop.xlane.xlu0 %540
      %542 = vadd.xlane.f32.xlu0 %v497
      %v543 = vpop.xlane.xlu0 %542
      %544 = vadd.xlane.f32.xlu0 %v498
      %v545 = vpop.xlane.xlu0 %544
      %546 = vadd.xlane.f32.xlu0 %v499
      %v547 = vpop.xlane.xlu0 %546
      %548 = vadd.xlane.f32.xlu0 %v500
      %v549 = vpop.xlane.xlu0 %548
      %550 = vadd.xlane.f32.xlu0 %v501
      %v551 = vpop.xlane.xlu0 %550
      %552 = vadd.xlane.f32.xlu0 %v502
      %v553 = vpop.xlane.xlu0 %552
      %554 = vadd.xlane.f32.xlu0 %v503
      %v555 = vpop.xlane.xlu0 %554
      %556 = vadd.xlane.f32.xlu0 %v504
      %v557 = vpop.xlane.xlu0 %556
      %558 = vadd.xlane.f32.xlu0 %v505
      %v559 = vpop.xlane.xlu0 %558
      %560 = vadd.xlane.f32.xlu0 %v506
      %v561 = vpop.xlane.xlu0 %560
      %562 = vadd.xlane.f32.xlu0 %v507
      %v563 = vpop.xlane.xlu0 %562
      %564 = vadd.xlane.f32.xlu0 %v508
      %v565 = vpop.xlane.xlu0 %564
      %566 = vadd.xlane.f32.xlu0 %v509
      %v567 = vpop.xlane.xlu0 %566
      %568 = vadd.xlane.f32.xlu0 %v510
      %v569 = vpop.xlane.xlu0 %568
      %570 = vadd.xlane.f32.xlu0 %v511
      %v571 = vpop.xlane.xlu0 %570
      %572 = vadd.xlane.f32.xlu0 %v512
      %v573 = vpop.xlane.xlu0 %572
      %574 = vadd.xlane.f32.xlu0 %v513
      %v575 = vpop.xlane.xlu0 %574
      %576 = vadd.xlane.f32.xlu0 %v514
      %v577 = vpop.xlane.xlu0 %576
      %578 = vadd.xlane.f32.xlu0 %v515
      %v579 = vpop.xlane.xlu0 %578
      %v580 = vrcp.pop 128.0
      %v581 = vmul.f32 %v517, %v580
      %v582 = vmul.f32 %v519, %v580
      %v583 = vmul.f32 %v521, %v580
      %v584 = vmul.f32 %v523, %v580
      %v585 = vmul.f32 %v525, %v580
      %v586 = vmul.f32 %v527, %v580
      %v587 = vmul.f32 %v529, %v580
      %v588 = vmul.f32 %v531, %v580
      %v589 = vmul.f32 %v533, %v580
      %v590 = vmul.f32 %v535, %v580
      %v591 = vmul.f32 %v537, %v580
      %v592 = vmul.f32 %v539, %v580
      %v593 = vmul.f32 %v541, %v580
      %v594 = vmul.f32 %v543, %v580
      %v595 = vmul.f32 %v545, %v580
      %v596 = vmul.f32 %v547, %v580
      %v597 = vmul.f32 %v549, %v580
      %v598 = vmul.f32 %v551, %v580
      %v599 = vmul.f32 %v553, %v580
      %v600 = vmul.f32 %v555, %v580
      %v601 = vmul.f32 %v557, %v580
      %v602 = vmul.f32 %v559, %v580
      %v603 = vmul.f32 %v561, %v580
      %v604 = vmul.f32 %v563, %v580
      %v605 = vmul.f32 %v565, %v580
      %v606 = vmul.f32 %v567, %v580
      %v607 = vmul.f32 %v569, %v580
      %v608 = vmul.f32 %v571, %v580
      %v609 = vmul.f32 %v573, %v580
      %v610 = vmul.f32 %v575, %v580
      %v611 = vmul.f32 %v577, %v580
      %v612 = vmul.f32 %v579, %v580
      %v613 = vadd.f32 %v581, 1e-05
      %v614 = vadd.f32 %v582, 1e-05
      %v615 = vadd.f32 %v583, 1e-05
      %v616 = vadd.f32 %v584, 1e-05
      %v617 = vadd.f32 %v585, 1e-05
      %v618 = vadd.f32 %v586, 1e-05
      %v619 = vadd.f32 %v587, 1e-05
      %v620 = vadd.f32 %v588, 1e-05
      %v621 = vadd.f32 %v589, 1e-05
      %v622 = vadd.f32 %v590, 1e-05
      %v623 = vadd.f32 %v591, 1e-05
      %v624 = vadd.f32 %v592, 1e-05
      %v625 = vadd.f32 %v593, 1e-05
      %v626 = vadd.f32 %v594, 1e-05
      %v627 = vadd.f32 %v595, 1e-05
      %v628 = vadd.f32 %v596, 1e-05
      %v629 = vadd.f32 %v597, 1e-05
      %v630 = vadd.f32 %v598, 1e-05
      %v631 = vadd.f32 %v599, 1e-05
      %v632 = vadd.f32 %v600, 1e-05
      %v633 = vadd.f32 %v601, 1e-05
      %v634 = vadd.f32 %v602, 1e-05
      %v635 = vadd.f32 %v603, 1e-05
      %v636 = vadd.f32 %v604, 1e-05
      %v637 = vadd.f32 %v605, 1e-05
      %v638 = vadd.f32 %v606, 1e-05
      %v639 = vadd.f32 %v607, 1e-05
      %v640 = vadd.f32 %v608, 1e-05
      %v641 = vadd.f32 %v609, 1e-05
      %v642 = vadd.f32 %v610, 1e-05
      %v643 = vadd.f32 %v611, 1e-05
      %v644 = vadd.f32 %v612, 1e-05
      %v645 = vrsqrt.pop %v613
      %v646 = vrsqrt.pop %v614
      %v647 = vrsqrt.pop %v615
      %v648 = vrsqrt.pop %v616
      %v649 = vrsqrt.pop %v617
      %v650 = vrsqrt.pop %v618
      %v651 = vrsqrt.pop %v619
      %v652 = vrsqrt.pop %v620
      %v653 = vrsqrt.pop %v621
      %v654 = vrsqrt.pop %v622
      %v655 = vrsqrt.pop %v623
      %v656 = vrsqrt.pop %v624
      %v657 = vrsqrt.pop %v625
      %v658 = vrsqrt.pop %v626
      %v659 = vrsqrt.pop %v627
      %v660 = vrsqrt.pop %v628
      %v661 = vrsqrt.pop %v629
      %v662 = vrsqrt.pop %v630
      %v663 = vrsqrt.pop %v631
      %v664 = vrsqrt.pop %v632
      %v665 = vrsqrt.pop %v633
      %v666 = vrsqrt.pop %v634
      %v667 = vrsqrt.pop %v635
      %v668 = vrsqrt.pop %v636
      %v669 = vrsqrt.pop %v637
      %v670 = vrsqrt.pop %v638
      %v671 = vrsqrt.pop %v639
      %v672 = vrsqrt.pop %v640
      %v673 = vrsqrt.pop %v641
      %v674 = vrsqrt.pop %v642
      %v675 = vrsqrt.pop %v643
      %v676 = vrsqrt.pop %v644
      %v677 = vmul.f32 %v452, %v645
      %v678 = vmul.f32 %v453, %v646
      %v679 = vmul.f32 %v454, %v647
      %v680 = vmul.f32 %v455, %v648
      %v681 = vmul.f32 %v456, %v649
      %v682 = vmul.f32 %v457, %v650
      %v683 = vmul.f32 %v458, %v651
      %v684 = vmul.f32 %v459, %v652
      %v685 = vmul.f32 %v460, %v653
      %v686 = vmul.f32 %v461, %v654
      %v687 = vmul.f32 %v462, %v655
      %v688 = vmul.f32 %v463, %v656
      %v689 = vmul.f32 %v464, %v657
      %v690 = vmul.f32 %v465, %v658
      %v691 = vmul.f32 %v466, %v659
      %v692 = vmul.f32 %v467, %v660
      %v693 = vmul.f32 %v468, %v661
      %v694 = vmul.f32 %v469, %v662
      %v695 = vmul.f32 %v470, %v663
      %v696 = vmul.f32 %v471, %v664
      %v697 = vmul.f32 %v472, %v665
      %v698 = vmul.f32 %v473, %v666
      %v699 = vmul.f32 %v474, %v667
      %v700 = vmul.f32 %v475, %v668
      %v701 = vmul.f32 %v476, %v669
      %v702 = vmul.f32 %v477, %v670
      %v703 = vmul.f32 %v478, %v671
      %v704 = vmul.f32 %v479, %v672
      %v705 = vmul.f32 %v480, %v673
      %v706 = vmul.f32 %v481, %v674
      %v707 = vmul.f32 %v482, %v675
      %v708 = vmul.f32 %v483, %v676
      %v709 = vld [vmem:[%s2] sm:$0x1]
      %v711 = vlaneseq
      %v712 = vshrl.u32 %v711, 7
      %v713 = vsub.s32 0, %v712
      %v714 = vrot.slane %v709, %v713
      %v716 = vmul.f32 %v677, %v714
      %v717 = vmul.f32 %v678, %v714
      %v718 = vmul.f32 %v679, %v714
      %v719 = vmul.f32 %v680, %v714
      %v720 = vmul.f32 %v681, %v714
      %v721 = vmul.f32 %v682, %v714
      %v722 = vmul.f32 %v683, %v714
      %v723 = vmul.f32 %v684, %v714
      %v724 = vmul.f32 %v685, %v714
      %v725 = vmul.f32 %v686, %v714
      %v726 = vmul.f32 %v687, %v714
      %v727 = vmul.f32 %v688, %v714
      %v728 = vmul.f32 %v689, %v714
      %v729 = vmul.f32 %v690, %v714
      %v730 = vmul.f32 %v691, %v714
      %v731 = vmul.f32 %v692, %v714
      %v732 = vmul.f32 %v693, %v714
      %v733 = vmul.f32 %v694, %v714
      %v734 = vmul.f32 %v695, %v714
      %v735 = vmul.f32 %v696, %v714
      %v736 = vmul.f32 %v697, %v714
      %v737 = vmul.f32 %v698, %v714
      %v738 = vmul.f32 %v699, %v714
      %v739 = vmul.f32 %v700, %v714
      %v740 = vmul.f32 %v701, %v714
      %v741 = vmul.f32 %v702, %v714
      %v742 = vmul.f32 %v703, %v714
      %v743 = vmul.f32 %v704, %v714
      %v744 = vmul.f32 %v705, %v714
      %v745 = vmul.f32 %v706, %v714
      %v746 = vmul.f32 %v707, %v714
      %v747 = vmul.f32 %v708, %v714
      %748 = vst [vmem:[%s194] sm:$0xff] %v716
      %749 = vst [vmem:[%s194 + $0x8] sm:$0xff] %v717
      %750 = vst [vmem:[%s194 + $0x10] sm:$0xff] %v718
      %751 = vst [vmem:[%s194 + $0x18] sm:$0xff] %v719
      %752 = vst [vmem:[%s194 + $0x20] sm:$0xff] %v720
      %753 = vst [vmem:[%s194 + $0x28] sm:$0xff] %v721
      %754 = vst [vmem:[%s194 + $0x30] sm:$0xff] %v722
      %755 = vst [vmem:[%s194 + $0x38] sm:$0xff] %v723
      %756 = vst [vmem:[%s194 + $0x40] sm:$0xff] %v724
      %757 = vst [vmem:[%s194 + $0x48] sm:$0xff] %v725
      %758 = vst [vmem:[%s194 + $0x50] sm:$0xff] %v726
      %759 = vst [vmem:[%s194 + $0x58] sm:$0xff] %v727
      %760 = vst [vmem:[%s194 + $0x60] sm:$0xff] %v728
      %761 = vst [vmem:[%s194 + $0x68] sm:$0xff] %v729
      %762 = vst [vmem:[%s194 + $0x70] sm:$0xff] %v730
      %763 = vst [vmem:[%s194 + $0x78] sm:$0xff] %v731
      %764 = vst [vmem:[%s194 + $0x80] sm:$0xff] %v732
      %765 = vst [vmem:[%s194 + $0x88] sm:$0xff] %v733
      %766 = vst [vmem:[%s194 + $0x90] sm:$0xff] %v734
      %767 = vst [vmem:[%s194 + $0x98] sm:$0xff] %v735
      %768 = vst [vmem:[%s194 + $0xa0] sm:$0xff] %v736
      %769 = vst [vmem:[%s194 + $0xa8] sm:$0xff] %v737
      %770 = vst [vmem:[%s194 + $0xb0] sm:$0xff] %v738
      %771 = vst [vmem:[%s194 + $0xb8] sm:$0xff] %v739
      %772 = vst [vmem:[%s194 + $0xc0] sm:$0xff] %v740
      %773 = vst [vmem:[%s194 + $0xc8] sm:$0xff] %v741
      %774 = vst [vmem:[%s194 + $0xd0] sm:$0xff] %v742
      %775 = vst [vmem:[%s194 + $0xd8] sm:$0xff] %v743
      %776 = vst [vmem:[%s194 + $0xe0] sm:$0xff] %v744
      %777 = vst [vmem:[%s194 + $0xe8] sm:$0xff] %v745
      %778 = vst [vmem:[%s194 + $0xf0] sm:$0xff] %v746
      %779 = vst [vmem:[%s194 + $0xf8] sm:$0xff] %v747
      %s780 = smul.u32 32, %s14
      %p781 = scmp.lt.s32.totalorder %s780, 63
      %s782 = scalar_select %p781, %s780, 63
      %s783 = smul.addr %s782, 8
      %s784 = scalar_lea.vmem %s3, %s783
      // Predicated region
      $region33: #{ndmamba2_forward.19} parent=31 // pred_check
        %p785 = pneg %p105
      $region34: #{ndmamba2_forward.19} parent=31 // pred_check_branch
        %787 = sbr.rel (%p785) target = $region36
      $region35: #{ndmamba2_forward.19} parent=31 // pred_region
        %s788 = smul.u32 32, %s14
      $region36: #{ndmamba2_forward.19} parent=31 // pred_fallthru
        _
    $region32: #{ndmamba2_forward.19} parent=5 // pred_fallthru
      _
    %p789 = scmp.le.s32.totalorder 2, %s9
    // Predicated region
    $region37: #{ndmamba2_forward.19} parent=5 // pred_check
      %p790 = pneg %p789
    $region38: #{ndmamba2_forward.19} parent=5 // pred_check_branch
      %792 = sbr.rel (%p790) target = $region40
    $region39: #{ndmamba2_forward.19} parent=5 // pred_region
      %s793 = ssub.s32 %s9, 2
      // Predicated region
      $region41: #{ndmamba2_forward.19} parent=39 // pred_check
        %p794 = pneg %p111
      $region42: #{ndmamba2_forward.19} parent=39 // pred_check_branch
        %796 = sbr.rel (%p794) target = $region44
      $region43: #{ndmamba2_forward.19} parent=39 // pred_region
        %s797 = smul.u32 32, %s15
        %p798 = scmp.lt.s32.totalorder %s797, 63
        %s799 = scalar_select %p798, %s797, 63
        %s800 = smul.addr %s799, 8
        %s801 = scalar_lea.vmem %s3, %s800
      $region44: #{ndmamba2_forward.19} parent=39 // pred_fallthru
        _
    $region40: #{ndmamba2_forward.19} parent=5 // pred_fallthru
      _
  $region6: #{ndmamba2_forward.19} parent=0 // loop_footer
    %s13 = sadd.s32 1, %s9
  $region7: #{ndmamba2_forward.19} parent=0 // loop_footer_branch
    %8 = sbr.rel target = $region3
  $region8: #{ndmamba2_forward.19} parent=0 // loop_exit
    _

// kernel: ndmamba2_forward.17
$region0: #{ndmamba2_forward.17}
  #allocation0 [shape = 'u32[]', space=smem, size = 0x4, offset = 0x4, fixed_abs, tag = 'smem constant byte address 0x4 - core index']
  #allocation1 [shape = 'u32[144,128]{1,0:T(1,128)}', space=vmem, size = 0x12000, scoped, tag = 'internal scratch']
  #allocation2 [shape = 'f32[3,192]{1,0:T(4,128)}', space=vmem, size = 0x1000, scoped, tag = 'scratch operand']
  %s0 = inlined_call_operand.vmem [shape: f32[2,256,192], index: 0, kind: input, shape index: {}]
  %s1 = inlined_call_operand.vmem [shape: f32[4,192], index: 1, kind: input, shape index: {}]
  %s2 = inlined_call_operand.vmem [shape: f32[1,192], index: 2, kind: input, shape index: {}]
  %s3 = inlined_call_operand.vmem [shape: f32[2,256,192], index: 3, kind: output, shape index: {}]
  %s4 = sld [smem:[#allocation0]]
  $region49: #{ndmamba2_forward.17} parent=0
    _
  %s6 = ssub.s32 1, %s4
  %s7 = scalar_select 0, %s6, %s4
  loop: start=0, step=1, limit=4
  $region2: #{ndmamba2_forward.17} parent=0 // loop_pre_header
    _
  $region3: #{ndmamba2_forward.17} parent=0 // loop_header
    %s9 = sphi 0, %s13
    %p10 = scmp.ge.s32.totalorder %s9, 4
    %s16 = sphi 0, %s28
    %s17 = sphi 0, %s24
    %s18 = sphi 0, %s16
    %s19 = sphi 0, %s17
    %s20 = sphi 0, %s18
    %s21 = sphi 0, %s19
    %s33 = sphi 0, %s35
    %s36 = sphi 0, %s33
    %s37 = sphi 0, %s36
    %s53 = sphi 0, %s37
    %s57 = sphi 0, %s57
    %s59 = sphi 0, %s57
    %s60 = sphi 0, %s59
    %s74 = sphi 0, %s60
    %s78 = sphi 0, %s78
    %s80 = sphi 0, %s78
    %s81 = sphi 0, %s80
    %s95 = sphi 0, %s81
    %s103 = sphi 0, %s105
    %s106 = sphi 0, %s103
    %s107 = sphi 0, %s106
    %s123 = sphi 0, %s107
  $region4: #{ndmamba2_forward.17} parent=0 // loop_header_branch
    %12 = sbr.rel (%p10) target = $region8
  $region5: #{ndmamba2_forward.17} parent=0 // loop_body
    %s14 = ssub.s32 %s9, 1
    %s15 = ssub.s32 %s9, 2
    %s22 = sadd.s32 1, %s17
    %p23 = scmp.ge.s32.totalorder %s22, 1
    %s24 = scalar_select %p23, 0, %s22
    %s25 = sadd.s32 1, %s16
    %s26 = scalar_select %p23, %s25, %s16
    %p27 = scmp.ge.s32.totalorder %s26, 2
    %s28 = scalar_select %p27, 0, %s26
    %s29 = ssub.s32 %s16, %s28
    %s30 = ssub.s32 %s17, %s24
    %s31 = sor.u32 %s29, %s30
    %p32 = scmp.eq.s32.totalorder %s31, 0
    %s34 = sadd.s32 %s33, 1
    %s35 = scalar_select %p32, %s33, %s34
    %p38 = pneg %p32
    %p39 = scmp.eq.s32.totalorder %s9, 1
    %p40 = por %p38, %p39
    %p41 = scmp.ne.s32.totalorder %s33, %s36
    %p42 = scmp.eq.s32.totalorder %s9, 0
    %p43 = por %p41, %p42
    %p44 = scmp.ne.s32.totalorder %s33, %s36
    %p45 = scmp.eq.s32.totalorder %s14, 1
    %p46 = por %p44, %p45
    %p47 = scmp.ne.s32.totalorder %s36, %s37
    %p48 = scmp.eq.s32.totalorder %s14, 0
    %p49 = por %p47, %p48
    %p50 = scmp.ne.s32.totalorder %s36, %s37
    %p51 = scmp.eq.s32.totalorder %s15, 1
    %p52 = por %p50, %p51
    %p54 = scmp.ne.s32.totalorder %s37, %s53
    %p55 = scmp.eq.s32.totalorder %s15, 0
    %p56 = por %p54, %p55
    %s58 = sadd.s32 %s57, 1
    %p61 = scmp.eq.s32.totalorder %s9, 1
    %p62 = scmp.ne.s32.totalorder %s57, %s59
    %p63 = scmp.eq.s32.totalorder %s9, 0
    %p64 = por %p62, %p63
    %p65 = scmp.ne.s32.totalorder %s57, %s59
    %p66 = scmp.eq.s32.totalorder %s14, 1
    %p67 = por %p65, %p66
    %p68 = scmp.ne.s32.totalorder %s59, %s60
    %p69 = scmp.eq.s32.totalorder %s14, 0
    %p70 = por %p68, %p69
    %p71 = scmp.ne.s32.totalorder %s59, %s60
    %p72 = scmp.eq.s32.totalorder %s15, 1
    %p73 = por %p71, %p72
    %p75 = scmp.ne.s32.totalorder %s60, %s74
    %p76 = scmp.eq.s32.totalorder %s15, 0
    %p77 = por %p75, %p76
    %s79 = sadd.s32 %s78, 1
    %p82 = scmp.eq.s32.totalorder %s9, 1
    %p83 = scmp.ne.s32.totalorder %s78, %s80
    %p84 = scmp.eq.s32.totalorder %s9, 0
    %p85 = por %p83, %p84
    %p86 = scmp.ne.s32.totalorder %s78, %s80
    %p87 = scmp.eq.s32.totalorder %s14, 1
    %p88 = por %p86, %p87
    %p89 = scmp.ne.s32.totalorder %s80, %s81
    %p90 = scmp.eq.s32.totalorder %s14, 0
    %p91 = por %p89, %p90
    %p92 = scmp.ne.s32.totalorder %s80, %s81
    %p93 = scmp.eq.s32.totalorder %s15, 1
    %p94 = por %p92, %p93
    %p96 = scmp.ne.s32.totalorder %s81, %s95
    %p97 = scmp.eq.s32.totalorder %s15, 0
    %p98 = por %p96, %p97
    %s99 = ssub.s32 %s16, %s28
    %s100 = ssub.s32 %s17, %s24
    %s101 = sor.u32 %s99, %s100
    %p102 = scmp.eq.s32.totalorder %s101, 0
    %s104 = sadd.s32 %s103, 1
    %s105 = scalar_select %p102, %s103, %s104
    %p108 = pneg %p102
    %p109 = scmp.eq.s32.totalorder %s9, 1
    %p110 = por %p108, %p109
    %p111 = scmp.ne.s32.totalorder %s103, %s106
    %p112 = scmp.eq.s32.totalorder %s9, 0
    %p113 = por %p111, %p112
    %p114 = scmp.ne.s32.totalorder %s103, %s106
    %p115 = scmp.eq.s32.totalorder %s14, 1
    %p116 = por %p114, %p115
    %p117 = scmp.ne.s32.totalorder %s106, %s107
    %p118 = scmp.eq.s32.totalorder %s14, 0
    %p119 = por %p117, %p118
    %p120 = scmp.ne.s32.totalorder %s106, %s107
    %p121 = scmp.eq.s32.totalorder %s15, 1
    %p122 = por %p120, %p121
    %p124 = scmp.ne.s32.totalorder %s107, %s123
    %p125 = scmp.eq.s32.totalorder %s15, 0
    %p126 = por %p124, %p125
    %p127 = scmp.le.s32.totalorder 1, %s9
    %p128 = scmp.lt.s32.totalorder %s9, 3
    %p129 = pnand %p127, %p128
    %p130 = pneg %p129
    // Predicated region
    $region9: #{ndmamba2_forward.17} parent=5 // pred_check
      _
    $region10: #{ndmamba2_forward.17} parent=5 // pred_check_branch
      %132 = sbr.rel (%p129) target = $region12
    $region11: #{ndmamba2_forward.17} parent=5 // pred_region
      %s133 = ssub.s32 %s9, 1
      // Predicated region
      $region13: #{ndmamba2_forward.17} parent=11 // pred_check
        %p134 = pneg %p70
      $region14: #{ndmamba2_forward.17} parent=11 // pred_check_branch
        %136 = sbr.rel (%p134) target = $region16
      $region15: #{ndmamba2_forward.17} parent=11 // pred_region
        _
      $region16: #{ndmamba2_forward.17} parent=11 // pred_fallthru
        _
      // Predicated region
      $region17: #{ndmamba2_forward.17} parent=11 // pred_check
        %p137 = pneg %p91
      $region18: #{ndmamba2_forward.17} parent=11 // pred_check_branch
        %139 = sbr.rel (%p137) target = $region20
      $region19: #{ndmamba2_forward.17} parent=11 // pred_region
        _
      $region20: #{ndmamba2_forward.17} parent=11 // pred_fallthru
        _
    $region12: #{ndmamba2_forward.17} parent=5 // pred_fallthru
      _
    %p140 = scmp.lt.s32.totalorder %s9, 2
    // Predicated region
    $region21: #{ndmamba2_forward.17} parent=5 // pred_check
      %p141 = pneg %p140
    $region22: #{ndmamba2_forward.17} parent=5 // pred_check_branch
      %143 = sbr.rel (%p141) target = $region24
    $region23: #{ndmamba2_forward.17} parent=5 // pred_region
      // Predicated region
      $region25: #{ndmamba2_forward.17} parent=23 // pred_check
        %p144 = pneg %p43
      $region26: #{ndmamba2_forward.17} parent=23 // pred_check_branch
        %146 = sbr.rel (%p144) target = $region28
      $region27: #{ndmamba2_forward.17} parent=23 // pred_region
        %s147 = smul.u32 32, %s17
        %p148 = scmp.lt.s32.totalorder %s16, 1
        %s149 = scalar_select %p148, %s16, 1
        %p150 = scmp.lt.s32.totalorder %s147, 31
        %s151 = scalar_select %p150, %s147, 31
        %s152 = smul.addr %s151, 2
        %s153 = smul.addr %s149, 64
        %s154 = sadd.s32 %s152, %s153
        %s155 = smul.addr %s154, 8
        %s156 = scalar_lea.vmem %s0, %s155
        %s157 = smul.u32 32, %s17
      $region28: #{ndmamba2_forward.17} parent=23 // pred_fallthru
        _
    $region24: #{ndmamba2_forward.17} parent=5 // pred_fallthru
      _
    %p158 = scmp.le.s32.totalorder 1, %s9
    %p159 = scmp.lt.s32.totalorder %s9, 3
    %p160 = pnand %p158, %p159
    %p161 = pneg %p160
    // Predicated region
    $region29: #{ndmamba2_forward.17} parent=5 // pred_check
      _
    $region30: #{ndmamba2_forward.17} parent=5 // pred_check_branch
      %163 = sbr.rel (%p160) target = $region32
    $region31: #{ndmamba2_forward.17} parent=5 // pred_region
      %s164 = ssub.s32 %s9, 1
      %s165 = smul.u32 32, %s19
      %p166 = scmp.lt.s32.totalorder %s18, 1
      %s167 = scalar_select %p166, %s18, 1
      %p168 = scmp.lt.s32.totalorder %s165, 31
      %s169 = scalar_select %p168, %s165, 31
      %s170 = smul.addr %s169, 2
      %s171 = smul.addr %s167, 64
      %s172 = sadd.s32 %s170, %s171
      %s173 = smul.addr %s172, 8
      %s174 = scalar_lea.vmem %s0, %s173
      %p175 = pneg %p49
      %p176 = pneg %p46
      %p177 = pneg %p70
      %p178 = pneg %p67
      %p179 = pneg %p91
      %p180 = pneg %p88
      %p181 = pneg %p119
      %p182 = pneg %p116
      %s183 = smul.u32 32, %s19
      %p184 = scmp.lt.s32.totalorder %s18, 1
      %s185 = scalar_select %p184, %s18, 1
      %p186 = scmp.lt.s32.totalorder %s183, 31
      %s187 = scalar_select %p186, %s183, 31
      %s188 = smul.addr %s187, 2
      %s189 = smul.addr %s185, 64
      %s190 = sadd.s32 %s188, %s189
      %s191 = smul.addr %s190, 8
      %s192 = scalar_lea.vmem %s3, %s191
      %s193 = smul.u32 32, %s19
      %p194 = scmp.lt.s32.totalorder %s18, 1
      %s195 = scalar_select %p194, %s18, 1
      %p196 = scmp.lt.s32.totalorder %s193, 31
      %s197 = scalar_select %p196, %s193, 31
      %s198 = smul.addr %s197, 2
      %s199 = smul.addr %s195, 64
      %s200 = sadd.s32 %s198, %s199
      %s201 = smul.addr %s200, 8
      %s202 = scalar_lea.vmem %s0, %s201
      %s203 = smul.u32 32, %s19
      %s204 = smul.u32 32, %s19
      %p205 = scmp.lt.s32.totalorder %s18, 1
      %s206 = scalar_select %p205, %s18, 1
      %p207 = scmp.lt.s32.totalorder %s204, 31
      %s208 = scalar_select %p207, %s204, 31
      %s209 = smul.addr %s208, 2
      %s210 = smul.addr %s206, 64
      %s211 = sadd.s32 %s209, %s210
      %s212 = smul.addr %s211, 8
      %s213 = scalar_lea.vmem %s3, %s212
      %s214 = smul.u32 32, %s19
      %p215 = scmp.eq.s32.totalorder %s19, 0
      // Predicated region
      $region33: #{ndmamba2_forward.17} parent=31 // pred_check
        %p216 = pneg %p215
      $region34: #{ndmamba2_forward.17} parent=31 // pred_check_branch
        %218 = sbr.rel (%p216) target = $region36
      $region35: #{ndmamba2_forward.17} parent=31 // pred_region
        %vm219 = vcmask 1042432
        %vm220 = vcmask 522244
        %vm221 = vmor %vm220, %vm219
        %222 = vst.msk [vmem:[#allocation2] sm:$0x77] %vm221, 0.0
      $region36: #{ndmamba2_forward.17} parent=31 // pred_fallthru
        _
      %v223 = vld [vmem:[%s202] sm:$0xff]
      %v224 = vld [vmem:[%s202 + $0x8] sm:$0xff]
      %v225 = vld [vmem:[%s202 + $0x10] sm:$0xff]
      %v226 = vld [vmem:[%s202 + $0x18] sm:$0xff]
      %v227 = vld [vmem:[%s202 + $0x20] sm:$0xff]
      %v228 = vld [vmem:[%s202 + $0x28] sm:$0xff]
      %v229 = vld [vmem:[%s202 + $0x30] sm:$0xff]
      %v230 = vld [vmem:[%s202 + $0x38] sm:$0xff]
      %v231 = vld [vmem:[%s202 + $0x40] sm:$0xff]
      %v232 = vld [vmem:[%s202 + $0x48] sm:$0xff]
      %v233 = vld [vmem:[%s202 + $0x50] sm:$0xff]
      %v234 = vld [vmem:[%s202 + $0x58] sm:$0xff]
      %v235 = vld [vmem:[%s202 + $0x60] sm:$0xff]
      %v236 = vld [vmem:[%s202 + $0x68] sm:$0xff]
      %v237 = vld [vmem:[%s202 + $0x70] sm:$0xff]
      %v238 = vld [vmem:[%s202 + $0x78] sm:$0xff]
      %v239 = vld [vmem:[%s202 + $0x80] sm:$0xff]
      %v240 = vld [vmem:[%s202 + $0x88] sm:$0xff]
      %v241 = vld [vmem:[%s202 + $0x90] sm:$0xff]
      %v242 = vld [vmem:[%s202 + $0x98] sm:$0xff]
      %v243 = vld [vmem:[%s202 + $0xa0] sm:$0xff]
      %v244 = vld [vmem:[%s202 + $0xa8] sm:$0xff]
      %v245 = vld [vmem:[%s202 + $0xb0] sm:$0xff]
      %v246 = vld [vmem:[%s202 + $0xb8] sm:$0xff]
      %v247 = vld [vmem:[%s202 + $0xc0] sm:$0xff]
      %v248 = vld [vmem:[%s202 + $0xc8] sm:$0xff]
      %v249 = vld [vmem:[%s202 + $0xd0] sm:$0xff]
      %v250 = vld [vmem:[%s202 + $0xd8] sm:$0xff]
      %v251 = vld [vmem:[%s202 + $0xe0] sm:$0xff]
      %v252 = vld [vmem:[%s202 + $0xe8] sm:$0xff]
      %v253 = vld [vmem:[%s202 + $0xf0] sm:$0xff]
      %v254 = vld [vmem:[%s202 + $0xf8] sm:$0xff]
      %v255 = vld [vmem:[%s202 + $0x100] sm:$0xff]
      %v256 = vld [vmem:[%s202 + $0x108] sm:$0xff]
      %v257 = vld [vmem:[%s202 + $0x110] sm:$0xff]
      %v258 = vld [vmem:[%s202 + $0x118] sm:$0xff]
      %v259 = vld [vmem:[%s202 + $0x120] sm:$0xff]
      %v260 = vld [vmem:[%s202 + $0x128] sm:$0xff]
      %v261 = vld [vmem:[%s202 + $0x130] sm:$0xff]
      %v262 = vld [vmem:[%s202 + $0x138] sm:$0xff]
      %v263 = vld [vmem:[%s202 + $0x140] sm:$0xff]
      %v264 = vld [vmem:[%s202 + $0x148] sm:$0xff]
      %v265 = vld [vmem:[%s202 + $0x150] sm:$0xff]
      %v266 = vld [vmem:[%s202 + $0x158] sm:$0xff]
      %v267 = vld [vmem:[%s202 + $0x160] sm:$0xff]
      %v268 = vld [vmem:[%s202 + $0x168] sm:$0xff]
      %v269 = vld [vmem:[%s202 + $0x170] sm:$0xff]
      %v270 = vld [vmem:[%s202 + $0x178] sm:$0xff]
      %v271 = vld [vmem:[%s202 + $0x180] sm:$0xff]
      %v272 = vld [vmem:[%s202 + $0x188] sm:$0xff]
      %v273 = vld [vmem:[%s202 + $0x190] sm:$0xff]
      %v274 = vld [vmem:[%s202 + $0x198] sm:$0xff]
      %v275 = vld [vmem:[%s202 + $0x1a0] sm:$0xff]
      %v276 = vld [vmem:[%s202 + $0x1a8] sm:$0xff]
      %v277 = vld [vmem:[%s202 + $0x1b0] sm:$0xff]
      %v278 = vld [vmem:[%s202 + $0x1b8] sm:$0xff]
      %v279 = vld [vmem:[%s202 + $0x1c0] sm:$0xff]
      %v280 = vld [vmem:[%s202 + $0x1c8] sm:$0xff]
      %v281 = vld [vmem:[%s202 + $0x1d0] sm:$0xff]
      %v282 = vld [vmem:[%s202 + $0x1d8] sm:$0xff]
      %v283 = vld [vmem:[%s202 + $0x1e0] sm:$0xff]
      %v284 = vld [vmem:[%s202 + $0x1e8] sm:$0xff]
      %v285 = vld [vmem:[%s202 + $0x1f0] sm:$0xff]
      %v286 = vld [vmem:[%s202 + $0x1f8] sm:$0xff]
      %v287 = vld [vmem:[#allocation2] sm:$0x77]
      %v289 = vcombine.high %v287, %v287
      %vm355 = vcmask 1042432
      %v356 = vrot.slane %v223, 5
      %v357 = vrot.slane %v224, 5
      %v358 = vrot.slane %v225, 5
      %v359 = vsel %vm355, %v356, %v358
      %v360 = vrot.slane %v226, 5
      %v361 = vsel %vm355, %v357, %v360
      %v362 = vrot.slane %v227, 5
      %v363 = vsel %vm355, %v358, %v362
      %v364 = vrot.slane %v228, 5
      %v365 = vsel %vm355, %v360, %v364
      %v366 = vrot.slane %v229, 5
      %v367 = vsel %vm355, %v362, %v366
      %v368 = vrot.slane %v230, 5
      %v369 = vsel %vm355, %v364, %v368
      %v370 = vrot.slane %v231, 5
      %v371 = vsel %vm355, %v366, %v370
      %v372 = vrot.slane %v232, 5
      %v373 = vsel %vm355, %v368, %v372
      %v374 = vrot.slane %v233, 5
      %v375 = vsel %vm355, %v370, %v374
      %v376 = vrot.slane %v234, 5
      %v377 = vsel %vm355, %v372, %v376
      %v378 = vrot.slane %v235, 5
      %v379 = vsel %vm355, %v374, %v378
      %v380 = vrot.slane %v236, 5
      %v381 = vsel %vm355, %v376, %v380
      %v382 = vrot.slane %v237, 5
      %v383 = vsel %vm355, %v378, %v382
      %v384 = vrot.slane %v238, 5
      %v385 = vsel %vm355, %v380, %v384
      %v386 = vrot.slane %v239, 5
      %v387 = vsel %vm355, %v382, %v386
      %v388 = vrot.slane %v240, 5
      %v389 = vsel %vm355, %v384, %v388
      %v390 = vrot.slane %v241, 5
      %v391 = vsel %vm355, %v386, %v390
      %v392 = vrot.slane %v242, 5
      %v393 = vsel %vm355, %v388, %v392
      %v394 = vrot.slane %v243, 5
      %v395 = vsel %vm355, %v390, %v394
      %v396 = vrot.slane %v244, 5
      %v397 = vsel %vm355, %v392, %v396
      %v398 = vrot.slane %v245, 5
      %v399 = vsel %vm355, %v394, %v398
      %v400 = vrot.slane %v246, 5
      %v401 = vsel %vm355, %v396, %v400
      %v402 = vrot.slane %v247, 5
      %v403 = vsel %vm355, %v398, %v402
      %v404 = vrot.slane %v248, 5
      %v405 = vsel %vm355, %v400, %v404
      %v406 = vrot.slane %v249, 5
      %v407 = vsel %vm355, %v402, %v406
      %v408 = vrot.slane %v250, 5
      %v409 = vsel %vm355, %v404, %v408
      %v410 = vrot.slane %v251, 5
      %v411 = vsel %vm355, %v406, %v410
      %v412 = vrot.slane %v252, 5
      %v413 = vsel %vm355, %v408, %v412
      %v414 = vrot.slane %v253, 5
      %v415 = vsel %vm355, %v410, %v414
      %v416 = vrot.slane %v254, 5
      %v417 = vsel %vm355, %v412, %v416
      %v418 = vrot.slane %v255, 5
      %v419 = vsel %vm355, %v414, %v418
      %v420 = vrot.slane %v256, 5
      %v421 = vsel %vm355, %v416, %v420
      %v422 = vrot.slane %v257, 5
      %v423 = vsel %vm355, %v418, %v422
      %v424 = vrot.slane %v258, 5
      %v425 = vsel %vm355, %v420, %v424
      %v426 = vrot.slane %v259, 5
      %v427 = vsel %vm355, %v422, %v426
      %v428 = vrot.slane %v260, 5
      %v429 = vsel %vm355, %v424, %v428
      %v430 = vrot.slane %v261, 5
      %v431 = vsel %vm355, %v426, %v430
      %v432 = vrot.slane %v262, 5
      %v433 = vsel %vm355, %v428, %v432
      %v434 = vrot.slane %v263, 5
      %v435 = vsel %vm355, %v430, %v434
      %v436 = vrot.slane %v264, 5
      %v437 = vsel %vm355, %v432, %v436
      %v438 = vrot.slane %v265, 5
      %v439 = vsel %vm355, %v434, %v438
      %v440 = vrot.slane %v266, 5
      %v441 = vsel %vm355, %v436, %v440
      %v442 = vrot.slane %v267, 5
      %v443 = vsel %vm355, %v438, %v442
      %v444 = vrot.slane %v268, 5
      %v445 = vsel %vm355, %v440, %v444
      %v446 = vrot.slane %v269, 5
      %v447 = vsel %vm355, %v442, %v446
      %v448 = vrot.slane %v270, 5
      %v449 = vsel %vm355, %v444, %v448
      %v450 = vrot.slane %v271, 5
      %v451 = vsel %vm355, %v446, %v450
      %v452 = vrot.slane %v272, 5
      %v453 = vsel %vm355, %v448, %v452
      %v454 = vrot.slane %v273, 5
      %v455 = vsel %vm355, %v450, %v454
      %v456 = vrot.slane %v274, 5
      %v457 = vsel %vm355, %v452, %v456
      %v458 = vrot.slane %v275, 5
      %v459 = vsel %vm355, %v454, %v458
      %v460 = vrot.slane %v276, 5
      %v461 = vsel %vm355, %v456, %v460
      %v462 = vrot.slane %v277, 5
      %v463 = vsel %vm355, %v458, %v462
      %v464 = vrot.slane %v278, 5
      %v465 = vsel %vm355, %v460, %v464
      %v466 = vrot.slane %v279, 5
      %v467 = vsel %vm355, %v462, %v466
      %v468 = vrot.slane %v280, 5
      %v469 = vsel %vm355, %v464, %v468
      %v470 = vrot.slane %v281, 5
      %v471 = vsel %vm355, %v466, %v470
      %v472 = vrot.slane %v282, 5
      %v473 = vsel %vm355, %v468, %v472
      %v474 = vrot.slane %v283, 5
      %v475 = vsel %vm355, %v470, %v474
      %v476 = vrot.slane %v284, 5
      %v477 = vsel %vm355, %v472, %v476
      %v478 = vrot.slane %v285, 5
      %v479 = vsel %vm355, %v474, %v478
      %v480 = vrot.slane %v286, 5
      %v481 = vsel %vm355, %v476, %v480
      %v548 = vsel %vm355, %v287, %v356
      %v549 = vsel %vm355, %v289, %v357
      %v550 = vld [vmem:[%s2] sm:$0x3]
      %v552 = vlaneseq
      %v553 = vshrl.u32 %v552, 7
      %v554 = vsub.s32 0, %v553
      %v555 = vrot.slane %v550, %v554
      %v556 = vlaneseq
      %v557 = vshrl.u32 %v556, 7
      %v558 = vsub.s32 1, %v557
      %v559 = vrot.slane %v550, %v558
      %v562 = vadd.f32 %v555, 0.0
      %v563 = vadd.f32 %v559, 0.0
      %v564 = vld [vmem:[%s1] ss:$4 sm:$0x3]
      %v566 = vlaneseq
      %v567 = vshrl.u32 %v566, 7
      %v568 = vsub.s32 0, %v567
      %v569 = vrot.slane %v564, %v568
      %v570 = vlaneseq
      %v571 = vshrl.u32 %v570, 7
      %v572 = vsub.s32 1, %v571
      %v573 = vrot.slane %v564, %v572
      %v576 = vmul.f32 %v548, %v569
      %v577 = vmul.f32 %v549, %v573
      %v578 = vmul.f32 %v359, %v569
      %v579 = vmul.f32 %v361, %v573
      %v580 = vmul.f32 %v363, %v569
      %v581 = vmul.f32 %v365, %v573
      %v582 = vmul.f32 %v367, %v569
      %v583 = vmul.f32 %v369, %v573
      %v584 = vmul.f32 %v371, %v569
      %v585 = vmul.f32 %v373, %v573
      %v586 = vmul.f32 %v375, %v569
      %v587 = vmul.f32 %v377, %v573
      %v588 = vmul.f32 %v379, %v569
      %v589 = vmul.f32 %v381, %v573
      %v590 = vmul.f32 %v383, %v569
      %v591 = vmul.f32 %v385, %v573
      %v592 = vmul.f32 %v387, %v569
      %v593 = vmul.f32 %v389, %v573
      %v594 = vmul.f32 %v391, %v569
      %v595 = vmul.f32 %v393, %v573
      %v596 = vmul.f32 %v395, %v569
      %v597 = vmul.f32 %v397, %v573
      %v598 = vmul.f32 %v399, %v569
      %v599 = vmul.f32 %v401, %v573
      %v600 = vmul.f32 %v403, %v569
      %v601 = vmul.f32 %v405, %v573
      %v602 = vmul.f32 %v407, %v569
      %v603 = vmul.f32 %v409, %v573
      %v604 = vmul.f32 %v411, %v569
      %v605 = vmul.f32 %v413, %v573
      %v606 = vmul.f32 %v415, %v569
      %v607 = vmul.f32 %v417, %v573
      %v608 = vmul.f32 %v419, %v569
      %v609 = vmul.f32 %v421, %v573
      %v610 = vmul.f32 %v423, %v569
      %v611 = vmul.f32 %v425, %v573
      %v612 = vmul.f32 %v427, %v569
      %v613 = vmul.f32 %v429, %v573
      %v614 = vmul.f32 %v431, %v569
      %v615 = vmul.f32 %v433, %v573
      %v616 = vmul.f32 %v435, %v569
      %v617 = vmul.f32 %v437, %v573
      %v618 = vmul.f32 %v439, %v569
      %v619 = vmul.f32 %v441, %v573
      %v620 = vmul.f32 %v443, %v569
      %v621 = vmul.f32 %v445, %v573
      %v622 = vmul.f32 %v447, %v569
      %v623 = vmul.f32 %v449, %v573
      %v624 = vmul.f32 %v451, %v569
      %v625 = vmul.f32 %v453, %v573
      %v626 = vmul.f32 %v455, %v569
      %v627 = vmul.f32 %v457, %v573
      %v628 = vmul.f32 %v459, %v569
      %v629 = vmul.f32 %v461, %v573
      %v630 = vmul.f32 %v463, %v569
      %v631 = vmul.f32 %v465, %v573
      %v632 = vmul.f32 %v467, %v569
      %v633 = vmul.f32 %v469, %v573
      %v634 = vmul.f32 %v471, %v569
      %v635 = vmul.f32 %v473, %v573
      %v636 = vmul.f32 %v475, %v569
      %v637 = vmul.f32 %v477, %v573
      %v638 = vmul.f32 %v479, %v569
      %v639 = vmul.f32 %v481, %v573
      %v640 = vadd.f32 %v562, %v576
      %v641 = vadd.f32 %v563, %v577
      %v642 = vadd.f32 %v562, %v578
      %v643 = vadd.f32 %v563, %v579
      %v644 = vadd.f32 %v562, %v580
      %v645 = vadd.f32 %v563, %v581
      %v646 = vadd.f32 %v562, %v582
      %v647 = vadd.f32 %v563, %v583
      %v648 = vadd.f32 %v562, %v584
      %v649 = vadd.f32 %v563, %v585
      %v650 = vadd.f32 %v562, %v586
      %v651 = vadd.f32 %v563, %v587
      %v652 = vadd.f32 %v562, %v588
      %v653 = vadd.f32 %v563, %v589
      %v654 = vadd.f32 %v562, %v590
      %v655 = vadd.f32 %v563, %v591
      %v656 = vadd.f32 %v562, %v592
      %v657 = vadd.f32 %v563, %v593
      %v658 = vadd.f32 %v562, %v594
      %v659 = vadd.f32 %v563, %v595
      %v660 = vadd.f32 %v562, %v596
      %v661 = vadd.f32 %v563, %v597
      %v662 = vadd.f32 %v562, %v598
      %v663 = vadd.f32 %v563, %v599
      %v664 = vadd.f32 %v562, %v600
      %v665 = vadd.f32 %v563, %v601
      %v666 = vadd.f32 %v562, %v602
      %v667 = vadd.f32 %v563, %v603
      %v668 = vadd.f32 %v562, %v604
      %v669 = vadd.f32 %v563, %v605
      %v670 = vadd.f32 %v562, %v606
      %v671 = vadd.f32 %v563, %v607
      %v672 = vadd.f32 %v562, %v608
      %v673 = vadd.f32 %v563, %v609
      %v674 = vadd.f32 %v562, %v610
      %v675 = vadd.f32 %v563, %v611
      %v676 = vadd.f32 %v562, %v612
      %v677 = vadd.f32 %v563, %v613
      %v678 = vadd.f32 %v562, %v614
      %v679 = vadd.f32 %v563, %v615
      %v680 = vadd.f32 %v562, %v616
      %v681 = vadd.f32 %v563, %v617
      %v682 = vadd.f32 %v562, %v618
      %v683 = vadd.f32 %v563, %v619
      %v684 = vadd.f32 %v562, %v620
      %v685 = vadd.f32 %v563, %v621
      %v686 = vadd.f32 %v562, %v622
      %v687 = vadd.f32 %v563, %v623
      %v688 = vadd.f32 %v562, %v624
      %v689 = vadd.f32 %v563, %v625
      %v690 = vadd.f32 %v562, %v626
      %v691 = vadd.f32 %v563, %v627
      %v692 = vadd.f32 %v562, %v628
      %v693 = vadd.f32 %v563, %v629
      %v694 = vadd.f32 %v562, %v630
      %v695 = vadd.f32 %v563, %v631
      %v696 = vadd.f32 %v562, %v632
      %v697 = vadd.f32 %v563, %v633
      %v698 = vadd.f32 %v562, %v634
      %v699 = vadd.f32 %v563, %v635
      %v700 = vadd.f32 %v562, %v636
      %v701 = vadd.f32 %v563, %v637
      %v702 = vadd.f32 %v562, %v638
      %v703 = vadd.f32 %v563, %v639
      %s704 = scalar_lea.vmem %s1, 1
      %v705 = vld [vmem:[%s704] ss:$4 sm:$0x3]
      %v707 = vlaneseq
      %v708 = vshrl.u32 %v707, 7
      %v709 = vsub.s32 0, %v708
      %v710 = vrot.slane %v705, %v709
      %v711 = vlaneseq
      %v712 = vshrl.u32 %v711, 7
      %v713 = vsub.s32 1, %v712
      %v714 = vrot.slane %v705, %v713
      %v717 = vmul.f32 %v548, %v710
      %v718 = vmul.f32 %v549, %v714
      %v719 = vmul.f32 %v359, %v710
      %v720 = vmul.f32 %v361, %v714
      %v721 = vmul.f32 %v363, %v710
      %v722 = vmul.f32 %v365, %v714
      %v723 = vmul.f32 %v367, %v710
      %v724 = vmul.f32 %v369, %v714
      %v725 = vmul.f32 %v371, %v710
      %v726 = vmul.f32 %v373, %v714
      %v727 = vmul.f32 %v375, %v710
      %v728 = vmul.f32 %v377, %v714
      %v729 = vmul.f32 %v379, %v710
      %v730 = vmul.f32 %v381, %v714
      %v731 = vmul.f32 %v383, %v710
      %v732 = vmul.f32 %v385, %v714
      %v733 = vmul.f32 %v387, %v710
      %v734 = vmul.f32 %v389, %v714
      %v735 = vmul.f32 %v391, %v710
      %v736 = vmul.f32 %v393, %v714
      %v737 = vmul.f32 %v395, %v710
      %v738 = vmul.f32 %v397, %v714
      %v739 = vmul.f32 %v399, %v710
      %v740 = vmul.f32 %v401, %v714
      %v741 = vmul.f32 %v403, %v710
      %v742 = vmul.f32 %v405, %v714
      %v743 = vmul.f32 %v407, %v710
      %v744 = vmul.f32 %v409, %v714
      %v745 = vmul.f32 %v411, %v710
      %v746 = vmul.f32 %v413, %v714
      %v747 = vmul.f32 %v415, %v710
      %v748 = vmul.f32 %v417, %v714
      %v749 = vmul.f32 %v419, %v710
      %v750 = vmul.f32 %v421, %v714
      %v751 = vmul.f32 %v423, %v710
      %v752 = vmul.f32 %v425, %v714
      %v753 = vmul.f32 %v427, %v710
      %v754 = vmul.f32 %v429, %v714
      %v755 = vmul.f32 %v431, %v710
      %v756 = vmul.f32 %v433, %v714
      %v757 = vmul.f32 %v435, %v710
      %v758 = vmul.f32 %v437, %v714
      %v759 = vmul.f32 %v439, %v710
      %v760 = vmul.f32 %v441, %v714
      %v761 = vmul.f32 %v443, %v710
      %v762 = vmul.f32 %v445, %v714
      %v763 = vmul.f32 %v447, %v710
      %v764 = vmul.f32 %v449, %v714
      %v765 = vmul.f32 %v451, %v710
      %v766 = vmul.f32 %v453, %v714
      %v767 = vmul.f32 %v455, %v710
      %v768 = vmul.f32 %v457, %v714
      %v769 = vmul.f32 %v459, %v710
      %v770 = vmul.f32 %v461, %v714
      %v771 = vmul.f32 %v463, %v710
      %v772 = vmul.f32 %v465, %v714
      %v773 = vmul.f32 %v467, %v710
      %v774 = vmul.f32 %v469, %v714
      %v775 = vmul.f32 %v471, %v710
      %v776 = vmul.f32 %v473, %v714
      %v777 = vmul.f32 %v475, %v710
      %v778 = vmul.f32 %v477, %v714
      %v779 = vmul.f32 %v479, %v710
      %v780 = vmul.f32 %v481, %v714
      %v781 = vmul.f32 %v478, %v710
      %v782 = vmul.f32 %v480, %v714
      %vm849 = vcmask 1046528
      %v850 = vrot.slane %v717, 1
      %v851 = vrot.slane %v719, 1
      %v852 = vsel %vm849, %v850, %v851
      %v853 = vrot.slane %v718, 1
      %v854 = vrot.slane %v720, 1
      %v855 = vsel %vm849, %v853, %v854
      %v856 = vrot.slane %v721, 1
      %v857 = vsel %vm849, %v851, %v856
      %v858 = vrot.slane %v722, 1
      %v859 = vsel %vm849, %v854, %v858
      %v860 = vrot.slane %v723, 1
      %v861 = vsel %vm849, %v856, %v860
      %v862 = vrot.slane %v724, 1
      %v863 = vsel %vm849, %v858, %v862
      %v864 = vrot.slane %v725, 1
      %v865 = vsel %vm849, %v860, %v864
      %v866 = vrot.slane %v726, 1
      %v867 = vsel %vm849, %v862, %v866
      %v868 = vrot.slane %v727, 1
      %v869 = vsel %vm849, %v864, %v868
      %v870 = vrot.slane %v728, 1
      %v871 = vsel %vm849, %v866, %v870
      %v872 = vrot.slane %v729, 1
      %v873 = vsel %vm849, %v868, %v872
      %v874 = vrot.slane %v730, 1
      %v875 = vsel %vm849, %v870, %v874
      %v876 = vrot.slane %v731, 1
      %v877 = vsel %vm849, %v872, %v876
      %v878 = vrot.slane %v732, 1
      %v879 = vsel %vm849, %v874, %v878
      %v880 = vrot.slane %v733, 1
      %v881 = vsel %vm849, %v876, %v880
      %v882 = vrot.slane %v734, 1
      %v883 = vsel %vm849, %v878, %v882
      %v884 = vrot.slane %v735, 1
      %v885 = vsel %vm849, %v880, %v884
      %v886 = vrot.slane %v736, 1
      %v887 = vsel %vm849, %v882, %v886
      %v888 = vrot.slane %v737, 1
      %v889 = vsel %vm849, %v884, %v888
      %v890 = vrot.slane %v738, 1
      %v891 = vsel %vm849, %v886, %v890
      %v892 = vrot.slane %v739, 1
      %v893 = vsel %vm849, %v888, %v892
      %v894 = vrot.slane %v740, 1
      %v895 = vsel %vm849, %v890, %v894
      %v896 = vrot.slane %v741, 1
      %v897 = vsel %vm849, %v892, %v896
      %v898 = vrot.slane %v742, 1
      %v899 = vsel %vm849, %v894, %v898
      %v900 = vrot.slane %v743, 1
      %v901 = vsel %vm849, %v896, %v900
      %v902 = vrot.slane %v744, 1
      %v903 = vsel %vm849, %v898, %v902
      %v904 = vrot.slane %v745, 1
      %v905 = vsel %vm849, %v900, %v904
      %v906 = vrot.slane %v746, 1
      %v907 = vsel %vm849, %v902, %v906
      %v908 = vrot.slane %v747, 1
      %v909 = vsel %vm849, %v904, %v908
      %v910 = vrot.slane %v748, 1
      %v911 = vsel %vm849, %v906, %v910
      %v912 = vrot.slane %v749, 1
      %v913 = vsel %vm849, %v908, %v912
      %v914 = vrot.slane %v750, 1
      %v915 = vsel %vm849, %v910, %v914
      %v916 = vrot.slane %v751, 1
      %v917 = vsel %vm849, %v912, %v916
      %v918 = vrot.slane %v752, 1
      %v919 = vsel %vm849, %v914, %v918
      %v920 = vrot.slane %v753, 1
      %v921 = vsel %vm849, %v916, %v920
      %v922 = vrot.slane %v754, 1
      %v923 = vsel %vm849, %v918, %v922
      %v924 = vrot.slane %v755, 1
      %v925 = vsel %vm849, %v920, %v924
      %v926 = vrot.slane %v756, 1
      %v927 = vsel %vm849, %v922, %v926
      %v928 = vrot.slane %v757, 1
      %v929 = vsel %vm849, %v924, %v928
      %v930 = vrot.slane %v758, 1
      %v931 = vsel %vm849, %v926, %v930
      %v932 = vrot.slane %v759, 1
      %v933 = vsel %vm849, %v928, %v932
      %v934 = vrot.slane %v760, 1
      %v935 = vsel %vm849, %v930, %v934
      %v936 = vrot.slane %v761, 1
      %v937 = vsel %vm849, %v932, %v936
      %v938 = vrot.slane %v762, 1
      %v939 = vsel %vm849, %v934, %v938
      %v940 = vrot.slane %v763, 1
      %v941 = vsel %vm849, %v936, %v940
      %v942 = vrot.slane %v764, 1
      %v943 = vsel %vm849, %v938, %v942
      %v944 = vrot.slane %v765, 1
      %v945 = vsel %vm849, %v940, %v944
      %v946 = vrot.slane %v766, 1
      %v947 = vsel %vm849, %v942, %v946
      %v948 = vrot.slane %v767, 1
      %v949 = vsel %vm849, %v944, %v948
      %v950 = vrot.slane %v768, 1
      %v951 = vsel %vm849, %v946, %v950
      %v952 = vrot.slane %v769, 1
      %v953 = vsel %vm849, %v948, %v952
      %v954 = vrot.slane %v770, 1
      %v955 = vsel %vm849, %v950, %v954
      %v956 = vrot.slane %v771, 1
      %v957 = vsel %vm849, %v952, %v956
      %v958 = vrot.slane %v772, 1
      %v959 = vsel %vm849, %v954, %v958
      %v960 = vrot.slane %v773, 1
      %v961 = vsel %vm849, %v956, %v960
      %v962 = vrot.slane %v774, 1
      %v963 = vsel %vm849, %v958, %v962
      %v964 = vrot.slane %v775, 1
      %v965 = vsel %vm849, %v960, %v964
      %v966 = vrot.slane %v776, 1
      %v967 = vsel %vm849, %v962, %v966
      %v968 = vrot.slane %v777, 1
      %v969 = vsel %vm849, %v964, %v968
      %v970 = vrot.slane %v778, 1
      %v971 = vsel %vm849, %v966, %v970
      %v972 = vrot.slane %v779, 1
      %v973 = vsel %vm849, %v968, %v972
      %v974 = vrot.slane %v780, 1
      %v975 = vsel %vm849, %v970, %v974
      %v976 = vrot.slane %v781, 1
      %v977 = vsel %vm849, %v972, %v976
      %v978 = vrot.slane %v782, 1
      %v979 = vsel %vm849, %v974, %v978
      %v1044 = vadd.f32 %v640, %v852
      %v1045 = vadd.f32 %v641, %v855
      %v1046 = vadd.f32 %v642, %v857
      %v1047 = vadd.f32 %v643, %v859
      %v1048 = vadd.f32 %v644, %v861
      %v1049 = vadd.f32 %v645, %v863
      %v1050 = vadd.f32 %v646, %v865
      %v1051 = vadd.f32 %v647, %v867
      %v1052 = vadd.f32 %v648, %v869
      %v1053 = vadd.f32 %v649, %v871
      %v1054 = vadd.f32 %v650, %v873
      %v1055 = vadd.f32 %v651, %v875
      %v1056 = vadd.f32 %v652, %v877
      %v1057 = vadd.f32 %v653, %v879
      %v1058 = vadd.f32 %v654, %v881
      %v1059 = vadd.f32 %v655, %v883
      %v1060 = vadd.f32 %v656, %v885
      %v1061 = vadd.f32 %v657, %v887
      %v1062 = vadd.f32 %v658, %v889
      %v1063 = vadd.f32 %v659, %v891
      %v1064 = vadd.f32 %v660, %v893
      %v1065 = vadd.f32 %v661, %v895
      %v1066 = vadd.f32 %v662, %v897
      %v1067 = vadd.f32 %v663, %v899
      %v1068 = vadd.f32 %v664, %v901
      %v1069 = vadd.f32 %v665, %v903
      %v1070 = vadd.f32 %v666, %v905
      %v1071 = vadd.f32 %v667, %v907
      %v1072 = vadd.f32 %v668, %v909
      %v1073 = vadd.f32 %v669, %v911
      %v1074 = vadd.f32 %v670, %v913
      %v1075 = vadd.f32 %v671, %v915
      %v1076 = vadd.f32 %v672, %v917
      %v1077 = vadd.f32 %v673, %v919
      %v1078 = vadd.f32 %v674, %v921
      %v1079 = vadd.f32 %v675, %v923
      %v1080 = vadd.f32 %v676, %v925
      %v1081 = vadd.f32 %v677, %v927
      %v1082 = vadd.f32 %v678, %v929
      %v1083 = vadd.f32 %v679, %v931
      %v1084 = vadd.f32 %v680, %v933
      %v1085 = vadd.f32 %v681, %v935
      %v1086 = vadd.f32 %v682, %v937
      %v1087 = vadd.f32 %v683, %v939
      %v1088 = vadd.f32 %v684, %v941
      %v1089 = vadd.f32 %v685, %v943
      %v1090 = vadd.f32 %v686, %v945
      %v1091 = vadd.f32 %v687, %v947
      %v1092 = vadd.f32 %v688, %v949
      %v1093 = vadd.f32 %v689, %v951
      %v1094 = vadd.f32 %v690, %v953
      %v1095 = vadd.f32 %v691, %v955
      %v1096 = vadd.f32 %v692, %v957
      %v1097 = vadd.f32 %v693, %v959
      %v1098 = vadd.f32 %v694, %v961
      %v1099 = vadd.f32 %v695, %v963
      %v1100 = vadd.f32 %v696, %v965
      %v1101 = vadd.f32 %v697, %v967
      %v1102 = vadd.f32 %v698, %v969
      %v1103 = vadd.f32 %v699, %v971
      %v1104 = vadd.f32 %v700, %v973
      %v1105 = vadd.f32 %v701, %v975
      %v1106 = vadd.f32 %v702, %v977
      %v1107 = vadd.f32 %v703, %v979
      %s1108 = scalar_lea.vmem %s1, 2
      %v1109 = vld [vmem:[%s1108] ss:$4 sm:$0x3]
      %v1111 = vlaneseq
      %v1112 = vshrl.u32 %v1111, 7
      %v1113 = vsub.s32 0, %v1112
      %v1114 = vrot.slane %v1109, %v1113
      %v1115 = vlaneseq
      %v1116 = vshrl.u32 %v1115, 7
      %v1117 = vsub.s32 1, %v1116
      %v1118 = vrot.slane %v1109, %v1117
      %v1121 = vmul.f32 %v548, %v1114
      %v1122 = vmul.f32 %v549, %v1118
      %v1123 = vmul.f32 %v359, %v1114
      %v1124 = vmul.f32 %v361, %v1118
      %v1125 = vmul.f32 %v363, %v1114
      %v1126 = vmul.f32 %v365, %v1118
      %v1127 = vmul.f32 %v367, %v1114
      %v1128 = vmul.f32 %v369, %v1118
      %v1129 = vmul.f32 %v371, %v1114
      %v1130 = vmul.f32 %v373, %v1118
      %v1131 = vmul.f32 %v375, %v1114
      %v1132 = vmul.f32 %v377, %v1118
      %v1133 = vmul.f32 %v379, %v1114
      %v1134 = vmul.f32 %v381, %v1118
      %v1135 = vmul.f32 %v383, %v1114
      %v1136 = vmul.f32 %v385, %v1118
      %v1137 = vmul.f32 %v387, %v1114
      %v1138 = vmul.f32 %v389, %v1118
      %v1139 = vmul.f32 %v391, %v1114
      %v1140 = vmul.f32 %v393, %v1118
      %v1141 = vmul.f32 %v395, %v1114
      %v1142 = vmul.f32 %v397, %v1118
      %v1143 = vmul.f32 %v399, %v1114
      %v1144 = vmul.f32 %v401, %v1118
      %v1145 = vmul.f32 %v403, %v1114
      %v1146 = vmul.f32 %v405, %v1118
      %v1147 = vmul.f32 %v407, %v1114
      %v1148 = vmul.f32 %v409, %v1118
      %v1149 = vmul.f32 %v411, %v1114
      %v1150 = vmul.f32 %v413, %v1118
      %v1151 = vmul.f32 %v415, %v1114
      %v1152 = vmul.f32 %v417, %v1118
      %v1153 = vmul.f32 %v419, %v1114
      %v1154 = vmul.f32 %v421, %v1118
      %v1155 = vmul.f32 %v423, %v1114
      %v1156 = vmul.f32 %v425, %v1118
      %v1157 = vmul.f32 %v427, %v1114
      %v1158 = vmul.f32 %v429, %v1118
      %v1159 = vmul.f32 %v431, %v1114
      %v1160 = vmul.f32 %v433, %v1118
      %v1161 = vmul.f32 %v435, %v1114
      %v1162 = vmul.f32 %v437, %v1118
      %v1163 = vmul.f32 %v439, %v1114
      %v1164 = vmul.f32 %v441, %v1118
      %v1165 = vmul.f32 %v443, %v1114
      %v1166 = vmul.f32 %v445, %v1118
      %v1167 = vmul.f32 %v447, %v1114
      %v1168 = vmul.f32 %v449, %v1118
      %v1169 = vmul.f32 %v451, %v1114
      %v1170 = vmul.f32 %v453, %v1118
      %v1171 = vmul.f32 %v455, %v1114
      %v1172 = vmul.f32 %v457, %v1118
      %v1173 = vmul.f32 %v459, %v1114
      %v1174 = vmul.f32 %v461, %v1118
      %v1175 = vmul.f32 %v463, %v1114
      %v1176 = vmul.f32 %v465, %v1118
      %v1177 = vmul.f32 %v467, %v1114
      %v1178 = vmul.f32 %v469, %v1118
      %v1179 = vmul.f32 %v471, %v1114
      %v1180 = vmul.f32 %v473, %v1118
      %v1181 = vmul.f32 %v475, %v1114
      %v1182 = vmul.f32 %v477, %v1118
      %v1183 = vmul.f32 %v479, %v1114
      %v1184 = vmul.f32 %v481, %v1118
      %v1185 = vmul.f32 %v478, %v1114
      %v1186 = vmul.f32 %v480, %v1118
      %vm1253 = vcmask 1045504
      %v1254 = vrot.slane %v1121, 2
      %v1255 = vrot.slane %v1123, 2
      %v1256 = vsel %vm1253, %v1254, %v1255
      %v1257 = vrot.slane %v1122, 2
      %v1258 = vrot.slane %v1124, 2
      %v1259 = vsel %vm1253, %v1257, %v1258
      %v1260 = vrot.slane %v1125, 2
      %v1261 = vsel %vm1253, %v1255, %v1260
      %v1262 = vrot.slane %v1126, 2
      %v1263 = vsel %vm1253, %v1258, %v1262
      %v1264 = vrot.slane %v1127, 2
      %v1265 = vsel %vm1253, %v1260, %v1264
      %v1266 = vrot.slane %v1128, 2
      %v1267 = vsel %vm1253, %v1262, %v1266
      %v1268 = vrot.slane %v1129, 2
      %v1269 = vsel %vm1253, %v1264, %v1268
      %v1270 = vrot.slane %v1130, 2
      %v1271 = vsel %vm1253, %v1266, %v1270
      %v1272 = vrot.slane %v1131, 2
      %v1273 = vsel %vm1253, %v1268, %v1272
      %v1274 = vrot.slane %v1132, 2
      %v1275 = vsel %vm1253, %v1270, %v1274
      %v1276 = vrot.slane %v1133, 2
      %v1277 = vsel %vm1253, %v1272, %v1276
      %v1278 = vrot.slane %v1134, 2
      %v1279 = vsel %vm1253, %v1274, %v1278
      %v1280 = vrot.slane %v1135, 2
      %v1281 = vsel %vm1253, %v1276, %v1280
      %v1282 = vrot.slane %v1136, 2
      %v1283 = vsel %vm1253, %v1278, %v1282
      %v1284 = vrot.slane %v1137, 2
      %v1285 = vsel %vm1253, %v1280, %v1284
      %v1286 = vrot.slane %v1138, 2
      %v1287 = vsel %vm1253, %v1282, %v1286
      %v1288 = vrot.slane %v1139, 2
      %v1289 = vsel %vm1253, %v1284, %v1288
      %v1290 = vrot.slane %v1140, 2
      %v1291 = vsel %vm1253, %v1286, %v1290
      %v1292 = vrot.slane %v1141, 2
      %v1293 = vsel %vm1253, %v1288, %v1292
      %v1294 = vrot.slane %v1142, 2
      %v1295 = vsel %vm1253, %v1290, %v1294
      %v1296 = vrot.slane %v1143, 2
      %v1297 = vsel %vm1253, %v1292, %v1296
      %v1298 = vrot.slane %v1144, 2
      %v1299 = vsel %vm1253, %v1294, %v1298
      %v1300 = vrot.slane %v1145, 2
      %v1301 = vsel %vm1253, %v1296, %v1300
      %v1302 = vrot.slane %v1146, 2
      %v1303 = vsel %vm1253, %v1298, %v1302
      %v1304 = vrot.slane %v1147, 2
      %v1305 = vsel %vm1253, %v1300, %v1304
      %v1306 = vrot.slane %v1148, 2
      %v1307 = vsel %vm1253, %v1302, %v1306
      %v1308 = vrot.slane %v1149, 2
      %v1309 = vsel %vm1253, %v1304, %v1308
      %v1310 = vrot.slane %v1150, 2
      %v1311 = vsel %vm1253, %v1306, %v1310
      %v1312 = vrot.slane %v1151, 2
      %v1313 = vsel %vm1253, %v1308, %v1312
      %v1314 = vrot.slane %v1152, 2
      %v1315 = vsel %vm1253, %v1310, %v1314
      %v1316 = vrot.slane %v1153, 2
      %v1317 = vsel %vm1253, %v1312, %v1316
      %v1318 = vrot.slane %v1154, 2
      %v1319 = vsel %vm1253, %v1314, %v1318
      %v1320 = vrot.slane %v1155, 2
      %v1321 = vsel %vm1253, %v1316, %v1320
      %v1322 = vrot.slane %v1156, 2
      %v1323 = vsel %vm1253, %v1318, %v1322
      %v1324 = vrot.slane %v1157, 2
      %v1325 = vsel %vm1253, %v1320, %v1324
      %v1326 = vrot.slane %v1158, 2
      %v1327 = vsel %vm1253, %v1322, %v1326
      %v1328 = vrot.slane %v1159, 2
      %v1329 = vsel %vm1253, %v1324, %v1328
      %v1330 = vrot.slane %v1160, 2
      %v1331 = vsel %vm1253, %v1326, %v1330
      %v1332 = vrot.slane %v1161, 2
      %v1333 = vsel %vm1253, %v1328, %v1332
      %v1334 = vrot.slane %v1162, 2
      %v1335 = vsel %vm1253, %v1330, %v1334
      %v1336 = vrot.slane %v1163, 2
      %v1337 = vsel %vm1253, %v1332, %v1336
      %v1338 = vrot.slane %v1164, 2
      %v1339 = vsel %vm1253, %v1334, %v1338
      %v1340 = vrot.slane %v1165, 2
      %v1341 = vsel %vm1253, %v1336, %v1340
      %v1342 = vrot.slane %v1166, 2
      %v1343 = vsel %vm1253, %v1338, %v1342
      %v1344 = vrot.slane %v1167, 2
      %v1345 = vsel %vm1253, %v1340, %v1344
      %v1346 = vrot.slane %v1168, 2
      %v1347 = vsel %vm1253, %v1342, %v1346
      %v1348 = vrot.slane %v1169, 2
      %v1349 = vsel %vm1253, %v1344, %v1348
      %v1350 = vrot.slane %v1170, 2
      %v1351 = vsel %vm1253, %v1346, %v1350
      %v1352 = vrot.slane %v1171, 2
      %v1353 = vsel %vm1253, %v1348, %v1352
      %v1354 = vrot.slane %v1172, 2
      %v1355 = vsel %vm1253, %v1350, %v1354
      %v1356 = vrot.slane %v1173, 2
      %v1357 = vsel %vm1253, %v1352, %v1356
      %v1358 = vrot.slane %v1174, 2
      %v1359 = vsel %vm1253, %v1354, %v1358
      %v1360 = vrot.slane %v1175, 2
      %v1361 = vsel %vm1253, %v1356, %v1360
      %v1362 = vrot.slane %v1176, 2
      %v1363 = vsel %vm1253, %v1358, %v1362
      %v1364 = vrot.slane %v1177, 2
      %v1365 = vsel %vm1253, %v1360, %v1364
      %v1366 = vrot.slane %v1178, 2
      %v1367 = vsel %vm1253, %v1362, %v1366
      %v1368 = vrot.slane %v1179, 2
      %v1369 = vsel %vm1253, %v1364, %v1368
      %v1370 = vrot.slane %v1180, 2
      %v1371 = vsel %vm1253, %v1366, %v1370
      %v1372 = vrot.slane %v1181, 2
      %v1373 = vsel %vm1253, %v1368, %v1372
      %v1374 = vrot.slane %v1182, 2
      %v1375 = vsel %vm1253, %v1370, %v1374
      %v1376 = vrot.slane %v1183, 2
      %v1377 = vsel %vm1253, %v1372, %v1376
      %v1378 = vrot.slane %v1184, 2
      %v1379 = vsel %vm1253, %v1374, %v1378
      %v1380 = vrot.slane %v1185, 2
      %v1381 = vsel %vm1253, %v1376, %v1380
      %v1382 = vrot.slane %v1186, 2
      %v1383 = vsel %vm1253, %v1378, %v1382
      %v1448 = vadd.f32 %v1044, %v1256
      %v1449 = vadd.f32 %v1045, %v1259
      %v1450 = vadd.f32 %v1046, %v1261
      %v1451 = vadd.f32 %v1047, %v1263
      %v1452 = vadd.f32 %v1048, %v1265
      %v1453 = vadd.f32 %v1049, %v1267
      %v1454 = vadd.f32 %v1050, %v1269
      %v1455 = vadd.f32 %v1051, %v1271
      %v1456 = vadd.f32 %v1052, %v1273
      %v1457 = vadd.f32 %v1053, %v1275
      %v1458 = vadd.f32 %v1054, %v1277
      %v1459 = vadd.f32 %v1055, %v1279
      %v1460 = vadd.f32 %v1056, %v1281
      %v1461 = vadd.f32 %v1057, %v1283
      %v1462 = vadd.f32 %v1058, %v1285
      %v1463 = vadd.f32 %v1059, %v1287
      %v1464 = vadd.f32 %v1060, %v1289
      %v1465 = vadd.f32 %v1061, %v1291
      %v1466 = vadd.f32 %v1062, %v1293
      %v1467 = vadd.f32 %v1063, %v1295
      %v1468 = vadd.f32 %v1064, %v1297
      %v1469 = vadd.f32 %v1065, %v1299
      %v1470 = vadd.f32 %v1066, %v1301
      %v1471 = vadd.f32 %v1067, %v1303
      %v1472 = vadd.f32 %v1068, %v1305
      %v1473 = vadd.f32 %v1069, %v1307
      %v1474 = vadd.f32 %v1070, %v1309
      %v1475 = vadd.f32 %v1071, %v1311
      %v1476 = vadd.f32 %v1072, %v1313
      %v1477 = vadd.f32 %v1073, %v1315
      %v1478 = vadd.f32 %v1074, %v1317
      %v1479 = vadd.f32 %v1075, %v1319
      %v1480 = vadd.f32 %v1076, %v1321
      %v1481 = vadd.f32 %v1077, %v1323
      %v1482 = vadd.f32 %v1078, %v1325
      %v1483 = vadd.f32 %v1079, %v1327
      %v1484 = vadd.f32 %v1080, %v1329
      %v1485 = vadd.f32 %v1081, %v1331
      %v1486 = vadd.f32 %v1082, %v1333
      %v1487 = vadd.f32 %v1083, %v1335
      %v1488 = vadd.f32 %v1084, %v1337
      %v1489 = vadd.f32 %v1085, %v1339
      %v1490 = vadd.f32 %v1086, %v1341
      %v1491 = vadd.f32 %v1087, %v1343
      %v1492 = vadd.f32 %v1088, %v1345
      %v1493 = vadd.f32 %v1089, %v1347
      %v1494 = vadd.f32 %v1090, %v1349
      %v1495 = vadd.f32 %v1091, %v1351
      %v1496 = vadd.f32 %v1092, %v1353
      %v1497 = vadd.f32 %v1093, %v1355
      %v1498 = vadd.f32 %v1094, %v1357
      %v1499 = vadd.f32 %v1095, %v1359
      %v1500 = vadd.f32 %v1096, %v1361
      %v1501 = vadd.f32 %v1097, %v1363
      %v1502 = vadd.f32 %v1098, %v1365
      %v1503 = vadd.f32 %v1099, %v1367
      %v1504 = vadd.f32 %v1100, %v1369
      %v1505 = vadd.f32 %v1101, %v1371
      %v1506 = vadd.f32 %v1102, %v1373
      %v1507 = vadd.f32 %v1103, %v1375
      %v1508 = vadd.f32 %v1104, %v1377
      %v1509 = vadd.f32 %v1105, %v1379
      %v1510 = vadd.f32 %v1106, %v1381
      %v1511 = vadd.f32 %v1107, %v1383
      %s1512 = scalar_lea.vmem %s1, 3
      %v1513 = vld [vmem:[%s1512] ss:$4 sm:$0x3]
      %v1515 = vlaneseq
      %v1516 = vshrl.u32 %v1515, 7
      %v1517 = vsub.s32 0, %v1516
      %v1518 = vrot.slane %v1513, %v1517
      %v1519 = vlaneseq
      %v1520 = vshrl.u32 %v1519, 7
      %v1521 = vsub.s32 1, %v1520
      %v1522 = vrot.slane %v1513, %v1521
      %v1525 = vmul.f32 %v548, %v1518
      %v1526 = vmul.f32 %v549, %v1522
      %v1527 = vmul.f32 %v359, %v1518
      %v1528 = vmul.f32 %v361, %v1522
      %v1529 = vmul.f32 %v363, %v1518
      %v1530 = vmul.f32 %v365, %v1522
      %v1531 = vmul.f32 %v367, %v1518
      %v1532 = vmul.f32 %v369, %v1522
      %v1533 = vmul.f32 %v371, %v1518
      %v1534 = vmul.f32 %v373, %v1522
      %v1535 = vmul.f32 %v375, %v1518
      %v1536 = vmul.f32 %v377, %v1522
      %v1537 = vmul.f32 %v379, %v1518
      %v1538 = vmul.f32 %v381, %v1522
      %v1539 = vmul.f32 %v383, %v1518
      %v1540 = vmul.f32 %v385, %v1522
      %v1541 = vmul.f32 %v387, %v1518
      %v1542 = vmul.f32 %v389, %v1522
      %v1543 = vmul.f32 %v391, %v1518
      %v1544 = vmul.f32 %v393, %v1522
      %v1545 = vmul.f32 %v395, %v1518
      %v1546 = vmul.f32 %v397, %v1522
      %v1547 = vmul.f32 %v399, %v1518
      %v1548 = vmul.f32 %v401, %v1522
      %v1549 = vmul.f32 %v403, %v1518
      %v1550 = vmul.f32 %v405, %v1522
      %v1551 = vmul.f32 %v407, %v1518
      %v1552 = vmul.f32 %v409, %v1522
      %v1553 = vmul.f32 %v411, %v1518
      %v1554 = vmul.f32 %v413, %v1522
      %v1555 = vmul.f32 %v415, %v1518
      %v1556 = vmul.f32 %v417, %v1522
      %v1557 = vmul.f32 %v419, %v1518
      %v1558 = vmul.f32 %v421, %v1522
      %v1559 = vmul.f32 %v423, %v1518
      %v1560 = vmul.f32 %v425, %v1522
      %v1561 = vmul.f32 %v427, %v1518
      %v1562 = vmul.f32 %v429, %v1522
      %v1563 = vmul.f32 %v431, %v1518
      %v1564 = vmul.f32 %v433, %v1522
      %v1565 = vmul.f32 %v435, %v1518
      %v1566 = vmul.f32 %v437, %v1522
      %v1567 = vmul.f32 %v439, %v1518
      %v1568 = vmul.f32 %v441, %v1522
      %v1569 = vmul.f32 %v443, %v1518
      %v1570 = vmul.f32 %v445, %v1522
      %v1571 = vmul.f32 %v447, %v1518
      %v1572 = vmul.f32 %v449, %v1522
      %v1573 = vmul.f32 %v451, %v1518
      %v1574 = vmul.f32 %v453, %v1522
      %v1575 = vmul.f32 %v455, %v1518
      %v1576 = vmul.f32 %v457, %v1522
      %v1577 = vmul.f32 %v459, %v1518
      %v1578 = vmul.f32 %v461, %v1522
      %v1579 = vmul.f32 %v463, %v1518
      %v1580 = vmul.f32 %v465, %v1522
      %v1581 = vmul.f32 %v467, %v1518
      %v1582 = vmul.f32 %v469, %v1522
      %v1583 = vmul.f32 %v471, %v1518
      %v1584 = vmul.f32 %v473, %v1522
      %v1585 = vmul.f32 %v475, %v1518
      %v1586 = vmul.f32 %v477, %v1522
      %v1587 = vmul.f32 %v479, %v1518
      %v1588 = vmul.f32 %v481, %v1522
      %v1589 = vmul.f32 %v478, %v1518
      %v1590 = vmul.f32 %v480, %v1522
      %vm1657 = vcmask 1044480
      %v1658 = vrot.slane %v1525, 3
      %v1659 = vrot.slane %v1527, 3
      %v1660 = vsel %vm1657, %v1658, %v1659
      %v1661 = vrot.slane %v1526, 3
      %v1662 = vrot.slane %v1528, 3
      %v1663 = vsel %vm1657, %v1661, %v1662
      %v1664 = vrot.slane %v1529, 3
      %v1665 = vsel %vm1657, %v1659, %v1664
      %v1666 = vrot.slane %v1530, 3
      %v1667 = vsel %vm1657, %v1662, %v1666
      %v1668 = vrot.slane %v1531, 3
      %v1669 = vsel %vm1657, %v1664, %v1668
      %v1670 = vrot.slane %v1532, 3
      %v1671 = vsel %vm1657, %v1666, %v1670
      %v1672 = vrot.slane %v1533, 3
      %v1673 = vsel %vm1657, %v1668, %v1672
      %v1674 = vrot.slane %v1534, 3
      %v1675 = vsel %vm1657, %v1670, %v1674
      %v1676 = vrot.slane %v1535, 3
      %v1677 = vsel %vm1657, %v1672, %v1676
      %v1678 = vrot.slane %v1536, 3
      %v1679 = vsel %vm1657, %v1674, %v1678
      %v1680 = vrot.slane %v1537, 3
      %v1681 = vsel %vm1657, %v1676, %v1680
      %v1682 = vrot.slane %v1538, 3
      %v1683 = vsel %vm1657, %v1678, %v1682
      %v1684 = vrot.slane %v1539, 3
      %v1685 = vsel %vm1657, %v1680, %v1684
      %v1686 = vrot.slane %v1540, 3
      %v1687 = vsel %vm1657, %v1682, %v1686
      %v1688 = vrot.slane %v1541, 3
      %v1689 = vsel %vm1657, %v1684, %v1688
      %v1690 = vrot.slane %v1542, 3
      %v1691 = vsel %vm1657, %v1686, %v1690
      %v1692 = vrot.slane %v1543, 3
      %v1693 = vsel %vm1657, %v1688, %v1692
      %v1694 = vrot.slane %v1544, 3
      %v1695 = vsel %vm1657, %v1690, %v1694
      %v1696 = vrot.slane %v1545, 3
      %v1697 = vsel %vm1657, %v1692, %v1696
      %v1698 = vrot.slane %v1546, 3
      %v1699 = vsel %vm1657, %v1694, %v1698
      %v1700 = vrot.slane %v1547, 3
      %v1701 = vsel %vm1657, %v1696, %v1700
      %v1702 = vrot.slane %v1548, 3
      %v1703 = vsel %vm1657, %v1698, %v1702
      %v1704 = vrot.slane %v1549, 3
      %v1705 = vsel %vm1657, %v1700, %v1704
      %v1706 = vrot.slane %v1550, 3
      %v1707 = vsel %vm1657, %v1702, %v1706
      %v1708 = vrot.slane %v1551, 3
      %v1709 = vsel %vm1657, %v1704, %v1708
      %v1710 = vrot.slane %v1552, 3
      %v1711 = vsel %vm1657, %v1706, %v1710
      %v1712 = vrot.slane %v1553, 3
      %v1713 = vsel %vm1657, %v1708, %v1712
      %v1714 = vrot.slane %v1554, 3
      %v1715 = vsel %vm1657, %v1710, %v1714
      %v1716 = vrot.slane %v1555, 3
      %v1717 = vsel %vm1657, %v1712, %v1716
      %v1718 = vrot.slane %v1556, 3
      %v1719 = vsel %vm1657, %v1714, %v1718
      %v1720 = vrot.slane %v1557, 3
      %v1721 = vsel %vm1657, %v1716, %v1720
      %v1722 = vrot.slane %v1558, 3
      %v1723 = vsel %vm1657, %v1718, %v1722
      %v1724 = vrot.slane %v1559, 3
      %v1725 = vsel %vm1657, %v1720, %v1724
      %v1726 = vrot.slane %v1560, 3
      %v1727 = vsel %vm1657, %v1722, %v1726
      %v1728 = vrot.slane %v1561, 3
      %v1729 = vsel %vm1657, %v1724, %v1728
      %v1730 = vrot.slane %v1562, 3
      %v1731 = vsel %vm1657, %v1726, %v1730
      %v1732 = vrot.slane %v1563, 3
      %v1733 = vsel %vm1657, %v1728, %v1732
      %v1734 = vrot.slane %v1564, 3
      %v1735 = vsel %vm1657, %v1730, %v1734
      %v1736 = vrot.slane %v1565, 3
      %v1737 = vsel %vm1657, %v1732, %v1736
      %v1738 = vrot.slane %v1566, 3
      %v1739 = vsel %vm1657, %v1734, %v1738
      %v1740 = vrot.slane %v1567, 3
      %v1741 = vsel %vm1657, %v1736, %v1740
      %v1742 = vrot.slane %v1568, 3
      %v1743 = vsel %vm1657, %v1738, %v1742
      %v1744 = vrot.slane %v1569, 3
      %v1745 = vsel %vm1657, %v1740, %v1744
      %v1746 = vrot.slane %v1570, 3
      %v1747 = vsel %vm1657, %v1742, %v1746
      %v1748 = vrot.slane %v1571, 3
      %v1749 = vsel %vm1657, %v1744, %v1748
      %v1750 = vrot.slane %v1572, 3
      %v1751 = vsel %vm1657, %v1746, %v1750
      %v1752 = vrot.slane %v1573, 3
      %v1753 = vsel %vm1657, %v1748, %v1752
      %v1754 = vrot.slane %v1574, 3
      %v1755 = vsel %vm1657, %v1750, %v1754
      %v1756 = vrot.slane %v1575, 3
      %v1757 = vsel %vm1657, %v1752, %v1756
      %v1758 = vrot.slane %v1576, 3
      %v1759 = vsel %vm1657, %v1754, %v1758
      %v1760 = vrot.slane %v1577, 3
      %v1761 = vsel %vm1657, %v1756, %v1760
      %v1762 = vrot.slane %v1578, 3
      %v1763 = vsel %vm1657, %v1758, %v1762
      %v1764 = vrot.slane %v1579, 3
      %v1765 = vsel %vm1657, %v1760, %v1764
      %v1766 = vrot.slane %v1580, 3
      %v1767 = vsel %vm1657, %v1762, %v1766
      %v1768 = vrot.slane %v1581, 3
      %v1769 = vsel %vm1657, %v1764, %v1768
      %v1770 = vrot.slane %v1582, 3
      %v1771 = vsel %vm1657, %v1766, %v1770
      %v1772 = vrot.slane %v1583, 3
      %v1773 = vsel %vm1657, %v1768, %v1772
      %v1774 = vrot.slane %v1584, 3
      %v1775 = vsel %vm1657, %v1770, %v1774
      %v1776 = vrot.slane %v1585, 3
      %v1777 = vsel %vm1657, %v1772, %v1776
      %v1778 = vrot.slane %v1586, 3
      %v1779 = vsel %vm1657, %v1774, %v1778
      %v1780 = vrot.slane %v1587, 3
      %v1781 = vsel %vm1657, %v1776, %v1780
      %v1782 = vrot.slane %v1588, 3
      %v1783 = vsel %vm1657, %v1778, %v1782
      %v1784 = vrot.slane %v1589, 3
      %v1785 = vsel %vm1657, %v1780, %v1784
      %v1786 = vrot.slane %v1590, 3
      %v1787 = vsel %vm1657, %v1782, %v1786
      %v1852 = vadd.f32 %v1448, %v1660
      %v1853 = vadd.f32 %v1449, %v1663
      %v1854 = vadd.f32 %v1450, %v1665
      %v1855 = vadd.f32 %v1451, %v1667
      %v1856 = vadd.f32 %v1452, %v1669
      %v1857 = vadd.f32 %v1453, %v1671
      %v1858 = vadd.f32 %v1454, %v1673
      %v1859 = vadd.f32 %v1455, %v1675
      %v1860 = vadd.f32 %v1456, %v1677
      %v1861 = vadd.f32 %v1457, %v1679
      %v1862 = vadd.f32 %v1458, %v1681
      %v1863 = vadd.f32 %v1459, %v1683
      %v1864 = vadd.f32 %v1460, %v1685
      %v1865 = vadd.f32 %v1461, %v1687
      %v1866 = vadd.f32 %v1462, %v1689
      %v1867 = vadd.f32 %v1463, %v1691
      %v1868 = vadd.f32 %v1464, %v1693
      %v1869 = vadd.f32 %v1465, %v1695
      %v1870 = vadd.f32 %v1466, %v1697
      %v1871 = vadd.f32 %v1467, %v1699
      %v1872 = vadd.f32 %v1468, %v1701
      %v1873 = vadd.f32 %v1469, %v1703
      %v1874 = vadd.f32 %v1470, %v1705
      %v1875 = vadd.f32 %v1471, %v1707
      %v1876 = vadd.f32 %v1472, %v1709
      %v1877 = vadd.f32 %v1473, %v1711
      %v1878 = vadd.f32 %v1474, %v1713
      %v1879 = vadd.f32 %v1475, %v1715
      %v1880 = vadd.f32 %v1476, %v1717
      %v1881 = vadd.f32 %v1477, %v1719
      %v1882 = vadd.f32 %v1478, %v1721
      %v1883 = vadd.f32 %v1479, %v1723
      %v1884 = vadd.f32 %v1480, %v1725
      %v1885 = vadd.f32 %v1481, %v1727
      %v1886 = vadd.f32 %v1482, %v1729
      %v1887 = vadd.f32 %v1483, %v1731
      %v1888 = vadd.f32 %v1484, %v1733
      %v1889 = vadd.f32 %v1485, %v1735
      %v1890 = vadd.f32 %v1486, %v1737
      %v1891 = vadd.f32 %v1487, %v1739
      %v1892 = vadd.f32 %v1488, %v1741
      %v1893 = vadd.f32 %v1489, %v1743
      %v1894 = vadd.f32 %v1490, %v1745
      %v1895 = vadd.f32 %v1491, %v1747
      %v1896 = vadd.f32 %v1492, %v1749
      %v1897 = vadd.f32 %v1493, %v1751
      %v1898 = vadd.f32 %v1494, %v1753
      %v1899 = vadd.f32 %v1495, %v1755
      %v1900 = vadd.f32 %v1496, %v1757
      %v1901 = vadd.f32 %v1497, %v1759
      %v1902 = vadd.f32 %v1498, %v1761
      %v1903 = vadd.f32 %v1499, %v1763
      %v1904 = vadd.f32 %v1500, %v1765
      %v1905 = vadd.f32 %v1501, %v1767
      %v1906 = vadd.f32 %v1502, %v1769
      %v1907 = vadd.f32 %v1503, %v1771
      %v1908 = vadd.f32 %v1504, %v1773
      %v1909 = vadd.f32 %v1505, %v1775
      %v1910 = vadd.f32 %v1506, %v1777
      %v1911 = vadd.f32 %v1507, %v1779
      %v1912 = vadd.f32 %v1508, %v1781
      %v1913 = vadd.f32 %v1509, %v1783
      %v1914 = vadd.f32 %v1510, %v1785
      %v1915 = vadd.f32 %v1511, %v1787
      %v1916 = vcombine.high %v285, %v286
      %v1917 = vrot.slane %v1916, 5
      %v1918 = vrot.slane %v1917, 4
      %vm1920 = vcmask 522244
      %vm1921 = vmor %vm1920, %vm355
      %1922 = vst.msk [vmem:[#allocation2] sm:$0x77] %vm1921, %v1918
      %v1923 = vsub.f32 0.0, %v1852
      %v1924 = vsub.f32 0.0, %v1853
      %v1925 = vsub.f32 0.0, %v1854
      %v1926 = vsub.f32 0.0, %v1855
      %v1927 = vsub.f32 0.0, %v1856
      %v1928 = vsub.f32 0.0, %v1857
      %v1929 = vsub.f32 0.0, %v1858
      %v1930 = vsub.f32 0.0, %v1859
      %v1931 = vsub.f32 0.0, %v1860
      %v1932 = vsub.f32 0.0, %v1861
      %v1933 = vsub.f32 0.0, %v1862
      %v1934 = vsub.f32 0.0, %v1863
      %v1935 = vsub.f32 0.0, %v1864
      %v1936 = vsub.f32 0.0, %v1865
      %v1937 = vsub.f32 0.0, %v1866
      %v1938 = vsub.f32 0.0, %v1867
      %v1939 = vsub.f32 0.0, %v1868
      %v1940 = vsub.f32 0.0, %v1869
      %v1941 = vsub.f32 0.0, %v1870
      %v1942 = vsub.f32 0.0, %v1871
      %v1943 = vsub.f32 0.0, %v1872
      %v1944 = vsub.f32 0.0, %v1873
      %v1945 = vsub.f32 0.0, %v1874
      %v1946 = vsub.f32 0.0, %v1875
      %v1947 = vsub.f32 0.0, %v1876
      %v1948 = vsub.f32 0.0, %v1877
      %v1949 = vsub.f32 0.0, %v1878
      %v1950 = vsub.f32 0.0, %v1879
      %v1951 = vsub.f32 0.0, %v1880
      %v1952 = vsub.f32 0.0, %v1881
      %v1953 = vsub.f32 0.0, %v1882
      %v1954 = vsub.f32 0.0, %v1883
      %v1955 = vsub.f32 0.0, %v1884
      %v1956 = vsub.f32 0.0, %v1885
      %v1957 = vsub.f32 0.0, %v1886
      %v1958 = vsub.f32 0.0, %v1887
      %v1959 = vsub.f32 0.0, %v1888
      %v1960 = vsub.f32 0.0, %v1889
      %v1961 = vsub.f32 0.0, %v1890
      %v1962 = vsub.f32 0.0, %v1891
      %v1963 = vsub.f32 0.0, %v1892
      %v1964 = vsub.f32 0.0, %v1893
      %v1965 = vsub.f32 0.0, %v1894
      %v1966 = vsub.f32 0.0, %v1895
      %v1967 = vsub.f32 0.0, %v1896
      %v1968 = vsub.f32 0.0, %v1897
      %v1969 = vsub.f32 0.0, %v1898
      %v1970 = vsub.f32 0.0, %v1899
      %v1971 = vsub.f32 0.0, %v1900
      %v1972 = vsub.f32 0.0, %v1901
      %v1973 = vsub.f32 0.0, %v1902
      %v1974 = vsub.f32 0.0, %v1903
      %v1975 = vsub.f32 0.0, %v1904
      %v1976 = vsub.f32 0.0, %v1905
      %v1977 = vsub.f32 0.0, %v1906
      %v1978 = vsub.f32 0.0, %v1907
      %v1979 = vsub.f32 0.0, %v1908
      %v1980 = vsub.f32 0.0, %v1909
      %v1981 = vsub.f32 0.0, %v1910
      %v1982 = vsub.f32 0.0, %v1911
      %v1983 = vsub.f32 0.0, %v1912
      %v1984 = vsub.f32 0.0, %v1913
      %v1985 = vsub.f32 0.0, %v1914
      %v1986 = vsub.f32 0.0, %v1915
      %v1987 = vmul.f32 %v1923, 1.442695
      %v1988 = vpow.pop %v1987
      %v1989 = vmul.f32 %v1924, 1.442695
      %v1990 = vpow.pop %v1989
      %v1991 = vmul.f32 %v1925, 1.442695
      %v1992 = vpow.pop %v1991
      %v1993 = vmul.f32 %v1926, 1.442695
      %v1994 = vpow.pop %v1993
      %v1995 = vmul.f32 %v1927, 1.442695
      %v1996 = vpow.pop %v1995
      %v1997 = vmul.f32 %v1928, 1.442695
      %v1998 = vpow.pop %v1997
      %v1999 = vmul.f32 %v1929, 1.442695
      %v2000 = vpow.pop %v1999
      %v2001 = vmul.f32 %v1930, 1.442695
      %v2002 = vpow.pop %v2001
      %v2003 = vmul.f32 %v1931, 1.442695
      %v2004 = vpow.pop %v2003
      %v2005 = vmul.f32 %v1932, 1.442695
      %v2006 = vpow.pop %v2005
      %v2007 = vmul.f32 %v1933, 1.442695
      %v2008 = vpow.pop %v2007
      %v2009 = vmul.f32 %v1934, 1.442695
      %v2010 = vpow.pop %v2009
      %v2011 = vmul.f32 %v1935, 1.442695
      %v2012 = vpow.pop %v2011
      %v2013 = vmul.f32 %v1936, 1.442695
      %v2014 = vpow.pop %v2013
      %v2015 = vmul.f32 %v1937, 1.442695
      %v2016 = vpow.pop %v2015
      %v2017 = vmul.f32 %v1938, 1.442695
      %v2018 = vpow.pop %v2017
      %v2019 = vmul.f32 %v1939, 1.442695
      %v2020 = vpow.pop %v2019
      %v2021 = vmul.f32 %v1940, 1.442695
      %v2022 = vpow.pop %v2021
      %v2023 = vmul.f32 %v1941, 1.442695
      %v2024 = vpow.pop %v2023
      %v2025 = vmul.f32 %v1942, 1.442695
      %v2026 = vpow.pop %v2025
      %v2027 = vmul.f32 %v1943, 1.442695
      %v2028 = vpow.pop %v2027
      %v2029 = vmul.f32 %v1944, 1.442695
      %v2030 = vpow.pop %v2029
      %v2031 = vmul.f32 %v1945, 1.442695
      %v2032 = vpow.pop %v2031
      %v2033 = vmul.f32 %v1946, 1.442695
      %v2034 = vpow.pop %v2033
      %v2035 = vmul.f32 %v1947, 1.442695
      %v2036 = vpow.pop %v2035
      %v2037 = vmul.f32 %v1948, 1.442695
      %v2038 = vpow.pop %v2037
      %v2039 = vmul.f32 %v1949, 1.442695
      %v2040 = vpow.pop %v2039
      %v2041 = vmul.f32 %v1950, 1.442695
      %v2042 = vpow.pop %v2041
      %v2043 = vmul.f32 %v1951, 1.442695
      %v2044 = vpow.pop %v2043
      %v2045 = vmul.f32 %v1952, 1.442695
      %v2046 = vpow.pop %v2045
      %v2047 = vmul.f32 %v1953, 1.442695
      %v2048 = vpow.pop %v2047
      %v2049 = vmul.f32 %v1954, 1.442695
      %v2050 = vpow.pop %v2049
      %v2051 = vmul.f32 %v1955, 1.442695
      %v2052 = vpow.pop %v2051
      %v2053 = vmul.f32 %v1956, 1.442695
      %v2054 = vpow.pop %v2053
      %v2055 = vmul.f32 %v1957, 1.442695
      %v2056 = vpow.pop %v2055
      %v2057 = vmul.f32 %v1958, 1.442695
      %v2058 = vpow.pop %v2057
      %v2059 = vmul.f32 %v1959, 1.442695
      %v2060 = vpow.pop %v2059
      %v2061 = vmul.f32 %v1960, 1.442695
      %v2062 = vpow.pop %v2061
      %v2063 = vmul.f32 %v1961, 1.442695
      %v2064 = vpow.pop %v2063
      %v2065 = vmul.f32 %v1962, 1.442695
      %v2066 = vpow.pop %v2065
      %v2067 = vmul.f32 %v1963, 1.442695
      %v2068 = vpow.pop %v2067
      %v2069 = vmul.f32 %v1964, 1.442695
      %v2070 = vpow.pop %v2069
      %v2071 = vmul.f32 %v1965, 1.442695
      %v2072 = vpow.pop %v2071
      %v2073 = vmul.f32 %v1966, 1.442695
      %v2074 = vpow.pop %v2073
      %v2075 = vmul.f32 %v1967, 1.442695
      %v2076 = vpow.pop %v2075
      %v2077 = vmul.f32 %v1968, 1.442695
      %v2078 = vpow.pop %v2077
      %v2079 = vmul.f32 %v1969, 1.442695
      %v2080 = vpow.pop %v2079
      %v2081 = vmul.f32 %v1970, 1.442695
      %v2082 = vpow.pop %v2081
      %v2083 = vmul.f32 %v1971, 1.442695
      %v2084 = vpow.pop %v2083
      %v2085 = vmul.f32 %v1972, 1.442695
      %v2086 = vpow.pop %v2085
      %v2087 = vmul.f32 %v1973, 1.442695
      %v2088 = vpow.pop %v2087
      %v2089 = vmul.f32 %v1974, 1.442695
      %v2090 = vpow.pop %v2089
      %v2091 = vmul.f32 %v1975, 1.442695
      %v2092 = vpow.pop %v2091
      %v2093 = vmul.f32 %v1976, 1.442695
      %v2094 = vpow.pop %v2093
      %v2095 = vmul.f32 %v1977, 1.442695
      %v2096 = vpow.pop %v2095
      %v2097 = vmul.f32 %v1978, 1.442695
      %v2098 = vpow.pop %v2097
      %v2099 = vmul.f32 %v1979, 1.442695
      %v2100 = vpow.pop %v2099
      %v2101 = vmul.f32 %v1980, 1.442695
      %v2102 = vpow.pop %v2101
      %v2103 = vmul.f32 %v1981, 1.442695
      %v2104 = vpow.pop %v2103
      %v2105 = vmul.f32 %v1982, 1.442695
      %v2106 = vpow.pop %v2105
      %v2107 = vmul.f32 %v1983, 1.442695
      %v2108 = vpow.pop %v2107
      %v2109 = vmul.f32 %v1984, 1.442695
      %v2110 = vpow.pop %v2109
      %v2111 = vmul.f32 %v1985, 1.442695
      %v2112 = vpow.pop %v2111
      %v2113 = vmul.f32 %v1986, 1.442695
      %v2114 = vpow.pop %v2113
      %v2115 = vadd.f32 %v1988, 1.0
      %v2116 = vadd.f32 %v1990, 1.0
      %v2117 = vadd.f32 %v1992, 1.0
      %v2118 = vadd.f32 %v1994, 1.0
      %v2119 = vadd.f32 %v1996, 1.0
      %v2120 = vadd.f32 %v1998, 1.0
      %v2121 = vadd.f32 %v2000, 1.0
      %v2122 = vadd.f32 %v2002, 1.0
      %v2123 = vadd.f32 %v2004, 1.0
      %v2124 = vadd.f32 %v2006, 1.0
      %v2125 = vadd.f32 %v2008, 1.0
      %v2126 = vadd.f32 %v2010, 1.0
      %v2127 = vadd.f32 %v2012, 1.0
      %v2128 = vadd.f32 %v2014, 1.0
      %v2129 = vadd.f32 %v2016, 1.0
      %v2130 = vadd.f32 %v2018, 1.0
      %v2131 = vadd.f32 %v2020, 1.0
      %v2132 = vadd.f32 %v2022, 1.0
      %v2133 = vadd.f32 %v2024, 1.0
      %v2134 = vadd.f32 %v2026, 1.0
      %v2135 = vadd.f32 %v2028, 1.0
      %v2136 = vadd.f32 %v2030, 1.0
      %v2137 = vadd.f32 %v2032, 1.0
      %v2138 = vadd.f32 %v2034, 1.0
      %v2139 = vadd.f32 %v2036, 1.0
      %v2140 = vadd.f32 %v2038, 1.0
      %v2141 = vadd.f32 %v2040, 1.0
      %v2142 = vadd.f32 %v2042, 1.0
      %v2143 = vadd.f32 %v2044, 1.0
      %v2144 = vadd.f32 %v2046, 1.0
      %v2145 = vadd.f32 %v2048, 1.0
      %v2146 = vadd.f32 %v2050, 1.0
      %v2147 = vadd.f32 %v2052, 1.0
      %v2148 = vadd.f32 %v2054, 1.0
      %v2149 = vadd.f32 %v2056, 1.0
      %v2150 = vadd.f32 %v2058, 1.0
      %v2151 = vadd.f32 %v2060, 1.0
      %v2152 = vadd.f32 %v2062, 1.0
      %v2153 = vadd.f32 %v2064, 1.0
      %v2154 = vadd.f32 %v2066, 1.0
      %v2155 = vadd.f32 %v2068, 1.0
      %v2156 = vadd.f32 %v2070, 1.0
      %v2157 = vadd.f32 %v2072, 1.0
      %v2158 = vadd.f32 %v2074, 1.0
      %v2159 = vadd.f32 %v2076, 1.0
      %v2160 = vadd.f32 %v2078, 1.0
      %v2161 = vadd.f32 %v2080, 1.0
      %v2162 = vadd.f32 %v2082, 1.0
      %v2163 = vadd.f32 %v2084, 1.0
      %v2164 = vadd.f32 %v2086, 1.0
      %v2165 = vadd.f32 %v2088, 1.0
      %v2166 = vadd.f32 %v2090, 1.0
      %v2167 = vadd.f32 %v2092, 1.0
      %v2168 = vadd.f32 %v2094, 1.0
      %v2169 = vadd.f32 %v2096, 1.0
      %v2170 = vadd.f32 %v2098, 1.0
      %v2171 = vadd.f32 %v2100, 1.0
      %v2172 = vadd.f32 %v2102, 1.0
      %v2173 = vadd.f32 %v2104, 1.0
      %v2174 = vadd.f32 %v2106, 1.0
      %v2175 = vadd.f32 %v2108, 1.0
      %v2176 = vadd.f32 %v2110, 1.0
      %v2177 = vadd.f32 %v2112, 1.0
      %v2178 = vadd.f32 %v2114, 1.0
      %v2179 = vrcp.pop %v2115
      %v2180 = vrcp.pop %v2116
      %v2181 = vrcp.pop %v2117
      %v2182 = vrcp.pop %v2118
      %v2183 = vrcp.pop %v2119
      %v2184 = vrcp.pop %v2120
      %v2185 = vrcp.pop %v2121
      %v2186 = vrcp.pop %v2122
      %v2187 = vrcp.pop %v2123
      %v2188 = vrcp.pop %v2124
      %v2189 = vrcp.pop %v2125
      %v2190 = vrcp.pop %v2126
      %v2191 = vrcp.pop %v2127
      %v2192 = vrcp.pop %v2128
      %v2193 = vrcp.pop %v2129
      %v2194 = vrcp.pop %v2130
      %v2195 = vrcp.pop %v2131
      %v2196 = vrcp.pop %v2132
      %v2197 = vrcp.pop %v2133
      %v2198 = vrcp.pop %v2134
      %v2199 = vrcp.pop %v2135
      %v2200 = vrcp.pop %v2136
      %v2201 = vrcp.pop %v2137
      %v2202 = vrcp.pop %v2138
      %v2203 = vrcp.pop %v2139
      %v2204 = vrcp.pop %v2140
      %v2205 = vrcp.pop %v2141
      %v2206 = vrcp.pop %v2142
      %v2207 = vrcp.pop %v2143
      %v2208 = vrcp.pop %v2144
      %v2209 = vrcp.pop %v2145
      %v2210 = vrcp.pop %v2146
      %v2211 = vrcp.pop %v2147
      %v2212 = vrcp.pop %v2148
      %v2213 = vrcp.pop %v2149
      %v2214 = vrcp.pop %v2150
      %v2215 = vrcp.pop %v2151
      %v2216 = vrcp.pop %v2152
      %v2217 = vrcp.pop %v2153
      %v2218 = vrcp.pop %v2154
      %v2219 = vrcp.pop %v2155
      %v2220 = vrcp.pop %v2156
      %v2221 = vrcp.pop %v2157
      %v2222 = vrcp.pop %v2158
      %v2223 = vrcp.pop %v2159
      %v2224 = vrcp.pop %v2160
      %v2225 = vrcp.pop %v2161
      %v2226 = vrcp.pop %v2162
      %v2227 = vrcp.pop %v2163
      %v2228 = vrcp.pop %v2164
      %v2229 = vrcp.pop %v2165
      %v2230 = vrcp.pop %v2166
      %v2231 = vrcp.pop %v2167
      %v2232 = vrcp.pop %v2168
      %v2233 = vrcp.pop %v2169
      %v2234 = vrcp.pop %v2170
      %v2235 = vrcp.pop %v2171
      %v2236 = vrcp.pop %v2172
      %v2237 = vrcp.pop %v2173
      %v2238 = vrcp.pop %v2174
      %v2239 = vrcp.pop %v2175
      %v2240 = vrcp.pop %v2176
      %v2241 = vrcp.pop %v2177
      %v2242 = vrcp.pop %v2178
      %v2243 = vmul.f32 %v1852, %v2179
      %v2244 = vmul.f32 %v1853, %v2180
      %v2245 = vmul.f32 %v1854, %v2181
      %v2246 = vmul.f32 %v1855, %v2182
      %v2247 = vmul.f32 %v1856, %v2183
      %v2248 = vmul.f32 %v1857, %v2184
      %v2249 = vmul.f32 %v1858, %v2185
      %v2250 = vmul.f32 %v1859, %v2186
      %v2251 = vmul.f32 %v1860, %v2187
      %v2252 = vmul.f32 %v1861, %v2188
      %v2253 = vmul.f32 %v1862, %v2189
      %v2254 = vmul.f32 %v1863, %v2190
      %v2255 = vmul.f32 %v1864, %v2191
      %v2256 = vmul.f32 %v1865, %v2192
      %v2257 = vmul.f32 %v1866, %v2193
      %v2258 = vmul.f32 %v1867, %v2194
      %v2259 = vmul.f32 %v1868, %v2195
      %v2260 = vmul.f32 %v1869, %v2196
      %v2261 = vmul.f32 %v1870, %v2197
      %v2262 = vmul.f32 %v1871, %v2198
      %v2263 = vmul.f32 %v1872, %v2199
      %v2264 = vmul.f32 %v1873, %v2200
      %v2265 = vmul.f32 %v1874, %v2201
      %v2266 = vmul.f32 %v1875, %v2202
      %v2267 = vmul.f32 %v1876, %v2203
      %v2268 = vmul.f32 %v1877, %v2204
      %v2269 = vmul.f32 %v1878, %v2205
      %v2270 = vmul.f32 %v1879, %v2206
      %v2271 = vmul.f32 %v1880, %v2207
      %v2272 = vmul.f32 %v1881, %v2208
      %v2273 = vmul.f32 %v1882, %v2209
      %v2274 = vmul.f32 %v1883, %v2210
      %v2275 = vmul.f32 %v1884, %v2211
      %v2276 = vmul.f32 %v1885, %v2212
      %v2277 = vmul.f32 %v1886, %v2213
      %v2278 = vmul.f32 %v1887, %v2214
      %v2279 = vmul.f32 %v1888, %v2215
      %v2280 = vmul.f32 %v1889, %v2216
      %v2281 = vmul.f32 %v1890, %v2217
      %v2282 = vmul.f32 %v1891, %v2218
      %v2283 = vmul.f32 %v1892, %v2219
      %v2284 = vmul.f32 %v1893, %v2220
      %v2285 = vmul.f32 %v1894, %v2221
      %v2286 = vmul.f32 %v1895, %v2222
      %v2287 = vmul.f32 %v1896, %v2223
      %v2288 = vmul.f32 %v1897, %v2224
      %v2289 = vmul.f32 %v1898, %v2225
      %v2290 = vmul.f32 %v1899, %v2226
      %v2291 = vmul.f32 %v1900, %v2227
      %v2292 = vmul.f32 %v1901, %v2228
      %v2293 = vmul.f32 %v1902, %v2229
      %v2294 = vmul.f32 %v1903, %v2230
      %v2295 = vmul.f32 %v1904, %v2231
      %v2296 = vmul.f32 %v1905, %v2232
      %v2297 = vmul.f32 %v1906, %v2233
      %v2298 = vmul.f32 %v1907, %v2234
      %v2299 = vmul.f32 %v1908, %v2235
      %v2300 = vmul.f32 %v1909, %v2236
      %v2301 = vmul.f32 %v1910, %v2237
      %v2302 = vmul.f32 %v1911, %v2238
      %v2303 = vmul.f32 %v1912, %v2239
      %v2304 = vmul.f32 %v1913, %v2240
      %v2305 = vmul.f32 %v1914, %v2241
      %v2306 = vmul.f32 %v1915, %v2242
      %2307 = vst [vmem:[%s213] sm:$0xff] %v2243
      %vm2308 = vcmask 523264
      %2309 = vst.msk [vmem:[%s213 + $0x8] sm:$0xff] %vm2308, %v2244
      %2310 = vst [vmem:[%s213 + $0x10] sm:$0xff] %v2245
      %2311 = vst.msk [vmem:[%s213 + $0x18] sm:$0xff] %vm2308, %v2246
      %2312 = vst [vmem:[%s213 + $0x20] sm:$0xff] %v2247
      %2313 = vst.msk [vmem:[%s213 + $0x28] sm:$0xff] %vm2308, %v2248
      %2314 = vst [vmem:[%s213 + $0x30] sm:$0xff] %v2249
      %2315 = vst.msk [vmem:[%s213 + $0x38] sm:$0xff] %vm2308, %v2250
      %2316 = vst [vmem:[%s213 + $0x40] sm:$0xff] %v2251
      %2317 = vst.msk [vmem:[%s213 + $0x48] sm:$0xff] %vm2308, %v2252
      %2318 = vst [vmem:[%s213 + $0x50] sm:$0xff] %v2253
      %2319 = vst.msk [vmem:[%s213 + $0x58] sm:$0xff] %vm2308, %v2254
      %2320 = vst [vmem:[%s213 + $0x60] sm:$0xff] %v2255
      %2321 = vst.msk [vmem:[%s213 + $0x68] sm:$0xff] %vm2308, %v2256
      %2322 = vst [vmem:[%s213 + $0x70] sm:$0xff] %v2257
      %2323 = vst.msk [vmem:[%s213 + $0x78] sm:$0xff] %vm2308, %v2258
      %2324 = vst [vmem:[%s213 + $0x80] sm:$0xff] %v2259
      %2325 = vst.msk [vmem:[%s213 + $0x88] sm:$0xff] %vm2308, %v2260
      %2326 = vst [vmem:[%s213 + $0x90] sm:$0xff] %v2261
      %2327 = vst.msk [vmem:[%s213 + $0x98] sm:$0xff] %vm2308, %v2262
      %2328 = vst [vmem:[%s213 + $0xa0] sm:$0xff] %v2263
      %2329 = vst.msk [vmem:[%s213 + $0xa8] sm:$0xff] %vm2308, %v2264
      %2330 = vst [vmem:[%s213 + $0xb0] sm:$0xff] %v2265
      %2331 = vst.msk [vmem:[%s213 + $0xb8] sm:$0xff] %vm2308, %v2266
      %2332 = vst [vmem:[%s213 + $0xc0] sm:$0xff] %v2267
      %2333 = vst.msk [vmem:[%s213 + $0xc8] sm:$0xff] %vm2308, %v2268
      %2334 = vst [vmem:[%s213 + $0xd0] sm:$0xff] %v2269
      %2335 = vst.msk [vmem:[%s213 + $0xd8] sm:$0xff] %vm2308, %v2270
      %2336 = vst [vmem:[%s213 + $0xe0] sm:$0xff] %v2271
      %2337 = vst.msk [vmem:[%s213 + $0xe8] sm:$0xff] %vm2308, %v2272
      %2338 = vst [vmem:[%s213 + $0xf0] sm:$0xff] %v2273
      %2339 = vst.msk [vmem:[%s213 + $0xf8] sm:$0xff] %vm2308, %v2274
      %2340 = vst [vmem:[%s213 + $0x100] sm:$0xff] %v2275
      %2341 = vst.msk [vmem:[%s213 + $0x108] sm:$0xff] %vm2308, %v2276
      %2342 = vst [vmem:[%s213 + $0x110] sm:$0xff] %v2277
      %2343 = vst.msk [vmem:[%s213 + $0x118] sm:$0xff] %vm2308, %v2278
      %2344 = vst [vmem:[%s213 + $0x120] sm:$0xff] %v2279
      %2345 = vst.msk [vmem:[%s213 + $0x128] sm:$0xff] %vm2308, %v2280
      %2346 = vst [vmem:[%s213 + $0x130] sm:$0xff] %v2281
      %2347 = vst.msk [vmem:[%s213 + $0x138] sm:$0xff] %vm2308, %v2282
      %2348 = vst [vmem:[%s213 + $0x140] sm:$0xff] %v2283
      %2349 = vst.msk [vmem:[%s213 + $0x148] sm:$0xff] %vm2308, %v2284
      %2350 = vst [vmem:[%s213 + $0x150] sm:$0xff] %v2285
      %2351 = vst.msk [vmem:[%s213 + $0x158] sm:$0xff] %vm2308, %v2286
      %2352 = vst [vmem:[%s213 + $0x160] sm:$0xff] %v2287
      %2353 = vst.msk [vmem:[%s213 + $0x168] sm:$0xff] %vm2308, %v2288
      %2354 = vst [vmem:[%s213 + $0x170] sm:$0xff] %v2289
      %2355 = vst.msk [vmem:[%s213 + $0x178] sm:$0xff] %vm2308, %v2290
      %2356 = vst [vmem:[%s213 + $0x180] sm:$0xff] %v2291
      %2357 = vst.msk [vmem:[%s213 + $0x188] sm:$0xff] %vm2308, %v2292
      %2358 = vst [vmem:[%s213 + $0x190] sm:$0xff] %v2293
      %2359 = vst.msk [vmem:[%s213 + $0x198] sm:$0xff] %vm2308, %v2294
      %2360 = vst [vmem:[%s213 + $0x1a0] sm:$0xff] %v2295
      %2361 = vst.msk [vmem:[%s213 + $0x1a8] sm:$0xff] %vm2308, %v2296
      %2362 = vst [vmem:[%s213 + $0x1b0] sm:$0xff] %v2297
      %2363 = vst.msk [vmem:[%s213 + $0x1b8] sm:$0xff] %vm2308, %v2298
      %2364 = vst [vmem:[%s213 + $0x1c0] sm:$0xff] %v2299
      %2365 = vst.msk [vmem:[%s213 + $0x1c8] sm:$0xff] %vm2308, %v2300
      %2366 = vst [vmem:[%s213 + $0x1d0] sm:$0xff] %v2301
      %2367 = vst.msk [vmem:[%s213 + $0x1d8] sm:$0xff] %vm2308, %v2302
      %2368 = vst [vmem:[%s213 + $0x1e0] sm:$0xff] %v2303
      %2369 = vst.msk [vmem:[%s213 + $0x1e8] sm:$0xff] %vm2308, %v2304
      %2370 = vst [vmem:[%s213 + $0x1f0] sm:$0xff] %v2305
      %2371 = vst.msk [vmem:[%s213 + $0x1f8] sm:$0xff] %vm2308, %v2306
      %s2372 = smul.u32 32, %s19
      %p2373 = scmp.lt.s32.totalorder %s18, 1
      %s2374 = scalar_select %p2373, %s18, 1
      %p2375 = scmp.lt.s32.totalorder %s2372, 31
      %s2376 = scalar_select %p2375, %s2372, 31
      %s2377 = smul.addr %s2376, 2
      %s2378 = smul.addr %s2374, 64
      %s2379 = sadd.s32 %s2377, %s2378
      %s2380 = smul.addr %s2379, 8
      %s2381 = scalar_lea.vmem %s3, %s2380
      // Predicated region
      $region37: #{ndmamba2_forward.17} parent=31 // pred_check
        %p2382 = pneg %p116
      $region38: #{ndmamba2_forward.17} parent=31 // pred_check_branch
        %2384 = sbr.rel (%p2382) target = $region40
      $region39: #{ndmamba2_forward.17} parent=31 // pred_region
        %s2385 = smul.u32 32, %s19
      $region40: #{ndmamba2_forward.17} parent=31 // pred_fallthru
        _
    $region32: #{ndmamba2_forward.17} parent=5 // pred_fallthru
      _
    %p2386 = scmp.le.s32.totalorder 2, %s9
    // Predicated region
    $region41: #{ndmamba2_forward.17} parent=5 // pred_check
      %p2387 = pneg %p2386
    $region42: #{ndmamba2_forward.17} parent=5 // pred_check_branch
      %2389 = sbr.rel (%p2387) target = $region44
    $region43: #{ndmamba2_forward.17} parent=5 // pred_region
      %s2390 = ssub.s32 %s9, 2
      // Predicated region
      $region45: #{ndmamba2_forward.17} parent=43 // pred_check
        %p2391 = pneg %p122
      $region46: #{ndmamba2_forward.17} parent=43 // pred_check_branch
        %2393 = sbr.rel (%p2391) target = $region48
      $region47: #{ndmamba2_forward.17} parent=43 // pred_region
        %s2394 = smul.u32 32, %s21
        %p2395 = scmp.lt.s32.totalorder %s20, 1
        %s2396 = scalar_select %p2395, %s20, 1
        %p2397 = scmp.lt.s32.totalorder %s2394, 31
        %s2398 = scalar_select %p2397, %s2394, 31
        %s2399 = smul.addr %s2398, 2
        %s2400 = smul.addr %s2396, 64
        %s2401 = sadd.s32 %s2399, %s2400
        %s2402 = smul.addr %s2401, 8
        %s2403 = scalar_lea.vmem %s3, %s2402
      $region48: #{ndmamba2_forward.17} parent=43 // pred_fallthru
        _
    $region44: #{ndmamba2_forward.17} parent=5 // pred_fallthru
      _
  $region6: #{ndmamba2_forward.17} parent=0 // loop_footer
    %s13 = sadd.s32 1, %s9
  $region7: #{ndmamba2_forward.17} parent=0 // loop_footer_branch
    %8 = sbr.rel target = $region3
  $region8: #{ndmamba2_forward.17} parent=0 // loop_exit
    _

// kernel: ndmamba2_forward.18
$region0: #{ndmamba2_forward.18}
  #allocation0 [shape = 'u32[]', space=smem, size = 0x4, offset = 0x4, fixed_abs, tag = 'smem constant byte address 0x4 - core index']
  #allocation1 [shape = 'u32[144,128]{1,0:T(1,128)}', space=vmem, size = 0x12000, scoped, tag = 'internal scratch']
  #allocation2 [shape = 'f32[32,128]{1,0:T(8,128)}', space=vmem, size = 0x4000, scoped, tag = 'scratch operand']
  %s0 = inlined_call_operand.vmem [shape: f32[2,256,192], index: 0, kind: input, shape index: {}]
  %s1 = inlined_call_operand.vmem [shape: f32[2,256,2], index: 1, kind: input, shape index: {}]
  %s2 = inlined_call_operand.vmem [shape: f32[2,256,32], index: 2, kind: input, shape index: {}]
  %s3 = inlined_call_operand.vmem [shape: f32[2,256,32], index: 3, kind: input, shape index: {}]
  %s4 = inlined_call_operand.vmem [shape: f32[2], index: 4, kind: input, shape index: {}]
  %s5 = inlined_call_operand.vmem [shape: f32[2], index: 5, kind: input, shape index: {}]
  %s6 = inlined_call_operand.vmem [shape: f32[2,256,128], index: 6, kind: output, shape index: {}]
  %s7 = sld [smem:[#allocation0]]
  $region107: #{ndmamba2_forward.18} parent=0
    _
  %s9 = ssub.s32 1, %s7
  %s10 = scalar_select 0, %s9, %s7
  $region1: #{ndmamba2_forward.18} parent=0
    #allocation3 [shape = 'u8[131072]{0}', space=vmem, size = 0x20000, scoped, tag = 'input window, operand 0']
    #allocation4 [shape = 'u8[512]{0}', space=smem, size = 0x200, scoped, tag = 'input window, operand 4, single buffered']
    #allocation5 [shape = 's32[2]{0}', space=sflag, size = 0x8, scoped, tag = 'scoped memory for ndmamba2_forward.18']
    #allocation6 [shape = 'u8[512]{0}', space=smem, size = 0x200, scoped, tag = 'input window, operand 5, single buffered']
    #allocation7 [shape = 's32[1]{0}', space=sflag, size = 0x4, scoped, tag = 'scoped memory for ndmamba2_forward.18']
    %11 = vsyncpa [#allocation5], 0
    %12 = vsyncpa [#allocation7], 0
    loop: start=0, step=1, limit=6
    $region2: #{ndmamba2_forward.18} parent=1 // loop_pre_header
      _
    $region3: #{ndmamba2_forward.18} parent=1 // loop_header
      %s14 = sphi 0, %s18
      %p15 = scmp.ge.s32.totalorder %s14, 6
      %s21 = sphi 0, %s33
      %s22 = sphi 0, %s29
      %s23 = sphi 0, %s21
      %s24 = sphi 0, %s22
      %s25 = sphi 0, %s23
      %s26 = sphi 0, %s24
      %s38 = sphi 0, %s40
      %s41 = sphi 0, %s38
      %s42 = sphi 0, %s41
      %s58 = sphi 0, %s42
      %s66 = sphi 0, %s68
      %s69 = sphi 0, %s66
      %s70 = sphi 0, %s69
      %s86 = sphi 0, %s70
      %s94 = sphi 0, %s96
      %s97 = sphi 0, %s94
      %s98 = sphi 0, %s97
      %s114 = sphi 0, %s98
      %s122 = sphi 0, %s124
      %s125 = sphi 0, %s122
      %s126 = sphi 0, %s125
      %s142 = sphi 0, %s126
      %s146 = sphi 0, %s146
      %s148 = sphi 0, %s146
      %s149 = sphi 0, %s148
      %s163 = sphi 0, %s149
      %s167 = sphi 0, %s167
      %s169 = sphi 0, %s167
      %s170 = sphi 0, %s169
      %s184 = sphi 0, %s170
      %s192 = sphi 0, %s194
      %s195 = sphi 0, %s192
      %s196 = sphi 0, %s195
      %s212 = sphi 0, %s196
    $region4: #{ndmamba2_forward.18} parent=1 // loop_header_branch
      %17 = sbr.rel (%p15) target = $region8
    $region5: #{ndmamba2_forward.18} parent=1 // loop_body
      %s19 = ssub.s32 %s14, 1
      %s20 = ssub.s32 %s14, 2
      %s27 = sadd.s32 1, %s22
      %p28 = scmp.ge.s32.totalorder %s27, 2
      %s29 = scalar_select %p28, 0, %s27
      %s30 = sadd.s32 1, %s21
      %s31 = scalar_select %p28, %s30, %s21
      %p32 = scmp.ge.s32.totalorder %s31, 2
      %s33 = scalar_select %p32, 0, %s31
      %s34 = ssub.s32 %s21, %s33
      %s35 = ssub.s32 %s22, %s29
      %s36 = sor.u32 %s34, %s35
      %p37 = scmp.eq.s32.totalorder %s36, 0
      %s39 = sadd.s32 %s38, 1
      %s40 = scalar_select %p37, %s38, %s39
      %p43 = pneg %p37
      %p44 = scmp.eq.s32.totalorder %s14, 3
      %p45 = por %p43, %p44
      %p46 = scmp.ne.s32.totalorder %s38, %s41
      %p47 = scmp.eq.s32.totalorder %s14, 0
      %p48 = por %p46, %p47
      %p49 = scmp.ne.s32.totalorder %s38, %s41
      %p50 = scmp.eq.s32.totalorder %s19, 3
      %p51 = por %p49, %p50
      %p52 = scmp.ne.s32.totalorder %s41, %s42
      %p53 = scmp.eq.s32.totalorder %s19, 0
      %p54 = por %p52, %p53
      %p55 = scmp.ne.s32.totalorder %s41, %s42
      %p56 = scmp.eq.s32.totalorder %s20, 3
      %p57 = por %p55, %p56
      %p59 = scmp.ne.s32.totalorder %s42, %s58
      %p60 = scmp.eq.s32.totalorder %s20, 0
      %p61 = por %p59, %p60
      %s62 = ssub.s32 %s21, %s33
      %s63 = ssub.s32 %s22, %s29
      %s64 = sor.u32 %s62, %s63
      %p65 = scmp.eq.s32.totalorder %s64, 0
      %s67 = sadd.s32 %s66, 1
      %s68 = scalar_select %p65, %s66, %s67
      %p71 = pneg %p65
      %p72 = scmp.eq.s32.totalorder %s14, 3
      %p73 = por %p71, %p72
      %p74 = scmp.ne.s32.totalorder %s66, %s69
      %p75 = scmp.eq.s32.totalorder %s14, 0
      %p76 = por %p74, %p75
      %p77 = scmp.ne.s32.totalorder %s66, %s69
      %p78 = scmp.eq.s32.totalorder %s19, 3
      %p79 = por %p77, %p78
      %p80 = scmp.ne.s32.totalorder %s69, %s70
      %p81 = scmp.eq.s32.totalorder %s19, 0
      %p82 = por %p80, %p81
      %p83 = scmp.ne.s32.totalorder %s69, %s70
      %p84 = scmp.eq.s32.totalorder %s20, 3
      %p85 = por %p83, %p84
      %p87 = scmp.ne.s32.totalorder %s70, %s86
      %p88 = scmp.eq.s32.totalorder %s20, 0
      %p89 = por %p87, %p88
      %s90 = ssub.s32 %s21, %s33
      %s91 = ssub.s32 %s22, %s29
      %s92 = sor.u32 %s90, %s91
      %p93 = scmp.eq.s32.totalorder %s92, 0
      %s95 = sadd.s32 %s94, 1
      %s96 = scalar_select %p93, %s94, %s95
      %p99 = pneg %p93
      %p100 = scmp.eq.s32.totalorder %s14, 3
      %p101 = por %p99, %p100
      %p102 = scmp.ne.s32.totalorder %s94, %s97
      %p103 = scmp.eq.s32.totalorder %s14, 0
      %p104 = por %p102, %p103
      %p105 = scmp.ne.s32.totalorder %s94, %s97
      %p106 = scmp.eq.s32.totalorder %s19, 3
      %p107 = por %p105, %p106
      %p108 = scmp.ne.s32.totalorder %s97, %s98
      %p109 = scmp.eq.s32.totalorder %s19, 0
      %p110 = por %p108, %p109
      %p111 = scmp.ne.s32.totalorder %s97, %s98
      %p112 = scmp.eq.s32.totalorder %s20, 3
      %p113 = por %p111, %p112
      %p115 = scmp.ne.s32.totalorder %s98, %s114
      %p116 = scmp.eq.s32.totalorder %s20, 0
      %p117 = por %p115, %p116
      %s118 = ssub.s32 %s21, %s33
      %s119 = ssub.s32 %s22, %s29
      %s120 = sor.u32 %s118, %s119
      %p121 = scmp.eq.s32.totalorder %s120, 0
      %s123 = sadd.s32 %s122, 1
      %s124 = scalar_select %p121, %s122, %s123
      %p127 = pneg %p121
      %p128 = scmp.eq.s32.totalorder %s14, 3
      %p129 = por %p127, %p128
      %p130 = scmp.ne.s32.totalorder %s122, %s125
      %p131 = scmp.eq.s32.totalorder %s14, 0
      %p132 = por %p130, %p131
      %p133 = scmp.ne.s32.totalorder %s122, %s125
      %p134 = scmp.eq.s32.totalorder %s19, 3
      %p135 = por %p133, %p134
      %p136 = scmp.ne.s32.totalorder %s125, %s126
      %p137 = scmp.eq.s32.totalorder %s19, 0
      %p138 = por %p136, %p137
      %p139 = scmp.ne.s32.totalorder %s125, %s126
      %p140 = scmp.eq.s32.totalorder %s20, 3
      %p141 = por %p139, %p140
      %p143 = scmp.ne.s32.totalorder %s126, %s142
      %p144 = scmp.eq.s32.totalorder %s20, 0
      %p145 = por %p143, %p144
      %s147 = sadd.s32 %s146, 1
      %p150 = scmp.eq.s32.totalorder %s14, 3
      %p151 = scmp.ne.s32.totalorder %s146, %s148
      %p152 = scmp.eq.s32.totalorder %s14, 0
      %p153 = por %p151, %p152
      %p154 = scmp.ne.s32.totalorder %s146, %s148
      %p155 = scmp.eq.s32.totalorder %s19, 3
      %p156 = por %p154, %p155
      %p157 = scmp.ne.s32.totalorder %s148, %s149
      %p158 = scmp.eq.s32.totalorder %s19, 0
      %p159 = por %p157, %p158
      %p160 = scmp.ne.s32.totalorder %s148, %s149
      %p161 = scmp.eq.s32.totalorder %s20, 3
      %p162 = por %p160, %p161
      %p164 = scmp.ne.s32.totalorder %s149, %s163
      %p165 = scmp.eq.s32.totalorder %s20, 0
      %p166 = por %p164, %p165
      %s168 = sadd.s32 %s167, 1
      %p171 = scmp.eq.s32.totalorder %s14, 3
      %p172 = scmp.ne.s32.totalorder %s167, %s169
      %p173 = scmp.eq.s32.totalorder %s14, 0
      %p174 = por %p172, %p173
      %p175 = scmp.ne.s32.totalorder %s167, %s169
      %p176 = scmp.eq.s32.totalorder %s19, 3
      %p177 = por %p175, %p176
      %p178 = scmp.ne.s32.totalorder %s169, %s170
      %p179 = scmp.eq.s32.totalorder %s19, 0
      %p180 = por %p178, %p179
      %p181 = scmp.ne.s32.totalorder %s169, %s170
      %p182 = scmp.eq.s32.totalorder %s20, 3
      %p183 = por %p181, %p182
      %p185 = scmp.ne.s32.totalorder %s170, %s184
      %p186 = scmp.eq.s32.totalorder %s20, 0
      %p187 = por %p185, %p186
      %s188 = ssub.s32 %s21, %s33
      %s189 = ssub.s32 %s22, %s29
      %s190 = sor.u32 %s188, %s189
      %p191 = scmp.eq.s32.totalorder %s190, 0
      %s193 = sadd.s32 %s192, 1
      %s194 = scalar_select %p191, %s192, %s193
      %p197 = pneg %p191
      %p198 = scmp.eq.s32.totalorder %s14, 3
      %p199 = por %p197, %p198
      %p200 = scmp.ne.s32.totalorder %s192, %s195
      %p201 = scmp.eq.s32.totalorder %s14, 0
      %p202 = por %p200, %p201
      %p203 = scmp.ne.s32.totalorder %s192, %s195
      %p204 = scmp.eq.s32.totalorder %s19, 3
      %p205 = por %p203, %p204
      %p206 = scmp.ne.s32.totalorder %s195, %s196
      %p207 = scmp.eq.s32.totalorder %s19, 0
      %p208 = por %p206, %p207
      %p209 = scmp.ne.s32.totalorder %s195, %s196
      %p210 = scmp.eq.s32.totalorder %s20, 3
      %p211 = por %p209, %p210
      %p213 = scmp.ne.s32.totalorder %s196, %s212
      %p214 = scmp.eq.s32.totalorder %s20, 0
      %p215 = por %p213, %p214
      %p216 = scmp.le.s32.totalorder 1, %s14
      %p217 = scmp.lt.s32.totalorder %s14, 5
      %p218 = pnand %p216, %p217
      %p219 = pneg %p218
      // Predicated region
      $region9: #{ndmamba2_forward.18} parent=5 // pred_check
        _
      $region10: #{ndmamba2_forward.18} parent=5 // pred_check_branch
        %221 = sbr.rel (%p218) target = $region12
      $region11: #{ndmamba2_forward.18} parent=5 // pred_region
        %s222 = ssub.s32 %s14, 1
        // Predicated region
        $region13: #{ndmamba2_forward.18} parent=11 // pred_check
          %p223 = pneg %p159
        $region14: #{ndmamba2_forward.18} parent=11 // pred_check_branch
          %225 = sbr.rel (%p223) target = $region16
        $region15: #{ndmamba2_forward.18} parent=11 // pred_region
          %s227 = ssub.s32 16, 16
          %228 = vsyncadd [#allocation5], %s227
          %s230 = sshll.u32 %s4, 4
          %s231 = int_to_ptr.vmem [resolvable:$true] %s230
          %233 = dma.vmem_to_smem %s231, 16, [#allocation4], [#allocation5]
        $region16: #{ndmamba2_forward.18} parent=11 // pred_fallthru
          _
        // Predicated region
        $region17: #{ndmamba2_forward.18} parent=11 // pred_check
          %p234 = pneg %p180
        $region18: #{ndmamba2_forward.18} parent=11 // pred_check_branch
          %236 = sbr.rel (%p234) target = $region20
        $region19: #{ndmamba2_forward.18} parent=11 // pred_region
          %s238 = ssub.s32 16, 16
          %239 = vsyncadd [#allocation7], %s238
          %s241 = sshll.u32 %s5, 4
          %s242 = int_to_ptr.vmem [resolvable:$true] %s241
          %244 = dma.vmem_to_smem %s242, 16, [#allocation6], [#allocation7]
        $region20: #{ndmamba2_forward.18} parent=11 // pred_fallthru
          _
      $region12: #{ndmamba2_forward.18} parent=5 // pred_fallthru
        _
      %p245 = scmp.lt.s32.totalorder %s14, 4
      // Predicated region
      $region21: #{ndmamba2_forward.18} parent=5 // pred_check
        %p246 = pneg %p245
      $region22: #{ndmamba2_forward.18} parent=5 // pred_check_branch
        %248 = sbr.rel (%p246) target = $region24
      $region23: #{ndmamba2_forward.18} parent=5 // pred_region
        // Predicated region
        $region25: #{ndmamba2_forward.18} parent=23 // pred_check
          %p249 = pneg %p48
        $region26: #{ndmamba2_forward.18} parent=23 // pred_check_branch
          %251 = sbr.rel (%p249) target = $region28
        $region27: #{ndmamba2_forward.18} parent=23 // pred_region
          %s252 = sand.u32 %s38, 1
          %s253 = sand.u32 %s38, 1
          %s254 = smul.addr %s253, 128
          %s255 = scalar_lea.vmem [#allocation3], %s254
          %s256 = smul.u32 16, %s22
          %s257 = smul.addr %s256, 2
          %s258 = smul.addr %s21, 64
          %s259 = sadd.s32 %s257, %s258
          %s260 = smul.addr %s259, 8
          %s261 = scalar_lea.vmem %s0, %s260
          // Predicated region
          $region29: #{ndmamba2_forward.18} parent=27 // pred_check
            _
          $region30: #{ndmamba2_forward.18} parent=27 // pred_check_branch
            %263 = sbr.rel (0) target = $region32
          $region31: #{ndmamba2_forward.18} parent=27 // pred_region
            // Predicated region
            $region33: #{ndmamba2_forward.18} parent=31 // pred_check
              _
            $region34: #{ndmamba2_forward.18} parent=31 // pred_check_branch
              %265 = sbr.rel (0) target = $region36
            $region35: #{ndmamba2_forward.18} parent=31 // pred_region
              // Predicated region
              $region48: #{ndmamba2_forward.18} parent=35 // pred_check
                _
              $region49: #{ndmamba2_forward.18} parent=35 // pred_check_branch
                %311 = sbr.rel (0) target = $region51
              $region50: #{ndmamba2_forward.18} parent=35 // pred_region
                loop: start=0, step=1, limit=1
                $region52: #{ndmamba2_forward.18} parent=50 // loop_pre_header
                  _
                $region53: #{ndmamba2_forward.18} parent=50 // loop_header
                  %s313 = sphi 0, %s317
                  %p314 = scmp.ge.s32.totalorder %s313, 1
                  %s318 = sphi %s261, %s261
                  %s319 = sphi %s255, %s255
                $region54: #{ndmamba2_forward.18} parent=50 // loop_header_branch
                  %316 = sbr.rel (%p314) target = $region58
                $region55: #{ndmamba2_forward.18} parent=50 // loop_body
                  %v320 = vld [vmem:[%s318] sm:$0xff]
                  %321 = vst [vmem:[%s319] sm:$0xff] %v320
                  %v322 = vld [vmem:[%s318 + $0x10] sm:$0xff]
                  %323 = vst [vmem:[%s319 + $0x8] sm:$0xff] %v322
                  %v324 = vld [vmem:[%s318 + $0x20] sm:$0xff]
                  %325 = vst [vmem:[%s319 + $0x10] sm:$0xff] %v324
                  %v326 = vld [vmem:[%s318 + $0x30] sm:$0xff]
                  %327 = vst [vmem:[%s319 + $0x18] sm:$0xff] %v326
                  %v328 = vld [vmem:[%s318 + $0x40] sm:$0xff]
                  %329 = vst [vmem:[%s319 + $0x20] sm:$0xff] %v328
                  %v330 = vld [vmem:[%s318 + $0x50] sm:$0xff]
                  %331 = vst [vmem:[%s319 + $0x28] sm:$0xff] %v330
                  %v332 = vld [vmem:[%s318 + $0x60] sm:$0xff]
                  %333 = vst [vmem:[%s319 + $0x30] sm:$0xff] %v332
                  %v334 = vld [vmem:[%s318 + $0x70] sm:$0xff]
                  %335 = vst [vmem:[%s319 + $0x38] sm:$0xff] %v334
                  %v336 = vld [vmem:[%s318 + $0x80] sm:$0xff]
                  %337 = vst [vmem:[%s319 + $0x40] sm:$0xff] %v336
                  %v338 = vld [vmem:[%s318 + $0x90] sm:$0xff]
                  %339 = vst [vmem:[%s319 + $0x48] sm:$0xff] %v338
                  %v340 = vld [vmem:[%s318 + $0xa0] sm:$0xff]
                  %341 = vst [vmem:[%s319 + $0x50] sm:$0xff] %v340
                  %v342 = vld [vmem:[%s318 + $0xb0] sm:$0xff]
                  %343 = vst [vmem:[%s319 + $0x58] sm:$0xff] %v342
                  %v344 = vld [vmem:[%s318 + $0xc0] sm:$0xff]
                  %345 = vst [vmem:[%s319 + $0x60] sm:$0xff] %v344
                  %v346 = vld [vmem:[%s318 + $0xd0] sm:$0xff]
                  %347 = vst [vmem:[%s319 + $0x68] sm:$0xff] %v346
                  %v348 = vld [vmem:[%s318 + $0xe0] sm:$0xff]
                  %349 = vst [vmem:[%s319 + $0x70] sm:$0xff] %v348
                  %v350 = vld [vmem:[%s318 + $0xf0] sm:$0xff]
                  %351 = vst [vmem:[%s319 + $0x78] sm:$0xff] %v350
                $region56: #{ndmamba2_forward.18} parent=50 // loop_footer
                  %s317 = sadd.s32 1, %s313
                $region57: #{ndmamba2_forward.18} parent=50 // loop_footer_branch
                  %312 = sbr.rel target = $region53
                $region58: #{ndmamba2_forward.18} parent=50 // loop_exit
                  _
              $region51: #{ndmamba2_forward.18} parent=35 // pred_fallthru
                _
              // Predicated region
              $region59: #{ndmamba2_forward.18} parent=35 // pred_check
                _
              $region60: #{ndmamba2_forward.18} parent=35 // pred_check_branch
                %353 = sbr.rel target = $region62
              $region61: #{ndmamba2_forward.18} parent=35 // pred_region
                _
              $region62: #{ndmamba2_forward.18} parent=35 // pred_fallthru
                _
            $region36: #{ndmamba2_forward.18} parent=31 // pred_fallthru
              _
            // Predicated region
            $region37: #{ndmamba2_forward.18} parent=31 // pred_check
              _
            $region38: #{ndmamba2_forward.18} parent=31 // pred_check_branch
              %267 = sbr.rel target = $region40
            $region39: #{ndmamba2_forward.18} parent=31 // pred_region
              %s269 = ssub.s32 256, 1
              loop: start=0, step=1, limit=1
              $region41: #{ndmamba2_forward.18} parent=39 // loop_pre_header
                _
              $region42: #{ndmamba2_forward.18} parent=39 // loop_header
                %s271 = sphi 0, %s275
                %p272 = scmp.ge.s32.totalorder %s271, 1
                %s276 = sphi %s261, %s261
                %s277 = sphi %s255, %s255
              $region43: #{ndmamba2_forward.18} parent=39 // loop_header_branch
                %274 = sbr.rel (%p272) target = $region47
              $region44: #{ndmamba2_forward.18} parent=39 // loop_body
                %v278 = vld [vmem:[%s276] sm:%s269]
                %279 = vst [vmem:[%s277] sm:%s269] %v278
                %v280 = vld [vmem:[%s276 + $0x10] sm:%s269]
                %281 = vst [vmem:[%s277 + $0x8] sm:%s269] %v280
                %v282 = vld [vmem:[%s276 + $0x20] sm:%s269]
                %283 = vst [vmem:[%s277 + $0x10] sm:%s269] %v282
                %v284 = vld [vmem:[%s276 + $0x30] sm:%s269]
                %285 = vst [vmem:[%s277 + $0x18] sm:%s269] %v284
                %v286 = vld [vmem:[%s276 + $0x40] sm:%s269]
                %287 = vst [vmem:[%s277 + $0x20] sm:%s269] %v286
                %v288 = vld [vmem:[%s276 + $0x50] sm:%s269]
                %289 = vst [vmem:[%s277 + $0x28] sm:%s269] %v288
                %v290 = vld [vmem:[%s276 + $0x60] sm:%s269]
                %291 = vst [vmem:[%s277 + $0x30] sm:%s269] %v290
                %v292 = vld [vmem:[%s276 + $0x70] sm:%s269]
                %293 = vst [vmem:[%s277 + $0x38] sm:%s269] %v292
                %v294 = vld [vmem:[%s276 + $0x80] sm:%s269]
                %295 = vst [vmem:[%s277 + $0x40] sm:%s269] %v294
                %v296 = vld [vmem:[%s276 + $0x90] sm:%s269]
                %297 = vst [vmem:[%s277 + $0x48] sm:%s269] %v296
                %v298 = vld [vmem:[%s276 + $0xa0] sm:%s269]
                %299 = vst [vmem:[%s277 + $0x50] sm:%s269] %v298
                %v300 = vld [vmem:[%s276 + $0xb0] sm:%s269]
                %301 = vst [vmem:[%s277 + $0x58] sm:%s269] %v300
                %v302 = vld [vmem:[%s276 + $0xc0] sm:%s269]
                %303 = vst [vmem:[%s277 + $0x60] sm:%s269] %v302
                %v304 = vld [vmem:[%s276 + $0xd0] sm:%s269]
                %305 = vst [vmem:[%s277 + $0x68] sm:%s269] %v304
                %v306 = vld [vmem:[%s276 + $0xe0] sm:%s269]
                %307 = vst [vmem:[%s277 + $0x70] sm:%s269] %v306
                %v308 = vld [vmem:[%s276 + $0xf0] sm:%s269]
                %309 = vst [vmem:[%s277 + $0x78] sm:%s269] %v308
              $region45: #{ndmamba2_forward.18} parent=39 // loop_footer
                %s275 = sadd.s32 1, %s271
              $region46: #{ndmamba2_forward.18} parent=39 // loop_footer_branch
                %270 = sbr.rel target = $region42
              $region47: #{ndmamba2_forward.18} parent=39 // loop_exit
                _
            $region40: #{ndmamba2_forward.18} parent=31 // pred_fallthru
              _
          $region32: #{ndmamba2_forward.18} parent=27 // pred_fallthru
            _
          %354 = vnop
        $region28: #{ndmamba2_forward.18} parent=23 // pred_fallthru
          _
        // Predicated region
        $region63: #{ndmamba2_forward.18} parent=23 // pred_check
          %p355 = pneg %p76
        $region64: #{ndmamba2_forward.18} parent=23 // pred_check_branch
          %357 = sbr.rel (%p355) target = $region66
        $region65: #{ndmamba2_forward.18} parent=23 // pred_region
          %s358 = smul.u32 16, %s22
          %p359 = scmp.lt.s32.totalorder %s21, 1
          %s360 = scalar_select %p359, %s21, 1
          %p361 = scmp.lt.s32.totalorder %s358, 31
          %s362 = scalar_select %p361, %s358, 31
          %s363 = smul.addr %s360, 32
          %s364 = sadd.s32 %s362, %s363
          %s365 = smul.addr %s364, 8
          %s366 = scalar_lea.vmem %s1, %s365
          %s367 = smul.u32 16, %s22
        $region66: #{ndmamba2_forward.18} parent=23 // pred_fallthru
          _
        // Predicated region
        $region67: #{ndmamba2_forward.18} parent=23 // pred_check
          %p368 = pneg %p104
        $region68: #{ndmamba2_forward.18} parent=23 // pred_check_branch
          %370 = sbr.rel (%p368) target = $region70
        $region69: #{ndmamba2_forward.18} parent=23 // pred_region
          %s371 = smul.u32 16, %s22
          %p372 = scmp.lt.s32.totalorder %s21, 1
          %s373 = scalar_select %p372, %s21, 1
          %p374 = scmp.lt.s32.totalorder %s371, 31
          %s375 = scalar_select %p374, %s371, 31
          %s376 = smul.addr %s373, 32
          %s377 = sadd.s32 %s375, %s376
          %s378 = smul.addr %s377, 8
          %s379 = scalar_lea.vmem %s2, %s378
          %s380 = smul.u32 16, %s22
        $region70: #{ndmamba2_forward.18} parent=23 // pred_fallthru
          _
        // Predicated region
        $region71: #{ndmamba2_forward.18} parent=23 // pred_check
          %p381 = pneg %p132
        $region72: #{ndmamba2_forward.18} parent=23 // pred_check_branch
          %383 = sbr.rel (%p381) target = $region74
        $region73: #{ndmamba2_forward.18} parent=23 // pred_region
          %s384 = smul.u32 16, %s22
          %p385 = scmp.lt.s32.totalorder %s21, 1
          %s386 = scalar_select %p385, %s21, 1
          %p387 = scmp.lt.s32.totalorder %s384, 31
          %s388 = scalar_select %p387, %s384, 31
          %s389 = smul.addr %s386, 32
          %s390 = sadd.s32 %s388, %s389
          %s391 = smul.addr %s390, 8
          %s392 = scalar_lea.vmem %s3, %s391
          %s393 = smul.u32 16, %s22
        $region74: #{ndmamba2_forward.18} parent=23 // pred_fallthru
          _
      $region24: #{ndmamba2_forward.18} parent=5 // pred_fallthru
        _
      %p394 = scmp.le.s32.totalorder 1, %s14
      %p395 = scmp.lt.s32.totalorder %s14, 5
      %p396 = pnand %p394, %p395
      %p397 = pneg %p396
      // Predicated region
      $region75: #{ndmamba2_forward.18} parent=5 // pred_check
        _
      $region76: #{ndmamba2_forward.18} parent=5 // pred_check_branch
        %399 = sbr.rel (%p396) target = $region78
      $region77: #{ndmamba2_forward.18} parent=5 // pred_region
        %s400 = ssub.s32 %s14, 1
        %s401 = sand.u32 %s41, 1
        %s402 = sand.u32 %s41, 1
        %s403 = smul.addr %s402, 128
        %s404 = scalar_lea.vmem [#allocation3], %s403
        // Predicated region
        $region79: #{ndmamba2_forward.18} parent=77 // pred_check
          %p405 = pneg %p54
        $region80: #{ndmamba2_forward.18} parent=77 // pred_check_branch
          %407 = sbr.rel (%p405) target = $region82
        $region81: #{ndmamba2_forward.18} parent=77 // pred_region
          _
        $region82: #{ndmamba2_forward.18} parent=77 // pred_fallthru
          _
        // Predicated region
        $region83: #{ndmamba2_forward.18} parent=77 // pred_check
          %p408 = pneg %p159
        $region84: #{ndmamba2_forward.18} parent=77 // pred_check_branch
          %410 = sbr.rel (%p408) target = $region86
        $region85: #{ndmamba2_forward.18} parent=77 // pred_region
          %411 = dma.done [#allocation5], 16
        $region86: #{ndmamba2_forward.18} parent=77 // pred_fallthru
          _
        // Predicated region
        $region87: #{ndmamba2_forward.18} parent=77 // pred_check
          %p412 = pneg %p180
        $region88: #{ndmamba2_forward.18} parent=77 // pred_check_branch
          %414 = sbr.rel (%p412) target = $region90
        $region89: #{ndmamba2_forward.18} parent=77 // pred_region
          %415 = dma.done [#allocation7], 16
        $region90: #{ndmamba2_forward.18} parent=77 // pred_fallthru
          _
        %416 = sfence
        %s417 = sand.u32 %s41, 1
        %s418 = sand.u32 %s41, 1
        %s419 = smul.addr %s418, 128
        %s420 = scalar_lea.vmem [#allocation3], %s419
        %p421 = pneg %p54
        %p422 = pneg %p51
        %s423 = smul.u32 16, %s24
        %p424 = scmp.lt.s32.totalorder %s23, 1
        %s425 = scalar_select %p424, %s23, 1
        %p426 = scmp.lt.s32.totalorder %s423, 31
        %s427 = scalar_select %p426, %s423, 31
        %s428 = smul.addr %s425, 32
        %s429 = sadd.s32 %s427, %s428
        %s430 = smul.addr %s429, 8
        %s431 = scalar_lea.vmem %s1, %s430
        %p432 = pneg %p82
        %p433 = pneg %p79
        %s434 = smul.u32 16, %s24
        %p435 = scmp.lt.s32.totalorder %s23, 1
        %s436 = scalar_select %p435, %s23, 1
        %p437 = scmp.lt.s32.totalorder %s434, 31
        %s438 = scalar_select %p437, %s434, 31
        %s439 = smul.addr %s436, 32
        %s440 = sadd.s32 %s438, %s439
        %s441 = smul.addr %s440, 8
        %s442 = scalar_lea.vmem %s2, %s441
        %p443 = pneg %p110
        %p444 = pneg %p107
        %s445 = smul.u32 16, %s24
        %p446 = scmp.lt.s32.totalorder %s23, 1
        %s447 = scalar_select %p446, %s23, 1
        %p448 = scmp.lt.s32.totalorder %s445, 31
        %s449 = scalar_select %p448, %s445, 31
        %s450 = smul.addr %s447, 32
        %s451 = sadd.s32 %s449, %s450
        %s452 = smul.addr %s451, 8
        %s453 = scalar_lea.vmem %s3, %s452
        %p454 = pneg %p138
        %p455 = pneg %p135
        %p456 = pneg %p159
        %p457 = pneg %p156
        %p458 = pneg %p180
        %p459 = pneg %p177
        %p460 = pneg %p208
        %p461 = pneg %p205
        %s462 = smul.u32 16, %s24
        %p463 = scmp.lt.s32.totalorder %s23, 1
        %s464 = scalar_select %p463, %s23, 1
        %p465 = scmp.lt.s32.totalorder %s462, 31
        %s466 = scalar_select %p465, %s462, 31
        %s467 = smul.addr %s464, 32
        %s468 = sadd.s32 %s466, %s467
        %s469 = smul.addr %s468, 8
        %s470 = scalar_lea.vmem %s6, %s469
        %s471 = smul.u32 16, %s24
        %s472 = smul.u32 16, %s24
        %p473 = scmp.lt.s32.totalorder %s23, 1
        %s474 = scalar_select %p473, %s23, 1
        %p475 = scmp.lt.s32.totalorder %s472, 31
        %s476 = scalar_select %p475, %s472, 31
        %s477 = smul.addr %s474, 32
        %s478 = sadd.s32 %s476, %s477
        %s479 = smul.addr %s478, 8
        %s480 = scalar_lea.vmem %s1, %s479
        %s481 = smul.u32 16, %s24
        %s482 = smul.u32 16, %s24
        %p483 = scmp.lt.s32.totalorder %s23, 1
        %s484 = scalar_select %p483, %s23, 1
        %p485 = scmp.lt.s32.totalorder %s482, 31
        %s486 = scalar_select %p485, %s482, 31
        %s487 = smul.addr %s484, 32
        %s488 = sadd.s32 %s486, %s487
        %s489 = smul.addr %s488, 8
        %s490 = scalar_lea.vmem %s2, %s489
        %s491 = smul.u32 16, %s24
        %s492 = smul.u32 16, %s24
        %p493 = scmp.lt.s32.totalorder %s23, 1
        %s494 = scalar_select %p493, %s23, 1
        %p495 = scmp.lt.s32.totalorder %s492, 31
        %s496 = scalar_select %p495, %s492, 31
        %s497 = smul.addr %s494, 32
        %s498 = sadd.s32 %s496, %s497
        %s499 = smul.addr %s498, 8
        %s500 = scalar_lea.vmem %s3, %s499
        %s501 = smul.u32 16, %s24
        %s502 = smul.u32 16, %s24
        %p503 = scmp.lt.s32.totalorder %s23, 1
        %s504 = scalar_select %p503, %s23, 1
        %p505 = scmp.lt.s32.totalorder %s502, 31
        %s506 = scalar_select %p505, %s502, 31
        %s507 = smul.addr %s504, 32
        %s508 = sadd.s32 %s506, %s507
        %s509 = smul.addr %s508, 8
        %s510 = scalar_lea.vmem %s6, %s509
        %s511 = smul.u32 16, %s24
        %p513 = scmp.eq.s32.totalorder %s24, 0
        // Predicated region
        $region91: #{ndmamba2_forward.18} parent=77 // pred_check
          %p514 = pneg %p513
        $region92: #{ndmamba2_forward.18} parent=77 // pred_check_branch
          %516 = sbr.rel (%p514) target = $region94
        $region93: #{ndmamba2_forward.18} parent=77 // pred_region
          %517 = vst [vmem:[#allocation2] sm:$0xff] 0.0
          %518 = vst [vmem:[#allocation2 + $0x8] sm:$0xff] 0.0
          %519 = vst [vmem:[#allocation2 + $0x10] sm:$0xff] 0.0
          %520 = vst [vmem:[#allocation2 + $0x18] sm:$0xff] 0.0
        $region94: #{ndmamba2_forward.18} parent=77 // pred_fallthru
          _
        %v521 = vld [vmem:[%s404] sm:$0xff]
        %v522 = vld [vmem:[%s404 + $0x8] sm:$0xff]
        %v523 = vld [vmem:[%s404 + $0x10] sm:$0xff]
        %v524 = vld [vmem:[%s404 + $0x18] sm:$0xff]
        %v525 = vld [vmem:[%s404 + $0x20] sm:$0xff]
        %v526 = vld [vmem:[%s404 + $0x28] sm:$0xff]
        %v527 = vld [vmem:[%s404 + $0x30] sm:$0xff]
        %v528 = vld [vmem:[%s404 + $0x38] sm:$0xff]
        %v529 = vld [vmem:[%s404 + $0x40] sm:$0xff]
        %v530 = vld [vmem:[%s404 + $0x48] sm:$0xff]
        %v531 = vld [vmem:[%s404 + $0x50] sm:$0xff]
        %v532 = vld [vmem:[%s404 + $0x58] sm:$0xff]
        %v533 = vld [vmem:[%s404 + $0x60] sm:$0xff]
        %v534 = vld [vmem:[%s404 + $0x68] sm:$0xff]
        %v535 = vld [vmem:[%s404 + $0x70] sm:$0xff]
        %v536 = vld [vmem:[%s404 + $0x78] sm:$0xff]
        %v537 = vld [vmem:[%s480] sm:$0xff]
        %v538 = vld [vmem:[%s480 + $0x8] sm:$0xff]
        %v539 = vld [vmem:[%s480 + $0x10] sm:$0xff]
        %v540 = vld [vmem:[%s480 + $0x18] sm:$0xff]
        %v541 = vld [vmem:[%s480 + $0x20] sm:$0xff]
        %v542 = vld [vmem:[%s480 + $0x28] sm:$0xff]
        %v543 = vld [vmem:[%s480 + $0x30] sm:$0xff]
        %v544 = vld [vmem:[%s480 + $0x38] sm:$0xff]
        %v545 = vld [vmem:[%s480 + $0x40] sm:$0xff]
        %v546 = vld [vmem:[%s480 + $0x48] sm:$0xff]
        %v547 = vld [vmem:[%s480 + $0x50] sm:$0xff]
        %v548 = vld [vmem:[%s480 + $0x58] sm:$0xff]
        %v549 = vld [vmem:[%s480 + $0x60] sm:$0xff]
        %v550 = vld [vmem:[%s480 + $0x68] sm:$0xff]
        %v551 = vld [vmem:[%s480 + $0x70] sm:$0xff]
        %v552 = vld [vmem:[%s480 + $0x78] sm:$0xff]
        %v553 = vld [vmem:[%s490] sm:$0xff]
        %v554 = vld [vmem:[%s490 + $0x8] sm:$0xff]
        %v555 = vld [vmem:[%s490 + $0x10] sm:$0xff]
        %v556 = vld [vmem:[%s490 + $0x18] sm:$0xff]
        %v557 = vld [vmem:[%s490 + $0x20] sm:$0xff]
        %v558 = vld [vmem:[%s490 + $0x28] sm:$0xff]
        %v559 = vld [vmem:[%s490 + $0x30] sm:$0xff]
        %v560 = vld [vmem:[%s490 + $0x38] sm:$0xff]
        %v561 = vld [vmem:[%s490 + $0x40] sm:$0xff]
        %v562 = vld [vmem:[%s490 + $0x48] sm:$0xff]
        %v563 = vld [vmem:[%s490 + $0x50] sm:$0xff]
        %v564 = vld [vmem:[%s490 + $0x58] sm:$0xff]
        %v565 = vld [vmem:[%s490 + $0x60] sm:$0xff]
        %v566 = vld [vmem:[%s490 + $0x68] sm:$0xff]
        %v567 = vld [vmem:[%s490 + $0x70] sm:$0xff]
        %v568 = vld [vmem:[%s490 + $0x78] sm:$0xff]
        %v569 = vld [vmem:[%s500] sm:$0xff]
        %v570 = vld [vmem:[%s500 + $0x8] sm:$0xff]
        %v571 = vld [vmem:[%s500 + $0x10] sm:$0xff]
        %v572 = vld [vmem:[%s500 + $0x18] sm:$0xff]
        %v573 = vld [vmem:[%s500 + $0x20] sm:$0xff]
        %v574 = vld [vmem:[%s500 + $0x28] sm:$0xff]
        %v575 = vld [vmem:[%s500 + $0x30] sm:$0xff]
        %v576 = vld [vmem:[%s500 + $0x38] sm:$0xff]
        %v577 = vld [vmem:[%s500 + $0x40] sm:$0xff]
        %v578 = vld [vmem:[%s500 + $0x48] sm:$0xff]
        %v579 = vld [vmem:[%s500 + $0x50] sm:$0xff]
        %v580 = vld [vmem:[%s500 + $0x58] sm:$0xff]
        %v581 = vld [vmem:[%s500 + $0x60] sm:$0xff]
        %v582 = vld [vmem:[%s500 + $0x68] sm:$0xff]
        %v583 = vld [vmem:[%s500 + $0x70] sm:$0xff]
        %v584 = vld [vmem:[%s500 + $0x78] sm:$0xff]
        %v585 = vlaneseq
        %v586 = vshrl.u32 %v585, 7
        %v587 = vadd.s32 %v586, 8
        %v588 = vadd.s32 %v586, 16
        %v589 = vadd.s32 %v586, 24
        %v590 = vadd.s32 %v586, 32
        %v591 = vadd.s32 %v586, 40
        %v592 = vadd.s32 %v586, 48
        %v593 = vadd.s32 %v586, 56
        %v594 = vadd.s32 %v586, 64
        %v595 = vadd.s32 %v586, 72
        %v596 = vadd.s32 %v586, 80
        %v597 = vadd.s32 %v586, 88
        %v598 = vadd.s32 %v586, 96
        %v599 = vadd.s32 %v586, 104
        %v600 = vadd.s32 %v586, 112
        %v601 = vadd.s32 %v586, 120
        %v602 = vlaneseq
        %v603 = vand.u32 %v602, 127
        %vm604 = vcmp.ge.s32.totalorder %v586, %v603
        %vm605 = vcmp.ge.s32.totalorder %v587, %v603
        %vm606 = vcmp.ge.s32.totalorder %v588, %v603
        %vm607 = vcmp.ge.s32.totalorder %v589, %v603
        %vm608 = vcmp.ge.s32.totalorder %v590, %v603
        %vm609 = vcmp.ge.s32.totalorder %v591, %v603
        %vm610 = vcmp.ge.s32.totalorder %v592, %v603
        %vm611 = vcmp.ge.s32.totalorder %v593, %v603
        %vm612 = vcmp.ge.s32.totalorder %v594, %v603
        %vm613 = vcmp.ge.s32.totalorder %v595, %v603
        %vm614 = vcmp.ge.s32.totalorder %v596, %v603
        %vm615 = vcmp.ge.s32.totalorder %v597, %v603
        %vm616 = vcmp.ge.s32.totalorder %v598, %v603
        %vm617 = vcmp.ge.s32.totalorder %v599, %v603
        %vm618 = vcmp.ge.s32.totalorder %v600, %v603
        %vm619 = vcmp.ge.s32.totalorder %v601, %v603
        %v620 = vsel %vm604, 1, 0
        %v621 = vsel %vm605, 1, 0
        %v622 = vsel %vm606, 1, 0
        %v623 = vsel %vm607, 1, 0
        %v624 = vsel %vm608, 1, 0
        %v625 = vsel %vm609, 1, 0
        %v626 = vsel %vm610, 1, 0
        %v627 = vsel %vm611, 1, 0
        %v628 = vsel %vm612, 1, 0
        %v629 = vsel %vm613, 1, 0
        %v630 = vsel %vm614, 1, 0
        %v631 = vsel %vm615, 1, 0
        %v632 = vsel %vm616, 1, 0
        %v633 = vsel %vm617, 1, 0
        %v634 = vsel %vm618, 1, 0
        %v635 = vsel %vm619, 1, 0
        %v636 = vcvt.s32.f32 %v620
        %v637 = vcvt.s32.f32 %v621
        %v638 = vcvt.s32.f32 %v622
        %v639 = vcvt.s32.f32 %v623
        %v640 = vcvt.s32.f32 %v624
        %v641 = vcvt.s32.f32 %v625
        %v642 = vcvt.s32.f32 %v626
        %v643 = vcvt.s32.f32 %v627
        %v644 = vcvt.s32.f32 %v628
        %v645 = vcvt.s32.f32 %v629
        %v646 = vcvt.s32.f32 %v630
        %v647 = vcvt.s32.f32 %v631
        %v648 = vcvt.s32.f32 %v632
        %v649 = vcvt.s32.f32 %v633
        %v650 = vcvt.s32.f32 %v634
        %v651 = vcvt.s32.f32 %v635
        %vm652 = vcmp.gt.s32.totalorder %v586, %v603
        %vm653 = vcmp.gt.s32.totalorder %v587, %v603
        %vm654 = vcmp.gt.s32.totalorder %v588, %v603
        %vm655 = vcmp.gt.s32.totalorder %v589, %v603
        %vm656 = vcmp.gt.s32.totalorder %v590, %v603
        %vm657 = vcmp.gt.s32.totalorder %v591, %v603
        %vm658 = vcmp.gt.s32.totalorder %v592, %v603
        %vm659 = vcmp.gt.s32.totalorder %v593, %v603
        %vm660 = vcmp.gt.s32.totalorder %v594, %v603
        %vm661 = vcmp.gt.s32.totalorder %v595, %v603
        %vm662 = vcmp.gt.s32.totalorder %v596, %v603
        %vm663 = vcmp.gt.s32.totalorder %v597, %v603
        %vm664 = vcmp.gt.s32.totalorder %v598, %v603
        %vm665 = vcmp.gt.s32.totalorder %v599, %v603
        %vm666 = vcmp.gt.s32.totalorder %v600, %v603
        %vm667 = vcmp.gt.s32.totalorder %v601, %v603
        %v668 = vsel %vm652, 1, 0
        %v669 = vsel %vm653, 1, 0
        %v670 = vsel %vm654, 1, 0
        %v671 = vsel %vm655, 1, 0
        %v672 = vsel %vm656, 1, 0
        %v673 = vsel %vm657, 1, 0
        %v674 = vsel %vm658, 1, 0
        %v675 = vsel %vm659, 1, 0
        %v676 = vsel %vm660, 1, 0
        %v677 = vsel %vm661, 1, 0
        %v678 = vsel %vm662, 1, 0
        %v679 = vsel %vm663, 1, 0
        %v680 = vsel %vm664, 1, 0
        %v681 = vsel %vm665, 1, 0
        %v682 = vsel %vm666, 1, 0
        %v683 = vsel %vm667, 1, 0
        %v684 = vcvt.s32.f32 %v668
        %v685 = vcvt.s32.f32 %v669
        %v686 = vcvt.s32.f32 %v670
        %v687 = vcvt.s32.f32 %v671
        %v688 = vcvt.s32.f32 %v672
        %v689 = vcvt.s32.f32 %v673
        %v690 = vcvt.s32.f32 %v674
        %v691 = vcvt.s32.f32 %v675
        %v692 = vcvt.s32.f32 %v676
        %v693 = vcvt.s32.f32 %v677
        %v694 = vcvt.s32.f32 %v678
        %v695 = vcvt.s32.f32 %v679
        %v696 = vcvt.s32.f32 %v680
        %v697 = vcvt.s32.f32 %v681
        %v698 = vcvt.s32.f32 %v682
        %v699 = vcvt.s32.f32 %v683
        %v700 = vpack.c.bf16 %v570, %v569
        %v701 = vpack.c.bf16 %v572, %v571
        %v702 = vpack.c.bf16 %v574, %v573
        %v703 = vpack.c.bf16 %v576, %v575
        %v704 = vpack.c.bf16 %v578, %v577
        %v705 = vpack.c.bf16 %v580, %v579
        %v706 = vpack.c.bf16 %v582, %v581
        %v707 = vpack.c.bf16 %v584, %v583
        %v708 = vpack.c.bf16 %v554, %v553
        %v709 = vpack.c.bf16 %v556, %v555
        %v710 = vpack.c.bf16 %v558, %v557
        %v711 = vpack.c.bf16 %v560, %v559
        %v712 = vpack.c.bf16 %v562, %v561
        %v713 = vpack.c.bf16 %v564, %v563
        %v714 = vpack.c.bf16 %v566, %v565
        %v715 = vpack.c.bf16 %v568, %v567
        %vm716 = vcmask 261120
        %v718 = vsel %vm716, %v700, 0
        %v721 = vsel %vm716, %v701, 0
        %v724 = vsel %vm716, %v702, 0
        %v727 = vsel %vm716, %v703, 0
        %v730 = vsel %vm716, %v704, 0
        %v733 = vsel %vm716, %v705, 0
        %v736 = vsel %vm716, %v706, 0
        %v739 = vsel %vm716, %v707, 0
        %v742 = vsel %vm716, %v708, 0
        %v745 = vsel %vm716, %v709, 0
        %v748 = vsel %vm716, %v710, 0
        %v751 = vsel %vm716, %v711, 0
        %v754 = vsel %vm716, %v712, 0
        %v757 = vsel %vm716, %v713, 0
        %v760 = vsel %vm716, %v714, 0
        %v763 = vsel %vm716, %v715, 0
        %765 = vmatprep.subr.bf16.mxu0 0
        %766 = vmatpush1.bf16.xpose.msra.mxu0 %v763
        %767 = vmatprep.subr.bf16.mxu0 0
        %768 = vmatpush1.bf16.xpose.msra.mxu0 %v760
        %769 = vmatprep.subr.bf16.mxu0 0
        %770 = vmatpush1.bf16.xpose.msra.mxu0 %v757
        %771 = vmatprep.subr.bf16.mxu0 0
        %772 = vmatpush1.bf16.xpose.msra.mxu0 %v754
        %773 = vmatprep.subr.bf16.mxu0 0
        %774 = vmatpush1.bf16.xpose.msra.mxu0 %v751
        %775 = vmatprep.subr.bf16.mxu0 0
        %776 = vmatpush1.bf16.xpose.msra.mxu0 %v748
        %777 = vmatprep.subr.bf16.mxu0 0
        %778 = vmatpush1.bf16.xpose.msra.mxu0 %v745
        %779 = vmatprep.subr.bf16.mxu0 0
        %780 = vmatpush1.bf16.xpose.msra.mxu0 %v742
        %781 = vmatprep.subr.bf16.mxu0 0
        %782 = vmatpush2.bf16.xpose.msra.mxu0 0
        %783 = vmatprep.subr.bf16.mxu0 0
        %784 = vmatpush2.bf16.xpose.msra.mxu0 0
        %785 = vmatprep.subr.bf16.mxu0 0
        %786 = vmatpush2.bf16.xpose.msra.mxu0 0
        %787 = vmatprep.subr.bf16.mxu0 0
        %788 = vmatpush2.bf16.xpose.msra.mxu0 0
        %789 = vmatprep.subr.bf16.mxu0 0
        %790 = vmatpush2.bf16.xpose.msra.mxu0 0
        %791 = vmatprep.subr.bf16.mxu0 0
        %792 = vmatpush2.bf16.xpose.msra.mxu0 0
        %793 = vmatprep.subr.bf16.mxu0 0
        %794 = vmatpush2.bf16.xpose.msra.mxu0 0
        %795 = vmatprep.subr.bf16.mxu0 0
        %796 = vmatpush2.bf16.xpose.msra.mxu0 0
        %797 = vmatprep.mubr.bf16.mxu0 0
        %798 = vmatmul.mubr.bf16.gmra.mxu0 %v718
        %v799 = vpop.f32.mrf.mxu0
        %v800 = vadd.f32 0.0, %v799
        %v801 = vpop.f32.mrf.mxu0
        %v802 = vpop.f32.mrf.mxu0
        %v803 = vadd.f32 0.0, %v802
        %v804 = vpop.f32.mrf.mxu0
        %805 = vmatprep.mubr.bf16.mxu0 0
        %806 = vmatmul.mubr.bf16.gmra.mxu0 %v721
        %v807 = vpop.f32.mrf.mxu0
        %v808 = vadd.f32 0.0, %v807
        %v809 = vpop.f32.mrf.mxu0
        %v810 = vpop.f32.mrf.mxu0
        %v811 = vadd.f32 0.0, %v810
        %v812 = vpop.f32.mrf.mxu0
        %813 = vmatprep.mubr.bf16.mxu0 0
        %814 = vmatmul.mubr.bf16.gmra.mxu0 %v724
        %v815 = vpop.f32.mrf.mxu0
        %v816 = vadd.f32 0.0, %v815
        %v817 = vpop.f32.mrf.mxu0
        %v818 = vpop.f32.mrf.mxu0
        %v819 = vadd.f32 0.0, %v818
        %v820 = vpop.f32.mrf.mxu0
        %821 = vmatprep.mubr.bf16.mxu0 0
        %822 = vmatmul.mubr.bf16.gmra.mxu0 %v727
        %v823 = vpop.f32.mrf.mxu0
        %v824 = vadd.f32 0.0, %v823
        %v825 = vpop.f32.mrf.mxu0
        %v826 = vpop.f32.mrf.mxu0
        %v827 = vadd.f32 0.0, %v826
        %v828 = vpop.f32.mrf.mxu0
        %829 = vmatprep.mubr.bf16.mxu0 0
        %830 = vmatmul.mubr.bf16.gmra.mxu0 %v730
        %v831 = vpop.f32.mrf.mxu0
        %v832 = vadd.f32 0.0, %v831
        %v833 = vpop.f32.mrf.mxu0
        %v834 = vpop.f32.mrf.mxu0
        %v835 = vadd.f32 0.0, %v834
        %v836 = vpop.f32.mrf.mxu0
        %837 = vmatprep.mubr.bf16.mxu0 0
        %838 = vmatmul.mubr.bf16.gmra.mxu0 %v733
        %v839 = vpop.f32.mrf.mxu0
        %v840 = vadd.f32 0.0, %v839
        %v841 = vpop.f32.mrf.mxu0
        %v842 = vpop.f32.mrf.mxu0
        %v843 = vadd.f32 0.0, %v842
        %v844 = vpop.f32.mrf.mxu0
        %845 = vmatprep.mubr.bf16.mxu0 0
        %846 = vmatmul.mubr.bf16.gmra.mxu0 %v736
        %v847 = vpop.f32.mrf.mxu0
        %v848 = vadd.f32 0.0, %v847
        %v849 = vpop.f32.mrf.mxu0
        %v850 = vpop.f32.mrf.mxu0
        %v851 = vadd.f32 0.0, %v850
        %v852 = vpop.f32.mrf.mxu0
        %853 = vmatprep.mubr.bf16.mxu0 0
        %854 = vmatmul.mubr.bf16.gmra.mxu0 %v739
        %v855 = vpop.f32.mrf.mxu0
        %v856 = vadd.f32 0.0, %v855
        %v857 = vpop.f32.mrf.mxu0
        %v858 = vpop.f32.mrf.mxu0
        %v859 = vadd.f32 0.0, %v858
        %v860 = vpop.f32.mrf.mxu0
        %861 = vdwg.mxu0
        %s862 = sld [smem:[#allocation4]]
        %v863 = vstv %s862
        %v864 = vmul.f32 %v863, %v537
        %v865 = vmul.f32 %v863, %v538
        %v866 = vmul.f32 %v863, %v539
        %v867 = vmul.f32 %v863, %v540
        %v868 = vmul.f32 %v863, %v541
        %v869 = vmul.f32 %v863, %v542
        %v870 = vmul.f32 %v863, %v543
        %v871 = vmul.f32 %v863, %v544
        %v872 = vmul.f32 %v863, %v545
        %v873 = vmul.f32 %v863, %v546
        %v874 = vmul.f32 %v863, %v547
        %v875 = vmul.f32 %v863, %v548
        %v876 = vmul.f32 %v863, %v549
        %v877 = vmul.f32 %v863, %v550
        %v878 = vmul.f32 %v863, %v551
        %v879 = vmul.f32 %v863, %v552
        %881 = vset.pattern.permute.xlu0 0
        %882 = vperm.xlu0 %881, %v537
        %v883 = vpop.permute.xlu0 %882
        %886 = vset.pattern.permute.xlu0 0
        %887 = vperm.xlu0 %886, %v538
        %v888 = vpop.permute.xlu0 %887
        %891 = vset.pattern.permute.xlu0 0
        %892 = vperm.xlu0 %891, %v539
        %v893 = vpop.permute.xlu0 %892
        %896 = vset.pattern.permute.xlu0 0
        %897 = vperm.xlu0 %896, %v540
        %v898 = vpop.permute.xlu0 %897
        %901 = vset.pattern.permute.xlu0 0
        %902 = vperm.xlu0 %901, %v541
        %v903 = vpop.permute.xlu0 %902
        %906 = vset.pattern.permute.xlu0 0
        %907 = vperm.xlu0 %906, %v542
        %v908 = vpop.permute.xlu0 %907
        %911 = vset.pattern.permute.xlu0 0
        %912 = vperm.xlu0 %911, %v543
        %v913 = vpop.permute.xlu0 %912
        %916 = vset.pattern.permute.xlu0 0
        %917 = vperm.xlu0 %916, %v544
        %v918 = vpop.permute.xlu0 %917
        %921 = vset.pattern.permute.xlu0 0
        %922 = vperm.xlu0 %921, %v545
        %v923 = vpop.permute.xlu0 %922
        %926 = vset.pattern.permute.xlu0 0
        %927 = vperm.xlu0 %926, %v546
        %v928 = vpop.permute.xlu0 %927
        %931 = vset.pattern.permute.xlu0 0
        %932 = vperm.xlu0 %931, %v547
        %v933 = vpop.permute.xlu0 %932
        %936 = vset.pattern.permute.xlu0 0
        %937 = vperm.xlu0 %936, %v548
        %v938 = vpop.permute.xlu0 %937
        %941 = vset.pattern.permute.xlu0 0
        %942 = vperm.xlu0 %941, %v549
        %v943 = vpop.permute.xlu0 %942
        %946 = vset.pattern.permute.xlu0 0
        %947 = vperm.xlu0 %946, %v550
        %v948 = vpop.permute.xlu0 %947
        %951 = vset.pattern.permute.xlu0 0
        %952 = vperm.xlu0 %951, %v551
        %v953 = vpop.permute.xlu0 %952
        %956 = vset.pattern.permute.xlu0 0
        %957 = vperm.xlu0 %956, %v552
        %v958 = vpop.permute.xlu0 %957
        %v960 = vmul.f32 %v521, %v883
        %v961 = vmul.f32 %v522, %v888
        %v962 = vmul.f32 %v523, %v893
        %v963 = vmul.f32 %v524, %v898
        %v964 = vmul.f32 %v525, %v903
        %v965 = vmul.f32 %v526, %v908
        %v966 = vmul.f32 %v527, %v913
        %v967 = vmul.f32 %v528, %v918
        %v968 = vmul.f32 %v529, %v923
        %v969 = vmul.f32 %v530, %v928
        %v970 = vmul.f32 %v531, %v933
        %v971 = vmul.f32 %v532, %v938
        %v972 = vmul.f32 %v533, %v943
        %v973 = vmul.f32 %v534, %v948
        %v974 = vmul.f32 %v535, %v953
        %v975 = vmul.f32 %v536, %v958
        %977 = vset.pattern.permute.xlu0 0
        %978 = vperm.xlu0 %977, %v864
        %v979 = vpop.permute.xlu0 %978
        %982 = vset.pattern.permute.xlu0 0
        %983 = vperm.xlu0 %982, %v865
        %v984 = vpop.permute.xlu0 %983
        %987 = vset.pattern.permute.xlu0 0
        %988 = vperm.xlu0 %987, %v866
        %v989 = vpop.permute.xlu0 %988
        %992 = vset.pattern.permute.xlu0 0
        %993 = vperm.xlu0 %992, %v867
        %v994 = vpop.permute.xlu0 %993
        %997 = vset.pattern.permute.xlu0 0
        %998 = vperm.xlu0 %997, %v868
        %v999 = vpop.permute.xlu0 %998
        %1002 = vset.pattern.permute.xlu0 0
        %1003 = vperm.xlu0 %1002, %v869
        %v1004 = vpop.permute.xlu0 %1003
        %1007 = vset.pattern.permute.xlu0 0
        %1008 = vperm.xlu0 %1007, %v870
        %v1009 = vpop.permute.xlu0 %1008
        %1012 = vset.pattern.permute.xlu0 0
        %1013 = vperm.xlu0 %1012, %v871
        %v1014 = vpop.permute.xlu0 %1013
        %1017 = vset.pattern.permute.xlu0 0
        %1018 = vperm.xlu0 %1017, %v872
        %v1019 = vpop.permute.xlu0 %1018
        %1022 = vset.pattern.permute.xlu0 0
        %1023 = vperm.xlu0 %1022, %v873
        %v1024 = vpop.permute.xlu0 %1023
        %1027 = vset.pattern.permute.xlu0 0
        %1028 = vperm.xlu0 %1027, %v874
        %v1029 = vpop.permute.xlu0 %1028
        %1032 = vset.pattern.permute.xlu0 0
        %1033 = vperm.xlu0 %1032, %v875
        %v1034 = vpop.permute.xlu0 %1033
        %1037 = vset.pattern.permute.xlu0 0
        %1038 = vperm.xlu0 %1037, %v876
        %v1039 = vpop.permute.xlu0 %1038
        %1042 = vset.pattern.permute.xlu0 0
        %1043 = vperm.xlu0 %1042, %v877
        %v1044 = vpop.permute.xlu0 %1043
        %1047 = vset.pattern.permute.xlu0 0
        %1048 = vperm.xlu0 %1047, %v878
        %v1049 = vpop.permute.xlu0 %1048
        %1052 = vset.pattern.permute.xlu0 0
        %1053 = vperm.xlu0 %1052, %v879
        %v1054 = vpop.permute.xlu0 %1053
        %v1056 = vmul.f32 %v979, %v684
        %v1057 = vmul.f32 %v984, %v685
        %v1058 = vmul.f32 %v989, %v686
        %v1059 = vmul.f32 %v994, %v687
        %v1060 = vmul.f32 %v999, %v688
        %v1061 = vmul.f32 %v1004, %v689
        %v1062 = vmul.f32 %v1009, %v690
        %v1063 = vmul.f32 %v1014, %v691
        %v1064 = vmul.f32 %v1019, %v692
        %v1065 = vmul.f32 %v1024, %v693
        %v1066 = vmul.f32 %v1029, %v694
        %v1067 = vmul.f32 %v1034, %v695
        %v1068 = vmul.f32 %v1039, %v696
        %v1069 = vmul.f32 %v1044, %v697
        %v1070 = vmul.f32 %v1049, %v698
        %v1071 = vmul.f32 %v1054, %v699
        %1072 = vmatprep.subr.mxu0 0.0
        %1073 = vmatpush1.msra.mxu0 %v1071
        %1074 = vmatprep.subr.mxu0 0.0
        %1075 = vmatpush1.msra.mxu0 %v1070
        %1076 = vmatprep.subr.mxu0 0.0
        %1077 = vmatpush1.msra.mxu0 %v1069
        %1078 = vmatprep.subr.mxu0 0.0
        %1079 = vmatpush1.msra.mxu0 %v1068
        %1080 = vmatprep.subr.mxu0 0.0
        %1081 = vmatpush1.msra.mxu0 %v1067
        %1082 = vmatprep.subr.mxu0 0.0
        %1083 = vmatpush1.msra.mxu0 %v1066
        %1084 = vmatprep.subr.mxu0 0.0
        %1085 = vmatpush1.msra.mxu0 %v1065
        %1086 = vmatprep.subr.mxu0 0.0
        %1087 = vmatpush1.msra.mxu0 %v1064
        %1088 = vmatprep.subr.mxu0 0.0
        %1089 = vmatpush1.msra.mxu0 %v1063
        %1090 = vmatprep.subr.mxu0 0.0
        %1091 = vmatpush1.msra.mxu0 %v1062
        %1092 = vmatprep.subr.mxu0 0.0
        %1093 = vmatpush1.msra.mxu0 %v1061
        %1094 = vmatprep.subr.mxu0 0.0
        %1095 = vmatpush1.msra.mxu0 %v1060
        %1096 = vmatprep.subr.mxu0 0.0
        %1097 = vmatpush1.msra.mxu0 %v1059
        %1098 = vmatprep.subr.mxu0 0.0
        %1099 = vmatpush1.msra.mxu0 %v1058
        %1100 = vmatprep.subr.mxu0 0.0
        %1101 = vmatpush1.msra.mxu0 %v1057
        %1102 = vmatprep.subr.mxu0 0.0
        %1103 = vmatpush1.msra.mxu0 %v1056
        %1104 = vmatprep.subr.mxu0 0.0
        %1105 = vmatpush2.msra.mxu0 0.0
        %1106 = vmatprep.subr.mxu0 0.0
        %1107 = vmatpush2.msra.mxu0 0.0
        %1108 = vmatprep.subr.mxu0 0.0
        %1109 = vmatpush2.msra.mxu0 0.0
        %1110 = vmatprep.subr.mxu0 0.0
        %1111 = vmatpush2.msra.mxu0 0.0
        %1112 = vmatprep.subr.mxu0 0.0
        %1113 = vmatpush2.msra.mxu0 0.0
        %1114 = vmatprep.subr.mxu0 0.0
        %1115 = vmatpush2.msra.mxu0 0.0
        %1116 = vmatprep.subr.mxu0 0.0
        %1117 = vmatpush2.msra.mxu0 0.0
        %1118 = vmatprep.subr.mxu0 0.0
        %1119 = vmatpush2.msra.mxu0 0.0
        %1120 = vmatprep.subr.mxu0 0.0
        %1121 = vmatpush2.msra.mxu0 0.0
        %1122 = vmatprep.subr.mxu0 0.0
        %1123 = vmatpush2.msra.mxu0 0.0
        %1124 = vmatprep.subr.mxu0 0.0
        %1125 = vmatpush2.msra.mxu0 0.0
        %1126 = vmatprep.subr.mxu0 0.0
        %1127 = vmatpush2.msra.mxu0 0.0
        %1128 = vmatprep.subr.mxu0 0.0
        %1129 = vmatpush2.msra.mxu0 0.0
        %1130 = vmatprep.subr.mxu0 0.0
        %1131 = vmatpush2.msra.mxu0 0.0
        %1132 = vmatprep.subr.mxu0 0.0
        %1133 = vmatpush2.msra.mxu0 0.0
        %1134 = vmatprep.subr.mxu0 0.0
        %1135 = vmatpush2.msra.mxu0 0.0
        %1136 = vmatprep.mubr.f32.mxu0 0.0
        %1137 = vmatmul.mubr.f32.gmra.mxu0 %v636
        %v1138 = vpop.f32.mrf.mxu0
        %v1139 = vadd.f32 0.0, %v1138
        %v1140 = vpop.f32.mrf.mxu0
        %1141 = vmatprep.mubr.f32.mxu0 0.0
        %1142 = vmatmul.mubr.f32.gmra.mxu0 %v637
        %v1143 = vpop.f32.mrf.mxu0
        %v1144 = vadd.f32 0.0, %v1143
        %v1145 = vpop.f32.mrf.mxu0
        %1146 = vmatprep.mubr.f32.mxu0 0.0
        %1147 = vmatmul.mubr.f32.gmra.mxu0 %v638
        %v1148 = vpop.f32.mrf.mxu0
        %v1149 = vadd.f32 0.0, %v1148
        %v1150 = vpop.f32.mrf.mxu0
        %1151 = vmatprep.mubr.f32.mxu0 0.0
        %1152 = vmatmul.mubr.f32.gmra.mxu0 %v639
        %v1153 = vpop.f32.mrf.mxu0
        %v1154 = vadd.f32 0.0, %v1153
        %v1155 = vpop.f32.mrf.mxu0
        %1156 = vmatprep.mubr.f32.mxu0 0.0
        %1157 = vmatmul.mubr.f32.gmra.mxu0 %v640
        %v1158 = vpop.f32.mrf.mxu0
        %v1159 = vadd.f32 0.0, %v1158
        %v1160 = vpop.f32.mrf.mxu0
        %1161 = vmatprep.mubr.f32.mxu0 0.0
        %1162 = vmatmul.mubr.f32.gmra.mxu0 %v641
        %v1163 = vpop.f32.mrf.mxu0
        %v1164 = vadd.f32 0.0, %v1163
        %v1165 = vpop.f32.mrf.mxu0
        %1166 = vmatprep.mubr.f32.mxu0 0.0
        %1167 = vmatmul.mubr.f32.gmra.mxu0 %v642
        %v1168 = vpop.f32.mrf.mxu0
        %v1169 = vadd.f32 0.0, %v1168
        %v1170 = vpop.f32.mrf.mxu0
        %1171 = vmatprep.mubr.f32.mxu0 0.0
        %1172 = vmatmul.mubr.f32.gmra.mxu0 %v643
        %v1173 = vpop.f32.mrf.mxu0
        %v1174 = vadd.f32 0.0, %v1173
        %v1175 = vpop.f32.mrf.mxu0
        %1176 = vmatprep.mubr.f32.mxu0 0.0
        %1177 = vmatmul.mubr.f32.gmra.mxu0 %v644
        %v1178 = vpop.f32.mrf.mxu0
        %v1179 = vadd.f32 0.0, %v1178
        %v1180 = vpop.f32.mrf.mxu0
        %1181 = vmatprep.mubr.f32.mxu0 0.0
        %1182 = vmatmul.mubr.f32.gmra.mxu0 %v645
        %v1183 = vpop.f32.mrf.mxu0
        %v1184 = vadd.f32 0.0, %v1183
        %v1185 = vpop.f32.mrf.mxu0
        %1186 = vmatprep.mubr.f32.mxu0 0.0
        %1187 = vmatmul.mubr.f32.gmra.mxu0 %v646
        %v1188 = vpop.f32.mrf.mxu0
        %v1189 = vadd.f32 0.0, %v1188
        %v1190 = vpop.f32.mrf.mxu0
        %1191 = vmatprep.mubr.f32.mxu0 0.0
        %1192 = vmatmul.mubr.f32.gmra.mxu0 %v647
        %v1193 = vpop.f32.mrf.mxu0
        %v1194 = vadd.f32 0.0, %v1193
        %v1195 = vpop.f32.mrf.mxu0
        %1196 = vmatprep.mubr.f32.mxu0 0.0
        %1197 = vmatmul.mubr.f32.gmra.mxu0 %v648
        %v1198 = vpop.f32.mrf.mxu0
        %v1199 = vadd.f32 0.0, %v1198
        %v1200 = vpop.f32.mrf.mxu0
        %1201 = vmatprep.mubr.f32.mxu0 0.0
        %1202 = vmatmul.mubr.f32.gmra.mxu0 %v649
        %v1203 = vpop.f32.mrf.mxu0
        %v1204 = vadd.f32 0.0, %v1203
        %v1205 = vpop.f32.mrf.mxu0
        %1206 = vmatprep.mubr.f32.mxu0 0.0
        %1207 = vmatmul.mubr.f32.gmra.mxu0 %v650
        %v1208 = vpop.f32.mrf.mxu0
        %v1209 = vadd.f32 0.0, %v1208
        %v1210 = vpop.f32.mrf.mxu0
        %1211 = vmatprep.mubr.f32.mxu0 0.0
        %1212 = vmatmul.mubr.f32.gmra.mxu0 %v651
        %v1213 = vpop.f32.mrf.mxu0
        %v1214 = vadd.f32 0.0, %v1213
        %v1215 = vpop.f32.mrf.mxu0
        %1216 = vdwg.mxu0
        %v1217 = vmul.f32 %v1139, 1.442695
        %v1218 = vpow.pop %v1217
        %v1219 = vmul.f32 %v1144, 1.442695
        %v1220 = vpow.pop %v1219
        %v1221 = vmul.f32 %v1149, 1.442695
        %v1222 = vpow.pop %v1221
        %v1223 = vmul.f32 %v1154, 1.442695
        %v1224 = vpow.pop %v1223
        %v1225 = vmul.f32 %v1159, 1.442695
        %v1226 = vpow.pop %v1225
        %v1227 = vmul.f32 %v1164, 1.442695
        %v1228 = vpow.pop %v1227
        %v1229 = vmul.f32 %v1169, 1.442695
        %v1230 = vpow.pop %v1229
        %v1231 = vmul.f32 %v1174, 1.442695
        %v1232 = vpow.pop %v1231
        %v1233 = vmul.f32 %v1179, 1.442695
        %v1234 = vpow.pop %v1233
        %v1235 = vmul.f32 %v1184, 1.442695
        %v1236 = vpow.pop %v1235
        %v1237 = vmul.f32 %v1189, 1.442695
        %v1238 = vpow.pop %v1237
        %v1239 = vmul.f32 %v1194, 1.442695
        %v1240 = vpow.pop %v1239
        %v1241 = vmul.f32 %v1199, 1.442695
        %v1242 = vpow.pop %v1241
        %v1243 = vmul.f32 %v1204, 1.442695
        %v1244 = vpow.pop %v1243
        %v1245 = vmul.f32 %v1209, 1.442695
        %v1246 = vpow.pop %v1245
        %v1247 = vmul.f32 %v1214, 1.442695
        %v1248 = vpow.pop %v1247
        %v1249 = vmul.f32 %v636, %v1218
        %v1250 = vmul.f32 %v637, %v1220
        %v1251 = vmul.f32 %v638, %v1222
        %v1252 = vmul.f32 %v639, %v1224
        %v1253 = vmul.f32 %v640, %v1226
        %v1254 = vmul.f32 %v641, %v1228
        %v1255 = vmul.f32 %v642, %v1230
        %v1256 = vmul.f32 %v643, %v1232
        %v1257 = vmul.f32 %v644, %v1234
        %v1258 = vmul.f32 %v645, %v1236
        %v1259 = vmul.f32 %v646, %v1238
        %v1260 = vmul.f32 %v647, %v1240
        %v1261 = vmul.f32 %v648, %v1242
        %v1262 = vmul.f32 %v649, %v1244
        %v1263 = vmul.f32 %v650, %v1246
        %v1264 = vmul.f32 %v651, %v1248
        %v1265 = vlaneseq
        %v1266 = vshrl.u32 %v1265, 7
        %v1267 = vsub.s32 0, %v1266
        %v1268 = vrot.slane %v864, %v1267
        %v1269 = vadd.f32 %v1139, %v1268
        %v1270 = vadd.f32 %v1144, %v1268
        %v1271 = vadd.f32 %v1149, %v1268
        %v1272 = vadd.f32 %v1154, %v1268
        %v1273 = vadd.f32 %v1159, %v1268
        %v1274 = vadd.f32 %v1164, %v1268
        %v1275 = vadd.f32 %v1169, %v1268
        %v1276 = vadd.f32 %v1174, %v1268
        %v1277 = vadd.f32 %v1179, %v1268
        %v1278 = vadd.f32 %v1184, %v1268
        %v1279 = vadd.f32 %v1189, %v1268
        %v1280 = vadd.f32 %v1194, %v1268
        %v1281 = vadd.f32 %v1199, %v1268
        %v1282 = vadd.f32 %v1204, %v1268
        %v1283 = vadd.f32 %v1209, %v1268
        %v1284 = vadd.f32 %v1214, %v1268
        %v1285 = vmul.f32 %v800, %v1249
        %v1286 = vmul.f32 %v803, %v1250
        %v1287 = vmul.f32 %v808, %v1251
        %v1288 = vmul.f32 %v811, %v1252
        %v1289 = vmul.f32 %v816, %v1253
        %v1290 = vmul.f32 %v819, %v1254
        %v1291 = vmul.f32 %v824, %v1255
        %v1292 = vmul.f32 %v827, %v1256
        %v1293 = vmul.f32 %v832, %v1257
        %v1294 = vmul.f32 %v835, %v1258
        %v1295 = vmul.f32 %v840, %v1259
        %v1296 = vmul.f32 %v843, %v1260
        %v1297 = vmul.f32 %v848, %v1261
        %v1298 = vmul.f32 %v851, %v1262
        %v1299 = vmul.f32 %v856, %v1263
        %v1300 = vmul.f32 %v859, %v1264
        %v1301 = vpack.c.bf16 %v1286, %v1285
        %v1302 = vpack.c.bf16 %v1288, %v1287
        %v1303 = vpack.c.bf16 %v1290, %v1289
        %v1304 = vpack.c.bf16 %v1292, %v1291
        %v1305 = vpack.c.bf16 %v1294, %v1293
        %v1306 = vpack.c.bf16 %v1296, %v1295
        %v1307 = vpack.c.bf16 %v1298, %v1297
        %v1308 = vpack.c.bf16 %v1300, %v1299
        %v1309 = vpack.c.bf16 %v961, %v960
        %v1310 = vpack.c.bf16 %v963, %v962
        %v1311 = vpack.c.bf16 %v965, %v964
        %v1312 = vpack.c.bf16 %v967, %v966
        %v1313 = vpack.c.bf16 %v969, %v968
        %v1314 = vpack.c.bf16 %v971, %v970
        %v1315 = vpack.c.bf16 %v973, %v972
        %v1316 = vpack.c.bf16 %v975, %v974
        %v1317 = vld [vmem:[#allocation2] sm:$0xff]
        %v1318 = vld [vmem:[#allocation2 + $0x8] sm:$0xff]
        %v1319 = vld [vmem:[#allocation2 + $0x10] sm:$0xff]
        %v1320 = vld [vmem:[#allocation2 + $0x18] sm:$0xff]
        %v1322 = vsel %vm716, %v569, 0
        %v1325 = vsel %vm716, %v570, 0
        %v1328 = vsel %vm716, %v571, 0
        %v1331 = vsel %vm716, %v572, 0
        %v1334 = vsel %vm716, %v573, 0
        %v1337 = vsel %vm716, %v574, 0
        %v1340 = vsel %vm716, %v575, 0
        %v1343 = vsel %vm716, %v576, 0
        %v1346 = vsel %vm716, %v577, 0
        %v1349 = vsel %vm716, %v578, 0
        %v1352 = vsel %vm716, %v579, 0
        %v1355 = vsel %vm716, %v580, 0
        %v1358 = vsel %vm716, %v581, 0
        %v1361 = vsel %vm716, %v582, 0
        %v1364 = vsel %vm716, %v583, 0
        %v1367 = vsel %vm716, %v584, 0
        %1369 = vmatprep.subr.mxu0 0.0
        %1370 = vmatpush1.msra.mxu0 0.0
        %1371 = vmatprep.subr.mxu0 0.0
        %1372 = vmatpush1.msra.mxu0 0.0
        %1373 = vmatprep.subr.mxu0 0.0
        %1374 = vmatpush1.msra.mxu0 0.0
        %1375 = vmatprep.subr.mxu0 0.0
        %1376 = vmatpush1.msra.mxu0 0.0
        %1377 = vmatprep.subr.mxu0 0.0
        %1378 = vmatpush1.msra.mxu0 0.0
        %1379 = vmatprep.subr.mxu0 0.0
        %1380 = vmatpush1.msra.mxu0 0.0
        %1381 = vmatprep.subr.mxu0 0.0
        %1382 = vmatpush1.msra.mxu0 0.0
        %1383 = vmatprep.subr.mxu0 0.0
        %1384 = vmatpush1.msra.mxu0 0.0
        %1385 = vmatprep.subr.mxu0 0.0
        %1386 = vmatpush1.msra.mxu0 0.0
        %1387 = vmatprep.subr.mxu0 0.0
        %1388 = vmatpush1.msra.mxu0 0.0
        %1389 = vmatprep.subr.mxu0 0.0
        %1390 = vmatpush1.msra.mxu0 0.0
        %1391 = vmatprep.subr.mxu0 0.0
        %1392 = vmatpush1.msra.mxu0 0.0
        %1393 = vmatprep.subr.mxu0 0.0
        %1394 = vmatpush1.msra.mxu0 %v1320
        %1395 = vmatprep.subr.mxu0 0.0
        %1396 = vmatpush1.msra.mxu0 %v1319
        %1397 = vmatprep.subr.mxu0 0.0
        %1398 = vmatpush1.msra.mxu0 %v1318
        %1399 = vmatprep.subr.mxu0 0.0
        %1400 = vmatpush1.msra.mxu0 %v1317
        %1401 = vmatprep.subr.mxu0 0.0
        %1402 = vmatpush2.msra.mxu0 0.0
        %1403 = vmatprep.subr.mxu0 0.0
        %1404 = vmatpush2.msra.mxu0 0.0
        %1405 = vmatprep.subr.mxu0 0.0
        %1406 = vmatpush2.msra.mxu0 0.0
        %1407 = vmatprep.subr.mxu0 0.0
        %1408 = vmatpush2.msra.mxu0 0.0
        %1409 = vmatprep.subr.mxu0 0.0
        %1410 = vmatpush2.msra.mxu0 0.0
        %1411 = vmatprep.subr.mxu0 0.0
        %1412 = vmatpush2.msra.mxu0 0.0
        %1413 = vmatprep.subr.mxu0 0.0
        %1414 = vmatpush2.msra.mxu0 0.0
        %1415 = vmatprep.subr.mxu0 0.0
        %1416 = vmatpush2.msra.mxu0 0.0
        %1417 = vmatprep.subr.mxu0 0.0
        %1418 = vmatpush2.msra.mxu0 0.0
        %1419 = vmatprep.subr.mxu0 0.0
        %1420 = vmatpush2.msra.mxu0 0.0
        %1421 = vmatprep.subr.mxu0 0.0
        %1422 = vmatpush2.msra.mxu0 0.0
        %1423 = vmatprep.subr.mxu0 0.0
        %1424 = vmatpush2.msra.mxu0 0.0
        %1425 = vmatprep.subr.mxu0 0.0
        %1426 = vmatpush2.msra.mxu0 0.0
        %1427 = vmatprep.subr.mxu0 0.0
        %1428 = vmatpush2.msra.mxu0 0.0
        %1429 = vmatprep.subr.mxu0 0.0
        %1430 = vmatpush2.msra.mxu0 0.0
        %1431 = vmatprep.subr.mxu0 0.0
        %1432 = vmatpush2.msra.mxu0 0.0
        %1433 = vmatprep.mubr.f32.mxu0 0.0
        %1434 = vmatmul.mubr.f32.gmra.mxu0 %v1322
        %v1435 = vpop.f32.mrf.mxu0
        %v1436 = vadd.f32 0.0, %v1435
        %v1437 = vpop.f32.mrf.mxu0
        %1438 = vmatprep.mubr.f32.mxu0 0.0
        %1439 = vmatmul.mubr.f32.gmra.mxu0 %v1325
        %v1440 = vpop.f32.mrf.mxu0
        %v1441 = vadd.f32 0.0, %v1440
        %v1442 = vpop.f32.mrf.mxu0
        %1443 = vmatprep.mubr.f32.mxu0 0.0
        %1444 = vmatmul.mubr.f32.gmra.mxu0 %v1328
        %v1445 = vpop.f32.mrf.mxu0
        %v1446 = vadd.f32 0.0, %v1445
        %v1447 = vpop.f32.mrf.mxu0
        %1448 = vmatprep.mubr.f32.mxu0 0.0
        %1449 = vmatmul.mubr.f32.gmra.mxu0 %v1331
        %v1450 = vpop.f32.mrf.mxu0
        %v1451 = vadd.f32 0.0, %v1450
        %v1452 = vpop.f32.mrf.mxu0
        %1453 = vmatprep.mubr.f32.mxu0 0.0
        %1454 = vmatmul.mubr.f32.gmra.mxu0 %v1334
        %v1455 = vpop.f32.mrf.mxu0
        %v1456 = vadd.f32 0.0, %v1455
        %v1457 = vpop.f32.mrf.mxu0
        %1458 = vmatprep.mubr.f32.mxu0 0.0
        %1459 = vmatmul.mubr.f32.gmra.mxu0 %v1337
        %v1460 = vpop.f32.mrf.mxu0
        %v1461 = vadd.f32 0.0, %v1460
        %v1462 = vpop.f32.mrf.mxu0
        %1463 = vmatprep.mubr.f32.mxu0 0.0
        %1464 = vmatmul.mubr.f32.gmra.mxu0 %v1340
        %v1465 = vpop.f32.mrf.mxu0
        %v1466 = vadd.f32 0.0, %v1465
        %v1467 = vpop.f32.mrf.mxu0
        %1468 = vmatprep.mubr.f32.mxu0 0.0
        %1469 = vmatmul.mubr.f32.gmra.mxu0 %v1343
        %v1470 = vpop.f32.mrf.mxu0
        %v1471 = vadd.f32 0.0, %v1470
        %v1472 = vpop.f32.mrf.mxu0
        %1473 = vmatprep.mubr.f32.mxu0 0.0
        %1474 = vmatmul.mubr.f32.gmra.mxu0 %v1346
        %v1475 = vpop.f32.mrf.mxu0
        %v1476 = vadd.f32 0.0, %v1475
        %v1477 = vpop.f32.mrf.mxu0
        %1478 = vmatprep.mubr.f32.mxu0 0.0
        %1479 = vmatmul.mubr.f32.gmra.mxu0 %v1349
        %v1480 = vpop.f32.mrf.mxu0
        %v1481 = vadd.f32 0.0, %v1480
        %v1482 = vpop.f32.mrf.mxu0
        %1483 = vmatprep.mubr.f32.mxu0 0.0
        %1484 = vmatmul.mubr.f32.gmra.mxu0 %v1352
        %v1485 = vpop.f32.mrf.mxu0
        %v1486 = vadd.f32 0.0, %v1485
        %v1487 = vpop.f32.mrf.mxu0
        %1488 = vmatprep.mubr.f32.mxu0 0.0
        %1489 = vmatmul.mubr.f32.gmra.mxu0 %v1355
        %v1490 = vpop.f32.mrf.mxu0
        %v1491 = vadd.f32 0.0, %v1490
        %v1492 = vpop.f32.mrf.mxu0
        %1493 = vmatprep.mubr.f32.mxu0 0.0
        %1494 = vmatmul.mubr.f32.gmra.mxu0 %v1358
        %v1495 = vpop.f32.mrf.mxu0
        %v1496 = vadd.f32 0.0, %v1495
        %v1497 = vpop.f32.mrf.mxu0
        %1498 = vmatprep.mubr.f32.mxu0 0.0
        %1499 = vmatmul.mubr.f32.gmra.mxu0 %v1361
        %v1500 = vpop.f32.mrf.mxu0
        %v1501 = vadd.f32 0.0, %v1500
        %v1502 = vpop.f32.mrf.mxu0
        %1503 = vmatprep.mubr.f32.mxu0 0.0
        %1504 = vmatmul.mubr.f32.gmra.mxu0 %v1364
        %v1505 = vpop.f32.mrf.mxu0
        %v1506 = vadd.f32 0.0, %v1505
        %v1507 = vpop.f32.mrf.mxu0
        %1508 = vmatprep.mubr.f32.mxu0 0.0
        %1509 = vmatmul.mubr.f32.gmra.mxu0 %v1367
        %v1510 = vpop.f32.mrf.mxu0
        %v1511 = vadd.f32 0.0, %v1510
        %v1512 = vpop.f32.mrf.mxu0
        %1513 = vdwg.mxu0
        %v1514 = vmul.f32 %v1269, 1.442695
        %v1515 = vpow.pop %v1514
        %v1516 = vmul.f32 %v1270, 1.442695
        %v1517 = vpow.pop %v1516
        %v1518 = vmul.f32 %v1271, 1.442695
        %v1519 = vpow.pop %v1518
        %v1520 = vmul.f32 %v1272, 1.442695
        %v1521 = vpow.pop %v1520
        %v1522 = vmul.f32 %v1273, 1.442695
        %v1523 = vpow.pop %v1522
        %v1524 = vmul.f32 %v1274, 1.442695
        %v1525 = vpow.pop %v1524
        %v1526 = vmul.f32 %v1275, 1.442695
        %v1527 = vpow.pop %v1526
        %v1528 = vmul.f32 %v1276, 1.442695
        %v1529 = vpow.pop %v1528
        %v1530 = vmul.f32 %v1277, 1.442695
        %v1531 = vpow.pop %v1530
        %v1532 = vmul.f32 %v1278, 1.442695
        %v1533 = vpow.pop %v1532
        %v1534 = vmul.f32 %v1279, 1.442695
        %v1535 = vpow.pop %v1534
        %v1536 = vmul.f32 %v1280, 1.442695
        %v1537 = vpow.pop %v1536
        %v1538 = vmul.f32 %v1281, 1.442695
        %v1539 = vpow.pop %v1538
        %v1540 = vmul.f32 %v1282, 1.442695
        %v1541 = vpow.pop %v1540
        %v1542 = vmul.f32 %v1283, 1.442695
        %v1543 = vpow.pop %v1542
        %v1544 = vmul.f32 %v1284, 1.442695
        %v1545 = vpow.pop %v1544
        %1547 = vset.pattern.permute.xlu0 0
        %1548 = vperm.xlu0 %1547, %v1515
        %v1549 = vpop.permute.xlu0 %1548
        %1552 = vset.pattern.permute.xlu0 0
        %1553 = vperm.xlu0 %1552, %v1517
        %v1554 = vpop.permute.xlu0 %1553
        %1557 = vset.pattern.permute.xlu0 0
        %1558 = vperm.xlu0 %1557, %v1519
        %v1559 = vpop.permute.xlu0 %1558
        %1562 = vset.pattern.permute.xlu0 0
        %1563 = vperm.xlu0 %1562, %v1521
        %v1564 = vpop.permute.xlu0 %1563
        %1567 = vset.pattern.permute.xlu0 0
        %1568 = vperm.xlu0 %1567, %v1523
        %v1569 = vpop.permute.xlu0 %1568
        %1572 = vset.pattern.permute.xlu0 0
        %1573 = vperm.xlu0 %1572, %v1525
        %v1574 = vpop.permute.xlu0 %1573
        %1577 = vset.pattern.permute.xlu0 0
        %1578 = vperm.xlu0 %1577, %v1527
        %v1579 = vpop.permute.xlu0 %1578
        %1582 = vset.pattern.permute.xlu0 0
        %1583 = vperm.xlu0 %1582, %v1529
        %v1584 = vpop.permute.xlu0 %1583
        %1587 = vset.pattern.permute.xlu0 0
        %1588 = vperm.xlu0 %1587, %v1531
        %v1589 = vpop.permute.xlu0 %1588
        %1592 = vset.pattern.permute.xlu0 0
        %1593 = vperm.xlu0 %1592, %v1533
        %v1594 = vpop.permute.xlu0 %1593
        %1597 = vset.pattern.permute.xlu0 0
        %1598 = vperm.xlu0 %1597, %v1535
        %v1599 = vpop.permute.xlu0 %1598
        %1602 = vset.pattern.permute.xlu0 0
        %1603 = vperm.xlu0 %1602, %v1537
        %v1604 = vpop.permute.xlu0 %1603
        %1607 = vset.pattern.permute.xlu0 0
        %1608 = vperm.xlu0 %1607, %v1539
        %v1609 = vpop.permute.xlu0 %1608
        %1612 = vset.pattern.permute.xlu0 0
        %1613 = vperm.xlu0 %1612, %v1541
        %v1614 = vpop.permute.xlu0 %1613
        %1617 = vset.pattern.permute.xlu0 0
        %1618 = vperm.xlu0 %1617, %v1543
        %v1619 = vpop.permute.xlu0 %1618
        %1622 = vset.pattern.permute.xlu0 0
        %1623 = vperm.xlu0 %1622, %v1545
        %v1624 = vpop.permute.xlu0 %1623
        %v1626 = vmul.f32 %v1436, %v1549
        %v1627 = vmul.f32 %v1441, %v1554
        %v1628 = vmul.f32 %v1446, %v1559
        %v1629 = vmul.f32 %v1451, %v1564
        %v1630 = vmul.f32 %v1456, %v1569
        %v1631 = vmul.f32 %v1461, %v1574
        %v1632 = vmul.f32 %v1466, %v1579
        %v1633 = vmul.f32 %v1471, %v1584
        %v1634 = vmul.f32 %v1476, %v1589
        %v1635 = vmul.f32 %v1481, %v1594
        %v1636 = vmul.f32 %v1486, %v1599
        %v1637 = vmul.f32 %v1491, %v1604
        %v1638 = vmul.f32 %v1496, %v1609
        %v1639 = vmul.f32 %v1501, %v1614
        %v1640 = vmul.f32 %v1506, %v1619
        %v1641 = vmul.f32 %v1511, %v1624
        %1642 = vmatprep.subr.bf16.mxu0 0
        %1643 = vmatpush1.bf16.msra.mxu0 %v1316
        %1644 = vmatprep.subr.bf16.mxu0 0
        %1645 = vmatpush1.bf16.msra.mxu0 %v1315
        %1646 = vmatprep.subr.bf16.mxu0 0
        %1647 = vmatpush1.bf16.msra.mxu0 %v1314
        %1648 = vmatprep.subr.bf16.mxu0 0
        %1649 = vmatpush1.bf16.msra.mxu0 %v1313
        %1650 = vmatprep.subr.bf16.mxu0 0
        %1651 = vmatpush1.bf16.msra.mxu0 %v1312
        %1652 = vmatprep.subr.bf16.mxu0 0
        %1653 = vmatpush1.bf16.msra.mxu0 %v1311
        %1654 = vmatprep.subr.bf16.mxu0 0
        %1655 = vmatpush1.bf16.msra.mxu0 %v1310
        %1656 = vmatprep.subr.bf16.mxu0 0
        %1657 = vmatpush1.bf16.msra.mxu0 %v1309
        %1658 = vmatprep.subr.bf16.mxu0 0
        %1659 = vmatpush2.bf16.msra.mxu0 0
        %1660 = vmatprep.subr.bf16.mxu0 0
        %1661 = vmatpush2.bf16.msra.mxu0 0
        %1662 = vmatprep.subr.bf16.mxu0 0
        %1663 = vmatpush2.bf16.msra.mxu0 0
        %1664 = vmatprep.subr.bf16.mxu0 0
        %1665 = vmatpush2.bf16.msra.mxu0 0
        %1666 = vmatprep.subr.bf16.mxu0 0
        %1667 = vmatpush2.bf16.msra.mxu0 0
        %1668 = vmatprep.subr.bf16.mxu0 0
        %1669 = vmatpush2.bf16.msra.mxu0 0
        %1670 = vmatprep.subr.bf16.mxu0 0
        %1671 = vmatpush2.bf16.msra.mxu0 0
        %1672 = vmatprep.subr.bf16.mxu0 0
        %1673 = vmatpush2.bf16.msra.mxu0 0
        %1674 = vmatprep.mubr.bf16.mxu0 0
        %1675 = vmatmul.mubr.bf16.gmra.mxu0 %v1301
        %v1676 = vpop.f32.mrf.mxu0
        %v1677 = vadd.f32 %v1626, %v1676
        %v1678 = vpop.f32.mrf.mxu0
        %v1679 = vpop.f32.mrf.mxu0
        %v1680 = vadd.f32 %v1627, %v1679
        %v1681 = vpop.f32.mrf.mxu0
        %1682 = vmatprep.mubr.bf16.mxu0 0
        %1683 = vmatmul.mubr.bf16.gmra.mxu0 %v1302
        %v1684 = vpop.f32.mrf.mxu0
        %v1685 = vadd.f32 %v1628, %v1684
        %v1686 = vpop.f32.mrf.mxu0
        %v1687 = vpop.f32.mrf.mxu0
        %v1688 = vadd.f32 %v1629, %v1687
        %v1689 = vpop.f32.mrf.mxu0
        %1690 = vmatprep.mubr.bf16.mxu0 0
        %1691 = vmatmul.mubr.bf16.gmra.mxu0 %v1303
        %v1692 = vpop.f32.mrf.mxu0
        %v1693 = vadd.f32 %v1630, %v1692
        %v1694 = vpop.f32.mrf.mxu0
        %v1695 = vpop.f32.mrf.mxu0
        %v1696 = vadd.f32 %v1631, %v1695
        %v1697 = vpop.f32.mrf.mxu0
        %1698 = vmatprep.mubr.bf16.mxu0 0
        %1699 = vmatmul.mubr.bf16.gmra.mxu0 %v1304
        %v1700 = vpop.f32.mrf.mxu0
        %v1701 = vadd.f32 %v1632, %v1700
        %v1702 = vpop.f32.mrf.mxu0
        %v1703 = vpop.f32.mrf.mxu0
        %v1704 = vadd.f32 %v1633, %v1703
        %v1705 = vpop.f32.mrf.mxu0
        %1706 = vmatprep.mubr.bf16.mxu0 0
        %1707 = vmatmul.mubr.bf16.gmra.mxu0 %v1305
        %v1708 = vpop.f32.mrf.mxu0
        %v1709 = vadd.f32 %v1634, %v1708
        %v1710 = vpop.f32.mrf.mxu0
        %v1711 = vpop.f32.mrf.mxu0
        %v1712 = vadd.f32 %v1635, %v1711
        %v1713 = vpop.f32.mrf.mxu0
        %1714 = vmatprep.mubr.bf16.mxu0 0
        %1715 = vmatmul.mubr.bf16.gmra.mxu0 %v1306
        %v1716 = vpop.f32.mrf.mxu0
        %v1717 = vadd.f32 %v1636, %v1716
        %v1718 = vpop.f32.mrf.mxu0
        %v1719 = vpop.f32.mrf.mxu0
        %v1720 = vadd.f32 %v1637, %v1719
        %v1721 = vpop.f32.mrf.mxu0
        %1722 = vmatprep.mubr.bf16.mxu0 0
        %1723 = vmatmul.mubr.bf16.gmra.mxu0 %v1307
        %v1724 = vpop.f32.mrf.mxu0
        %v1725 = vadd.f32 %v1638, %v1724
        %v1726 = vpop.f32.mrf.mxu0
        %v1727 = vpop.f32.mrf.mxu0
        %v1728 = vadd.f32 %v1639, %v1727
        %v1729 = vpop.f32.mrf.mxu0
        %1730 = vmatprep.mubr.bf16.mxu0 0
        %1731 = vmatmul.mubr.bf16.gmra.mxu0 %v1308
        %v1732 = vpop.f32.mrf.mxu0
        %v1733 = vadd.f32 %v1640, %v1732
        %v1734 = vpop.f32.mrf.mxu0
        %v1735 = vpop.f32.mrf.mxu0
        %v1736 = vadd.f32 %v1641, %v1735
        %v1737 = vpop.f32.mrf.mxu0
        %1738 = vdwg.mxu0
        %s1739 = sld [smem:[#allocation6]]
        %v1740 = vstv %s1739
        %v1741 = vmul.f32 %v1740, %v521
        %v1742 = vmul.f32 %v1740, %v522
        %v1743 = vmul.f32 %v1740, %v523
        %v1744 = vmul.f32 %v1740, %v524
        %v1745 = vmul.f32 %v1740, %v525
        %v1746 = vmul.f32 %v1740, %v526
        %v1747 = vmul.f32 %v1740, %v527
        %v1748 = vmul.f32 %v1740, %v528
        %v1749 = vmul.f32 %v1740, %v529
        %v1750 = vmul.f32 %v1740, %v530
        %v1751 = vmul.f32 %v1740, %v531
        %v1752 = vmul.f32 %v1740, %v532
        %v1753 = vmul.f32 %v1740, %v533
        %v1754 = vmul.f32 %v1740, %v534
        %v1755 = vmul.f32 %v1740, %v535
        %v1756 = vmul.f32 %v1740, %v536
        %v1757 = vadd.f32 %v1677, %v1741
        %v1758 = vadd.f32 %v1680, %v1742
        %v1759 = vadd.f32 %v1685, %v1743
        %v1760 = vadd.f32 %v1688, %v1744
        %v1761 = vadd.f32 %v1693, %v1745
        %v1762 = vadd.f32 %v1696, %v1746
        %v1763 = vadd.f32 %v1701, %v1747
        %v1764 = vadd.f32 %v1704, %v1748
        %v1765 = vadd.f32 %v1709, %v1749
        %v1766 = vadd.f32 %v1712, %v1750
        %v1767 = vadd.f32 %v1717, %v1751
        %v1768 = vadd.f32 %v1720, %v1752
        %v1769 = vadd.f32 %v1725, %v1753
        %v1770 = vadd.f32 %v1728, %v1754
        %v1771 = vadd.f32 %v1733, %v1755
        %v1772 = vadd.f32 %v1736, %v1756
        %v1773 = vlaneseq
        %v1774 = vshrl.u32 %v1773, 7
        %v1775 = vsub.s32 7, %v1774
        %v1776 = vrot.slane %v1284, %v1775
        %v1777 = vsub.f32 %v1776, %v1269
        %v1778 = vsub.f32 %v1776, %v1270
        %v1779 = vsub.f32 %v1776, %v1271
        %v1780 = vsub.f32 %v1776, %v1272
        %v1781 = vsub.f32 %v1776, %v1273
        %v1782 = vsub.f32 %v1776, %v1274
        %v1783 = vsub.f32 %v1776, %v1275
        %v1784 = vsub.f32 %v1776, %v1276
        %v1785 = vsub.f32 %v1776, %v1277
        %v1786 = vsub.f32 %v1776, %v1278
        %v1787 = vsub.f32 %v1776, %v1279
        %v1788 = vsub.f32 %v1776, %v1280
        %v1789 = vsub.f32 %v1776, %v1281
        %v1790 = vsub.f32 %v1776, %v1282
        %v1791 = vsub.f32 %v1776, %v1283
        %v1792 = vsub.f32 %v1776, %v1284
        %v1793 = vmul.f32 %v1777, 1.442695
        %v1794 = vpow.pop %v1793
        %v1795 = vmul.f32 %v1778, 1.442695
        %v1796 = vpow.pop %v1795
        %v1797 = vmul.f32 %v1779, 1.442695
        %v1798 = vpow.pop %v1797
        %v1799 = vmul.f32 %v1780, 1.442695
        %v1800 = vpow.pop %v1799
        %v1801 = vmul.f32 %v1781, 1.442695
        %v1802 = vpow.pop %v1801
        %v1803 = vmul.f32 %v1782, 1.442695
        %v1804 = vpow.pop %v1803
        %v1805 = vmul.f32 %v1783, 1.442695
        %v1806 = vpow.pop %v1805
        %v1807 = vmul.f32 %v1784, 1.442695
        %v1808 = vpow.pop %v1807
        %v1809 = vmul.f32 %v1785, 1.442695
        %v1810 = vpow.pop %v1809
        %v1811 = vmul.f32 %v1786, 1.442695
        %v1812 = vpow.pop %v1811
        %v1813 = vmul.f32 %v1787, 1.442695
        %v1814 = vpow.pop %v1813
        %v1815 = vmul.f32 %v1788, 1.442695
        %v1816 = vpow.pop %v1815
        %v1817 = vmul.f32 %v1789, 1.442695
        %v1818 = vpow.pop %v1817
        %v1819 = vmul.f32 %v1790, 1.442695
        %v1820 = vpow.pop %v1819
        %v1821 = vmul.f32 %v1791, 1.442695
        %v1822 = vpow.pop %v1821
        %v1823 = vmul.f32 %v1792, 1.442695
        %v1824 = vpow.pop %v1823
        %1826 = vset.pattern.permute.xlu0 0
        %1827 = vperm.xlu0 %1826, %v1794
        %v1828 = vpop.permute.xlu0 %1827
        %1831 = vset.pattern.permute.xlu0 0
        %1832 = vperm.xlu0 %1831, %v1796
        %v1833 = vpop.permute.xlu0 %1832
        %1836 = vset.pattern.permute.xlu0 0
        %1837 = vperm.xlu0 %1836, %v1798
        %v1838 = vpop.permute.xlu0 %1837
        %1841 = vset.pattern.permute.xlu0 0
        %1842 = vperm.xlu0 %1841, %v1800
        %v1843 = vpop.permute.xlu0 %1842
        %1846 = vset.pattern.permute.xlu0 0
        %1847 = vperm.xlu0 %1846, %v1802
        %v1848 = vpop.permute.xlu0 %1847
        %1851 = vset.pattern.permute.xlu0 0
        %1852 = vperm.xlu0 %1851, %v1804
        %v1853 = vpop.permute.xlu0 %1852
        %1856 = vset.pattern.permute.xlu0 0
        %1857 = vperm.xlu0 %1856, %v1806
        %v1858 = vpop.permute.xlu0 %1857
        %1861 = vset.pattern.permute.xlu0 0
        %1862 = vperm.xlu0 %1861, %v1808
        %v1863 = vpop.permute.xlu0 %1862
        %1866 = vset.pattern.permute.xlu0 0
        %1867 = vperm.xlu0 %1866, %v1810
        %v1868 = vpop.permute.xlu0 %1867
        %1871 = vset.pattern.permute.xlu0 0
        %1872 = vperm.xlu0 %1871, %v1812
        %v1873 = vpop.permute.xlu0 %1872
        %1876 = vset.pattern.permute.xlu0 0
        %1877 = vperm.xlu0 %1876, %v1814
        %v1878 = vpop.permute.xlu0 %1877
        %1881 = vset.pattern.permute.xlu0 0
        %1882 = vperm.xlu0 %1881, %v1816
        %v1883 = vpop.permute.xlu0 %1882
        %1886 = vset.pattern.permute.xlu0 0
        %1887 = vperm.xlu0 %1886, %v1818
        %v1888 = vpop.permute.xlu0 %1887
        %1891 = vset.pattern.permute.xlu0 0
        %1892 = vperm.xlu0 %1891, %v1820
        %v1893 = vpop.permute.xlu0 %1892
        %1896 = vset.pattern.permute.xlu0 0
        %1897 = vperm.xlu0 %1896, %v1822
        %v1898 = vpop.permute.xlu0 %1897
        %1901 = vset.pattern.permute.xlu0 0
        %1902 = vperm.xlu0 %1901, %v1824
        %v1903 = vpop.permute.xlu0 %1902
        %v1905 = vmul.f32 %v1828, %v960
        %v1906 = vmul.f32 %v1833, %v961
        %v1907 = vmul.f32 %v1838, %v962
        %v1908 = vmul.f32 %v1843, %v963
        %v1909 = vmul.f32 %v1848, %v964
        %v1910 = vmul.f32 %v1853, %v965
        %v1911 = vmul.f32 %v1858, %v966
        %v1912 = vmul.f32 %v1863, %v967
        %v1913 = vmul.f32 %v1868, %v968
        %v1914 = vmul.f32 %v1873, %v969
        %v1915 = vmul.f32 %v1878, %v970
        %v1916 = vmul.f32 %v1883, %v971
        %v1917 = vmul.f32 %v1888, %v972
        %v1918 = vmul.f32 %v1893, %v973
        %v1919 = vmul.f32 %v1898, %v974
        %v1920 = vmul.f32 %v1903, %v975
        %v1921 = vpack.c.bf16 %v1906, %v1905
        %v1922 = vpack.c.bf16 %v1908, %v1907
        %v1923 = vpack.c.bf16 %v1910, %v1909
        %v1924 = vpack.c.bf16 %v1912, %v1911
        %v1925 = vpack.c.bf16 %v1914, %v1913
        %v1926 = vpack.c.bf16 %v1916, %v1915
        %v1927 = vpack.c.bf16 %v1918, %v1917
        %v1928 = vpack.c.bf16 %v1920, %v1919
        %1929 = vxpose.xlu0.c.b16.start [1/8] %v708, 128
        %1930 = vxpose.xlu0.c.b16.cont [2/8] %v709, 128
        %1931 = vxpose.xlu0.c.b16.cont [3/8] %v710, 128
        %1932 = vxpose.xlu0.c.b16.cont [4/8] %v711, 128
        %1933 = vxpose.xlu0.c.b16.cont [5/8] %v712, 128
        %1934 = vxpose.xlu0.c.b16.cont [6/8] %v713, 128
        %1935 = vxpose.xlu0.c.b16.cont [7/8] %v714, 128
        %1936 = vxpose.xlu0.c.b16.end [8/8] %v715, 128
        %v1937 = vpop.trf.xlu0
        %v1938 = vpop.trf.xlu0
        %v1939 = vpop.trf.xlu0
        %v1940 = vpop.trf.xlu0
        %v1941 = vpop.trf.xlu0
        %v1942 = vpop.trf.xlu0
        %v1943 = vpop.trf.xlu0
        %v1944 = vpop.trf.xlu0
        %1945 = vmatprep.subr.bf16.mxu0 0
        %1946 = vmatpush1.bf16.msra.mxu0 %v1928
        %1947 = vmatprep.subr.bf16.mxu0 0
        %1948 = vmatpush1.bf16.msra.mxu0 %v1927
        %1949 = vmatprep.subr.bf16.mxu0 0
        %1950 = vmatpush1.bf16.msra.mxu0 %v1926
        %1951 = vmatprep.subr.bf16.mxu0 0
        %1952 = vmatpush1.bf16.msra.mxu0 %v1925
        %1953 = vmatprep.subr.bf16.mxu0 0
        %1954 = vmatpush1.bf16.msra.mxu0 %v1924
        %1955 = vmatprep.subr.bf16.mxu0 0
        %1956 = vmatpush1.bf16.msra.mxu0 %v1923
        %1957 = vmatprep.subr.bf16.mxu0 0
        %1958 = vmatpush1.bf16.msra.mxu0 %v1922
        %1959 = vmatprep.subr.bf16.mxu0 0
        %1960 = vmatpush1.bf16.msra.mxu0 %v1921
        %1961 = vmatprep.subr.bf16.mxu0 0
        %1962 = vmatpush2.bf16.msra.mxu0 0
        %1963 = vmatprep.subr.bf16.mxu0 0
        %1964 = vmatpush2.bf16.msra.mxu0 0
        %1965 = vmatprep.subr.bf16.mxu0 0
        %1966 = vmatpush2.bf16.msra.mxu0 0
        %1967 = vmatprep.subr.bf16.mxu0 0
        %1968 = vmatpush2.bf16.msra.mxu0 0
        %1969 = vmatprep.subr.bf16.mxu0 0
        %1970 = vmatpush2.bf16.msra.mxu0 0
        %1971 = vmatprep.subr.bf16.mxu0 0
        %1972 = vmatpush2.bf16.msra.mxu0 0
        %1973 = vmatprep.subr.bf16.mxu0 0
        %1974 = vmatpush2.bf16.msra.mxu0 0
        %1975 = vmatprep.subr.bf16.mxu0 0
        %1976 = vmatpush2.bf16.msra.mxu0 0
        %1977 = vmatprep.mubr.bf16.mxu0 0
        %1978 = vmatmul.mubr.bf16.gmra.mxu0 %v1937
        %v1979 = vpop.f32.mrf.mxu0
        %v1980 = vadd.f32 0.0, %v1979
        %v1981 = vpop.f32.mrf.mxu0
        %v1982 = vpop.f32.mrf.mxu0
        %v1983 = vadd.f32 0.0, %v1982
        %v1984 = vpop.f32.mrf.mxu0
        %1985 = vmatprep.mubr.bf16.mxu0 0
        %1986 = vmatmul.mubr.bf16.gmra.mxu0 %v1938
        %v1987 = vpop.f32.mrf.mxu0
        %v1988 = vadd.f32 0.0, %v1987
        %v1989 = vpop.f32.mrf.mxu0
        %v1990 = vpop.f32.mrf.mxu0
        %v1991 = vadd.f32 0.0, %v1990
        %v1992 = vpop.f32.mrf.mxu0
        %1993 = vdwg.mxu0
        %v1994 = vrot.slane %v1545, 7
        %s1995 = vtos %v1994
        %v1996 = vstv %s1995
        %v1998 = vmul.f32 %v1996, %v1317
        %v1999 = vmul.f32 %v1996, %v1318
        %v2000 = vmul.f32 %v1996, %v1319
        %v2001 = vmul.f32 %v1996, %v1320
        %v2002 = vadd.f32 %v1998, %v1980
        %v2003 = vadd.f32 %v1999, %v1983
        %v2004 = vadd.f32 %v2000, %v1988
        %v2005 = vadd.f32 %v2001, %v1991
        %s2006 = sld [smem:[#allocation4 + $0x1]]
        %v2007 = vstv %s2006
        %v2008 = vmul.f32 %v2007, %v537
        %v2009 = vmul.f32 %v2007, %v538
        %v2010 = vmul.f32 %v2007, %v539
        %v2011 = vmul.f32 %v2007, %v540
        %v2012 = vmul.f32 %v2007, %v541
        %v2013 = vmul.f32 %v2007, %v542
        %v2014 = vmul.f32 %v2007, %v543
        %v2015 = vmul.f32 %v2007, %v544
        %v2016 = vmul.f32 %v2007, %v545
        %v2017 = vmul.f32 %v2007, %v546
        %v2018 = vmul.f32 %v2007, %v547
        %v2019 = vmul.f32 %v2007, %v548
        %v2020 = vmul.f32 %v2007, %v549
        %v2021 = vmul.f32 %v2007, %v550
        %v2022 = vmul.f32 %v2007, %v551
        %v2023 = vmul.f32 %v2007, %v552
        %2024 = vset.pattern.permute.xlu0 1
        %2025 = vperm.xlu0 %2024, %v537
        %v2026 = vpop.permute.xlu0 %2025
        %2028 = vset.pattern.permute.xlu0 1
        %2029 = vperm.xlu0 %2028, %v538
        %v2030 = vpop.permute.xlu0 %2029
        %2032 = vset.pattern.permute.xlu0 1
        %2033 = vperm.xlu0 %2032, %v539
        %v2034 = vpop.permute.xlu0 %2033
        %2036 = vset.pattern.permute.xlu0 1
        %2037 = vperm.xlu0 %2036, %v540
        %v2038 = vpop.permute.xlu0 %2037
        %2040 = vset.pattern.permute.xlu0 1
        %2041 = vperm.xlu0 %2040, %v541
        %v2042 = vpop.permute.xlu0 %2041
        %2044 = vset.pattern.permute.xlu0 1
        %2045 = vperm.xlu0 %2044, %v542
        %v2046 = vpop.permute.xlu0 %2045
        %2048 = vset.pattern.permute.xlu0 1
        %2049 = vperm.xlu0 %2048, %v543
        %v2050 = vpop.permute.xlu0 %2049
        %2052 = vset.pattern.permute.xlu0 1
        %2053 = vperm.xlu0 %2052, %v544
        %v2054 = vpop.permute.xlu0 %2053
        %2056 = vset.pattern.permute.xlu0 1
        %2057 = vperm.xlu0 %2056, %v545
        %v2058 = vpop.permute.xlu0 %2057
        %2060 = vset.pattern.permute.xlu0 1
        %2061 = vperm.xlu0 %2060, %v546
        %v2062 = vpop.permute.xlu0 %2061
        %2064 = vset.pattern.permute.xlu0 1
        %2065 = vperm.xlu0 %2064, %v547
        %v2066 = vpop.permute.xlu0 %2065
        %2068 = vset.pattern.permute.xlu0 1
        %2069 = vperm.xlu0 %2068, %v548
        %v2070 = vpop.permute.xlu0 %2069
        %2072 = vset.pattern.permute.xlu0 1
        %2073 = vperm.xlu0 %2072, %v549
        %v2074 = vpop.permute.xlu0 %2073
        %2076 = vset.pattern.permute.xlu0 1
        %2077 = vperm.xlu0 %2076, %v550
        %v2078 = vpop.permute.xlu0 %2077
        %2080 = vset.pattern.permute.xlu0 1
        %2081 = vperm.xlu0 %2080, %v551
        %v2082 = vpop.permute.xlu0 %2081
        %2084 = vset.pattern.permute.xlu0 1
        %2085 = vperm.xlu0 %2084, %v552
        %v2086 = vpop.permute.xlu0 %2085
        %v2088 = vmul.f32 %v521, %v2026
        %v2089 = vmul.f32 %v522, %v2030
        %v2090 = vmul.f32 %v523, %v2034
        %v2091 = vmul.f32 %v524, %v2038
        %v2092 = vmul.f32 %v525, %v2042
        %v2093 = vmul.f32 %v526, %v2046
        %v2094 = vmul.f32 %v527, %v2050
        %v2095 = vmul.f32 %v528, %v2054
        %v2096 = vmul.f32 %v529, %v2058
        %v2097 = vmul.f32 %v530, %v2062
        %v2098 = vmul.f32 %v531, %v2066
        %v2099 = vmul.f32 %v532, %v2070
        %v2100 = vmul.f32 %v533, %v2074
        %v2101 = vmul.f32 %v534, %v2078
        %v2102 = vmul.f32 %v535, %v2082
        %v2103 = vmul.f32 %v536, %v2086
        %2105 = vset.pattern.permute.xlu0 1
        %2106 = vperm.xlu0 %2105, %v2008
        %v2107 = vpop.permute.xlu0 %2106
        %2110 = vset.pattern.permute.xlu0 1
        %2111 = vperm.xlu0 %2110, %v2009
        %v2112 = vpop.permute.xlu0 %2111
        %2115 = vset.pattern.permute.xlu0 1
        %2116 = vperm.xlu0 %2115, %v2010
        %v2117 = vpop.permute.xlu0 %2116
        %2120 = vset.pattern.permute.xlu0 1
        %2121 = vperm.xlu0 %2120, %v2011
        %v2122 = vpop.permute.xlu0 %2121
        %2125 = vset.pattern.permute.xlu0 1
        %2126 = vperm.xlu0 %2125, %v2012
        %v2127 = vpop.permute.xlu0 %2126
        %2130 = vset.pattern.permute.xlu0 1
        %2131 = vperm.xlu0 %2130, %v2013
        %v2132 = vpop.permute.xlu0 %2131
        %2135 = vset.pattern.permute.xlu0 1
        %2136 = vperm.xlu0 %2135, %v2014
        %v2137 = vpop.permute.xlu0 %2136
        %2140 = vset.pattern.permute.xlu0 1
        %2141 = vperm.xlu0 %2140, %v2015
        %v2142 = vpop.permute.xlu0 %2141
        %2145 = vset.pattern.permute.xlu0 1
        %2146 = vperm.xlu0 %2145, %v2016
        %v2147 = vpop.permute.xlu0 %2146
        %2150 = vset.pattern.permute.xlu0 1
        %2151 = vperm.xlu0 %2150, %v2017
        %v2152 = vpop.permute.xlu0 %2151
        %2155 = vset.pattern.permute.xlu0 1
        %2156 = vperm.xlu0 %2155, %v2018
        %v2157 = vpop.permute.xlu0 %2156
        %2160 = vset.pattern.permute.xlu0 1
        %2161 = vperm.xlu0 %2160, %v2019
        %v2162 = vpop.permute.xlu0 %2161
        %2165 = vset.pattern.permute.xlu0 1
        %2166 = vperm.xlu0 %2165, %v2020
        %v2167 = vpop.permute.xlu0 %2166
        %2170 = vset.pattern.permute.xlu0 1
        %2171 = vperm.xlu0 %2170, %v2021
        %v2172 = vpop.permute.xlu0 %2171
        %2175 = vset.pattern.permute.xlu0 1
        %2176 = vperm.xlu0 %2175, %v2022
        %v2177 = vpop.permute.xlu0 %2176
        %2180 = vset.pattern.permute.xlu0 1
        %2181 = vperm.xlu0 %2180, %v2023
        %v2182 = vpop.permute.xlu0 %2181
        %v2184 = vmul.f32 %v2107, %v684
        %v2185 = vmul.f32 %v2112, %v685
        %v2186 = vmul.f32 %v2117, %v686
        %v2187 = vmul.f32 %v2122, %v687
        %v2188 = vmul.f32 %v2127, %v688
        %v2189 = vmul.f32 %v2132, %v689
        %v2190 = vmul.f32 %v2137, %v690
        %v2191 = vmul.f32 %v2142, %v691
        %v2192 = vmul.f32 %v2147, %v692
        %v2193 = vmul.f32 %v2152, %v693
        %v2194 = vmul.f32 %v2157, %v694
        %v2195 = vmul.f32 %v2162, %v695
        %v2196 = vmul.f32 %v2167, %v696
        %v2197 = vmul.f32 %v2172, %v697
        %v2198 = vmul.f32 %v2177, %v698
        %v2199 = vmul.f32 %v2182, %v699
        %2200 = vmatprep.subr.mxu0 0.0
        %2201 = vmatpush1.msra.mxu0 %v2199
        %2202 = vmatprep.subr.mxu0 0.0
        %2203 = vmatpush1.msra.mxu0 %v2198
        %2204 = vmatprep.subr.mxu0 0.0
        %2205 = vmatpush1.msra.mxu0 %v2197
        %2206 = vmatprep.subr.mxu0 0.0
        %2207 = vmatpush1.msra.mxu0 %v2196
        %2208 = vmatprep.subr.mxu0 0.0
        %2209 = vmatpush1.msra.mxu0 %v2195
        %2210 = vmatprep.subr.mxu0 0.0
        %2211 = vmatpush1.msra.mxu0 %v2194
        %2212 = vmatprep.subr.mxu0 0.0
        %2213 = vmatpush1.msra.mxu0 %v2193
        %2214 = vmatprep.subr.mxu0 0.0
        %2215 = vmatpush1.msra.mxu0 %v2192
        %2216 = vmatprep.subr.mxu0 0.0
        %2217 = vmatpush1.msra.mxu0 %v2191
        %2218 = vmatprep.subr.mxu0 0.0
        %2219 = vmatpush1.msra.mxu0 %v2190
        %2220 = vmatprep.subr.mxu0 0.0
        %2221 = vmatpush1.msra.mxu0 %v2189
        %2222 = vmatprep.subr.mxu0 0.0
        %2223 = vmatpush1.msra.mxu0 %v2188
        %2224 = vmatprep.subr.mxu0 0.0
        %2225 = vmatpush1.msra.mxu0 %v2187
        %2226 = vmatprep.subr.mxu0 0.0
        %2227 = vmatpush1.msra.mxu0 %v2186
        %2228 = vmatprep.subr.mxu0 0.0
        %2229 = vmatpush1.msra.mxu0 %v2185
        %2230 = vmatprep.subr.mxu0 0.0
        %2231 = vmatpush1.msra.mxu0 %v2184
        %2232 = vmatprep.subr.mxu0 0.0
        %2233 = vmatpush2.msra.mxu0 0.0
        %2234 = vmatprep.subr.mxu0 0.0
        %2235 = vmatpush2.msra.mxu0 0.0
        %2236 = vmatprep.subr.mxu0 0.0
        %2237 = vmatpush2.msra.mxu0 0.0
        %2238 = vmatprep.subr.mxu0 0.0
        %2239 = vmatpush2.msra.mxu0 0.0
        %2240 = vmatprep.subr.mxu0 0.0
        %2241 = vmatpush2.msra.mxu0 0.0
        %2242 = vmatprep.subr.mxu0 0.0
        %2243 = vmatpush2.msra.mxu0 0.0
        %2244 = vmatprep.subr.mxu0 0.0
        %2245 = vmatpush2.msra.mxu0 0.0
        %2246 = vmatprep.subr.mxu0 0.0
        %2247 = vmatpush2.msra.mxu0 0.0
        %2248 = vmatprep.subr.mxu0 0.0
        %2249 = vmatpush2.msra.mxu0 0.0
        %2250 = vmatprep.subr.mxu0 0.0
        %2251 = vmatpush2.msra.mxu0 0.0
        %2252 = vmatprep.subr.mxu0 0.0
        %2253 = vmatpush2.msra.mxu0 0.0
        %2254 = vmatprep.subr.mxu0 0.0
        %2255 = vmatpush2.msra.mxu0 0.0
        %2256 = vmatprep.subr.mxu0 0.0
        %2257 = vmatpush2.msra.mxu0 0.0
        %2258 = vmatprep.subr.mxu0 0.0
        %2259 = vmatpush2.msra.mxu0 0.0
        %2260 = vmatprep.subr.mxu0 0.0
        %2261 = vmatpush2.msra.mxu0 0.0
        %2262 = vmatprep.subr.mxu0 0.0
        %2263 = vmatpush2.msra.mxu0 0.0
        %2264 = vmatprep.mubr.f32.mxu0 0.0
        %2265 = vmatmul.mubr.f32.gmra.mxu0 %v636
        %v2266 = vpop.f32.mrf.mxu0
        %v2267 = vadd.f32 0.0, %v2266
        %v2268 = vpop.f32.mrf.mxu0
        %2269 = vmatprep.mubr.f32.mxu0 0.0
        %2270 = vmatmul.mubr.f32.gmra.mxu0 %v637
        %v2271 = vpop.f32.mrf.mxu0
        %v2272 = vadd.f32 0.0, %v2271
        %v2273 = vpop.f32.mrf.mxu0
        %2274 = vmatprep.mubr.f32.mxu0 0.0
        %2275 = vmatmul.mubr.f32.gmra.mxu0 %v638
        %v2276 = vpop.f32.mrf.mxu0
        %v2277 = vadd.f32 0.0, %v2276
        %v2278 = vpop.f32.mrf.mxu0
        %2279 = vmatprep.mubr.f32.mxu0 0.0
        %2280 = vmatmul.mubr.f32.gmra.mxu0 %v639
        %v2281 = vpop.f32.mrf.mxu0
        %v2282 = vadd.f32 0.0, %v2281
        %v2283 = vpop.f32.mrf.mxu0
        %2284 = vmatprep.mubr.f32.mxu0 0.0
        %2285 = vmatmul.mubr.f32.gmra.mxu0 %v640
        %v2286 = vpop.f32.mrf.mxu0
        %v2287 = vadd.f32 0.0, %v2286
        %v2288 = vpop.f32.mrf.mxu0
        %2289 = vmatprep.mubr.f32.mxu0 0.0
        %2290 = vmatmul.mubr.f32.gmra.mxu0 %v641
        %v2291 = vpop.f32.mrf.mxu0
        %v2292 = vadd.f32 0.0, %v2291
        %v2293 = vpop.f32.mrf.mxu0
        %2294 = vmatprep.mubr.f32.mxu0 0.0
        %2295 = vmatmul.mubr.f32.gmra.mxu0 %v642
        %v2296 = vpop.f32.mrf.mxu0
        %v2297 = vadd.f32 0.0, %v2296
        %v2298 = vpop.f32.mrf.mxu0
        %2299 = vmatprep.mubr.f32.mxu0 0.0
        %2300 = vmatmul.mubr.f32.gmra.mxu0 %v643
        %v2301 = vpop.f32.mrf.mxu0
        %v2302 = vadd.f32 0.0, %v2301
        %v2303 = vpop.f32.mrf.mxu0
        %2304 = vmatprep.mubr.f32.mxu0 0.0
        %2305 = vmatmul.mubr.f32.gmra.mxu0 %v644
        %v2306 = vpop.f32.mrf.mxu0
        %v2307 = vadd.f32 0.0, %v2306
        %v2308 = vpop.f32.mrf.mxu0
        %2309 = vmatprep.mubr.f32.mxu0 0.0
        %2310 = vmatmul.mubr.f32.gmra.mxu0 %v645
        %v2311 = vpop.f32.mrf.mxu0
        %v2312 = vadd.f32 0.0, %v2311
        %v2313 = vpop.f32.mrf.mxu0
        %2314 = vmatprep.mubr.f32.mxu0 0.0
        %2315 = vmatmul.mubr.f32.gmra.mxu0 %v646
        %v2316 = vpop.f32.mrf.mxu0
        %v2317 = vadd.f32 0.0, %v2316
        %v2318 = vpop.f32.mrf.mxu0
        %2319 = vmatprep.mubr.f32.mxu0 0.0
        %2320 = vmatmul.mubr.f32.gmra.mxu0 %v647
        %v2321 = vpop.f32.mrf.mxu0
        %v2322 = vadd.f32 0.0, %v2321
        %v2323 = vpop.f32.mrf.mxu0
        %2324 = vmatprep.mubr.f32.mxu0 0.0
        %2325 = vmatmul.mubr.f32.gmra.mxu0 %v648
        %v2326 = vpop.f32.mrf.mxu0
        %v2327 = vadd.f32 0.0, %v2326
        %v2328 = vpop.f32.mrf.mxu0
        %2329 = vmatprep.mubr.f32.mxu0 0.0
        %2330 = vmatmul.mubr.f32.gmra.mxu0 %v649
        %v2331 = vpop.f32.mrf.mxu0
        %v2332 = vadd.f32 0.0, %v2331
        %v2333 = vpop.f32.mrf.mxu0
        %2334 = vmatprep.mubr.f32.mxu0 0.0
        %2335 = vmatmul.mubr.f32.gmra.mxu0 %v650
        %v2336 = vpop.f32.mrf.mxu0
        %v2337 = vadd.f32 0.0, %v2336
        %v2338 = vpop.f32.mrf.mxu0
        %2339 = vmatprep.mubr.f32.mxu0 0.0
        %2340 = vmatmul.mubr.f32.gmra.mxu0 %v651
        %v2341 = vpop.f32.mrf.mxu0
        %v2342 = vadd.f32 0.0, %v2341
        %v2343 = vpop.f32.mrf.mxu0
        %2344 = vdwg.mxu0
        %v2345 = vmul.f32 %v2267, 1.442695
        %v2346 = vpow.pop %v2345
        %v2347 = vmul.f32 %v2272, 1.442695
        %v2348 = vpow.pop %v2347
        %v2349 = vmul.f32 %v2277, 1.442695
        %v2350 = vpow.pop %v2349
        %v2351 = vmul.f32 %v2282, 1.442695
        %v2352 = vpow.pop %v2351
        %v2353 = vmul.f32 %v2287, 1.442695
        %v2354 = vpow.pop %v2353
        %v2355 = vmul.f32 %v2292, 1.442695
        %v2356 = vpow.pop %v2355
        %v2357 = vmul.f32 %v2297, 1.442695
        %v2358 = vpow.pop %v2357
        %v2359 = vmul.f32 %v2302, 1.442695
        %v2360 = vpow.pop %v2359
        %v2361 = vmul.f32 %v2307, 1.442695
        %v2362 = vpow.pop %v2361
        %v2363 = vmul.f32 %v2312, 1.442695
        %v2364 = vpow.pop %v2363
        %v2365 = vmul.f32 %v2317, 1.442695
        %v2366 = vpow.pop %v2365
        %v2367 = vmul.f32 %v2322, 1.442695
        %v2368 = vpow.pop %v2367
        %v2369 = vmul.f32 %v2327, 1.442695
        %v2370 = vpow.pop %v2369
        %v2371 = vmul.f32 %v2332, 1.442695
        %v2372 = vpow.pop %v2371
        %v2373 = vmul.f32 %v2337, 1.442695
        %v2374 = vpow.pop %v2373
        %v2375 = vmul.f32 %v2342, 1.442695
        %v2376 = vpow.pop %v2375
        %v2377 = vmul.f32 %v636, %v2346
        %v2378 = vmul.f32 %v637, %v2348
        %v2379 = vmul.f32 %v638, %v2350
        %v2380 = vmul.f32 %v639, %v2352
        %v2381 = vmul.f32 %v640, %v2354
        %v2382 = vmul.f32 %v641, %v2356
        %v2383 = vmul.f32 %v642, %v2358
        %v2384 = vmul.f32 %v643, %v2360
        %v2385 = vmul.f32 %v644, %v2362
        %v2386 = vmul.f32 %v645, %v2364
        %v2387 = vmul.f32 %v646, %v2366
        %v2388 = vmul.f32 %v647, %v2368
        %v2389 = vmul.f32 %v648, %v2370
        %v2390 = vmul.f32 %v649, %v2372
        %v2391 = vmul.f32 %v650, %v2374
        %v2392 = vmul.f32 %v651, %v2376
        %v2393 = vlaneseq
        %v2394 = vshrl.u32 %v2393, 7
        %v2395 = vsub.s32 0, %v2394
        %v2396 = vrot.slane %v2008, %v2395
        %2398 = vrot.lane.b32.xlu0 %v2396, 127
        %v2399 = vpop.permute.xlu0 %2398
        %v2401 = vadd.f32 %v2267, %v2399
        %v2402 = vadd.f32 %v2272, %v2399
        %v2403 = vadd.f32 %v2277, %v2399
        %v2404 = vadd.f32 %v2282, %v2399
        %v2405 = vadd.f32 %v2287, %v2399
        %v2406 = vadd.f32 %v2292, %v2399
        %v2407 = vadd.f32 %v2297, %v2399
        %v2408 = vadd.f32 %v2302, %v2399
        %v2409 = vadd.f32 %v2307, %v2399
        %v2410 = vadd.f32 %v2312, %v2399
        %v2411 = vadd.f32 %v2317, %v2399
        %v2412 = vadd.f32 %v2322, %v2399
        %v2413 = vadd.f32 %v2327, %v2399
        %v2414 = vadd.f32 %v2332, %v2399
        %v2415 = vadd.f32 %v2337, %v2399
        %v2416 = vadd.f32 %v2342, %v2399
        %v2417 = vmul.f32 %v800, %v2377
        %v2418 = vmul.f32 %v803, %v2378
        %v2419 = vmul.f32 %v808, %v2379
        %v2420 = vmul.f32 %v811, %v2380
        %v2421 = vmul.f32 %v816, %v2381
        %v2422 = vmul.f32 %v819, %v2382
        %v2423 = vmul.f32 %v824, %v2383
        %v2424 = vmul.f32 %v827, %v2384
        %v2425 = vmul.f32 %v832, %v2385
        %v2426 = vmul.f32 %v835, %v2386
        %v2427 = vmul.f32 %v840, %v2387
        %v2428 = vmul.f32 %v843, %v2388
        %v2429 = vmul.f32 %v848, %v2389
        %v2430 = vmul.f32 %v851, %v2390
        %v2431 = vmul.f32 %v856, %v2391
        %v2432 = vmul.f32 %v859, %v2392
        %v2433 = vpack.c.bf16 %v2418, %v2417
        %v2434 = vpack.c.bf16 %v2420, %v2419
        %v2435 = vpack.c.bf16 %v2422, %v2421
        %v2436 = vpack.c.bf16 %v2424, %v2423
        %v2437 = vpack.c.bf16 %v2426, %v2425
        %v2438 = vpack.c.bf16 %v2428, %v2427
        %v2439 = vpack.c.bf16 %v2430, %v2429
        %v2440 = vpack.c.bf16 %v2432, %v2431
        %v2441 = vpack.c.bf16 %v2089, %v2088
        %v2442 = vpack.c.bf16 %v2091, %v2090
        %v2443 = vpack.c.bf16 %v2093, %v2092
        %v2444 = vpack.c.bf16 %v2095, %v2094
        %v2445 = vpack.c.bf16 %v2097, %v2096
        %v2446 = vpack.c.bf16 %v2099, %v2098
        %v2447 = vpack.c.bf16 %v2101, %v2100
        %v2448 = vpack.c.bf16 %v2103, %v2102
        %2453 = vrot.lane.b32.xlu0 %v1317, 64
        %v2454 = vpop.permute.xlu0 %2453
        %2455 = vrot.lane.b32.xlu0 %v1318, 64
        %v2456 = vpop.permute.xlu0 %2455
        %2457 = vrot.lane.b32.xlu0 %v1319, 64
        %v2458 = vpop.permute.xlu0 %2457
        %2459 = vrot.lane.b32.xlu0 %v1320, 64
        %v2460 = vpop.permute.xlu0 %2459
        %2465 = vmatprep.subr.mxu0 0.0
        %2466 = vmatpush1.msra.mxu0 0.0
        %2467 = vmatprep.subr.mxu0 0.0
        %2468 = vmatpush1.msra.mxu0 0.0
        %2469 = vmatprep.subr.mxu0 0.0
        %2470 = vmatpush1.msra.mxu0 0.0
        %2471 = vmatprep.subr.mxu0 0.0
        %2472 = vmatpush1.msra.mxu0 0.0
        %2473 = vmatprep.subr.mxu0 0.0
        %2474 = vmatpush1.msra.mxu0 0.0
        %2475 = vmatprep.subr.mxu0 0.0
        %2476 = vmatpush1.msra.mxu0 0.0
        %2477 = vmatprep.subr.mxu0 0.0
        %2478 = vmatpush1.msra.mxu0 0.0
        %2479 = vmatprep.subr.mxu0 0.0
        %2480 = vmatpush1.msra.mxu0 0.0
        %2481 = vmatprep.subr.mxu0 0.0
        %2482 = vmatpush1.msra.mxu0 0.0
        %2483 = vmatprep.subr.mxu0 0.0
        %2484 = vmatpush1.msra.mxu0 0.0
        %2485 = vmatprep.subr.mxu0 0.0
        %2486 = vmatpush1.msra.mxu0 0.0
        %2487 = vmatprep.subr.mxu0 0.0
        %2488 = vmatpush1.msra.mxu0 0.0
        %2489 = vmatprep.subr.mxu0 0.0
        %2490 = vmatpush1.msra.mxu0 %v2460
        %2491 = vmatprep.subr.mxu0 0.0
        %2492 = vmatpush1.msra.mxu0 %v2458
        %2493 = vmatprep.subr.mxu0 0.0
        %2494 = vmatpush1.msra.mxu0 %v2456
        %2495 = vmatprep.subr.mxu0 0.0
        %2496 = vmatpush1.msra.mxu0 %v2454
        %2497 = vmatprep.subr.mxu0 0.0
        %2498 = vmatpush2.msra.mxu0 0.0
        %2499 = vmatprep.subr.mxu0 0.0
        %2500 = vmatpush2.msra.mxu0 0.0
        %2501 = vmatprep.subr.mxu0 0.0
        %2502 = vmatpush2.msra.mxu0 0.0
        %2503 = vmatprep.subr.mxu0 0.0
        %2504 = vmatpush2.msra.mxu0 0.0
        %2505 = vmatprep.subr.mxu0 0.0
        %2506 = vmatpush2.msra.mxu0 0.0
        %2507 = vmatprep.subr.mxu0 0.0
        %2508 = vmatpush2.msra.mxu0 0.0
        %2509 = vmatprep.subr.mxu0 0.0
        %2510 = vmatpush2.msra.mxu0 0.0
        %2511 = vmatprep.subr.mxu0 0.0
        %2512 = vmatpush2.msra.mxu0 0.0
        %2513 = vmatprep.subr.mxu0 0.0
        %2514 = vmatpush2.msra.mxu0 0.0
        %2515 = vmatprep.subr.mxu0 0.0
        %2516 = vmatpush2.msra.mxu0 0.0
        %2517 = vmatprep.subr.mxu0 0.0
        %2518 = vmatpush2.msra.mxu0 0.0
        %2519 = vmatprep.subr.mxu0 0.0
        %2520 = vmatpush2.msra.mxu0 0.0
        %2521 = vmatprep.subr.mxu0 0.0
        %2522 = vmatpush2.msra.mxu0 0.0
        %2523 = vmatprep.subr.mxu0 0.0
        %2524 = vmatpush2.msra.mxu0 0.0
        %2525 = vmatprep.subr.mxu0 0.0
        %2526 = vmatpush2.msra.mxu0 0.0
        %2527 = vmatprep.subr.mxu0 0.0
        %2528 = vmatpush2.msra.mxu0 0.0
        %2529 = vmatprep.mubr.f32.mxu0 0.0
        %2530 = vmatmul.mubr.f32.gmra.mxu0 %v1322
        %v2531 = vpop.f32.mrf.mxu0
        %v2532 = vadd.f32 0.0, %v2531
        %v2533 = vpop.f32.mrf.mxu0
        %2534 = vmatprep.mubr.f32.mxu0 0.0
        %2535 = vmatmul.mubr.f32.gmra.mxu0 %v1325
        %v2536 = vpop.f32.mrf.mxu0
        %v2537 = vadd.f32 0.0, %v2536
        %v2538 = vpop.f32.mrf.mxu0
        %2539 = vmatprep.mubr.f32.mxu0 0.0
        %2540 = vmatmul.mubr.f32.gmra.mxu0 %v1328
        %v2541 = vpop.f32.mrf.mxu0
        %v2542 = vadd.f32 0.0, %v2541
        %v2543 = vpop.f32.mrf.mxu0
        %2544 = vmatprep.mubr.f32.mxu0 0.0
        %2545 = vmatmul.mubr.f32.gmra.mxu0 %v1331
        %v2546 = vpop.f32.mrf.mxu0
        %v2547 = vadd.f32 0.0, %v2546
        %v2548 = vpop.f32.mrf.mxu0
        %2549 = vmatprep.mubr.f32.mxu0 0.0
        %2550 = vmatmul.mubr.f32.gmra.mxu0 %v1334
        %v2551 = vpop.f32.mrf.mxu0
        %v2552 = vadd.f32 0.0, %v2551
        %v2553 = vpop.f32.mrf.mxu0
        %2554 = vmatprep.mubr.f32.mxu0 0.0
        %2555 = vmatmul.mubr.f32.gmra.mxu0 %v1337
        %v2556 = vpop.f32.mrf.mxu0
        %v2557 = vadd.f32 0.0, %v2556
        %v2558 = vpop.f32.mrf.mxu0
        %2559 = vmatprep.mubr.f32.mxu0 0.0
        %2560 = vmatmul.mubr.f32.gmra.mxu0 %v1340
        %v2561 = vpop.f32.mrf.mxu0
        %v2562 = vadd.f32 0.0, %v2561
        %v2563 = vpop.f32.mrf.mxu0
        %2564 = vmatprep.mubr.f32.mxu0 0.0
        %2565 = vmatmul.mubr.f32.gmra.mxu0 %v1343
        %v2566 = vpop.f32.mrf.mxu0
        %v2567 = vadd.f32 0.0, %v2566
        %v2568 = vpop.f32.mrf.mxu0
        %2569 = vmatprep.mubr.f32.mxu0 0.0
        %2570 = vmatmul.mubr.f32.gmra.mxu0 %v1346
        %v2571 = vpop.f32.mrf.mxu0
        %v2572 = vadd.f32 0.0, %v2571
        %v2573 = vpop.f32.mrf.mxu0
        %2574 = vmatprep.mubr.f32.mxu0 0.0
        %2575 = vmatmul.mubr.f32.gmra.mxu0 %v1349
        %v2576 = vpop.f32.mrf.mxu0
        %v2577 = vadd.f32 0.0, %v2576
        %v2578 = vpop.f32.mrf.mxu0
        %2579 = vmatprep.mubr.f32.mxu0 0.0
        %2580 = vmatmul.mubr.f32.gmra.mxu0 %v1352
        %v2581 = vpop.f32.mrf.mxu0
        %v2582 = vadd.f32 0.0, %v2581
        %v2583 = vpop.f32.mrf.mxu0
        %2584 = vmatprep.mubr.f32.mxu0 0.0
        %2585 = vmatmul.mubr.f32.gmra.mxu0 %v1355
        %v2586 = vpop.f32.mrf.mxu0
        %v2587 = vadd.f32 0.0, %v2586
        %v2588 = vpop.f32.mrf.mxu0
        %2589 = vmatprep.mubr.f32.mxu0 0.0
        %2590 = vmatmul.mubr.f32.gmra.mxu0 %v1358
        %v2591 = vpop.f32.mrf.mxu0
        %v2592 = vadd.f32 0.0, %v2591
        %v2593 = vpop.f32.mrf.mxu0
        %2594 = vmatprep.mubr.f32.mxu0 0.0
        %2595 = vmatmul.mubr.f32.gmra.mxu0 %v1361
        %v2596 = vpop.f32.mrf.mxu0
        %v2597 = vadd.f32 0.0, %v2596
        %v2598 = vpop.f32.mrf.mxu0
        %2599 = vmatprep.mubr.f32.mxu0 0.0
        %2600 = vmatmul.mubr.f32.gmra.mxu0 %v1364
        %v2601 = vpop.f32.mrf.mxu0
        %v2602 = vadd.f32 0.0, %v2601
        %v2603 = vpop.f32.mrf.mxu0
        %2604 = vmatprep.mubr.f32.mxu0 0.0
        %2605 = vmatmul.mubr.f32.gmra.mxu0 %v1367
        %v2606 = vpop.f32.mrf.mxu0
        %v2607 = vadd.f32 0.0, %v2606
        %v2608 = vpop.f32.mrf.mxu0
        %2609 = vdwg.mxu0
        %v2610 = vmul.f32 %v2401, 1.442695
        %v2611 = vpow.pop %v2610
        %v2612 = vmul.f32 %v2402, 1.442695
        %v2613 = vpow.pop %v2612
        %v2614 = vmul.f32 %v2403, 1.442695
        %v2615 = vpow.pop %v2614
        %v2616 = vmul.f32 %v2404, 1.442695
        %v2617 = vpow.pop %v2616
        %v2618 = vmul.f32 %v2405, 1.442695
        %v2619 = vpow.pop %v2618
        %v2620 = vmul.f32 %v2406, 1.442695
        %v2621 = vpow.pop %v2620
        %v2622 = vmul.f32 %v2407, 1.442695
        %v2623 = vpow.pop %v2622
        %v2624 = vmul.f32 %v2408, 1.442695
        %v2625 = vpow.pop %v2624
        %v2626 = vmul.f32 %v2409, 1.442695
        %v2627 = vpow.pop %v2626
        %v2628 = vmul.f32 %v2410, 1.442695
        %v2629 = vpow.pop %v2628
        %v2630 = vmul.f32 %v2411, 1.442695
        %v2631 = vpow.pop %v2630
        %v2632 = vmul.f32 %v2412, 1.442695
        %v2633 = vpow.pop %v2632
        %v2634 = vmul.f32 %v2413, 1.442695
        %v2635 = vpow.pop %v2634
        %v2636 = vmul.f32 %v2414, 1.442695
        %v2637 = vpow.pop %v2636
        %v2638 = vmul.f32 %v2415, 1.442695
        %v2639 = vpow.pop %v2638
        %v2640 = vmul.f32 %v2416, 1.442695
        %v2641 = vpow.pop %v2640
        %2643 = vset.pattern.permute.xlu0 0
        %2644 = vperm.xlu0 %2643, %v2611
        %v2645 = vpop.permute.xlu0 %2644
        %2648 = vset.pattern.permute.xlu0 0
        %2649 = vperm.xlu0 %2648, %v2613
        %v2650 = vpop.permute.xlu0 %2649
        %2653 = vset.pattern.permute.xlu0 0
        %2654 = vperm.xlu0 %2653, %v2615
        %v2655 = vpop.permute.xlu0 %2654
        %2658 = vset.pattern.permute.xlu0 0
        %2659 = vperm.xlu0 %2658, %v2617
        %v2660 = vpop.permute.xlu0 %2659
        %2663 = vset.pattern.permute.xlu0 0
        %2664 = vperm.xlu0 %2663, %v2619
        %v2665 = vpop.permute.xlu0 %2664
        %2668 = vset.pattern.permute.xlu0 0
        %2669 = vperm.xlu0 %2668, %v2621
        %v2670 = vpop.permute.xlu0 %2669
        %2673 = vset.pattern.permute.xlu0 0
        %2674 = vperm.xlu0 %2673, %v2623
        %v2675 = vpop.permute.xlu0 %2674
        %2678 = vset.pattern.permute.xlu0 0
        %2679 = vperm.xlu0 %2678, %v2625
        %v2680 = vpop.permute.xlu0 %2679
        %2683 = vset.pattern.permute.xlu0 0
        %2684 = vperm.xlu0 %2683, %v2627
        %v2685 = vpop.permute.xlu0 %2684
        %2688 = vset.pattern.permute.xlu0 0
        %2689 = vperm.xlu0 %2688, %v2629
        %v2690 = vpop.permute.xlu0 %2689
        %2693 = vset.pattern.permute.xlu0 0
        %2694 = vperm.xlu0 %2693, %v2631
        %v2695 = vpop.permute.xlu0 %2694
        %2698 = vset.pattern.permute.xlu0 0
        %2699 = vperm.xlu0 %2698, %v2633
        %v2700 = vpop.permute.xlu0 %2699
        %2703 = vset.pattern.permute.xlu0 0
        %2704 = vperm.xlu0 %2703, %v2635
        %v2705 = vpop.permute.xlu0 %2704
        %2708 = vset.pattern.permute.xlu0 0
        %2709 = vperm.xlu0 %2708, %v2637
        %v2710 = vpop.permute.xlu0 %2709
        %2713 = vset.pattern.permute.xlu0 0
        %2714 = vperm.xlu0 %2713, %v2639
        %v2715 = vpop.permute.xlu0 %2714
        %2718 = vset.pattern.permute.xlu0 0
        %2719 = vperm.xlu0 %2718, %v2641
        %v2720 = vpop.permute.xlu0 %2719
        %v2722 = vmul.f32 %v2532, %v2645
        %v2723 = vmul.f32 %v2537, %v2650
        %v2724 = vmul.f32 %v2542, %v2655
        %v2725 = vmul.f32 %v2547, %v2660
        %v2726 = vmul.f32 %v2552, %v2665
        %v2727 = vmul.f32 %v2557, %v2670
        %v2728 = vmul.f32 %v2562, %v2675
        %v2729 = vmul.f32 %v2567, %v2680
        %v2730 = vmul.f32 %v2572, %v2685
        %v2731 = vmul.f32 %v2577, %v2690
        %v2732 = vmul.f32 %v2582, %v2695
        %v2733 = vmul.f32 %v2587, %v2700
        %v2734 = vmul.f32 %v2592, %v2705
        %v2735 = vmul.f32 %v2597, %v2710
        %v2736 = vmul.f32 %v2602, %v2715
        %v2737 = vmul.f32 %v2607, %v2720
        %2746 = vrot.lane.b32.xlu0 %v2441, 64
        %v2747 = vpop.permute.xlu0 %2746
        %2748 = vrot.lane.b32.xlu0 %v2442, 64
        %v2749 = vpop.permute.xlu0 %2748
        %2750 = vrot.lane.b32.xlu0 %v2443, 64
        %v2751 = vpop.permute.xlu0 %2750
        %2752 = vrot.lane.b32.xlu0 %v2444, 64
        %v2753 = vpop.permute.xlu0 %2752
        %2754 = vrot.lane.b32.xlu0 %v2445, 64
        %v2755 = vpop.permute.xlu0 %2754
        %2756 = vrot.lane.b32.xlu0 %v2446, 64
        %v2757 = vpop.permute.xlu0 %2756
        %2758 = vrot.lane.b32.xlu0 %v2447, 64
        %v2759 = vpop.permute.xlu0 %2758
        %2760 = vrot.lane.b32.xlu0 %v2448, 64
        %v2761 = vpop.permute.xlu0 %2760
        %2770 = vmatprep.subr.bf16.mxu0 0
        %2771 = vmatpush1.bf16.msra.mxu0 %v2761
        %2772 = vmatprep.subr.bf16.mxu0 0
        %2773 = vmatpush1.bf16.msra.mxu0 %v2759
        %2774 = vmatprep.subr.bf16.mxu0 0
        %2775 = vmatpush1.bf16.msra.mxu0 %v2757
        %2776 = vmatprep.subr.bf16.mxu0 0
        %2777 = vmatpush1.bf16.msra.mxu0 %v2755
        %2778 = vmatprep.subr.bf16.mxu0 0
        %2779 = vmatpush1.bf16.msra.mxu0 %v2753
        %2780 = vmatprep.subr.bf16.mxu0 0
        %2781 = vmatpush1.bf16.msra.mxu0 %v2751
        %2782 = vmatprep.subr.bf16.mxu0 0
        %2783 = vmatpush1.bf16.msra.mxu0 %v2749
        %2784 = vmatprep.subr.bf16.mxu0 0
        %2785 = vmatpush1.bf16.msra.mxu0 %v2747
        %2786 = vmatprep.subr.bf16.mxu0 0
        %2787 = vmatpush2.bf16.msra.mxu0 0
        %2788 = vmatprep.subr.bf16.mxu0 0
        %2789 = vmatpush2.bf16.msra.mxu0 0
        %2790 = vmatprep.subr.bf16.mxu0 0
        %2791 = vmatpush2.bf16.msra.mxu0 0
        %2792 = vmatprep.subr.bf16.mxu0 0
        %2793 = vmatpush2.bf16.msra.mxu0 0
        %2794 = vmatprep.subr.bf16.mxu0 0
        %2795 = vmatpush2.bf16.msra.mxu0 0
        %2796 = vmatprep.subr.bf16.mxu0 0
        %2797 = vmatpush2.bf16.msra.mxu0 0
        %2798 = vmatprep.subr.bf16.mxu0 0
        %2799 = vmatpush2.bf16.msra.mxu0 0
        %2800 = vmatprep.subr.bf16.mxu0 0
        %2801 = vmatpush2.bf16.msra.mxu0 0
        %2802 = vmatprep.mubr.bf16.mxu0 0
        %2803 = vmatmul.mubr.bf16.gmra.mxu0 %v2433
        %v2804 = vpop.f32.mrf.mxu0
        %v2805 = vadd.f32 %v2722, %v2804
        %v2806 = vpop.f32.mrf.mxu0
        %v2807 = vpop.f32.mrf.mxu0
        %v2808 = vadd.f32 %v2723, %v2807
        %v2809 = vpop.f32.mrf.mxu0
        %2810 = vmatprep.mubr.bf16.mxu0 0
        %2811 = vmatmul.mubr.bf16.gmra.mxu0 %v2434
        %v2812 = vpop.f32.mrf.mxu0
        %v2813 = vadd.f32 %v2724, %v2812
        %v2814 = vpop.f32.mrf.mxu0
        %v2815 = vpop.f32.mrf.mxu0
        %v2816 = vadd.f32 %v2725, %v2815
        %v2817 = vpop.f32.mrf.mxu0
        %2818 = vmatprep.mubr.bf16.mxu0 0
        %2819 = vmatmul.mubr.bf16.gmra.mxu0 %v2435
        %v2820 = vpop.f32.mrf.mxu0
        %v2821 = vadd.f32 %v2726, %v2820
        %v2822 = vpop.f32.mrf.mxu0
        %v2823 = vpop.f32.mrf.mxu0
        %v2824 = vadd.f32 %v2727, %v2823
        %v2825 = vpop.f32.mrf.mxu0
        %2826 = vmatprep.mubr.bf16.mxu0 0
        %2827 = vmatmul.mubr.bf16.gmra.mxu0 %v2436
        %v2828 = vpop.f32.mrf.mxu0
        %v2829 = vadd.f32 %v2728, %v2828
        %v2830 = vpop.f32.mrf.mxu0
        %v2831 = vpop.f32.mrf.mxu0
        %v2832 = vadd.f32 %v2729, %v2831
        %v2833 = vpop.f32.mrf.mxu0
        %2834 = vmatprep.mubr.bf16.mxu0 0
        %2835 = vmatmul.mubr.bf16.gmra.mxu0 %v2437
        %v2836 = vpop.f32.mrf.mxu0
        %v2837 = vadd.f32 %v2730, %v2836
        %v2838 = vpop.f32.mrf.mxu0
        %v2839 = vpop.f32.mrf.mxu0
        %v2840 = vadd.f32 %v2731, %v2839
        %v2841 = vpop.f32.mrf.mxu0
        %2842 = vmatprep.mubr.bf16.mxu0 0
        %2843 = vmatmul.mubr.bf16.gmra.mxu0 %v2438
        %v2844 = vpop.f32.mrf.mxu0
        %v2845 = vadd.f32 %v2732, %v2844
        %v2846 = vpop.f32.mrf.mxu0
        %v2847 = vpop.f32.mrf.mxu0
        %v2848 = vadd.f32 %v2733, %v2847
        %v2849 = vpop.f32.mrf.mxu0
        %2850 = vmatprep.mubr.bf16.mxu0 0
        %2851 = vmatmul.mubr.bf16.gmra.mxu0 %v2439
        %v2852 = vpop.f32.mrf.mxu0
        %v2853 = vadd.f32 %v2734, %v2852
        %v2854 = vpop.f32.mrf.mxu0
        %v2855 = vpop.f32.mrf.mxu0
        %v2856 = vadd.f32 %v2735, %v2855
        %v2857 = vpop.f32.mrf.mxu0
        %2858 = vmatprep.mubr.bf16.mxu0 0
        %2859 = vmatmul.mubr.bf16.gmra.mxu0 %v2440
        %v2860 = vpop.f32.mrf.mxu0
        %v2861 = vadd.f32 %v2736, %v2860
        %v2862 = vpop.f32.mrf.mxu0
        %v2863 = vpop.f32.mrf.mxu0
        %v2864 = vadd.f32 %v2737, %v2863
        %v2865 = vpop.f32.mrf.mxu0
        %2866 = vdwg.mxu0
        %s2867 = sld [smem:[#allocation6 + $0x1]]
        %v2868 = vstv %s2867
        %v2869 = vmul.f32 %v2868, %v521
        %v2870 = vmul.f32 %v2868, %v522
        %v2871 = vmul.f32 %v2868, %v523
        %v2872 = vmul.f32 %v2868, %v524
        %v2873 = vmul.f32 %v2868, %v525
        %v2874 = vmul.f32 %v2868, %v526
        %v2875 = vmul.f32 %v2868, %v527
        %v2876 = vmul.f32 %v2868, %v528
        %v2877 = vmul.f32 %v2868, %v529
        %v2878 = vmul.f32 %v2868, %v530
        %v2879 = vmul.f32 %v2868, %v531
        %v2880 = vmul.f32 %v2868, %v532
        %v2881 = vmul.f32 %v2868, %v533
        %v2882 = vmul.f32 %v2868, %v534
        %v2883 = vmul.f32 %v2868, %v535
        %v2884 = vmul.f32 %v2868, %v536
        %2901 = vrot.lane.b32.xlu0 %v2869, 64
        %v2902 = vpop.permute.xlu0 %2901
        %2903 = vrot.lane.b32.xlu0 %v2870, 64
        %v2904 = vpop.permute.xlu0 %2903
        %2905 = vrot.lane.b32.xlu0 %v2871, 64
        %v2906 = vpop.permute.xlu0 %2905
        %2907 = vrot.lane.b32.xlu0 %v2872, 64
        %v2908 = vpop.permute.xlu0 %2907
        %2909 = vrot.lane.b32.xlu0 %v2873, 64
        %v2910 = vpop.permute.xlu0 %2909
        %2911 = vrot.lane.b32.xlu0 %v2874, 64
        %v2912 = vpop.permute.xlu0 %2911
        %2913 = vrot.lane.b32.xlu0 %v2875, 64
        %v2914 = vpop.permute.xlu0 %2913
        %2915 = vrot.lane.b32.xlu0 %v2876, 64
        %v2916 = vpop.permute.xlu0 %2915
        %2917 = vrot.lane.b32.xlu0 %v2877, 64
        %v2918 = vpop.permute.xlu0 %2917
        %2919 = vrot.lane.b32.xlu0 %v2878, 64
        %v2920 = vpop.permute.xlu0 %2919
        %2921 = vrot.lane.b32.xlu0 %v2879, 64
        %v2922 = vpop.permute.xlu0 %2921
        %2923 = vrot.lane.b32.xlu0 %v2880, 64
        %v2924 = vpop.permute.xlu0 %2923
        %2925 = vrot.lane.b32.xlu0 %v2881, 64
        %v2926 = vpop.permute.xlu0 %2925
        %2927 = vrot.lane.b32.xlu0 %v2882, 64
        %v2928 = vpop.permute.xlu0 %2927
        %2929 = vrot.lane.b32.xlu0 %v2883, 64
        %v2930 = vpop.permute.xlu0 %2929
        %2931 = vrot.lane.b32.xlu0 %v2884, 64
        %v2932 = vpop.permute.xlu0 %2931
        %v2949 = vadd.f32 %v2805, %v2902
        %v2950 = vadd.f32 %v2808, %v2904
        %v2951 = vadd.f32 %v2813, %v2906
        %v2952 = vadd.f32 %v2816, %v2908
        %v2953 = vadd.f32 %v2821, %v2910
        %v2954 = vadd.f32 %v2824, %v2912
        %v2955 = vadd.f32 %v2829, %v2914
        %v2956 = vadd.f32 %v2832, %v2916
        %v2957 = vadd.f32 %v2837, %v2918
        %v2958 = vadd.f32 %v2840, %v2920
        %v2959 = vadd.f32 %v2845, %v2922
        %v2960 = vadd.f32 %v2848, %v2924
        %v2961 = vadd.f32 %v2853, %v2926
        %v2962 = vadd.f32 %v2856, %v2928
        %v2963 = vadd.f32 %v2861, %v2930
        %v2964 = vadd.f32 %v2864, %v2932
        %v2965 = vlaneseq
        %v2966 = vshrl.u32 %v2965, 7
        %v2967 = vsub.s32 7, %v2966
        %v2968 = vrot.slane %v2416, %v2967
        %v2969 = vsub.f32 %v2968, %v2401
        %v2970 = vsub.f32 %v2968, %v2402
        %v2971 = vsub.f32 %v2968, %v2403
        %v2972 = vsub.f32 %v2968, %v2404
        %v2973 = vsub.f32 %v2968, %v2405
        %v2974 = vsub.f32 %v2968, %v2406
        %v2975 = vsub.f32 %v2968, %v2407
        %v2976 = vsub.f32 %v2968, %v2408
        %v2977 = vsub.f32 %v2968, %v2409
        %v2978 = vsub.f32 %v2968, %v2410
        %v2979 = vsub.f32 %v2968, %v2411
        %v2980 = vsub.f32 %v2968, %v2412
        %v2981 = vsub.f32 %v2968, %v2413
        %v2982 = vsub.f32 %v2968, %v2414
        %v2983 = vsub.f32 %v2968, %v2415
        %v2984 = vsub.f32 %v2968, %v2416
        %v2985 = vmul.f32 %v2969, 1.442695
        %v2986 = vpow.pop %v2985
        %v2987 = vmul.f32 %v2970, 1.442695
        %v2988 = vpow.pop %v2987
        %v2989 = vmul.f32 %v2971, 1.442695
        %v2990 = vpow.pop %v2989
        %v2991 = vmul.f32 %v2972, 1.442695
        %v2992 = vpow.pop %v2991
        %v2993 = vmul.f32 %v2973, 1.442695
        %v2994 = vpow.pop %v2993
        %v2995 = vmul.f32 %v2974, 1.442695
        %v2996 = vpow.pop %v2995
        %v2997 = vmul.f32 %v2975, 1.442695
        %v2998 = vpow.pop %v2997
        %v2999 = vmul.f32 %v2976, 1.442695
        %v3000 = vpow.pop %v2999
        %v3001 = vmul.f32 %v2977, 1.442695
        %v3002 = vpow.pop %v3001
        %v3003 = vmul.f32 %v2978, 1.442695
        %v3004 = vpow.pop %v3003
        %v3005 = vmul.f32 %v2979, 1.442695
        %v3006 = vpow.pop %v3005
        %v3007 = vmul.f32 %v2980, 1.442695
        %v3008 = vpow.pop %v3007
        %v3009 = vmul.f32 %v2981, 1.442695
        %v3010 = vpow.pop %v3009
        %v3011 = vmul.f32 %v2982, 1.442695
        %v3012 = vpow.pop %v3011
        %v3013 = vmul.f32 %v2983, 1.442695
        %v3014 = vpow.pop %v3013
        %v3015 = vmul.f32 %v2984, 1.442695
        %v3016 = vpow.pop %v3015
        %3018 = vset.pattern.permute.xlu0 0
        %3019 = vperm.xlu0 %3018, %v2986
        %v3020 = vpop.permute.xlu0 %3019
        %3023 = vset.pattern.permute.xlu0 0
        %3024 = vperm.xlu0 %3023, %v2988
        %v3025 = vpop.permute.xlu0 %3024
        %3028 = vset.pattern.permute.xlu0 0
        %3029 = vperm.xlu0 %3028, %v2990
        %v3030 = vpop.permute.xlu0 %3029
        %3033 = vset.pattern.permute.xlu0 0
        %3034 = vperm.xlu0 %3033, %v2992
        %v3035 = vpop.permute.xlu0 %3034
        %3038 = vset.pattern.permute.xlu0 0
        %3039 = vperm.xlu0 %3038, %v2994
        %v3040 = vpop.permute.xlu0 %3039
        %3043 = vset.pattern.permute.xlu0 0
        %3044 = vperm.xlu0 %3043, %v2996
        %v3045 = vpop.permute.xlu0 %3044
        %3048 = vset.pattern.permute.xlu0 0
        %3049 = vperm.xlu0 %3048, %v2998
        %v3050 = vpop.permute.xlu0 %3049
        %3053 = vset.pattern.permute.xlu0 0
        %3054 = vperm.xlu0 %3053, %v3000
        %v3055 = vpop.permute.xlu0 %3054
        %3058 = vset.pattern.permute.xlu0 0
        %3059 = vperm.xlu0 %3058, %v3002
        %v3060 = vpop.permute.xlu0 %3059
        %3063 = vset.pattern.permute.xlu0 0
        %3064 = vperm.xlu0 %3063, %v3004
        %v3065 = vpop.permute.xlu0 %3064
        %3068 = vset.pattern.permute.xlu0 0
        %3069 = vperm.xlu0 %3068, %v3006
        %v3070 = vpop.permute.xlu0 %3069
        %3073 = vset.pattern.permute.xlu0 0
        %3074 = vperm.xlu0 %3073, %v3008
        %v3075 = vpop.permute.xlu0 %3074
        %3078 = vset.pattern.permute.xlu0 0
        %3079 = vperm.xlu0 %3078, %v3010
        %v3080 = vpop.permute.xlu0 %3079
        %3083 = vset.pattern.permute.xlu0 0
        %3084 = vperm.xlu0 %3083, %v3012
        %v3085 = vpop.permute.xlu0 %3084
        %3088 = vset.pattern.permute.xlu0 0
        %3089 = vperm.xlu0 %3088, %v3014
        %v3090 = vpop.permute.xlu0 %3089
        %3093 = vset.pattern.permute.xlu0 0
        %3094 = vperm.xlu0 %3093, %v3016
        %v3095 = vpop.permute.xlu0 %3094
        %v3097 = vmul.f32 %v3020, %v2088
        %v3098 = vmul.f32 %v3025, %v2089
        %v3099 = vmul.f32 %v3030, %v2090
        %v3100 = vmul.f32 %v3035, %v2091
        %v3101 = vmul.f32 %v3040, %v2092
        %v3102 = vmul.f32 %v3045, %v2093
        %v3103 = vmul.f32 %v3050, %v2094
        %v3104 = vmul.f32 %v3055, %v2095
        %v3105 = vmul.f32 %v3060, %v2096
        %v3106 = vmul.f32 %v3065, %v2097
        %v3107 = vmul.f32 %v3070, %v2098
        %v3108 = vmul.f32 %v3075, %v2099
        %v3109 = vmul.f32 %v3080, %v2100
        %v3110 = vmul.f32 %v3085, %v2101
        %v3111 = vmul.f32 %v3090, %v2102
        %v3112 = vmul.f32 %v3095, %v2103
        %v3113 = vpack.c.bf16 %v3098, %v3097
        %v3114 = vpack.c.bf16 %v3100, %v3099
        %v3115 = vpack.c.bf16 %v3102, %v3101
        %v3116 = vpack.c.bf16 %v3104, %v3103
        %v3117 = vpack.c.bf16 %v3106, %v3105
        %v3118 = vpack.c.bf16 %v3108, %v3107
        %v3119 = vpack.c.bf16 %v3110, %v3109
        %v3120 = vpack.c.bf16 %v3112, %v3111
        %3129 = vrot.lane.b32.xlu0 %v3113, 64
        %v3130 = vpop.permute.xlu0 %3129
        %3131 = vrot.lane.b32.xlu0 %v3114, 64
        %v3132 = vpop.permute.xlu0 %3131
        %3133 = vrot.lane.b32.xlu0 %v3115, 64
        %v3134 = vpop.permute.xlu0 %3133
        %3135 = vrot.lane.b32.xlu0 %v3116, 64
        %v3136 = vpop.permute.xlu0 %3135
        %3137 = vrot.lane.b32.xlu0 %v3117, 64
        %v3138 = vpop.permute.xlu0 %3137
        %3139 = vrot.lane.b32.xlu0 %v3118, 64
        %v3140 = vpop.permute.xlu0 %3139
        %3141 = vrot.lane.b32.xlu0 %v3119, 64
        %v3142 = vpop.permute.xlu0 %3141
        %3143 = vrot.lane.b32.xlu0 %v3120, 64
        %v3144 = vpop.permute.xlu0 %3143
        %3153 = vmatprep.subr.bf16.mxu0 0
        %3154 = vmatpush1.bf16.msra.mxu0 %v3144
        %3155 = vmatprep.subr.bf16.mxu0 0
        %3156 = vmatpush1.bf16.msra.mxu0 %v3142
        %3157 = vmatprep.subr.bf16.mxu0 0
        %3158 = vmatpush1.bf16.msra.mxu0 %v3140
        %3159 = vmatprep.subr.bf16.mxu0 0
        %3160 = vmatpush1.bf16.msra.mxu0 %v3138
        %3161 = vmatprep.subr.bf16.mxu0 0
        %3162 = vmatpush1.bf16.msra.mxu0 %v3136
        %3163 = vmatprep.subr.bf16.mxu0 0
        %3164 = vmatpush1.bf16.msra.mxu0 %v3134
        %3165 = vmatprep.subr.bf16.mxu0 0
        %3166 = vmatpush1.bf16.msra.mxu0 %v3132
        %3167 = vmatprep.subr.bf16.mxu0 0
        %3168 = vmatpush1.bf16.msra.mxu0 %v3130
        %3169 = vmatprep.subr.bf16.mxu0 0
        %3170 = vmatpush2.bf16.msra.mxu0 0
        %3171 = vmatprep.subr.bf16.mxu0 0
        %3172 = vmatpush2.bf16.msra.mxu0 0
        %3173 = vmatprep.subr.bf16.mxu0 0
        %3174 = vmatpush2.bf16.msra.mxu0 0
        %3175 = vmatprep.subr.bf16.mxu0 0
        %3176 = vmatpush2.bf16.msra.mxu0 0
        %3177 = vmatprep.subr.bf16.mxu0 0
        %3178 = vmatpush2.bf16.msra.mxu0 0
        %3179 = vmatprep.subr.bf16.mxu0 0
        %3180 = vmatpush2.bf16.msra.mxu0 0
        %3181 = vmatprep.subr.bf16.mxu0 0
        %3182 = vmatpush2.bf16.msra.mxu0 0
        %3183 = vmatprep.subr.bf16.mxu0 0
        %3184 = vmatpush2.bf16.msra.mxu0 0
        %3185 = vmatprep.mubr.bf16.mxu0 0
        %3186 = vmatmul.mubr.bf16.gmra.mxu0 %v1937
        %v3187 = vpop.f32.mrf.mxu0
        %v3188 = vadd.f32 0.0, %v3187
        %v3189 = vpop.f32.mrf.mxu0
        %v3190 = vpop.f32.mrf.mxu0
        %v3191 = vadd.f32 0.0, %v3190
        %v3192 = vpop.f32.mrf.mxu0
        %3193 = vmatprep.mubr.bf16.mxu0 0
        %3194 = vmatmul.mubr.bf16.gmra.mxu0 %v1938
        %v3195 = vpop.f32.mrf.mxu0
        %v3196 = vadd.f32 0.0, %v3195
        %v3197 = vpop.f32.mrf.mxu0
        %v3198 = vpop.f32.mrf.mxu0
        %v3199 = vadd.f32 0.0, %v3198
        %v3200 = vpop.f32.mrf.mxu0
        %3201 = vdwg.mxu0
        %v3202 = vrot.slane %v2641, 7
        %s3203 = vtos %v3202
        %v3204 = vstv %s3203
        %v3206 = vmul.f32 %v3204, %v1317
        %v3207 = vmul.f32 %v3204, %v1318
        %v3208 = vmul.f32 %v3204, %v1319
        %v3209 = vmul.f32 %v3204, %v1320
        %3214 = vrot.lane.b32.xlu0 %v3188, 64
        %v3215 = vpop.permute.xlu0 %3214
        %3216 = vrot.lane.b32.xlu0 %v3191, 64
        %v3217 = vpop.permute.xlu0 %3216
        %3218 = vrot.lane.b32.xlu0 %v3196, 64
        %v3219 = vpop.permute.xlu0 %3218
        %3220 = vrot.lane.b32.xlu0 %v3199, 64
        %v3221 = vpop.permute.xlu0 %3220
        %v3226 = vadd.f32 %v3206, %v3215
        %v3227 = vadd.f32 %v3207, %v3217
        %v3228 = vadd.f32 %v3208, %v3219
        %v3229 = vadd.f32 %v3209, %v3221
        %3246 = vrot.lane.b32.xlu0 %v2949, 64
        %v3247 = vpop.permute.xlu0 %3246
        %3248 = vrot.lane.b32.xlu0 %v2950, 64
        %v3249 = vpop.permute.xlu0 %3248
        %3250 = vrot.lane.b32.xlu0 %v2951, 64
        %v3251 = vpop.permute.xlu0 %3250
        %3252 = vrot.lane.b32.xlu0 %v2952, 64
        %v3253 = vpop.permute.xlu0 %3252
        %3254 = vrot.lane.b32.xlu0 %v2953, 64
        %v3255 = vpop.permute.xlu0 %3254
        %3256 = vrot.lane.b32.xlu0 %v2954, 64
        %v3257 = vpop.permute.xlu0 %3256
        %3258 = vrot.lane.b32.xlu0 %v2955, 64
        %v3259 = vpop.permute.xlu0 %3258
        %3260 = vrot.lane.b32.xlu0 %v2956, 64
        %v3261 = vpop.permute.xlu0 %3260
        %3262 = vrot.lane.b32.xlu0 %v2957, 64
        %v3263 = vpop.permute.xlu0 %3262
        %3264 = vrot.lane.b32.xlu0 %v2958, 64
        %v3265 = vpop.permute.xlu0 %3264
        %3266 = vrot.lane.b32.xlu0 %v2959, 64
        %v3267 = vpop.permute.xlu0 %3266
        %3268 = vrot.lane.b32.xlu0 %v2960, 64
        %v3269 = vpop.permute.xlu0 %3268
        %3270 = vrot.lane.b32.xlu0 %v2961, 64
        %v3271 = vpop.permute.xlu0 %3270
        %3272 = vrot.lane.b32.xlu0 %v2962, 64
        %v3273 = vpop.permute.xlu0 %3272
        %3274 = vrot.lane.b32.xlu0 %v2963, 64
        %v3275 = vpop.permute.xlu0 %3274
        %3276 = vrot.lane.b32.xlu0 %v2964, 64
        %v3277 = vpop.permute.xlu0 %3276
        %vm3294 = vcmask 523264
        %v3295 = vsel %vm3294, %v1757, %v3247
        %v3296 = vsel %vm3294, %v1758, %v3249
        %v3297 = vsel %vm3294, %v1759, %v3251
        %v3298 = vsel %vm3294, %v1760, %v3253
        %v3299 = vsel %vm3294, %v1761, %v3255
        %v3300 = vsel %vm3294, %v1762, %v3257
        %v3301 = vsel %vm3294, %v1763, %v3259
        %v3302 = vsel %vm3294, %v1764, %v3261
        %v3303 = vsel %vm3294, %v1765, %v3263
        %v3304 = vsel %vm3294, %v1766, %v3265
        %v3305 = vsel %vm3294, %v1767, %v3267
        %v3306 = vsel %vm3294, %v1768, %v3269
        %v3307 = vsel %vm3294, %v1769, %v3271
        %v3308 = vsel %vm3294, %v1770, %v3273
        %v3309 = vsel %vm3294, %v1771, %v3275
        %v3310 = vsel %vm3294, %v1772, %v3277
        %3311 = vst [vmem:[%s510] sm:$0xff] %v3295
        %3312 = vst [vmem:[%s510 + $0x8] sm:$0xff] %v3296
        %3313 = vst [vmem:[%s510 + $0x10] sm:$0xff] %v3297
        %3314 = vst [vmem:[%s510 + $0x18] sm:$0xff] %v3298
        %3315 = vst [vmem:[%s510 + $0x20] sm:$0xff] %v3299
        %3316 = vst [vmem:[%s510 + $0x28] sm:$0xff] %v3300
        %3317 = vst [vmem:[%s510 + $0x30] sm:$0xff] %v3301
        %3318 = vst [vmem:[%s510 + $0x38] sm:$0xff] %v3302
        %3319 = vst [vmem:[%s510 + $0x40] sm:$0xff] %v3303
        %3320 = vst [vmem:[%s510 + $0x48] sm:$0xff] %v3304
        %3321 = vst [vmem:[%s510 + $0x50] sm:$0xff] %v3305
        %3322 = vst [vmem:[%s510 + $0x58] sm:$0xff] %v3306
        %3323 = vst [vmem:[%s510 + $0x60] sm:$0xff] %v3307
        %3324 = vst [vmem:[%s510 + $0x68] sm:$0xff] %v3308
        %3325 = vst [vmem:[%s510 + $0x70] sm:$0xff] %v3309
        %3326 = vst [vmem:[%s510 + $0x78] sm:$0xff] %v3310
        %v3327 = vsel %vm3294, %v2002, %v3226
        %v3328 = vsel %vm3294, %v2003, %v3227
        %v3329 = vsel %vm3294, %v2004, %v3228
        %v3330 = vsel %vm3294, %v2005, %v3229
        %3331 = vst [vmem:[#allocation2] sm:$0xff] %v3327
        %3332 = vst [vmem:[#allocation2 + $0x8] sm:$0xff] %v3328
        %3333 = vst [vmem:[#allocation2 + $0x10] sm:$0xff] %v3329
        %3334 = vst [vmem:[#allocation2 + $0x18] sm:$0xff] %v3330
        %s3335 = smul.u32 16, %s24
        %p3336 = scmp.lt.s32.totalorder %s23, 1
        %s3337 = scalar_select %p3336, %s23, 1
        %p3338 = scmp.lt.s32.totalorder %s3335, 31
        %s3339 = scalar_select %p3338, %s3335, 31
        %s3340 = smul.addr %s3337, 32
        %s3341 = sadd.s32 %s3339, %s3340
        %s3342 = smul.addr %s3341, 8
        %s3343 = scalar_lea.vmem %s6, %s3342
        // Predicated region
        $region95: #{ndmamba2_forward.18} parent=77 // pred_check
          %p3344 = pneg %p205
        $region96: #{ndmamba2_forward.18} parent=77 // pred_check_branch
          %3346 = sbr.rel (%p3344) target = $region98
        $region97: #{ndmamba2_forward.18} parent=77 // pred_region
          %s3347 = smul.u32 16, %s24
        $region98: #{ndmamba2_forward.18} parent=77 // pred_fallthru
          _
      $region78: #{ndmamba2_forward.18} parent=5 // pred_fallthru
        _
      %p3348 = scmp.le.s32.totalorder 2, %s14
      // Predicated region
      $region99: #{ndmamba2_forward.18} parent=5 // pred_check
        %p3349 = pneg %p3348
      $region100: #{ndmamba2_forward.18} parent=5 // pred_check_branch
        %3351 = sbr.rel (%p3349) target = $region102
      $region101: #{ndmamba2_forward.18} parent=5 // pred_region
        %s3352 = ssub.s32 %s14, 2
        // Predicated region
        $region103: #{ndmamba2_forward.18} parent=101 // pred_check
          %p3353 = pneg %p211
        $region104: #{ndmamba2_forward.18} parent=101 // pred_check_branch
          %3355 = sbr.rel (%p3353) target = $region106
        $region105: #{ndmamba2_forward.18} parent=101 // pred_region
          %s3356 = smul.u32 16, %s26
          %p3357 = scmp.lt.s32.totalorder %s25, 1
          %s3358 = scalar_select %p3357, %s25, 1
          %p3359 = scmp.lt.s32.totalorder %s3356, 31
          %s3360 = scalar_select %p3359, %s3356, 31
          %s3361 = smul.addr %s3358, 32
          %s3362 = sadd.s32 %s3360, %s3361
          %s3363 = smul.addr %s3362, 8
          %s3364 = scalar_lea.vmem %s6, %s3363
        $region106: #{ndmamba2_forward.18} parent=101 // pred_fallthru
          _
      $region102: #{ndmamba2_forward.18} parent=5 // pred_fallthru
        _
    $region6: #{ndmamba2_forward.18} parent=1 // loop_footer
      %s18 = sadd.s32 1, %s14
    $region7: #{ndmamba2_forward.18} parent=1 // loop_footer_branch
      %13 = sbr.rel target = $region3
    $region8: #{ndmamba2_forward.18} parent=1 // loop_exit
      _
    %3365 = vsyncpa [#allocation5], 1
    %s3366 = scalar_lea.sflag [#allocation5], 1
    %3367 = vsyncpa %s3366, 1
    %3368 = vsyncpa [#allocation7], 1

// kernel: ndmamba2_forward.21
$region0: #{ndmamba2_forward.21}
  #allocation0 [shape = 'u32[]', space=smem, size = 0x4, offset = 0x4, fixed_abs, tag = 'smem constant byte address 0x4 - core index']
  #allocation1 [shape = 'u32[144,128]{1,0:T(1,128)}', space=vmem, size = 0x12000, scoped, tag = 'internal scratch']
  #allocation2 [shape = 'f32[256,4]{1,0:T(8,128)}', space=vmem, size = 0x20000, scoped, tag = 'scratch operand']
  %s0 = inlined_call_operand.vmem [shape: f32[512,64], index: 0, kind: input, shape index: {}]
  %s1 = inlined_call_operand.vmem [shape: f32[64,4], index: 1, kind: input, shape index: {}]
  %s2 = inlined_call_operand.vmem [shape: f32[512,4], index: 2, kind: output, shape index: {}]
  %s3 = sld [smem:[#allocation0]]
  $region49: #{ndmamba2_forward.21} parent=0
    _
  %s5 = ssub.s32 1, %s3
  %s6 = scalar_select 0, %s5, %s3
  loop: start=0, step=1, limit=4
  $region2: #{ndmamba2_forward.21} parent=0 // loop_pre_header
    _
  $region3: #{ndmamba2_forward.21} parent=0 // loop_header
    %s8 = sphi 0, %s12
    %p9 = scmp.ge.s32.totalorder %s8, 4
    %s15 = sphi 0, %s34
    %s16 = sphi 0, %s30
    %s17 = sphi 0, %s26
    %s18 = sphi 0, %s15
    %s19 = sphi 0, %s16
    %s20 = sphi 0, %s17
    %s21 = sphi 0, %s18
    %s22 = sphi 0, %s19
    %s23 = sphi 0, %s20
    %s39 = sphi 0, %s41
    %s42 = sphi 0, %s39
    %s43 = sphi 0, %s42
    %s59 = sphi 0, %s43
    %s67 = sphi 0, %s69
    %s70 = sphi 0, %s67
    %s71 = sphi 0, %s70
    %s87 = sphi 0, %s71
    %s95 = sphi 0, %s97
    %s98 = sphi 0, %s95
    %s99 = sphi 0, %s98
    %s115 = sphi 0, %s99
  $region4: #{ndmamba2_forward.21} parent=0 // loop_header_branch
    %11 = sbr.rel (%p9) target = $region8
  $region5: #{ndmamba2_forward.21} parent=0 // loop_body
    %s13 = ssub.s32 %s8, 1
    %s14 = ssub.s32 %s8, 2
    %s24 = sadd.s32 1, %s17
    %p25 = scmp.ge.s32.totalorder %s24, 1
    %s26 = scalar_select %p25, 0, %s24
    %s27 = sadd.s32 1, %s16
    %s28 = scalar_select %p25, %s27, %s16
    %p29 = scmp.ge.s32.totalorder %s28, 1
    %s30 = scalar_select %p29, 0, %s28
    %s31 = sadd.s32 1, %s15
    %s32 = scalar_select %p29, %s31, %s15
    %p33 = scmp.ge.s32.totalorder %s32, 2
    %s34 = scalar_select %p33, 0, %s32
    %s35 = ssub.s32 %s15, %s34
    %s36 = ssub.s32 %s17, %s26
    %s37 = sor.u32 %s35, %s36
    %p38 = scmp.eq.s32.totalorder %s37, 0
    %s40 = sadd.s32 %s39, 1
    %s41 = scalar_select %p38, %s39, %s40
    %p44 = pneg %p38
    %p45 = scmp.eq.s32.totalorder %s8, 1
    %p46 = por %p44, %p45
    %p47 = scmp.ne.s32.totalorder %s39, %s42
    %p48 = scmp.eq.s32.totalorder %s8, 0
    %p49 = por %p47, %p48
    %p50 = scmp.ne.s32.totalorder %s39, %s42
    %p51 = scmp.eq.s32.totalorder %s13, 1
    %p52 = por %p50, %p51
    %p53 = scmp.ne.s32.totalorder %s42, %s43
    %p54 = scmp.eq.s32.totalorder %s13, 0
    %p55 = por %p53, %p54
    %p56 = scmp.ne.s32.totalorder %s42, %s43
    %p57 = scmp.eq.s32.totalorder %s14, 1
    %p58 = por %p56, %p57
    %p60 = scmp.ne.s32.totalorder %s43, %s59
    %p61 = scmp.eq.s32.totalorder %s14, 0
    %p62 = por %p60, %p61
    %s63 = ssub.s32 %s17, %s26
    %s64 = ssub.s32 %s16, %s30
    %s65 = sor.u32 %s63, %s64
    %p66 = scmp.eq.s32.totalorder %s65, 0
    %s68 = sadd.s32 %s67, 1
    %s69 = scalar_select %p66, %s67, %s68
    %p72 = pneg %p66
    %p73 = scmp.eq.s32.totalorder %s8, 1
    %p74 = por %p72, %p73
    %p75 = scmp.ne.s32.totalorder %s67, %s70
    %p76 = scmp.eq.s32.totalorder %s8, 0
    %p77 = por %p75, %p76
    %p78 = scmp.ne.s32.totalorder %s67, %s70
    %p79 = scmp.eq.s32.totalorder %s13, 1
    %p80 = por %p78, %p79
    %p81 = scmp.ne.s32.totalorder %s70, %s71
    %p82 = scmp.eq.s32.totalorder %s13, 0
    %p83 = por %p81, %p82
    %p84 = scmp.ne.s32.totalorder %s70, %s71
    %p85 = scmp.eq.s32.totalorder %s14, 1
    %p86 = por %p84, %p85
    %p88 = scmp.ne.s32.totalorder %s71, %s87
    %p89 = scmp.eq.s32.totalorder %s14, 0
    %p90 = por %p88, %p89
    %s91 = ssub.s32 %s15, %s34
    %s92 = ssub.s32 %s16, %s30
    %s93 = sor.u32 %s91, %s92
    %p94 = scmp.eq.s32.totalorder %s93, 0
    %s96 = sadd.s32 %s95, 1
    %s97 = scalar_select %p94, %s95, %s96
    %p100 = pneg %p94
    %p101 = scmp.eq.s32.totalorder %s8, 1
    %p102 = por %p100, %p101
    %p103 = scmp.ne.s32.totalorder %s95, %s98
    %p104 = scmp.eq.s32.totalorder %s8, 0
    %p105 = por %p103, %p104
    %p106 = scmp.ne.s32.totalorder %s95, %s98
    %p107 = scmp.eq.s32.totalorder %s13, 1
    %p108 = por %p106, %p107
    %p109 = scmp.ne.s32.totalorder %s98, %s99
    %p110 = scmp.eq.s32.totalorder %s13, 0
    %p111 = por %p109, %p110
    %p112 = scmp.ne.s32.totalorder %s98, %s99
    %p113 = scmp.eq.s32.totalorder %s14, 1
    %p114 = por %p112, %p113
    %p116 = scmp.ne.s32.totalorder %s99, %s115
    %p117 = scmp.eq.s32.totalorder %s14, 0
    %p118 = por %p116, %p117
    %p119 = scmp.le.s32.totalorder 1, %s8
    %p120 = scmp.lt.s32.totalorder %s8, 3
    %p121 = pnand %p119, %p120
    %p122 = pneg %p121
    // Predicated region
    $region9: #{ndmamba2_forward.21} parent=5 // pred_check
      _
    $region10: #{ndmamba2_forward.21} parent=5 // pred_check_branch
      %124 = sbr.rel (%p121) target = $region12
    $region11: #{ndmamba2_forward.21} parent=5 // pred_region
      %s125 = ssub.s32 %s8, 1
      // Predicated region
      $region13: #{ndmamba2_forward.21} parent=11 // pred_check
        %p126 = pneg %p83
      $region14: #{ndmamba2_forward.21} parent=11 // pred_check_branch
        %128 = sbr.rel (%p126) target = $region16
      $region15: #{ndmamba2_forward.21} parent=11 // pred_region
        %s129 = smul.u32 8, %s20
        %p130 = scmp.lt.s32.totalorder %s129, 7
        %s131 = scalar_select %p130, %s129, 7
        %p132 = scmp.lt.s32.totalorder %s19, 0
        %s133 = scalar_select %p132, %s19, 0
        %s134 = sadd.s32 %s133, %s131
        %s135 = smul.addr %s134, 8
        %s136 = scalar_lea.vmem %s1, %s135
        %s137 = smul.u32 8, %s20
      $region16: #{ndmamba2_forward.21} parent=11 // pred_fallthru
        _
    $region12: #{ndmamba2_forward.21} parent=5 // pred_fallthru
      _
    %p138 = scmp.lt.s32.totalorder %s8, 2
    // Predicated region
    $region17: #{ndmamba2_forward.21} parent=5 // pred_check
      %p139 = pneg %p138
    $region18: #{ndmamba2_forward.21} parent=5 // pred_check_branch
      %141 = sbr.rel (%p139) target = $region20
    $region19: #{ndmamba2_forward.21} parent=5 // pred_region
      // Predicated region
      $region21: #{ndmamba2_forward.21} parent=19 // pred_check
        %p142 = pneg %p49
      $region22: #{ndmamba2_forward.21} parent=19 // pred_check_branch
        %144 = sbr.rel (%p142) target = $region24
      $region23: #{ndmamba2_forward.21} parent=19 // pred_region
        %s145 = smul.u32 32, %s15
        %p146 = scmp.lt.s32.totalorder %s145, 63
        %s147 = scalar_select %p146, %s145, 63
        %p148 = scmp.lt.s32.totalorder %s17, 0
        %s149 = scalar_select %p148, %s17, 0
        %s150 = sadd.s32 %s149, %s147
        %s151 = smul.addr %s150, 8
        %s152 = scalar_lea.vmem %s0, %s151
        %s153 = smul.u32 32, %s15
      $region24: #{ndmamba2_forward.21} parent=19 // pred_fallthru
        _
    $region20: #{ndmamba2_forward.21} parent=5 // pred_fallthru
      _
    %p154 = scmp.le.s32.totalorder 1, %s8
    %p155 = scmp.lt.s32.totalorder %s8, 3
    %p156 = pnand %p154, %p155
    %p157 = pneg %p156
    // Predicated region
    $region25: #{ndmamba2_forward.21} parent=5 // pred_check
      _
    $region26: #{ndmamba2_forward.21} parent=5 // pred_check_branch
      %159 = sbr.rel (%p156) target = $region28
    $region27: #{ndmamba2_forward.21} parent=5 // pred_region
      %s160 = ssub.s32 %s8, 1
      %s161 = smul.u32 32, %s18
      %p162 = scmp.lt.s32.totalorder %s161, 63
      %s163 = scalar_select %p162, %s161, 63
      %p164 = scmp.lt.s32.totalorder %s20, 0
      %s165 = scalar_select %p164, %s20, 0
      %s166 = sadd.s32 %s165, %s163
      %s167 = smul.addr %s166, 8
      %s168 = scalar_lea.vmem %s0, %s167
      %p169 = pneg %p55
      %p170 = pneg %p52
      %s171 = smul.u32 8, %s20
      %p172 = scmp.lt.s32.totalorder %s171, 7
      %s173 = scalar_select %p172, %s171, 7
      %p174 = scmp.lt.s32.totalorder %s19, 0
      %s175 = scalar_select %p174, %s19, 0
      %s176 = sadd.s32 %s175, %s173
      %s177 = smul.addr %s176, 8
      %s178 = scalar_lea.vmem %s1, %s177
      %p179 = pneg %p83
      %p180 = pneg %p80
      %p181 = pneg %p111
      %p182 = pneg %p108
      %s183 = smul.u32 32, %s18
      %p184 = scmp.lt.s32.totalorder %s183, 63
      %s185 = scalar_select %p184, %s183, 63
      %p186 = scmp.lt.s32.totalorder %s19, 0
      %s187 = scalar_select %p186, %s19, 0
      %s188 = sadd.s32 %s187, %s185
      %s189 = smul.addr %s188, 8
      %s190 = scalar_lea.vmem %s2, %s189
      %s191 = smul.u32 32, %s18
      %p192 = scmp.lt.s32.totalorder %s191, 63
      %s193 = scalar_select %p192, %s191, 63
      %p194 = scmp.lt.s32.totalorder %s20, 0
      %s195 = scalar_select %p194, %s20, 0
      %s196 = sadd.s32 %s195, %s193
      %s197 = smul.addr %s196, 8
      %s198 = scalar_lea.vmem %s0, %s197
      %s199 = smul.u32 32, %s18
      %s200 = smul.u32 8, %s20
      %p201 = scmp.lt.s32.totalorder %s200, 7
      %s202 = scalar_select %p201, %s200, 7
      %p203 = scmp.lt.s32.totalorder %s19, 0
      %s204 = scalar_select %p203, %s19, 0
      %s205 = sadd.s32 %s204, %s202
      %s206 = smul.addr %s205, 8
      %s207 = scalar_lea.vmem %s1, %s206
      %s208 = smul.u32 8, %s20
      %s209 = smul.u32 32, %s18
      %p210 = scmp.lt.s32.totalorder %s209, 63
      %s211 = scalar_select %p210, %s209, 63
      %p212 = scmp.lt.s32.totalorder %s19, 0
      %s213 = scalar_select %p212, %s19, 0
      %s214 = sadd.s32 %s213, %s211
      %s215 = smul.addr %s214, 8
      %s216 = scalar_lea.vmem %s2, %s215
      %s217 = smul.u32 32, %s18
      %p219 = scmp.eq.s32.totalorder %s20, 0
      // Predicated region
      $region29: #{ndmamba2_forward.21} parent=27 // pred_check
        %p220 = pneg %p219
      $region30: #{ndmamba2_forward.21} parent=27 // pred_check_branch
        %222 = sbr.rel (%p220) target = $region32
      $region31: #{ndmamba2_forward.21} parent=27 // pred_region
        %vm223 = vcmask 31744
        %224 = vst.msk [vmem:[#allocation2] sm:$0xff] %vm223, 0.0
        %225 = vst.msk [vmem:[#allocation2 + $0x8] sm:$0xff] %vm223, 0.0
        %226 = vst.msk [vmem:[#allocation2 + $0x10] sm:$0xff] %vm223, 0.0
        %227 = vst.msk [vmem:[#allocation2 + $0x18] sm:$0xff] %vm223, 0.0
        %228 = vst.msk [vmem:[#allocation2 + $0x20] sm:$0xff] %vm223, 0.0
        %229 = vst.msk [vmem:[#allocation2 + $0x28] sm:$0xff] %vm223, 0.0
        %230 = vst.msk [vmem:[#allocation2 + $0x30] sm:$0xff] %vm223, 0.0
        %231 = vst.msk [vmem:[#allocation2 + $0x38] sm:$0xff] %vm223, 0.0
        %232 = vst.msk [vmem:[#allocation2 + $0x40] sm:$0xff] %vm223, 0.0
        %233 = vst.msk [vmem:[#allocation2 + $0x48] sm:$0xff] %vm223, 0.0
        %234 = vst.msk [vmem:[#allocation2 + $0x50] sm:$0xff] %vm223, 0.0
        %235 = vst.msk [vmem:[#allocation2 + $0x58] sm:$0xff] %vm223, 0.0
        %236 = vst.msk [vmem:[#allocation2 + $0x60] sm:$0xff] %vm223, 0.0
        %237 = vst.msk [vmem:[#allocation2 + $0x68] sm:$0xff] %vm223, 0.0
        %238 = vst.msk [vmem:[#allocation2 + $0x70] sm:$0xff] %vm223, 0.0
        %239 = vst.msk [vmem:[#allocation2 + $0x78] sm:$0xff] %vm223, 0.0
        %240 = vst.msk [vmem:[#allocation2 + $0x80] sm:$0xff] %vm223, 0.0
        %241 = vst.msk [vmem:[#allocation2 + $0x88] sm:$0xff] %vm223, 0.0
        %242 = vst.msk [vmem:[#allocation2 + $0x90] sm:$0xff] %vm223, 0.0
        %243 = vst.msk [vmem:[#allocation2 + $0x98] sm:$0xff] %vm223, 0.0
        %244 = vst.msk [vmem:[#allocation2 + $0xa0] sm:$0xff] %vm223, 0.0
        %245 = vst.msk [vmem:[#allocation2 + $0xa8] sm:$0xff] %vm223, 0.0
        %246 = vst.msk [vmem:[#allocation2 + $0xb0] sm:$0xff] %vm223, 0.0
        %247 = vst.msk [vmem:[#allocation2 + $0xb8] sm:$0xff] %vm223, 0.0
        %248 = vst.msk [vmem:[#allocation2 + $0xc0] sm:$0xff] %vm223, 0.0
        %249 = vst.msk [vmem:[#allocation2 + $0xc8] sm:$0xff] %vm223, 0.0
        %250 = vst.msk [vmem:[#allocation2 + $0xd0] sm:$0xff] %vm223, 0.0
        %251 = vst.msk [vmem:[#allocation2 + $0xd8] sm:$0xff] %vm223, 0.0
        %252 = vst.msk [vmem:[#allocation2 + $0xe0] sm:$0xff] %vm223, 0.0
        %253 = vst.msk [vmem:[#allocation2 + $0xe8] sm:$0xff] %vm223, 0.0
        %254 = vst.msk [vmem:[#allocation2 + $0xf0] sm:$0xff] %vm223, 0.0
        %255 = vst.msk [vmem:[#allocation2 + $0xf8] sm:$0xff] %vm223, 0.0
      $region32: #{ndmamba2_forward.21} parent=27 // pred_fallthru
        _
      %v256 = vld [vmem:[#allocation2] sm:$0xff]
      %v257 = vld [vmem:[#allocation2 + $0x8] sm:$0xff]
      %v258 = vld [vmem:[#allocation2 + $0x10] sm:$0xff]
      %v259 = vld [vmem:[#allocation2 + $0x18] sm:$0xff]
      %v260 = vld [vmem:[#allocation2 + $0x20] sm:$0xff]
      %v261 = vld [vmem:[#allocation2 + $0x28] sm:$0xff]
      %v262 = vld [vmem:[#allocation2 + $0x30] sm:$0xff]
      %v263 = vld [vmem:[#allocation2 + $0x38] sm:$0xff]
      %v264 = vld [vmem:[#allocation2 + $0x40] sm:$0xff]
      %v265 = vld [vmem:[#allocation2 + $0x48] sm:$0xff]
      %v266 = vld [vmem:[#allocation2 + $0x50] sm:$0xff]
      %v267 = vld [vmem:[#allocation2 + $0x58] sm:$0xff]
      %v268 = vld [vmem:[#allocation2 + $0x60] sm:$0xff]
      %v269 = vld [vmem:[#allocation2 + $0x68] sm:$0xff]
      %v270 = vld [vmem:[#allocation2 + $0x70] sm:$0xff]
      %v271 = vld [vmem:[#allocation2 + $0x78] sm:$0xff]
      %v272 = vld [vmem:[#allocation2 + $0x80] sm:$0xff]
      %v273 = vld [vmem:[#allocation2 + $0x88] sm:$0xff]
      %v274 = vld [vmem:[#allocation2 + $0x90] sm:$0xff]
      %v275 = vld [vmem:[#allocation2 + $0x98] sm:$0xff]
      %v276 = vld [vmem:[#allocation2 + $0xa0] sm:$0xff]
      %v277 = vld [vmem:[#allocation2 + $0xa8] sm:$0xff]
      %v278 = vld [vmem:[#allocation2 + $0xb0] sm:$0xff]
      %v279 = vld [vmem:[#allocation2 + $0xb8] sm:$0xff]
      %v280 = vld [vmem:[#allocation2 + $0xc0] sm:$0xff]
      %v281 = vld [vmem:[#allocation2 + $0xc8] sm:$0xff]
      %v282 = vld [vmem:[#allocation2 + $0xd0] sm:$0xff]
      %v283 = vld [vmem:[#allocation2 + $0xd8] sm:$0xff]
      %v284 = vld [vmem:[#allocation2 + $0xe0] sm:$0xff]
      %v285 = vld [vmem:[#allocation2 + $0xe8] sm:$0xff]
      %v286 = vld [vmem:[#allocation2 + $0xf0] sm:$0xff]
      %v287 = vld [vmem:[#allocation2 + $0xf8] sm:$0xff]
      %v288 = vld [vmem:[%s198] sm:$0xff]
      %v289 = vld [vmem:[%s198 + $0x8] sm:$0xff]
      %v290 = vld [vmem:[%s198 + $0x10] sm:$0xff]
      %v291 = vld [vmem:[%s198 + $0x18] sm:$0xff]
      %v292 = vld [vmem:[%s198 + $0x20] sm:$0xff]
      %v293 = vld [vmem:[%s198 + $0x28] sm:$0xff]
      %v294 = vld [vmem:[%s198 + $0x30] sm:$0xff]
      %v295 = vld [vmem:[%s198 + $0x38] sm:$0xff]
      %v296 = vld [vmem:[%s198 + $0x40] sm:$0xff]
      %v297 = vld [vmem:[%s198 + $0x48] sm:$0xff]
      %v298 = vld [vmem:[%s198 + $0x50] sm:$0xff]
      %v299 = vld [vmem:[%s198 + $0x58] sm:$0xff]
      %v300 = vld [vmem:[%s198 + $0x60] sm:$0xff]
      %v301 = vld [vmem:[%s198 + $0x68] sm:$0xff]
      %v302 = vld [vmem:[%s198 + $0x70] sm:$0xff]
      %v303 = vld [vmem:[%s198 + $0x78] sm:$0xff]
      %v304 = vld [vmem:[%s198 + $0x80] sm:$0xff]
      %v305 = vld [vmem:[%s198 + $0x88] sm:$0xff]
      %v306 = vld [vmem:[%s198 + $0x90] sm:$0xff]
      %v307 = vld [vmem:[%s198 + $0x98] sm:$0xff]
      %v308 = vld [vmem:[%s198 + $0xa0] sm:$0xff]
      %v309 = vld [vmem:[%s198 + $0xa8] sm:$0xff]
      %v310 = vld [vmem:[%s198 + $0xb0] sm:$0xff]
      %v311 = vld [vmem:[%s198 + $0xb8] sm:$0xff]
      %v312 = vld [vmem:[%s198 + $0xc0] sm:$0xff]
      %v313 = vld [vmem:[%s198 + $0xc8] sm:$0xff]
      %v314 = vld [vmem:[%s198 + $0xd0] sm:$0xff]
      %v315 = vld [vmem:[%s198 + $0xd8] sm:$0xff]
      %v316 = vld [vmem:[%s198 + $0xe0] sm:$0xff]
      %v317 = vld [vmem:[%s198 + $0xe8] sm:$0xff]
      %v318 = vld [vmem:[%s198 + $0xf0] sm:$0xff]
      %v319 = vld [vmem:[%s198 + $0xf8] sm:$0xff]
      %v320 = vpack.c.bf16 %v289, %v288
      %v321 = vpack.c.bf16 %v291, %v290
      %v322 = vpack.c.bf16 %v293, %v292
      %v323 = vpack.c.bf16 %v295, %v294
      %v324 = vpack.c.bf16 %v297, %v296
      %v325 = vpack.c.bf16 %v299, %v298
      %v326 = vpack.c.bf16 %v301, %v300
      %v327 = vpack.c.bf16 %v303, %v302
      %v328 = vpack.c.bf16 %v305, %v304
      %v329 = vpack.c.bf16 %v307, %v306
      %v330 = vpack.c.bf16 %v309, %v308
      %v331 = vpack.c.bf16 %v311, %v310
      %v332 = vpack.c.bf16 %v313, %v312
      %v333 = vpack.c.bf16 %v315, %v314
      %v334 = vpack.c.bf16 %v317, %v316
      %v335 = vpack.c.bf16 %v319, %v318
      %v336 = vld [vmem:[%s207] sm:$0xff]
      %v337 = vld [vmem:[%s207 + $0x8] sm:$0xff]
      %v338 = vld [vmem:[%s207 + $0x10] sm:$0xff]
      %v339 = vld [vmem:[%s207 + $0x18] sm:$0xff]
      %v340 = vld [vmem:[%s207 + $0x20] sm:$0xff]
      %v341 = vld [vmem:[%s207 + $0x28] sm:$0xff]
      %v342 = vld [vmem:[%s207 + $0x30] sm:$0xff]
      %v343 = vld [vmem:[%s207 + $0x38] sm:$0xff]
      %v344 = vpack.c.bf16 %v337, %v336
      %v345 = vpack.c.bf16 %v339, %v338
      %v346 = vpack.c.bf16 %v341, %v340
      %v347 = vpack.c.bf16 %v343, %v342
      %vm348 = vcmask 523264
      %v350 = vsel %vm348, %v320, 0
      %v353 = vsel %vm348, %v321, 0
      %v356 = vsel %vm348, %v322, 0
      %v359 = vsel %vm348, %v323, 0
      %v362 = vsel %vm348, %v324, 0
      %v365 = vsel %vm348, %v325, 0
      %v368 = vsel %vm348, %v326, 0
      %v371 = vsel %vm348, %v327, 0
      %v374 = vsel %vm348, %v328, 0
      %v377 = vsel %vm348, %v329, 0
      %v380 = vsel %vm348, %v330, 0
      %v383 = vsel %vm348, %v331, 0
      %v386 = vsel %vm348, %v332, 0
      %v389 = vsel %vm348, %v333, 0
      %v392 = vsel %vm348, %v334, 0
      %v395 = vsel %vm348, %v335, 0
      %397 = vmatprep.subr.bf16.mxu0 0
      %398 = vmatpush1.bf16.msra.mxu0 0
      %399 = vmatprep.subr.bf16.mxu0 0
      %400 = vmatpush1.bf16.msra.mxu0 0
      %401 = vmatprep.subr.bf16.mxu0 0
      %402 = vmatpush1.bf16.msra.mxu0 0
      %403 = vmatprep.subr.bf16.mxu0 0
      %404 = vmatpush1.bf16.msra.mxu0 0
      %405 = vmatprep.subr.bf16.mxu0 0
      %406 = vmatpush1.bf16.msra.mxu0 %v347
      %407 = vmatprep.subr.bf16.mxu0 0
      %408 = vmatpush1.bf16.msra.mxu0 %v346
      %409 = vmatprep.subr.bf16.mxu0 0
      %410 = vmatpush1.bf16.msra.mxu0 %v345
      %411 = vmatprep.subr.bf16.mxu0 0
      %412 = vmatpush1.bf16.msra.mxu0 %v344
      %413 = vmatprep.subr.bf16.mxu0 0
      %414 = vmatpush2.bf16.msra.mxu0 0
      %415 = vmatprep.subr.bf16.mxu0 0
      %416 = vmatpush2.bf16.msra.mxu0 0
      %417 = vmatprep.subr.bf16.mxu0 0
      %418 = vmatpush2.bf16.msra.mxu0 0
      %419 = vmatprep.subr.bf16.mxu0 0
      %420 = vmatpush2.bf16.msra.mxu0 0
      %421 = vmatprep.subr.bf16.mxu0 0
      %422 = vmatpush2.bf16.msra.mxu0 0
      %423 = vmatprep.subr.bf16.mxu0 0
      %424 = vmatpush2.bf16.msra.mxu0 0
      %425 = vmatprep.subr.bf16.mxu0 0
      %426 = vmatpush2.bf16.msra.mxu0 0
      %427 = vmatprep.subr.bf16.mxu0 0
      %428 = vmatpush2.bf16.msra.mxu0 0
      %429 = vmatprep.mubr.bf16.mxu0 0
      %430 = vmatmul.mubr.bf16.gmra.mxu0 %v350
      %v431 = vpop.f32.mrf.mxu0
      %v432 = vadd.f32 0.0, %v431
      %v433 = vpop.f32.mrf.mxu0
      %v434 = vpop.f32.mrf.mxu0
      %v435 = vadd.f32 0.0, %v434
      %v436 = vpop.f32.mrf.mxu0
      %437 = vmatprep.mubr.bf16.mxu0 0
      %438 = vmatmul.mubr.bf16.gmra.mxu0 %v353
      %v439 = vpop.f32.mrf.mxu0
      %v440 = vadd.f32 0.0, %v439
      %v441 = vpop.f32.mrf.mxu0
      %v442 = vpop.f32.mrf.mxu0
      %v443 = vadd.f32 0.0, %v442
      %v444 = vpop.f32.mrf.mxu0
      %445 = vmatprep.mubr.bf16.mxu0 0
      %446 = vmatmul.mubr.bf16.gmra.mxu0 %v356
      %v447 = vpop.f32.mrf.mxu0
      %v448 = vadd.f32 0.0, %v447
      %v449 = vpop.f32.mrf.mxu0
      %v450 = vpop.f32.mrf.mxu0
      %v451 = vadd.f32 0.0, %v450
      %v452 = vpop.f32.mrf.mxu0
      %453 = vmatprep.mubr.bf16.mxu0 0
      %454 = vmatmul.mubr.bf16.gmra.mxu0 %v359
      %v455 = vpop.f32.mrf.mxu0
      %v456 = vadd.f32 0.0, %v455
      %v457 = vpop.f32.mrf.mxu0
      %v458 = vpop.f32.mrf.mxu0
      %v459 = vadd.f32 0.0, %v458
      %v460 = vpop.f32.mrf.mxu0
      %461 = vmatprep.mubr.bf16.mxu0 0
      %462 = vmatmul.mubr.bf16.gmra.mxu0 %v362
      %v463 = vpop.f32.mrf.mxu0
      %v464 = vadd.f32 0.0, %v463
      %v465 = vpop.f32.mrf.mxu0
      %v466 = vpop.f32.mrf.mxu0
      %v467 = vadd.f32 0.0, %v466
      %v468 = vpop.f32.mrf.mxu0
      %469 = vmatprep.mubr.bf16.mxu0 0
      %470 = vmatmul.mubr.bf16.gmra.mxu0 %v365
      %v471 = vpop.f32.mrf.mxu0
      %v472 = vadd.f32 0.0, %v471
      %v473 = vpop.f32.mrf.mxu0
      %v474 = vpop.f32.mrf.mxu0
      %v475 = vadd.f32 0.0, %v474
      %v476 = vpop.f32.mrf.mxu0
      %477 = vmatprep.mubr.bf16.mxu0 0
      %478 = vmatmul.mubr.bf16.gmra.mxu0 %v368
      %v479 = vpop.f32.mrf.mxu0
      %v480 = vadd.f32 0.0, %v479
      %v481 = vpop.f32.mrf.mxu0
      %v482 = vpop.f32.mrf.mxu0
      %v483 = vadd.f32 0.0, %v482
      %v484 = vpop.f32.mrf.mxu0
      %485 = vmatprep.mubr.bf16.mxu0 0
      %486 = vmatmul.mubr.bf16.gmra.mxu0 %v371
      %v487 = vpop.f32.mrf.mxu0
      %v488 = vadd.f32 0.0, %v487
      %v489 = vpop.f32.mrf.mxu0
      %v490 = vpop.f32.mrf.mxu0
      %v491 = vadd.f32 0.0, %v490
      %v492 = vpop.f32.mrf.mxu0
      %493 = vmatprep.mubr.bf16.mxu0 0
      %494 = vmatmul.mubr.bf16.gmra.mxu0 %v374
      %v495 = vpop.f32.mrf.mxu0
      %v496 = vadd.f32 0.0, %v495
      %v497 = vpop.f32.mrf.mxu0
      %v498 = vpop.f32.mrf.mxu0
      %v499 = vadd.f32 0.0, %v498
      %v500 = vpop.f32.mrf.mxu0
      %501 = vmatprep.mubr.bf16.mxu0 0
      %502 = vmatmul.mubr.bf16.gmra.mxu0 %v377
      %v503 = vpop.f32.mrf.mxu0
      %v504 = vadd.f32 0.0, %v503
      %v505 = vpop.f32.mrf.mxu0
      %v506 = vpop.f32.mrf.mxu0
      %v507 = vadd.f32 0.0, %v506
      %v508 = vpop.f32.mrf.mxu0
      %509 = vmatprep.mubr.bf16.mxu0 0
      %510 = vmatmul.mubr.bf16.gmra.mxu0 %v380
      %v511 = vpop.f32.mrf.mxu0
      %v512 = vadd.f32 0.0, %v511
      %v513 = vpop.f32.mrf.mxu0
      %v514 = vpop.f32.mrf.mxu0
      %v515 = vadd.f32 0.0, %v514
      %v516 = vpop.f32.mrf.mxu0
      %517 = vmatprep.mubr.bf16.mxu0 0
      %518 = vmatmul.mubr.bf16.gmra.mxu0 %v383
      %v519 = vpop.f32.mrf.mxu0
      %v520 = vadd.f32 0.0, %v519
      %v521 = vpop.f32.mrf.mxu0
      %v522 = vpop.f32.mrf.mxu0
      %v523 = vadd.f32 0.0, %v522
      %v524 = vpop.f32.mrf.mxu0
      %525 = vmatprep.mubr.bf16.mxu0 0
      %526 = vmatmul.mubr.bf16.gmra.mxu0 %v386
      %v527 = vpop.f32.mrf.mxu0
      %v528 = vadd.f32 0.0, %v527
      %v529 = vpop.f32.mrf.mxu0
      %v530 = vpop.f32.mrf.mxu0
      %v531 = vadd.f32 0.0, %v530
      %v532 = vpop.f32.mrf.mxu0
      %533 = vmatprep.mubr.bf16.mxu0 0
      %534 = vmatmul.mubr.bf16.gmra.mxu0 %v389
      %v535 = vpop.f32.mrf.mxu0
      %v536 = vadd.f32 0.0, %v535
      %v537 = vpop.f32.mrf.mxu0
      %v538 = vpop.f32.mrf.mxu0
      %v539 = vadd.f32 0.0, %v538
      %v540 = vpop.f32.mrf.mxu0
      %541 = vmatprep.mubr.bf16.mxu0 0
      %542 = vmatmul.mubr.bf16.gmra.mxu0 %v392
      %v543 = vpop.f32.mrf.mxu0
      %v544 = vadd.f32 0.0, %v543
      %v545 = vpop.f32.mrf.mxu0
      %v546 = vpop.f32.mrf.mxu0
      %v547 = vadd.f32 0.0, %v546
      %v548 = vpop.f32.mrf.mxu0
      %549 = vmatprep.mubr.bf16.mxu0 0
      %550 = vmatmul.mubr.bf16.gmra.mxu0 %v395
      %v551 = vpop.f32.mrf.mxu0
      %v552 = vadd.f32 0.0, %v551
      %v553 = vpop.f32.mrf.mxu0
      %v554 = vpop.f32.mrf.mxu0
      %v555 = vadd.f32 0.0, %v554
      %v556 = vpop.f32.mrf.mxu0
      %557 = vdwg.mxu0
      %v558 = vadd.f32 %v256, %v432
      %v559 = vadd.f32 %v257, %v435
      %v560 = vadd.f32 %v258, %v440
      %v561 = vadd.f32 %v259, %v443
      %v562 = vadd.f32 %v260, %v448
      %v563 = vadd.f32 %v261, %v451
      %v564 = vadd.f32 %v262, %v456
      %v565 = vadd.f32 %v263, %v459
      %v566 = vadd.f32 %v264, %v464
      %v567 = vadd.f32 %v265, %v467
      %v568 = vadd.f32 %v266, %v472
      %v569 = vadd.f32 %v267, %v475
      %v570 = vadd.f32 %v268, %v480
      %v571 = vadd.f32 %v269, %v483
      %v572 = vadd.f32 %v270, %v488
      %v573 = vadd.f32 %v271, %v491
      %v574 = vadd.f32 %v272, %v496
      %v575 = vadd.f32 %v273, %v499
      %v576 = vadd.f32 %v274, %v504
      %v577 = vadd.f32 %v275, %v507
      %v578 = vadd.f32 %v276, %v512
      %v579 = vadd.f32 %v277, %v515
      %v580 = vadd.f32 %v278, %v520
      %v581 = vadd.f32 %v279, %v523
      %v582 = vadd.f32 %v280, %v528
      %v583 = vadd.f32 %v281, %v531
      %v584 = vadd.f32 %v282, %v536
      %v585 = vadd.f32 %v283, %v539
      %v586 = vadd.f32 %v284, %v544
      %v587 = vadd.f32 %v285, %v547
      %v588 = vadd.f32 %v286, %v552
      %v589 = vadd.f32 %v287, %v555
      %vm590 = vcmask 31744
      %591 = vst.msk [vmem:[#allocation2] sm:$0xff] %vm590, %v558
      %592 = vst.msk [vmem:[#allocation2 + $0x8] sm:$0xff] %vm590, %v559
      %593 = vst.msk [vmem:[#allocation2 + $0x10] sm:$0xff] %vm590, %v560
      %594 = vst.msk [vmem:[#allocation2 + $0x18] sm:$0xff] %vm590, %v561
      %595 = vst.msk [vmem:[#allocation2 + $0x20] sm:$0xff] %vm590, %v562
      %596 = vst.msk [vmem:[#allocation2 + $0x28] sm:$0xff] %vm590, %v563
      %597 = vst.msk [vmem:[#allocation2 + $0x30] sm:$0xff] %vm590, %v564
      %598 = vst.msk [vmem:[#allocation2 + $0x38] sm:$0xff] %vm590, %v565
      %599 = vst.msk [vmem:[#allocation2 + $0x40] sm:$0xff] %vm590, %v566
      %600 = vst.msk [vmem:[#allocation2 + $0x48] sm:$0xff] %vm590, %v567
      %601 = vst.msk [vmem:[#allocation2 + $0x50] sm:$0xff] %vm590, %v568
      %602 = vst.msk [vmem:[#allocation2 + $0x58] sm:$0xff] %vm590, %v569
      %603 = vst.msk [vmem:[#allocation2 + $0x60] sm:$0xff] %vm590, %v570
      %604 = vst.msk [vmem:[#allocation2 + $0x68] sm:$0xff] %vm590, %v571
      %605 = vst.msk [vmem:[#allocation2 + $0x70] sm:$0xff] %vm590, %v572
      %606 = vst.msk [vmem:[#allocation2 + $0x78] sm:$0xff] %vm590, %v573
      %607 = vst.msk [vmem:[#allocation2 + $0x80] sm:$0xff] %vm590, %v574
      %608 = vst.msk [vmem:[#allocation2 + $0x88] sm:$0xff] %vm590, %v575
      %609 = vst.msk [vmem:[#allocation2 + $0x90] sm:$0xff] %vm590, %v576
      %610 = vst.msk [vmem:[#allocation2 + $0x98] sm:$0xff] %vm590, %v577
      %611 = vst.msk [vmem:[#allocation2 + $0xa0] sm:$0xff] %vm590, %v578
      %612 = vst.msk [vmem:[#allocation2 + $0xa8] sm:$0xff] %vm590, %v579
      %613 = vst.msk [vmem:[#allocation2 + $0xb0] sm:$0xff] %vm590, %v580
      %614 = vst.msk [vmem:[#allocation2 + $0xb8] sm:$0xff] %vm590, %v581
      %615 = vst.msk [vmem:[#allocation2 + $0xc0] sm:$0xff] %vm590, %v582
      %616 = vst.msk [vmem:[#allocation2 + $0xc8] sm:$0xff] %vm590, %v583
      %617 = vst.msk [vmem:[#allocation2 + $0xd0] sm:$0xff] %vm590, %v584
      %618 = vst.msk [vmem:[#allocation2 + $0xd8] sm:$0xff] %vm590, %v585
      %619 = vst.msk [vmem:[#allocation2 + $0xe0] sm:$0xff] %vm590, %v586
      %620 = vst.msk [vmem:[#allocation2 + $0xe8] sm:$0xff] %vm590, %v587
      %621 = vst.msk [vmem:[#allocation2 + $0xf0] sm:$0xff] %vm590, %v588
      %622 = vst.msk [vmem:[#allocation2 + $0xf8] sm:$0xff] %vm590, %v589
      // Predicated region
      $region33: #{ndmamba2_forward.21} parent=27 // pred_check
        %p623 = pneg %p219
      $region34: #{ndmamba2_forward.21} parent=27 // pred_check_branch
        %625 = sbr.rel (%p623) target = $region36
      $region35: #{ndmamba2_forward.21} parent=27 // pred_region
        %v626 = vld [vmem:[#allocation2] sm:$0xff]
        %v627 = vld [vmem:[#allocation2 + $0x8] sm:$0xff]
        %v628 = vld [vmem:[#allocation2 + $0x10] sm:$0xff]
        %v629 = vld [vmem:[#allocation2 + $0x18] sm:$0xff]
        %v630 = vld [vmem:[#allocation2 + $0x20] sm:$0xff]
        %v631 = vld [vmem:[#allocation2 + $0x28] sm:$0xff]
        %v632 = vld [vmem:[#allocation2 + $0x30] sm:$0xff]
        %v633 = vld [vmem:[#allocation2 + $0x38] sm:$0xff]
        %v634 = vld [vmem:[#allocation2 + $0x40] sm:$0xff]
        %v635 = vld [vmem:[#allocation2 + $0x48] sm:$0xff]
        %v636 = vld [vmem:[#allocation2 + $0x50] sm:$0xff]
        %v637 = vld [vmem:[#allocation2 + $0x58] sm:$0xff]
        %v638 = vld [vmem:[#allocation2 + $0x60] sm:$0xff]
        %v639 = vld [vmem:[#allocation2 + $0x68] sm:$0xff]
        %v640 = vld [vmem:[#allocation2 + $0x70] sm:$0xff]
        %v641 = vld [vmem:[#allocation2 + $0x78] sm:$0xff]
        %v642 = vld [vmem:[#allocation2 + $0x80] sm:$0xff]
        %v643 = vld [vmem:[#allocation2 + $0x88] sm:$0xff]
        %v644 = vld [vmem:[#allocation2 + $0x90] sm:$0xff]
        %v645 = vld [vmem:[#allocation2 + $0x98] sm:$0xff]
        %v646 = vld [vmem:[#allocation2 + $0xa0] sm:$0xff]
        %v647 = vld [vmem:[#allocation2 + $0xa8] sm:$0xff]
        %v648 = vld [vmem:[#allocation2 + $0xb0] sm:$0xff]
        %v649 = vld [vmem:[#allocation2 + $0xb8] sm:$0xff]
        %v650 = vld [vmem:[#allocation2 + $0xc0] sm:$0xff]
        %v651 = vld [vmem:[#allocation2 + $0xc8] sm:$0xff]
        %v652 = vld [vmem:[#allocation2 + $0xd0] sm:$0xff]
        %v653 = vld [vmem:[#allocation2 + $0xd8] sm:$0xff]
        %v654 = vld [vmem:[#allocation2 + $0xe0] sm:$0xff]
        %v655 = vld [vmem:[#allocation2 + $0xe8] sm:$0xff]
        %v656 = vld [vmem:[#allocation2 + $0xf0] sm:$0xff]
        %v657 = vld [vmem:[#allocation2 + $0xf8] sm:$0xff]
        %658 = vst.msk [vmem:[%s216] sm:$0xff] %vm590, %v626
        %659 = vst.msk [vmem:[%s216 + $0x8] sm:$0xff] %vm590, %v627
        %660 = vst.msk [vmem:[%s216 + $0x10] sm:$0xff] %vm590, %v628
        %661 = vst.msk [vmem:[%s216 + $0x18] sm:$0xff] %vm590, %v629
        %662 = vst.msk [vmem:[%s216 + $0x20] sm:$0xff] %vm590, %v630
        %663 = vst.msk [vmem:[%s216 + $0x28] sm:$0xff] %vm590, %v631
        %664 = vst.msk [vmem:[%s216 + $0x30] sm:$0xff] %vm590, %v632
        %665 = vst.msk [vmem:[%s216 + $0x38] sm:$0xff] %vm590, %v633
        %666 = vst.msk [vmem:[%s216 + $0x40] sm:$0xff] %vm590, %v634
        %667 = vst.msk [vmem:[%s216 + $0x48] sm:$0xff] %vm590, %v635
        %668 = vst.msk [vmem:[%s216 + $0x50] sm:$0xff] %vm590, %v636
        %669 = vst.msk [vmem:[%s216 + $0x58] sm:$0xff] %vm590, %v637
        %670 = vst.msk [vmem:[%s216 + $0x60] sm:$0xff] %vm590, %v638
        %671 = vst.msk [vmem:[%s216 + $0x68] sm:$0xff] %vm590, %v639
        %672 = vst.msk [vmem:[%s216 + $0x70] sm:$0xff] %vm590, %v640
        %673 = vst.msk [vmem:[%s216 + $0x78] sm:$0xff] %vm590, %v641
        %674 = vst.msk [vmem:[%s216 + $0x80] sm:$0xff] %vm590, %v642
        %675 = vst.msk [vmem:[%s216 + $0x88] sm:$0xff] %vm590, %v643
        %676 = vst.msk [vmem:[%s216 + $0x90] sm:$0xff] %vm590, %v644
        %677 = vst.msk [vmem:[%s216 + $0x98] sm:$0xff] %vm590, %v645
        %678 = vst.msk [vmem:[%s216 + $0xa0] sm:$0xff] %vm590, %v646
        %679 = vst.msk [vmem:[%s216 + $0xa8] sm:$0xff] %vm590, %v647
        %680 = vst.msk [vmem:[%s216 + $0xb0] sm:$0xff] %vm590, %v648
        %681 = vst.msk [vmem:[%s216 + $0xb8] sm:$0xff] %vm590, %v649
        %682 = vst.msk [vmem:[%s216 + $0xc0] sm:$0xff] %vm590, %v650
        %683 = vst.msk [vmem:[%s216 + $0xc8] sm:$0xff] %vm590, %v651
        %684 = vst.msk [vmem:[%s216 + $0xd0] sm:$0xff] %vm590, %v652
        %685 = vst.msk [vmem:[%s216 + $0xd8] sm:$0xff] %vm590, %v653
        %686 = vst.msk [vmem:[%s216 + $0xe0] sm:$0xff] %vm590, %v654
        %687 = vst.msk [vmem:[%s216 + $0xe8] sm:$0xff] %vm590, %v655
        %688 = vst.msk [vmem:[%s216 + $0xf0] sm:$0xff] %vm590, %v656
        %689 = vst.msk [vmem:[%s216 + $0xf8] sm:$0xff] %vm590, %v657
      $region36: #{ndmamba2_forward.21} parent=27 // pred_fallthru
        _
      %s690 = smul.u32 32, %s18
      %p691 = scmp.lt.s32.totalorder %s690, 63
      %s692 = scalar_select %p691, %s690, 63
      %p693 = scmp.lt.s32.totalorder %s19, 0
      %s694 = scalar_select %p693, %s19, 0
      %s695 = sadd.s32 %s694, %s692
      %s696 = smul.addr %s695, 8
      %s697 = scalar_lea.vmem %s2, %s696
      // Predicated region
      $region37: #{ndmamba2_forward.21} parent=27 // pred_check
        %p698 = pneg %p108
      $region38: #{ndmamba2_forward.21} parent=27 // pred_check_branch
        %700 = sbr.rel (%p698) target = $region40
      $region39: #{ndmamba2_forward.21} parent=27 // pred_region
        %s701 = smul.u32 32, %s18
      $region40: #{ndmamba2_forward.21} parent=27 // pred_fallthru
        _
    $region28: #{ndmamba2_forward.21} parent=5 // pred_fallthru
      _
    %p702 = scmp.le.s32.totalorder 2, %s8
    // Predicated region
    $region41: #{ndmamba2_forward.21} parent=5 // pred_check
      %p703 = pneg %p702
    $region42: #{ndmamba2_forward.21} parent=5 // pred_check_branch
      %705 = sbr.rel (%p703) target = $region44
    $region43: #{ndmamba2_forward.21} parent=5 // pred_region
      %s706 = ssub.s32 %s8, 2
      // Predicated region
      $region45: #{ndmamba2_forward.21} parent=43 // pred_check
        %p707 = pneg %p114
      $region46: #{ndmamba2_forward.21} parent=43 // pred_check_branch
        %709 = sbr.rel (%p707) target = $region48
      $region47: #{ndmamba2_forward.21} parent=43 // pred_region
        %s710 = smul.u32 32, %s21
        %p711 = scmp.lt.s32.totalorder %s710, 63
        %s712 = scalar_select %p711, %s710, 63
        %p713 = scmp.lt.s32.totalorder %s22, 0
        %s714 = scalar_select %p713, %s22, 0
        %s715 = sadd.s32 %s714, %s712
        %s716 = smul.addr %s715, 8
        %s717 = scalar_lea.vmem %s2, %s716
      $region48: #{ndmamba2_forward.21} parent=43 // pred_fallthru
        _
    $region44: #{ndmamba2_forward.21} parent=5 // pred_fallthru
      _
  $region6: #{ndmamba2_forward.21} parent=0 // loop_footer
    %s12 = sadd.s32 1, %s8
  $region7: #{ndmamba2_forward.21} parent=0 // loop_footer_branch
    %7 = sbr.rel target = $region3
  $region8: #{ndmamba2_forward.21} parent=0 // loop_exit
    _

</llo_original>
